<compile_context>
chip_gen: v5e
topology: v5e:2x2
jax: 0.10.0
libtpu: 0.0.40
codegen_flags: <defaults>
</compile_context>

<pallas_src>
import functools
import math

import jax
import jax.numpy as jnp
from jax import lax
from jax.experimental import pallas as pl
from jax.experimental.pallas import tpu as pltpu


def _round_up(x, m):
    return ((x + m - 1) // m) * m


def _derive_vmem_limit():
    mib = 1024 * 1024
    try:
        cap = int(getattr(pltpu.get_tpu_info(), "vmem_capacity_bytes", 64 * mib))
    except Exception:
        cap = 64 * mib
    # >=16 MiB headroom; cap at 96 MiB so v5e/v6e (128 MiB) still get big tiles
    # while v7x (64 MiB) lands at 48 MiB.
    return int(max(32 * mib, min(cap - 16 * mib, 96 * mib)))


_VMEM_LIMIT = _derive_vmem_limit()


# --------------------------------------------------------------------------
# Kernel 1: fused single-head cross attention + BertIntermediate + BertOutput
# One grid step = one side (name/desc) x one batch block of B_blk rows.
# Output is stored time-major (side, Tp, Bp, H) in bf16.
# --------------------------------------------------------------------------
def _attn_ffn_kernel(q_ref, kv_ref, wq_ref, bq_ref, wkv_ref, bkv_ref,
                     wi_ref, bi_ref, wo_ref, bo_ref, g_ref, beta_ref, o_ref,
                     *, t_real):
    b_blk, t_pad, hid = q_ref.shape[1], q_ref.shape[2], q_ref.shape[3]
    m = b_blk * t_pad

    q_in = q_ref[0].reshape(m, hid)          # (M, H) f32 -- also the residual
    kv_in = kv_ref[0].reshape(m, hid)

    # Projections: bf16 operands on the MXU, f32 accumulation; K/V fused (H,2H).
    q = jnp.dot(q_in.astype(jnp.bfloat16), wq_ref[0],
                preferred_element_type=jnp.float32) + bq_ref[0]
    kv = jnp.dot(kv_in.astype(jnp.bfloat16), wkv_ref[0],
                 preferred_element_type=jnp.float32) + bkv_ref[0]

    q3 = q.reshape(b_blk, t_pad, hid).astype(jnp.bfloat16)
    k3 = kv[:, :hid].reshape(b_blk, t_pad, hid).astype(jnp.bfloat16)
    v3 = kv[:, hid:].reshape(b_blk, t_pad, hid).astype(jnp.bfloat16)

    scores = jnp.einsum('bqd,bkd->bqk', q3, k3,
                        preferred_element_type=jnp.float32)
    scores = scores * (1.0 / math.sqrt(hid))
    if t_pad > t_real:
        # Mask alignment-padding key positions (trace-time condition).
        key_pos = lax.broadcasted_iota(jnp.int32, (1, 1, t_pad), 2)
        scores = scores + jnp.where(key_pos < t_real, 0.0,
                                    -1e30).astype(jnp.float32)
    # TODO(synk): no real-input attention mask (pad tokens from BERT) is applied.
    scores = scores - jnp.max(scores, axis=-1, keepdims=True)
    p = jnp.exp(scores)
    p = p * pl.reciprocal(jnp.sum(p, axis=-1, keepdims=True), approx=True)
    ctx = jnp.einsum('bqk,bkd->bqd', p.astype(jnp.bfloat16), v3,
                     preferred_element_type=jnp.float32).reshape(m, hid)

    # BertIntermediate + BertOutput: Linear -> GELU -> Linear -> +res -> LayerNorm.
    # TODO(synk): HF BERT uses the erf-based GELU; tanh approximation used here.
    h = jnp.dot(ctx.astype(jnp.bfloat16), wi_ref[0],
                preferred_element_type=jnp.float32) + bi_ref[0]
    h = jax.nn.gelu(h, approximate=True)
    y = jnp.dot(h.astype(jnp.bfloat16), wo_ref[0],
                preferred_element_type=jnp.float32) + bo_ref[0]
    y = y + q_in
    mu = jnp.mean(y, axis=-1, keepdims=True)
    var = jnp.mean((y - mu) ** 2, axis=-1, keepdims=True)
    yn = (y - mu) * lax.rsqrt(var + 1e-12) * g_ref[0] + beta_ref[0]

    # Store time-major bf16 so kernel 2 consumes it with zero HBM transpose.
    yn3 = yn.reshape(b_blk, t_pad, hid).astype(jnp.bfloat16)
    o_ref[0] = pltpu.einshape('mtd->tmd', yn3)


def _attention_ffn_call(feat, bp, *, t_real, b_blk, single_buffer_weights):
    _, b_pad, t_pad, hid = feat.shape
    hi = bp["wi"].shape[2]
    nb = b_pad // b_blk

    def wspec(*shape):
        idx = lambda s, b: (s, 0, 0)
        if single_buffer_weights:
            # Weights are constant within a side: one VMEM copy is enough.
            return pl.BlockSpec((1,) + shape, idx, pipeline_mode=pl.Buffered(1))
        return pl.BlockSpec((1,) + shape, idx)

    q_spec = pl.BlockSpec((1, b_blk, t_pad, hid), lambda s, b: (s, b, 0, 0))
    kv_spec = pl.BlockSpec((1, b_blk, t_pad, hid), lambda s, b: (1 - s, b, 0, 0))

    return pl.pallas_call(
        functools.partial(_attn_ffn_kernel, t_real=t_real),
        grid=(2, nb),
        in_specs=[q_spec, kv_spec,
                  wspec(hid, hid), wspec(1, hid),
                  wspec(hid, 2 * hid), wspec(1, 2 * hid),
                  wspec(hid, hi), wspec(1, hi),
                  wspec(hi, hid), wspec(1, hid),
                  wspec(1, hid), wspec(1, hid)],
        out_specs=pl.BlockSpec((1, t_pad, b_blk, hid),
                               lambda s, b: (s, 0, b, 0)),
        out_shape=jax.ShapeDtypeStruct((2, t_pad, b_pad, hid), jnp.bfloat16),
        compiler_params=pltpu.CompilerParams(
            dimension_semantics=("parallel", "parallel"),
            vmem_limit_bytes=_VMEM_LIMIT),
    )(feat, feat, bp["wq"], bp["bq"], bp["wkv"], bp["bkv"],
      bp["wi"], bp["bi"], bp["wo"], bp["bo"], bp["gamma"], bp["beta"])


def attention_ffn(feat, bp, *, t_real, b_blk):
    try:
        return _attention_ffn_call(feat, bp, t_real=t_real, b_blk=b_blk,
                                   single_buffer_weights=True)
    except Exception:
        # pl.Buffered(1) not supported on this jax/libtpu combo: fall back to
        # default double-buffered weight blocks (correctness identical).
        return _attention_ffn_call(feat, bp, t_real=t_real, b_blk=b_blk,
                                   single_buffer_weights=False)


# --------------------------------------------------------------------------
# Kernel 2: bidirectional single-layer LSTM for BOTH sides (grid=(2,), one
# side per grid step -> one per TensorCore on v7x), fused with the final FC
# matmul.  Input is time-major flattened bf16: x[s, t*Bp + b, :].
# Emits per-side partial logits  cat(h_fwd, h_bwd) @ Wfc  (unweighted).
# --------------------------------------------------------------------------
def _bilstm_head_kernel(x_ref, wih_ref, whh_f_ref, whh_b_ref, b_ref, wfc_ref,
                        o_ref, gates_ref, *, seq_len, batch, lstm_hidden):
    lh = lstm_hidden
    tb = gates_ref.shape[0]

    # Hoisted input projection for BOTH directions with the (b_ih + b_hh)
    # biases folded in; stored bf16 (halves scratch + store traffic).  Chunked
    # to bound the f32 matmul temporaries at production T*B.
    # TODO(synk): for very large T*B, pipeline these chunks against the
    # recurrence instead of materializing the full gates scratch.
    chunk = min(512, tb)
    for r0 in range(0, tb, chunk):
        rows = min(chunk, tb - r0)
        gates_ref[r0:r0 + rows, :] = (
            jnp.dot(x_ref[0, r0:r0 + rows, :], wih_ref[0],
                    preferred_element_type=jnp.float32)
            + b_ref[0]).astype(jnp.bfloat16)

    def gate_math(gx, h, c, whh):
        g = gx + jnp.dot(h.astype(jnp.bfloat16), whh,
                         preferred_element_type=jnp.float32)
        i = jax.nn.sigmoid(g[:, 0 * lh:1 * lh])
        f = jax.nn.sigmoid(g[:, 1 * lh:2 * lh])
        gg = jnp.tanh(g[:, 2 * lh:3 * lh])
        o = jax.nn.sigmoid(g[:, 3 * lh:4 * lh])
        c_new = f * c + i * gg
        return o * jnp.tanh(c_new), c_new

    def step(t, carry):
        h_f, c_f, h_b, c_b = carry
        row_f = pl.multiple_of(t * batch, 8)                     # fwd @ t
        row_b = pl.multiple_of((seq_len - 1 - t) * batch, 8)     # bwd @ T-1-t
        gx_f = gates_ref[pl.ds(row_f, batch), 0:4 * lh].astype(jnp.float32)
        gx_b = gates_ref[pl.ds(row_b, batch), 4 * lh:8 * lh].astype(jnp.float32)
        h_f, c_f = gate_math(gx_f, h_f, c_f, whh_f_ref[0])
        h_b, c_b = gate_math(gx_b, h_b, c_b, whh_b_ref[0])
        return h_f, c_f, h_b, c_b

    z = jnp.zeros((batch, lh), jnp.float32)
    h_f, _, h_b, _ = lax.fori_loop(0, seq_len, step, (z, z, z, z), unroll=4)

    # Fused head tail: cat(h_f, h_b) @ Wfc == h_f @ Wfc[:LH] + h_b @ Wfc[LH:]
    # (no lane concat).  Scalar weighted-sum + bias are applied outside.
    o_ref[0] = (jnp.dot(h_f.astype(jnp.bfloat16), wfc_ref[0:lh, :],
                        preferred_element_type=jnp.float32)
                + jnp.dot(h_b.astype(jnp.bfloat16), wfc_ref[lh:2 * lh, :],
                          preferred_element_type=jnp.float32))


def bilstm_head(x, lstm_p, wfc, *, seq_len, batch):
    _, tb, hid = x.shape
    lh = lstm_p["whh_f"].shape[1]
    cp = wfc.shape[1]

    def side(*shape):
        return pl.BlockSpec((1,) + shape, lambda s: (s,) + (0,) * len(shape))

    return pl.pallas_call(
        functools.partial(_bilstm_head_kernel, seq_len=seq_len, batch=batch,
                          lstm_hidden=lh),
        grid=(2,),
        in_specs=[side(tb, hid),
                  side(hid, 8 * lh),
                  side(lh, 4 * lh), side(lh, 4 * lh),
                  side(1, 8 * lh),
                  pl.BlockSpec((2 * lh, cp), lambda s: (0, 0))],
        out_specs=side(batch, cp),
        out_shape=jax.ShapeDtypeStruct((2, batch, cp), jnp.float32),
        scratch_shapes=[pltpu.VMEM((tb, 8 * lh), jnp.bfloat16)],
        compiler_params=pltpu.CompilerParams(
            dimension_semantics=("parallel",),
            vmem_limit_bytes=_VMEM_LIMIT),
    )(x, lstm_p["wih"], lstm_p["whh_f"], lstm_p["whh_b"], lstm_p["b"], wfc)


# --------------------------------------------------------------------------
# Full forward (glue in plain JAX, hot paths in the kernels above)
# --------------------------------------------------------------------------
def forward(name_seq, name_pooled, desc_seq, desc_pooled, params):
    B, S, H = name_seq.shape
    T = S + 1

    # torch.cat((pooled.view(-1,1,H), sequence), dim=1), stacked [name, desc].
    name_feature = jnp.concatenate([name_pooled[:, None, :], name_seq], axis=1)
    desc_feature = jnp.concatenate([desc_pooled[:, None, :], desc_seq], axis=1)
    feat = jnp.stack([name_feature, desc_feature], axis=0)       # (2, B, T, H)

    # Pad batch / time to sublane-friendly sizes; padded keys are masked in the
    # attention kernel, padded rows are dropped again at the end.
    if B <= 8:
        b_pad, b_blk = 8, 8
    else:
        b_blk = 16
        b_pad = _round_up(B, 16)
    t_pad = _round_up(T, 8)
    feat = jnp.pad(feat, ((0, 0), (0, b_pad - B), (0, t_pad - T), (0, 0)))

    # Fused cross-attention + BertIntermediate/BertOutput for both sides
    # (q = own feature, k/v = other side's feature). Output: time-major bf16.
    attn_out = attention_ffn(feat, params["block"], t_real=T, b_blk=b_blk)

    # biLSTM (both sides in one call) fused with the final FC matmul; the
    # reshape below is a free contiguous view (no HBM transpose).
    x = attn_out.reshape(2, t_pad * b_pad, H)
    partial = bilstm_head(x, params["lstm"], params["head"]["wfc"],
                          seq_len=T, batch=b_pad)                # (2, Bp, CP)

    # weighted_sum + bias (linear, so it commutes with the in-kernel FC).
    head = params["head"]
    ws = head["ws"]
    logits = ws[0] * partial[0] + ws[1] * partial[1] + head["bfc"]
    return logits[:B, :head["n_classes"]]


# --------------------------------------------------------------------------
# Deterministic parameter init (weights bf16, biases / norm params f32).
# Leading axis of size 2 stacks the name (0) and description (1) sub-modules.
# --------------------------------------------------------------------------
def init_params(key, H, LH, C):
    keys = iter(jax.random.split(key, 32))
    CP = _round_up(C, 128)

    def nrm(shape, scale=0.05, dtype=jnp.float32):
        return (scale * jax.random.normal(next(keys), shape)).astype(dtype)

    block = dict(
        wq=nrm((2, H, H), dtype=jnp.bfloat16), bq=nrm((2, 1, H)),
        wkv=nrm((2, H, 2 * H), dtype=jnp.bfloat16), bkv=nrm((2, 1, 2 * H)),
        wi=nrm((2, H, 4 * H), dtype=jnp.bfloat16), bi=nrm((2, 1, 4 * H)),
        wo=nrm((2, 4 * H, H), dtype=jnp.bfloat16), bo=nrm((2, 1, H)),
        gamma=jnp.ones((2, 1, H), jnp.float32),
        beta=jnp.zeros((2, 1, H), jnp.float32))

    lstm = dict(
        wih=nrm((2, H, 8 * LH), dtype=jnp.bfloat16),    # [Wih_fwd | Wih_bwd]
        whh_f=nrm((2, LH, 4 * LH), dtype=jnp.bfloat16),
        whh_b=nrm((2, LH, 4 * LH), dtype=jnp.bfloat16),
        b=nrm((2, 1, 8 * LH)))                          # combined b_ih + b_hh

    wfc = jnp.zeros((2 * LH, CP), jnp.float32)
    wfc = wfc.at[:, :C].set(0.05 * jax.random.normal(next(keys), (2 * LH, C)))
    bfc = jnp.zeros((1, CP), jnp.float32)
    bfc = bfc.at[:, :C].set(0.05 * jax.random.normal(next(keys), (1, C)))
    head = dict(ws=jnp.array([0.6, 0.4], jnp.float32),
                wfc=wfc.astype(jnp.bfloat16), bfc=bfc, n_classes=C)

    return dict(block=block, lstm=lstm, head=head)


if __name__ == "__main__":
    # Small shapes consistent with the module (original: H=768, LSTM=512, classes=50).
    B, S, H, LH, C = 2, 8, 128, 64, 50

    key = jax.random.PRNGKey(0)
    kp, k1, k2, k3, k4 = jax.random.split(key, 5)
    params = init_params(kp, H, LH, C)

    # Synthetic BERT outputs (sequence_output, pooled_output) for names / descs.
    name_seq = jax.random.normal(k1, (B, S, H), jnp.float32)
    name_pooled = jax.random.normal(k2, (B, H), jnp.float32)
    desc_seq = jax.random.normal(k3, (B, S, H), jnp.float32)
    desc_pooled = jax.random.normal(k4, (B, H), jnp.float32)

    out = forward(name_seq, name_pooled, desc_seq, desc_pooled, params)
    out = jax.block_until_ready(out)
    assert out.shape == (B, C) and out.dtype == jnp.float32
    print("KERNEL_OK")
</pallas_src>

<mosaic_0001>
module attributes {stable_mosaic.version = 11 : i64} {
  func.func @_attn_ffn_kernel(%arg0: i32, %arg1: i32, %arg2: memref<1x8x16x128xf32, #tpu.memory_space<vmem>>, %arg3: memref<1x8x16x128xf32, #tpu.memory_space<vmem>>, %arg4: memref<1x128x128xbf16, #tpu.memory_space<vmem>>, %arg5: memref<1x1x128xf32, #tpu.memory_space<vmem>>, %arg6: memref<1x128x256xbf16, #tpu.memory_space<vmem>>, %arg7: memref<1x1x256xf32, #tpu.memory_space<vmem>>, %arg8: memref<1x128x512xbf16, #tpu.memory_space<vmem>>, %arg9: memref<1x1x512xf32, #tpu.memory_space<vmem>>, %arg10: memref<1x512x128xbf16, #tpu.memory_space<vmem>>, %arg11: memref<1x1x128xf32, #tpu.memory_space<vmem>>, %arg12: memref<1x1x128xf32, #tpu.memory_space<vmem>>, %arg13: memref<1x1x128xf32, #tpu.memory_space<vmem>>, %arg14: memref<1x16x8x128xbf16, #tpu.memory_space<vmem>>) attributes {dimension_semantics = [#tpu.dimension_semantics<parallel>, #tpu.dimension_semantics<parallel>], iteration_bounds = array<i64: 2, 1>, scalar_prefetch = 0 : i64, scratch_operands = 0 : i64, tpu.core_type = #tpu.core_type<tc>, window_params = [{transform_indices = @transform_0, window_bounds = array<i64: 1, 8, 16, 128>}, {transform_indices = @transform_1, window_bounds = array<i64: 1, 8, 16, 128>}, {pipeline_mode = #tpu.pipeline_mode<synchronous>, transform_indices = @transform_2, window_bounds = array<i64: 1, 128, 128>}, {pipeline_mode = #tpu.pipeline_mode<synchronous>, transform_indices = @transform_3, window_bounds = array<i64: 1, 1, 128>}, {pipeline_mode = #tpu.pipeline_mode<synchronous>, transform_indices = @transform_4, window_bounds = array<i64: 1, 128, 256>}, {pipeline_mode = #tpu.pipeline_mode<synchronous>, transform_indices = @transform_5, window_bounds = array<i64: 1, 1, 256>}, {pipeline_mode = #tpu.pipeline_mode<synchronous>, transform_indices = @transform_6, window_bounds = array<i64: 1, 128, 512>}, {pipeline_mode = #tpu.pipeline_mode<synchronous>, transform_indices = @transform_7, window_bounds = array<i64: 1, 1, 512>}, {pipeline_mode = #tpu.pipeline_mode<synchronous>, transform_indices = @transform_8, window_bounds = array<i64: 1, 512, 128>}, {pipeline_mode = #tpu.pipeline_mode<synchronous>, transform_indices = @transform_9, window_bounds = array<i64: 1, 1, 128>}, {pipeline_mode = #tpu.pipeline_mode<synchronous>, transform_indices = @transform_10, window_bounds = array<i64: 1, 1, 128>}, {pipeline_mode = #tpu.pipeline_mode<synchronous>, transform_indices = @transform_11, window_bounds = array<i64: 1, 1, 128>}, {transform_indices = @transform_12, window_bounds = array<i64: 1, 16, 8, 128>}]} {
    %c0 = arith.constant 0 : index
    %c0_0 = arith.constant 0 : index
    %c0_1 = arith.constant 0 : index
    %c0_2 = arith.constant 0 : index
    %0 = vector.load %arg2[%c0, %c0_0, %c0_1, %c0_2] : memref<1x8x16x128xf32, #tpu.memory_space<vmem>>, vector<1x8x16x128xf32>
    %1 = vector.shape_cast %0 : vector<1x8x16x128xf32> to vector<8x16x128xf32>
    %2 = vector.shape_cast %1 : vector<8x16x128xf32> to vector<128x128xf32>
    %c0_3 = arith.constant 0 : index
    %c0_4 = arith.constant 0 : index
    %c0_5 = arith.constant 0 : index
    %c0_6 = arith.constant 0 : index
    %3 = vector.load %arg3[%c0_3, %c0_4, %c0_5, %c0_6] : memref<1x8x16x128xf32, #tpu.memory_space<vmem>>, vector<1x8x16x128xf32>
    %4 = vector.shape_cast %3 : vector<1x8x16x128xf32> to vector<8x16x128xf32>
    %5 = vector.shape_cast %4 : vector<8x16x128xf32> to vector<128x128xf32>
    %6 = arith.truncf %2 : vector<128x128xf32> to vector<128x128xbf16>
    %c0_7 = arith.constant 0 : index
    %c0_8 = arith.constant 0 : index
    %c0_9 = arith.constant 0 : index
    %7 = vector.load %arg4[%c0_7, %c0_8, %c0_9] : memref<1x128x128xbf16, #tpu.memory_space<vmem>>, vector<1x128x128xbf16>
    %8 = vector.shape_cast %7 : vector<1x128x128xbf16> to vector<128x128xbf16>
    %cst = arith.constant dense<0.000000e+00> : vector<128x128xf32>
    %9 = tpu.matmul %6, %8, %cst {dimension_numbers = #tpu.dot_dimension_numbers<[1], [0], [0], [1], [0, 0, 1, 1], [], []>} : vector<128x128xbf16>, vector<128x128xbf16>, vector<128x128xf32> -> vector<128x128xf32>
    %c0_10 = arith.constant 0 : index
    %c0_11 = arith.constant 0 : index
    %c0_12 = arith.constant 0 : index
    %10 = vector.load %arg5[%c0_10, %c0_11, %c0_12] : memref<1x1x128xf32, #tpu.memory_space<vmem>>, vector<1x1x128xf32>
    %11 = vector.shape_cast %10 : vector<1x1x128xf32> to vector<1x128xf32>
    %12 = vector.broadcast %11 : vector<1x128xf32> to vector<128x128xf32>
    %13 = arith.addf %9, %12 : vector<128x128xf32>
    %14 = arith.truncf %5 : vector<128x128xf32> to vector<128x128xbf16>
    %c0_13 = arith.constant 0 : index
    %c0_14 = arith.constant 0 : index
    %c0_15 = arith.constant 0 : index
    %15 = vector.load %arg6[%c0_13, %c0_14, %c0_15] : memref<1x128x256xbf16, #tpu.memory_space<vmem>>, vector<1x128x256xbf16>
    %16 = vector.shape_cast %15 : vector<1x128x256xbf16> to vector<128x256xbf16>
    %cst_16 = arith.constant dense<0.000000e+00> : vector<128x256xf32>
    %17 = tpu.matmul %14, %16, %cst_16 {dimension_numbers = #tpu.dot_dimension_numbers<[1], [0], [0], [1], [0, 0, 1, 1], [], []>} : vector<128x128xbf16>, vector<128x256xbf16>, vector<128x256xf32> -> vector<128x256xf32>
    %c0_17 = arith.constant 0 : index
    %c0_18 = arith.constant 0 : index
    %c0_19 = arith.constant 0 : index
    %18 = vector.load %arg7[%c0_17, %c0_18, %c0_19] : memref<1x1x256xf32, #tpu.memory_space<vmem>>, vector<1x1x256xf32>
    %19 = vector.shape_cast %18 : vector<1x1x256xf32> to vector<1x256xf32>
    %20 = vector.broadcast %19 : vector<1x256xf32> to vector<128x256xf32>
    %21 = arith.addf %17, %20 : vector<128x256xf32>
    %22 = vector.shape_cast %13 : vector<128x128xf32> to vector<8x16x128xf32>
    %23 = arith.truncf %22 : vector<8x16x128xf32> to vector<8x16x128xbf16>
    %24 = vector.extract_strided_slice %21 {offsets = [0, 0], sizes = [128, 128], strides = [1, 1]} : vector<128x256xf32> to vector<128x128xf32>
    %25 = vector.shape_cast %24 : vector<128x128xf32> to vector<8x16x128xf32>
    %26 = arith.truncf %25 : vector<8x16x128xf32> to vector<8x16x128xbf16>
    %27 = vector.extract_strided_slice %21 {offsets = [0, 128], sizes = [128, 128], strides = [1, 1]} : vector<128x256xf32> to vector<128x128xf32>
    %28 = vector.shape_cast %27 : vector<128x128xf32> to vector<8x16x128xf32>
    %29 = arith.truncf %28 : vector<8x16x128xf32> to vector<8x16x128xbf16>
    "tpu.trace_start"() <{level = 10 : i32, message = "bqd,bkd->bqk"}> : () -> ()
    %cst_20 = arith.constant dense<0.000000e+00> : vector<8x16x16xf32>
    %30 = tpu.matmul %23, %26, %cst_20 {dimension_numbers = #tpu.dot_dimension_numbers<[2], [2], [1], [1], [0, 0, 0, 1, 1, 1], [0], [0]>} : vector<8x16x128xbf16>, vector<8x16x128xbf16>, vector<8x16x16xf32> -> vector<8x16x16xf32>
    "tpu.trace_stop"() : () -> ()
    %cst_21 = arith.constant 0.0883883461 : f32
    %31 = vector.broadcast %cst_21 : f32 to vector<8x16x16xf32>
    %32 = arith.mulf %30, %31 : vector<8x16x16xf32>
    %33 = tpu.iota {dimensions = array<i32: 2>} : vector<1x1x16xi32>
    %c9_i32 = arith.constant 9 : i32
    %34 = vector.broadcast %c9_i32 : i32 to vector<1x1x16xi32>
    %35 = arith.cmpi slt, %33, %34 : vector<1x1x16xi32>
    %cst_22 = arith.constant 0.000000e+00 : f32
    %cst_23 = arith.constant -1.000000e+30 : f32
    %36 = vector.broadcast %cst_22 : f32 to vector<1x1x16xf32>
    %37 = vector.broadcast %cst_23 : f32 to vector<1x1x16xf32>
    %38 = arith.select %35, %36, %37 : vector<1x1x16xi1>, vector<1x1x16xf32>
    %39 = vector.broadcast %38 : vector<1x1x16xf32> to vector<8x16x16xf32>
    %40 = arith.addf %32, %39 : vector<8x16x16xf32>
    %cst_24 = arith.constant dense<0xFF800000> : vector<8x16xf32>
    %41 = vector.multi_reduction <maximumf>, %40, %cst_24 [2] : vector<8x16x16xf32> to vector<8x16xf32>
    %42 = vector.shape_cast %41 : vector<8x16xf32> to vector<8x16x1xf32>
    %43 = vector.broadcast %42 : vector<8x16x1xf32> to vector<8x16x16xf32>
    %44 = arith.subf %40, %43 : vector<8x16x16xf32>
    %45 = math.exp %44 : vector<8x16x16xf32>
    %cst_25 = arith.constant dense<0.000000e+00> : vector<8x16xf32>
    %46 = vector.multi_reduction <add>, %45, %cst_25 [2] : vector<8x16x16xf32> to vector<8x16xf32>
    %47 = vector.shape_cast %46 : vector<8x16xf32> to vector<8x16x1xf32>
    %48 = tpu.reciprocal %47 {approx = true} : vector<8x16x1xf32> -> vector<8x16x1xf32>
    %49 = vector.broadcast %48 : vector<8x16x1xf32> to vector<8x16x16xf32>
    %50 = arith.mulf %45, %49 : vector<8x16x16xf32>
    %51 = arith.truncf %50 : vector<8x16x16xf32> to vector<8x16x16xbf16>
    "tpu.trace_start"() <{level = 10 : i32, message = "bqk,bkd->bqd"}> : () -> ()
    %cst_26 = arith.constant dense<0.000000e+00> : vector<8x16x128xf32>
    %52 = tpu.matmul %51, %29, %cst_26 {dimension_numbers = #tpu.dot_dimension_numbers<[2], [1], [1], [2], [0, 0, 0, 1, 1, 2], [0], [0]>} : vector<8x16x16xbf16>, vector<8x16x128xbf16>, vector<8x16x128xf32> -> vector<8x16x128xf32>
    "tpu.trace_stop"() : () -> ()
    %53 = vector.shape_cast %52 : vector<8x16x128xf32> to vector<128x128xf32>
    %54 = arith.truncf %53 : vector<128x128xf32> to vector<128x128xbf16>
    %c0_27 = arith.constant 0 : index
    %c0_28 = arith.constant 0 : index
    %c0_29 = arith.constant 0 : index
    %55 = vector.load %arg8[%c0_27, %c0_28, %c0_29] : memref<1x128x512xbf16, #tpu.memory_space<vmem>>, vector<1x128x512xbf16>
    %56 = vector.shape_cast %55 : vector<1x128x512xbf16> to vector<128x512xbf16>
    %cst_30 = arith.constant dense<0.000000e+00> : vector<128x512xf32>
    %57 = tpu.matmul %54, %56, %cst_30 {dimension_numbers = #tpu.dot_dimension_numbers<[1], [0], [0], [1], [0, 0, 1, 1], [], []>} : vector<128x128xbf16>, vector<128x512xbf16>, vector<128x512xf32> -> vector<128x512xf32>
    %c0_31 = arith.constant 0 : index
    %c0_32 = arith.constant 0 : index
    %c0_33 = arith.constant 0 : index
    %58 = vector.load %arg9[%c0_31, %c0_32, %c0_33] : memref<1x1x512xf32, #tpu.memory_space<vmem>>, vector<1x1x512xf32>
    %59 = vector.shape_cast %58 : vector<1x1x512xf32> to vector<1x512xf32>
    %60 = vector.broadcast %59 : vector<1x512xf32> to vector<128x512xf32>
    %61 = arith.addf %57, %60 : vector<128x512xf32>
    %62 = arith.mulf %61, %61 : vector<128x512xf32>
    %63 = arith.mulf %61, %62 : vector<128x512xf32>
    %cst_34 = arith.constant 4.471500e-02 : f32
    %64 = vector.broadcast %cst_34 : f32 to vector<128x512xf32>
    %65 = arith.mulf %64, %63 : vector<128x512xf32>
    %66 = arith.addf %61, %65 : vector<128x512xf32>
    %cst_35 = arith.constant 0.797884583 : f32
    %67 = vector.broadcast %cst_35 : f32 to vector<128x512xf32>
    %68 = arith.mulf %67, %66 : vector<128x512xf32>
    %69 = math.tanh %68 : vector<128x512xf32>
    %cst_36 = arith.constant 1.000000e+00 : f32
    %70 = vector.broadcast %cst_36 : f32 to vector<128x512xf32>
    %71 = arith.addf %70, %69 : vector<128x512xf32>
    %cst_37 = arith.constant 5.000000e-01 : f32
    %72 = vector.broadcast %cst_37 : f32 to vector<128x512xf32>
    %73 = arith.mulf %72, %71 : vector<128x512xf32>
    %74 = arith.mulf %61, %73 : vector<128x512xf32>
    %75 = arith.truncf %74 : vector<128x512xf32> to vector<128x512xbf16>
    %c0_38 = arith.constant 0 : index
    %c0_39 = arith.constant 0 : index
    %c0_40 = arith.constant 0 : index
    %76 = vector.load %arg10[%c0_38, %c0_39, %c0_40] : memref<1x512x128xbf16, #tpu.memory_space<vmem>>, vector<1x512x128xbf16>
    %77 = vector.shape_cast %76 : vector<1x512x128xbf16> to vector<512x128xbf16>
    %cst_41 = arith.constant dense<0.000000e+00> : vector<128x128xf32>
    %78 = tpu.matmul %75, %77, %cst_41 {dimension_numbers = #tpu.dot_dimension_numbers<[1], [0], [0], [1], [0, 0, 1, 1], [], []>} : vector<128x512xbf16>, vector<512x128xbf16>, vector<128x128xf32> -> vector<128x128xf32>
    %c0_42 = arith.constant 0 : index
    %c0_43 = arith.constant 0 : index
    %c0_44 = arith.constant 0 : index
    %79 = vector.load %arg11[%c0_42, %c0_43, %c0_44] : memref<1x1x128xf32, #tpu.memory_space<vmem>>, vector<1x1x128xf32>
    %80 = vector.shape_cast %79 : vector<1x1x128xf32> to vector<1x128xf32>
    %81 = vector.broadcast %80 : vector<1x128xf32> to vector<128x128xf32>
    %82 = arith.addf %78, %81 : vector<128x128xf32>
    %83 = arith.addf %82, %2 : vector<128x128xf32>
    %cst_45 = arith.constant dense<0.000000e+00> : vector<128xf32>
    %84 = vector.multi_reduction <add>, %83, %cst_45 [1] : vector<128x128xf32> to vector<128xf32>
    %85 = vector.shape_cast %84 : vector<128xf32> to vector<128x1xf32>
    %cst_46 = arith.constant 1.280000e+02 : f32
    %86 = vector.broadcast %cst_46 : f32 to vector<128x1xf32>
    %87 = arith.divf %85, %86 : vector<128x1xf32>
    %88 = vector.broadcast %87 : vector<128x1xf32> to vector<128x128xf32>
    %89 = arith.subf %83, %88 : vector<128x128xf32>
    %90 = arith.mulf %89, %89 : vector<128x128xf32>
    %cst_47 = arith.constant dense<0.000000e+00> : vector<128xf32>
    %91 = vector.multi_reduction <add>, %90, %cst_47 [1] : vector<128x128xf32> to vector<128xf32>
    %92 = vector.shape_cast %91 : vector<128xf32> to vector<128x1xf32>
    %cst_48 = arith.constant 1.280000e+02 : f32
    %93 = vector.broadcast %cst_48 : f32 to vector<128x1xf32>
    %94 = arith.divf %92, %93 : vector<128x1xf32>
    %95 = vector.broadcast %87 : vector<128x1xf32> to vector<128x128xf32>
    %96 = arith.subf %83, %95 : vector<128x128xf32>
    %cst_49 = arith.constant 9.99999996E-13 : f32
    %97 = vector.broadcast %cst_49 : f32 to vector<128x1xf32>
    %98 = arith.addf %94, %97 : vector<128x1xf32>
    %99 = math.rsqrt %98 : vector<128x1xf32>
    %100 = vector.broadcast %99 : vector<128x1xf32> to vector<128x128xf32>
    %101 = arith.mulf %96, %100 : vector<128x128xf32>
    %c0_50 = arith.constant 0 : index
    %c0_51 = arith.constant 0 : index
    %c0_52 = arith.constant 0 : index
    %102 = vector.load %arg12[%c0_50, %c0_51, %c0_52] : memref<1x1x128xf32, #tpu.memory_space<vmem>>, vector<1x1x128xf32>
    %103 = vector.shape_cast %102 : vector<1x1x128xf32> to vector<1x128xf32>
    %104 = vector.broadcast %103 : vector<1x128xf32> to vector<128x128xf32>
    %105 = arith.mulf %101, %104 : vector<128x128xf32>
    %c0_53 = arith.constant 0 : index
    %c0_54 = arith.constant 0 : index
    %c0_55 = arith.constant 0 : index
    %106 = vector.load %arg13[%c0_53, %c0_54, %c0_55] : memref<1x1x128xf32, #tpu.memory_space<vmem>>, vector<1x1x128xf32>
    %107 = vector.shape_cast %106 : vector<1x1x128xf32> to vector<1x128xf32>
    %108 = vector.broadcast %107 : vector<1x128xf32> to vector<128x128xf32>
    %109 = arith.addf %105, %108 : vector<128x128xf32>
    %110 = vector.shape_cast %109 : vector<128x128xf32> to vector<8x16x128xf32>
    %111 = arith.truncf %110 : vector<8x16x128xf32> to vector<8x16x128xbf16>
    %112 = tpu.transpose %111, [1, 0, 2] : vector<8x16x128xbf16> -> vector<16x8x128xbf16>
    %c0_56 = arith.constant 0 : index
    %c0_57 = arith.constant 0 : index
    %c0_58 = arith.constant 0 : index
    %c0_59 = arith.constant 0 : index
    %113 = vector.load %arg14[%c0_56, %c0_57, %c0_58, %c0_59] : memref<1x16x8x128xbf16, #tpu.memory_space<vmem>>, vector<1x16x8x128xbf16>
    %114 = vector.shape_cast %113 : vector<1x16x8x128xbf16> to vector<16x8x128xbf16>
    %115 = vector.shape_cast %112 : vector<16x8x128xbf16> to vector<1x16x8x128xbf16>
    tpu.vector_store %arg14[%c0_56, %c0_57, %c0_58, %c0_59], %115 {strides = array<i32>} : memref<1x16x8x128xbf16, #tpu.memory_space<vmem>>, vector<1x16x8x128xbf16>,
    return
  }
  func.func @transform_0(%arg0: i32, %arg1: i32) -> (i32, i32, i32, i32) {
    %c0_i32 = arith.constant 0 : i32
    %c0_i32_0 = arith.constant 0 : i32
    %c0_i32_1 = arith.constant 0 : i32
    return %arg0, %arg1, %c0_i32, %c0_i32_0 : i32, i32, i32, i32
  }
  func.func @transform_1(%arg0: i32, %arg1: i32) -> (i32, i32, i32, i32) {
    %c1_i32 = arith.constant 1 : i32
    %0 = arith.subi %c1_i32, %arg0 : i32
    %c0_i32 = arith.constant 0 : i32
    %c0_i32_0 = arith.constant 0 : i32
    %c0_i32_1 = arith.constant 0 : i32
    return %0, %arg1, %c0_i32, %c0_i32_0 : i32, i32, i32, i32
  }
  func.func @transform_2(%arg0: i32, %arg1: i32) -> (i32, i32, i32) {
    %c0_i32 = arith.constant 0 : i32
    %c0_i32_0 = arith.constant 0 : i32
    %c0_i32_1 = arith.constant 0 : i32
    return %arg0, %c0_i32, %c0_i32_0 : i32, i32, i32
  }
  func.func @transform_3(%arg0: i32, %arg1: i32) -> (i32, i32, i32) {
    %c0_i32 = arith.constant 0 : i32
    %c0_i32_0 = arith.constant 0 : i32
    %c0_i32_1 = arith.constant 0 : i32
    return %arg0, %c0_i32, %c0_i32_0 : i32, i32, i32
  }
  func.func @transform_4(%arg0: i32, %arg1: i32) -> (i32, i32, i32) {
    %c0_i32 = arith.constant 0 : i32
    %c0_i32_0 = arith.constant 0 : i32
    %c0_i32_1 = arith.constant 0 : i32
    return %arg0, %c0_i32, %c0_i32_0 : i32, i32, i32
  }
  func.func @transform_5(%arg0: i32, %arg1: i32) -> (i32, i32, i32) {
    %c0_i32 = arith.constant 0 : i32
    %c0_i32_0 = arith.constant 0 : i32
    %c0_i32_1 = arith.constant 0 : i32
    return %arg0, %c0_i32, %c0_i32_0 : i32, i32, i32
  }
  func.func @transform_6(%arg0: i32, %arg1: i32) -> (i32, i32, i32) {
    %c0_i32 = arith.constant 0 : i32
    %c0_i32_0 = arith.constant 0 : i32
    %c0_i32_1 = arith.constant 0 : i32
    return %arg0, %c0_i32, %c0_i32_0 : i32, i32, i32
  }
  func.func @transform_7(%arg0: i32, %arg1: i32) -> (i32, i32, i32) {
    %c0_i32 = arith.constant 0 : i32
    %c0_i32_0 = arith.constant 0 : i32
    %c0_i32_1 = arith.constant 0 : i32
    return %arg0, %c0_i32, %c0_i32_0 : i32, i32, i32
  }
  func.func @transform_8(%arg0: i32, %arg1: i32) -> (i32, i32, i32) {
    %c0_i32 = arith.constant 0 : i32
    %c0_i32_0 = arith.constant 0 : i32
    %c0_i32_1 = arith.constant 0 : i32
    return %arg0, %c0_i32, %c0_i32_0 : i32, i32, i32
  }
  func.func @transform_9(%arg0: i32, %arg1: i32) -> (i32, i32, i32) {
    %c0_i32 = arith.constant 0 : i32
    %c0_i32_0 = arith.constant 0 : i32
    %c0_i32_1 = arith.constant 0 : i32
    return %arg0, %c0_i32, %c0_i32_0 : i32, i32, i32
  }
  func.func @transform_10(%arg0: i32, %arg1: i32) -> (i32, i32, i32) {
    %c0_i32 = arith.constant 0 : i32
    %c0_i32_0 = arith.constant 0 : i32
    %c0_i32_1 = arith.constant 0 : i32
    return %arg0, %c0_i32, %c0_i32_0 : i32, i32, i32
  }
  func.func @transform_11(%arg0: i32, %arg1: i32) -> (i32, i32, i32) {
    %c0_i32 = arith.constant 0 : i32
    %c0_i32_0 = arith.constant 0 : i32
    %c0_i32_1 = arith.constant 0 : i32
    return %arg0, %c0_i32, %c0_i32_0 : i32, i32, i32
  }
  func.func @transform_12(%arg0: i32, %arg1: i32) -> (i32, i32, i32, i32) {
    %c0_i32 = arith.constant 0 : i32
    %c0_i32_0 = arith.constant 0 : i32
    %c0_i32_1 = arith.constant 0 : i32
    return %arg0, %c0_i32, %arg1, %c0_i32_0 : i32, i32, i32, i32
  }
}

module attributes {stable_mosaic.version = 11 : i64} {
  func.func @_attn_ffn_kernel(%arg0: i32, %arg1: i32, %arg2: memref<1x8x16x128xf32, #tpu.memory_space<vmem>>, %arg3: memref<1x8x16x128xf32, #tpu.memory_space<vmem>>, %arg4: memref<1x128x128xbf16, #tpu.memory_space<vmem>>, %arg5: memref<1x1x128xf32, #tpu.memory_space<vmem>>, %arg6: memref<1x128x256xbf16, #tpu.memory_space<vmem>>, %arg7: memref<1x1x256xf32, #tpu.memory_space<vmem>>, %arg8: memref<1x128x512xbf16, #tpu.memory_space<vmem>>, %arg9: memref<1x1x512xf32, #tpu.memory_space<vmem>>, %arg10: memref<1x512x128xbf16, #tpu.memory_space<vmem>>, %arg11: memref<1x1x128xf32, #tpu.memory_space<vmem>>, %arg12: memref<1x1x128xf32, #tpu.memory_space<vmem>>, %arg13: memref<1x1x128xf32, #tpu.memory_space<vmem>>, %arg14: memref<1x16x8x128xbf16, #tpu.memory_space<vmem>>) attributes {dimension_semantics = [#tpu.dimension_semantics<parallel>, #tpu.dimension_semantics<parallel>], iteration_bounds = array<i64: 2, 1>, scalar_prefetch = 0 : i64, scratch_operands = 0 : i64, tpu.core_type = #tpu.core_type<tc>, window_params = [{transform_indices = @transform_0, window_bounds = array<i64: 1, 8, 16, 128>}, {transform_indices = @transform_1, window_bounds = array<i64: 1, 8, 16, 128>}, {transform_indices = @transform_2, window_bounds = array<i64: 1, 128, 128>}, {transform_indices = @transform_3, window_bounds = array<i64: 1, 1, 128>}, {transform_indices = @transform_4, window_bounds = array<i64: 1, 128, 256>}, {transform_indices = @transform_5, window_bounds = array<i64: 1, 1, 256>}, {transform_indices = @transform_6, window_bounds = array<i64: 1, 128, 512>}, {transform_indices = @transform_7, window_bounds = array<i64: 1, 1, 512>}, {transform_indices = @transform_8, window_bounds = array<i64: 1, 512, 128>}, {transform_indices = @transform_9, window_bounds = array<i64: 1, 1, 128>}, {transform_indices = @transform_10, window_bounds = array<i64: 1, 1, 128>}, {transform_indices = @transform_11, window_bounds = array<i64: 1, 1, 128>}, {transform_indices = @transform_12, window_bounds = array<i64: 1, 16, 8, 128>}]} {
    %c0 = arith.constant 0 : index
    %c0_0 = arith.constant 0 : index
    %c0_1 = arith.constant 0 : index
    %c0_2 = arith.constant 0 : index
    %0 = vector.load %arg2[%c0, %c0_0, %c0_1, %c0_2] : memref<1x8x16x128xf32, #tpu.memory_space<vmem>>, vector<1x8x16x128xf32>
    %1 = vector.shape_cast %0 : vector<1x8x16x128xf32> to vector<8x16x128xf32>
    %2 = vector.shape_cast %1 : vector<8x16x128xf32> to vector<128x128xf32>
    %c0_3 = arith.constant 0 : index
    %c0_4 = arith.constant 0 : index
    %c0_5 = arith.constant 0 : index
    %c0_6 = arith.constant 0 : index
    %3 = vector.load %arg3[%c0_3, %c0_4, %c0_5, %c0_6] : memref<1x8x16x128xf32, #tpu.memory_space<vmem>>, vector<1x8x16x128xf32>
    %4 = vector.shape_cast %3 : vector<1x8x16x128xf32> to vector<8x16x128xf32>
    %5 = vector.shape_cast %4 : vector<8x16x128xf32> to vector<128x128xf32>
    %6 = arith.truncf %2 : vector<128x128xf32> to vector<128x128xbf16>
    %c0_7 = arith.constant 0 : index
    %c0_8 = arith.constant 0 : index
    %c0_9 = arith.constant 0 : index
    %7 = vector.load %arg4[%c0_7, %c0_8, %c0_9] : memref<1x128x128xbf16, #tpu.memory_space<vmem>>, vector<1x128x128xbf16>
    %8 = vector.shape_cast %7 : vector<1x128x128xbf16> to vector<128x128xbf16>
    %cst = arith.constant dense<0.000000e+00> : vector<128x128xf32>
    %9 = tpu.matmul %6, %8, %cst {dimension_numbers = #tpu.dot_dimension_numbers<[1], [0], [0], [1], [0, 0, 1, 1], [], []>} : vector<128x128xbf16>, vector<128x128xbf16>, vector<128x128xf32> -> vector<128x128xf32>
    %c0_10 = arith.constant 0 : index
    %c0_11 = arith.constant 0 : index
    %c0_12 = arith.constant 0 : index
    %10 = vector.load %arg5[%c0_10, %c0_11, %c0_12] : memref<1x1x128xf32, #tpu.memory_space<vmem>>, vector<1x1x128xf32>
    %11 = vector.shape_cast %10 : vector<1x1x128xf32> to vector<1x128xf32>
    %12 = vector.broadcast %11 : vector<1x128xf32> to vector<128x128xf32>
    %13 = arith.addf %9, %12 : vector<128x128xf32>
    %14 = arith.truncf %5 : vector<128x128xf32> to vector<128x128xbf16>
    %c0_13 = arith.constant 0 : index
    %c0_14 = arith.constant 0 : index
    %c0_15 = arith.constant 0 : index
    %15 = vector.load %arg6[%c0_13, %c0_14, %c0_15] : memref<1x128x256xbf16, #tpu.memory_space<vmem>>, vector<1x128x256xbf16>
    %16 = vector.shape_cast %15 : vector<1x128x256xbf16> to vector<128x256xbf16>
    %cst_16 = arith.constant dense<0.000000e+00> : vector<128x256xf32>
    %17 = tpu.matmul %14, %16, %cst_16 {dimension_numbers = #tpu.dot_dimension_numbers<[1], [0], [0], [1], [0, 0, 1, 1], [], []>} : vector<128x128xbf16>, vector<128x256xbf16>, vector<128x256xf32> -> vector<128x256xf32>
    %c0_17 = arith.constant 0 : index
    %c0_18 = arith.constant 0 : index
    %c0_19 = arith.constant 0 : index
    %18 = vector.load %arg7[%c0_17, %c0_18, %c0_19] : memref<1x1x256xf32, #tpu.memory_space<vmem>>, vector<1x1x256xf32>
    %19 = vector.shape_cast %18 : vector<1x1x256xf32> to vector<1x256xf32>
    %20 = vector.broadcast %19 : vector<1x256xf32> to vector<128x256xf32>
    %21 = arith.addf %17, %20 : vector<128x256xf32>
    %22 = vector.shape_cast %13 : vector<128x128xf32> to vector<8x16x128xf32>
    %23 = arith.truncf %22 : vector<8x16x128xf32> to vector<8x16x128xbf16>
    %24 = vector.extract_strided_slice %21 {offsets = [0, 0], sizes = [128, 128], strides = [1, 1]} : vector<128x256xf32> to vector<128x128xf32>
    %25 = vector.shape_cast %24 : vector<128x128xf32> to vector<8x16x128xf32>
    %26 = arith.truncf %25 : vector<8x16x128xf32> to vector<8x16x128xbf16>
    %27 = vector.extract_strided_slice %21 {offsets = [0, 128], sizes = [128, 128], strides = [1, 1]} : vector<128x256xf32> to vector<128x128xf32>
    %28 = vector.shape_cast %27 : vector<128x128xf32> to vector<8x16x128xf32>
    %29 = arith.truncf %28 : vector<8x16x128xf32> to vector<8x16x128xbf16>
    "tpu.trace_start"() <{level = 10 : i32, message = "bqd,bkd->bqk"}> : () -> ()
    %cst_20 = arith.constant dense<0.000000e+00> : vector<8x16x16xf32>
    %30 = tpu.matmul %23, %26, %cst_20 {dimension_numbers = #tpu.dot_dimension_numbers<[2], [2], [1], [1], [0, 0, 0, 1, 1, 1], [0], [0]>} : vector<8x16x128xbf16>, vector<8x16x128xbf16>, vector<8x16x16xf32> -> vector<8x16x16xf32>
    "tpu.trace_stop"() : () -> ()
    %cst_21 = arith.constant 0.0883883461 : f32
    %31 = vector.broadcast %cst_21 : f32 to vector<8x16x16xf32>
    %32 = arith.mulf %30, %31 : vector<8x16x16xf32>
    %33 = tpu.iota {dimensions = array<i32: 2>} : vector<1x1x16xi32>
    %c9_i32 = arith.constant 9 : i32
    %34 = vector.broadcast %c9_i32 : i32 to vector<1x1x16xi32>
    %35 = arith.cmpi slt, %33, %34 : vector<1x1x16xi32>
    %cst_22 = arith.constant 0.000000e+00 : f32
    %cst_23 = arith.constant -1.000000e+30 : f32
    %36 = vector.broadcast %cst_22 : f32 to vector<1x1x16xf32>
    %37 = vector.broadcast %cst_23 : f32 to vector<1x1x16xf32>
    %38 = arith.select %35, %36, %37 : vector<1x1x16xi1>, vector<1x1x16xf32>
    %39 = vector.broadcast %38 : vector<1x1x16xf32> to vector<8x16x16xf32>
    %40 = arith.addf %32, %39 : vector<8x16x16xf32>
    %cst_24 = arith.constant dense<0xFF800000> : vector<8x16xf32>
    %41 = vector.multi_reduction <maximumf>, %40, %cst_24 [2] : vector<8x16x16xf32> to vector<8x16xf32>
    %42 = vector.shape_cast %41 : vector<8x16xf32> to vector<8x16x1xf32>
    %43 = vector.broadcast %42 : vector<8x16x1xf32> to vector<8x16x16xf32>
    %44 = arith.subf %40, %43 : vector<8x16x16xf32>
    %45 = math.exp %44 : vector<8x16x16xf32>
    %cst_25 = arith.constant dense<0.000000e+00> : vector<8x16xf32>
    %46 = vector.multi_reduction <add>, %45, %cst_25 [2] : vector<8x16x16xf32> to vector<8x16xf32>
    %47 = vector.shape_cast %46 : vector<8x16xf32> to vector<8x16x1xf32>
    %48 = tpu.reciprocal %47 {approx = true} : vector<8x16x1xf32> -> vector<8x16x1xf32>
    %49 = vector.broadcast %48 : vector<8x16x1xf32> to vector<8x16x16xf32>
    %50 = arith.mulf %45, %49 : vector<8x16x16xf32>
    %51 = arith.truncf %50 : vector<8x16x16xf32> to vector<8x16x16xbf16>
    "tpu.trace_start"() <{level = 10 : i32, message = "bqk,bkd->bqd"}> : () -> ()
    %cst_26 = arith.constant dense<0.000000e+00> : vector<8x16x128xf32>
    %52 = tpu.matmul %51, %29, %cst_26 {dimension_numbers = #tpu.dot_dimension_numbers<[2], [1], [1], [2], [0, 0, 0, 1, 1, 2], [0], [0]>} : vector<8x16x16xbf16>, vector<8x16x128xbf16>, vector<8x16x128xf32> -> vector<8x16x128xf32>
    "tpu.trace_stop"() : () -> ()
    %53 = vector.shape_cast %52 : vector<8x16x128xf32> to vector<128x128xf32>
    %54 = arith.truncf %53 : vector<128x128xf32> to vector<128x128xbf16>
    %c0_27 = arith.constant 0 : index
    %c0_28 = arith.constant 0 : index
    %c0_29 = arith.constant 0 : index
    %55 = vector.load %arg8[%c0_27, %c0_28, %c0_29] : memref<1x128x512xbf16, #tpu.memory_space<vmem>>, vector<1x128x512xbf16>
    %56 = vector.shape_cast %55 : vector<1x128x512xbf16> to vector<128x512xbf16>
    %cst_30 = arith.constant dense<0.000000e+00> : vector<128x512xf32>
    %57 = tpu.matmul %54, %56, %cst_30 {dimension_numbers = #tpu.dot_dimension_numbers<[1], [0], [0], [1], [0, 0, 1, 1], [], []>} : vector<128x128xbf16>, vector<128x512xbf16>, vector<128x512xf32> -> vector<128x512xf32>
    %c0_31 = arith.constant 0 : index
    %c0_32 = arith.constant 0 : index
    %c0_33 = arith.constant 0 : index
    %58 = vector.load %arg9[%c0_31, %c0_32, %c0_33] : memref<1x1x512xf32, #tpu.memory_space<vmem>>, vector<1x1x512xf32>
    %59 = vector.shape_cast %58 : vector<1x1x512xf32> to vector<1x512xf32>
    %60 = vector.broadcast %59 : vector<1x512xf32> to vector<128x512xf32>
    %61 = arith.addf %57, %60 : vector<128x512xf32>
    %62 = arith.mulf %61, %61 : vector<128x512xf32>
    %63 = arith.mulf %61, %62 : vector<128x512xf32>
    %cst_34 = arith.constant 4.471500e-02 : f32
    %64 = vector.broadcast %cst_34 : f32 to vector<128x512xf32>
    %65 = arith.mulf %64, %63 : vector<128x512xf32>
    %66 = arith.addf %61, %65 : vector<128x512xf32>
    %cst_35 = arith.constant 0.797884583 : f32
    %67 = vector.broadcast %cst_35 : f32 to vector<128x512xf32>
    %68 = arith.mulf %67, %66 : vector<128x512xf32>
    %69 = math.tanh %68 : vector<128x512xf32>
    %cst_36 = arith.constant 1.000000e+00 : f32
    %70 = vector.broadcast %cst_36 : f32 to vector<128x512xf32>
    %71 = arith.addf %70, %69 : vector<128x512xf32>
    %cst_37 = arith.constant 5.000000e-01 : f32
    %72 = vector.broadcast %cst_37 : f32 to vector<128x512xf32>
    %73 = arith.mulf %72, %71 : vector<128x512xf32>
    %74 = arith.mulf %61, %73 : vector<128x512xf32>
    %75 = arith.truncf %74 : vector<128x512xf32> to vector<128x512xbf16>
    %c0_38 = arith.constant 0 : index
    %c0_39 = arith.constant 0 : index
    %c0_40 = arith.constant 0 : index
    %76 = vector.load %arg10[%c0_38, %c0_39, %c0_40] : memref<1x512x128xbf16, #tpu.memory_space<vmem>>, vector<1x512x128xbf16>
    %77 = vector.shape_cast %76 : vector<1x512x128xbf16> to vector<512x128xbf16>
    %cst_41 = arith.constant dense<0.000000e+00> : vector<128x128xf32>
    %78 = tpu.matmul %75, %77, %cst_41 {dimension_numbers = #tpu.dot_dimension_numbers<[1], [0], [0], [1], [0, 0, 1, 1], [], []>} : vector<128x512xbf16>, vector<512x128xbf16>, vector<128x128xf32> -> vector<128x128xf32>
    %c0_42 = arith.constant 0 : index
    %c0_43 = arith.constant 0 : index
    %c0_44 = arith.constant 0 : index
    %79 = vector.load %arg11[%c0_42, %c0_43, %c0_44] : memref<1x1x128xf32, #tpu.memory_space<vmem>>, vector<1x1x128xf32>
    %80 = vector.shape_cast %79 : vector<1x1x128xf32> to vector<1x128xf32>
    %81 = vector.broadcast %80 : vector<1x128xf32> to vector<128x128xf32>
    %82 = arith.addf %78, %81 : vector<128x128xf32>
    %83 = arith.addf %82, %2 : vector<128x128xf32>
    %cst_45 = arith.constant dense<0.000000e+00> : vector<128xf32>
    %84 = vector.multi_reduction <add>, %83, %cst_45 [1] : vector<128x128xf32> to vector<128xf32>
    %85 = vector.shape_cast %84 : vector<128xf32> to vector<128x1xf32>
    %cst_46 = arith.constant 1.280000e+02 : f32
    %86 = vector.broadcast %cst_46 : f32 to vector<128x1xf32>
    %87 = arith.divf %85, %86 : vector<128x1xf32>
    %88 = vector.broadcast %87 : vector<128x1xf32> to vector<128x128xf32>
    %89 = arith.subf %83, %88 : vector<128x128xf32>
    %90 = arith.mulf %89, %89 : vector<128x128xf32>
    %cst_47 = arith.constant dense<0.000000e+00> : vector<128xf32>
    %91 = vector.multi_reduction <add>, %90, %cst_47 [1] : vector<128x128xf32> to vector<128xf32>
    %92 = vector.shape_cast %91 : vector<128xf32> to vector<128x1xf32>
    %cst_48 = arith.constant 1.280000e+02 : f32
    %93 = vector.broadcast %cst_48 : f32 to vector<128x1xf32>
    %94 = arith.divf %92, %93 : vector<128x1xf32>
    %95 = vector.broadcast %87 : vector<128x1xf32> to vector<128x128xf32>
    %96 = arith.subf %83, %95 : vector<128x128xf32>
    %cst_49 = arith.constant 9.99999996E-13 : f32
    %97 = vector.broadcast %cst_49 : f32 to vector<128x1xf32>
    %98 = arith.addf %94, %97 : vector<128x1xf32>
    %99 = math.rsqrt %98 : vector<128x1xf32>
    %100 = vector.broadcast %99 : vector<128x1xf32> to vector<128x128xf32>
    %101 = arith.mulf %96, %100 : vector<128x128xf32>
    %c0_50 = arith.constant 0 : index
    %c0_51 = arith.constant 0 : index
    %c0_52 = arith.constant 0 : index
    %102 = vector.load %arg12[%c0_50, %c0_51, %c0_52] : memref<1x1x128xf32, #tpu.memory_space<vmem>>, vector<1x1x128xf32>
    %103 = vector.shape_cast %102 : vector<1x1x128xf32> to vector<1x128xf32>
    %104 = vector.broadcast %103 : vector<1x128xf32> to vector<128x128xf32>
    %105 = arith.mulf %101, %104 : vector<128x128xf32>
    %c0_53 = arith.constant 0 : index
    %c0_54 = arith.constant 0 : index
    %c0_55 = arith.constant 0 : index
    %106 = vector.load %arg13[%c0_53, %c0_54, %c0_55] : memref<1x1x128xf32, #tpu.memory_space<vmem>>, vector<1x1x128xf32>
    %107 = vector.shape_cast %106 : vector<1x1x128xf32> to vector<1x128xf32>
    %108 = vector.broadcast %107 : vector<1x128xf32> to vector<128x128xf32>
    %109 = arith.addf %105, %108 : vector<128x128xf32>
    %110 = vector.shape_cast %109 : vector<128x128xf32> to vector<8x16x128xf32>
    %111 = arith.truncf %110 : vector<8x16x128xf32> to vector<8x16x128xbf16>
    %112 = tpu.transpose %111, [1, 0, 2] : vector<8x16x128xbf16> -> vector<16x8x128xbf16>
    %c0_56 = arith.constant 0 : index
    %c0_57 = arith.constant 0 : index
    %c0_58 = arith.constant 0 : index
    %c0_59 = arith.constant 0 : index
    %113 = vector.load %arg14[%c0_56, %c0_57, %c0_58, %c0_59] : memref<1x16x8x128xbf16, #tpu.memory_space<vmem>>, vector<1x16x8x128xbf16>
    %114 = vector.shape_cast %113 : vector<1x16x8x128xbf16> to vector<16x8x128xbf16>
    %115 = vector.shape_cast %112 : vector<16x8x128xbf16> to vector<1x16x8x128xbf16>
    tpu.vector_store %arg14[%c0_56, %c0_57, %c0_58, %c0_59], %115 {strides = array<i32>} : memref<1x16x8x128xbf16, #tpu.memory_space<vmem>>, vector<1x16x8x128xbf16>,
    return
  }
  func.func @transform_0(%arg0: i32, %arg1: i32) -> (i32, i32, i32, i32) {
    %c0_i32 = arith.constant 0 : i32
    %c0_i32_0 = arith.constant 0 : i32
    %c0_i32_1 = arith.constant 0 : i32
    return %arg0, %arg1, %c0_i32, %c0_i32_0 : i32, i32, i32, i32
  }
  func.func @transform_1(%arg0: i32, %arg1: i32) -> (i32, i32, i32, i32) {
    %c1_i32 = arith.constant 1 : i32
    %0 = arith.subi %c1_i32, %arg0 : i32
    %c0_i32 = arith.constant 0 : i32
    %c0_i32_0 = arith.constant 0 : i32
    %c0_i32_1 = arith.constant 0 : i32
    return %0, %arg1, %c0_i32, %c0_i32_0 : i32, i32, i32, i32
  }
  func.func @transform_2(%arg0: i32, %arg1: i32) -> (i32, i32, i32) {
    %c0_i32 = arith.constant 0 : i32
    %c0_i32_0 = arith.constant 0 : i32
    %c0_i32_1 = arith.constant 0 : i32
    return %arg0, %c0_i32, %c0_i32_0 : i32, i32, i32
  }
  func.func @transform_3(%arg0: i32, %arg1: i32) -> (i32, i32, i32) {
    %c0_i32 = arith.constant 0 : i32
    %c0_i32_0 = arith.constant 0 : i32
    %c0_i32_1 = arith.constant 0 : i32
    return %arg0, %c0_i32, %c0_i32_0 : i32, i32, i32
  }
  func.func @transform_4(%arg0: i32, %arg1: i32) -> (i32, i32, i32) {
    %c0_i32 = arith.constant 0 : i32
    %c0_i32_0 = arith.constant 0 : i32
    %c0_i32_1 = arith.constant 0 : i32
    return %arg0, %c0_i32, %c0_i32_0 : i32, i32, i32
  }
  func.func @transform_5(%arg0: i32, %arg1: i32) -> (i32, i32, i32) {
    %c0_i32 = arith.constant 0 : i32
    %c0_i32_0 = arith.constant 0 : i32
    %c0_i32_1 = arith.constant 0 : i32
    return %arg0, %c0_i32, %c0_i32_0 : i32, i32, i32
  }
  func.func @transform_6(%arg0: i32, %arg1: i32) -> (i32, i32, i32) {
    %c0_i32 = arith.constant 0 : i32
    %c0_i32_0 = arith.constant 0 : i32
    %c0_i32_1 = arith.constant 0 : i32
    return %arg0, %c0_i32, %c0_i32_0 : i32, i32, i32
  }
  func.func @transform_7(%arg0: i32, %arg1: i32) -> (i32, i32, i32) {
    %c0_i32 = arith.constant 0 : i32
    %c0_i32_0 = arith.constant 0 : i32
    %c0_i32_1 = arith.constant 0 : i32
    return %arg0, %c0_i32, %c0_i32_0 : i32, i32, i32
  }
  func.func @transform_8(%arg0: i32, %arg1: i32) -> (i32, i32, i32) {
    %c0_i32 = arith.constant 0 : i32
    %c0_i32_0 = arith.constant 0 : i32
    %c0_i32_1 = arith.constant 0 : i32
    return %arg0, %c0_i32, %c0_i32_0 : i32, i32, i32
  }
  func.func @transform_9(%arg0: i32, %arg1: i32) -> (i32, i32, i32) {
    %c0_i32 = arith.constant 0 : i32
    %c0_i32_0 = arith.constant 0 : i32
    %c0_i32_1 = arith.constant 0 : i32
    return %arg0, %c0_i32, %c0_i32_0 : i32, i32, i32
  }
  func.func @transform_10(%arg0: i32, %arg1: i32) -> (i32, i32, i32) {
    %c0_i32 = arith.constant 0 : i32
    %c0_i32_0 = arith.constant 0 : i32
    %c0_i32_1 = arith.constant 0 : i32
    return %arg0, %c0_i32, %c0_i32_0 : i32, i32, i32
  }
  func.func @transform_11(%arg0: i32, %arg1: i32) -> (i32, i32, i32) {
    %c0_i32 = arith.constant 0 : i32
    %c0_i32_0 = arith.constant 0 : i32
    %c0_i32_1 = arith.constant 0 : i32
    return %arg0, %c0_i32, %c0_i32_0 : i32, i32, i32
  }
  func.func @transform_12(%arg0: i32, %arg1: i32) -> (i32, i32, i32, i32) {
    %c0_i32 = arith.constant 0 : i32
    %c0_i32_0 = arith.constant 0 : i32
    %c0_i32_1 = arith.constant 0 : i32
    return %arg0, %c0_i32, %arg1, %c0_i32_0 : i32, i32, i32, i32
  }
}

</mosaic_0001>

<llo_original>
// kernel: tpu_custom_call.1
$region0: #{tpu_custom_call.1}
  #allocation0 [shape = 'u32[]', space=smem, size = 0x4, offset = 0x4, fixed_abs, tag = 'smem constant byte address 0x4 - core index']
  #allocation1 [shape = 'u32[72,128]{1,0:T(1,128)}', space=vmem, size = 0x9000, scoped, tag = 'internal scratch']
  %s0 = inlined_call_operand.hbm [shape: f32[2,8,16,128], index: 0, kind: input, shape index: {}]
  %s1 = inlined_call_operand.hbm [shape: f32[2,8,16,128], index: 1, kind: input, shape index: {}]
  %s2 = inlined_call_operand.hbm [shape: bf16[2,128,128], index: 2, kind: input, shape index: {}]
  %s3 = inlined_call_operand.hbm [shape: f32[2,1,128], index: 3, kind: input, shape index: {}]
  %s4 = inlined_call_operand.hbm [shape: bf16[2,128,256], index: 4, kind: input, shape index: {}]
  %s5 = inlined_call_operand.vmem [shape: f32[2,1,256], index: 5, kind: input, shape index: {}]
  %s6 = inlined_call_operand.hbm [shape: bf16[2,128,512], index: 6, kind: input, shape index: {}]
  %s7 = inlined_call_operand.hbm [shape: f32[2,1,512], index: 7, kind: input, shape index: {}]
  %s8 = inlined_call_operand.hbm [shape: bf16[2,512,128], index: 8, kind: input, shape index: {}]
  %s9 = inlined_call_operand.vmem [shape: f32[2,1,128], index: 9, kind: input, shape index: {}]
  %s10 = inlined_call_operand.vmem [shape: f32[2,1,128], index: 10, kind: input, shape index: {}]
  %s11 = inlined_call_operand.vmem [shape: f32[2,1,128], index: 11, kind: input, shape index: {}]
  %s12 = inlined_call_operand.hbm [shape: bf16[2,16,8,128], index: 12, kind: output, shape index: {}]
  %s13 = sld [smem:[#allocation0]]
  $region113: #{tpu_custom_call.1} parent=0
    _
  %s15 = ssub.s32 1, %s13
  %s16 = scalar_select 0, %s15, %s13
  $region1: #{tpu_custom_call.1} parent=0
    #allocation2 [shape = 'u8[131072]{0}', space=vmem, size = 0x20000, scoped, tag = 'input window, operand 0']
    #allocation3 [shape = 's32[2]{0}', space=sflag, size = 0x8, scoped, tag = 'scoped memory for tpu_custom_call.1']
    #allocation4 [shape = 's32[2]{0}', space=sflag, size = 0x8, scoped, tag = 'scoped memory for tpu_custom_call.1']
    #allocation5 [shape = 'u8[131072]{0}', space=vmem, size = 0x20000, scoped, tag = 'input window, operand 1']
    #allocation6 [shape = 's32[2]{0}', space=sflag, size = 0x8, scoped, tag = 'scoped memory for tpu_custom_call.1']
    #allocation7 [shape = 'u8[32768]{0}', space=vmem, size = 0x8000, scoped, tag = 'input window, operand 2, single buffered']
    #allocation8 [shape = 'u8[512]{0}', space=vmem, size = 0x400, scoped, tag = 'input window, operand 3, single buffered']
    #allocation9 [shape = 's32[1]{0}', space=sflag, size = 0x4, scoped, tag = 'scoped memory for tpu_custom_call.1']
    #allocation10 [shape = 'u8[65536]{0}', space=vmem, size = 0x10000, scoped, tag = 'input window, operand 4, single buffered']
    #allocation11 [shape = 'u8[131072]{0}', space=vmem, size = 0x20000, scoped, tag = 'input window, operand 6, single buffered']
    #allocation12 [shape = 's32[1]{0}', space=sflag, size = 0x4, scoped, tag = 'scoped memory for tpu_custom_call.1']
    #allocation13 [shape = 'u8[2048]{0}', space=vmem, size = 0x800, scoped, tag = 'input window, operand 7, single buffered']
    #allocation14 [shape = 'u8[131072]{0}', space=vmem, size = 0x20000, scoped, tag = 'input window, operand 8, single buffered']
    #allocation15 [shape = 's32[1]{0}', space=sflag, size = 0x4, scoped, tag = 'scoped memory for tpu_custom_call.1']
    #allocation16 [shape = 'u8[65536]{0}', space=vmem, size = 0x10000, scoped, tag = 'output window, operand 0']
    %17 = vsyncpa [#allocation3], 0
    %s18 = scalar_lea.sflag [#allocation3], 1
    %19 = vsyncpa %s18, 0
    %20 = vsyncpa [#allocation6], 0
    %s21 = scalar_lea.sflag [#allocation6], 1
    %22 = vsyncpa %s21, 0
    %23 = vsyncpa [#allocation9], 0
    %24 = vsyncpa [#allocation12], 0
    %25 = vsyncpa [#allocation15], 0
    %26 = vsyncpa [#allocation4], 0
    %s27 = scalar_lea.sflag [#allocation4], 1
    %28 = vsyncpa %s27, 0
    loop: start=0, step=1, limit=4
    $region2: #{tpu_custom_call.1} parent=1 // loop_pre_header
      _
    $region3: #{tpu_custom_call.1} parent=1 // loop_header
      %s30 = sphi 0, %s34
      %p31 = scmp.ge.s32.totalorder %s30, 4
      %s37 = sphi 0, %s49
      %s38 = sphi 0, %s45
      %s39 = sphi 0, %s37
      %s40 = sphi 0, %s38
      %s41 = sphi 0, %s39
      %s42 = sphi 0, %s40
      %s54 = sphi 0, %s56
      %s57 = sphi 0, %s54
      %s58 = sphi 0, %s57
      %s74 = sphi 0, %s58
      %s84 = sphi 0, %s86
      %s87 = sphi 0, %s84
      %s88 = sphi 0, %s87
      %s104 = sphi 0, %s88
      %s110 = sphi 0, %s112
      %s113 = sphi 0, %s110
      %s114 = sphi 0, %s113
      %s130 = sphi 0, %s114
      %s136 = sphi 0, %s138
      %s139 = sphi 0, %s136
      %s140 = sphi 0, %s139
      %s156 = sphi 0, %s140
      %s162 = sphi 0, %s164
      %s165 = sphi 0, %s162
      %s166 = sphi 0, %s165
      %s182 = sphi 0, %s166
      %s188 = sphi 0, %s190
      %s191 = sphi 0, %s188
      %s192 = sphi 0, %s191
      %s208 = sphi 0, %s192
      %s214 = sphi 0, %s216
      %s217 = sphi 0, %s214
      %s218 = sphi 0, %s217
      %s234 = sphi 0, %s218
      %s240 = sphi 0, %s242
      %s243 = sphi 0, %s240
      %s244 = sphi 0, %s243
      %s260 = sphi 0, %s244
      %s266 = sphi 0, %s268
      %s269 = sphi 0, %s266
      %s270 = sphi 0, %s269
      %s286 = sphi 0, %s270
      %s292 = sphi 0, %s294
      %s295 = sphi 0, %s292
      %s296 = sphi 0, %s295
      %s312 = sphi 0, %s296
      %s318 = sphi 0, %s320
      %s321 = sphi 0, %s318
      %s322 = sphi 0, %s321
      %s338 = sphi 0, %s322
      %s344 = sphi 0, %s346
      %s347 = sphi 0, %s344
      %s348 = sphi 0, %s347
      %s364 = sphi 0, %s348
      %s372 = sphi 0, %s374
      %s375 = sphi 0, %s372
      %s376 = sphi 0, %s375
      %s392 = sphi 0, %s376
    $region4: #{tpu_custom_call.1} parent=1 // loop_header_branch
      %33 = sbr.rel (%p31) target = $region8
    $region5: #{tpu_custom_call.1} parent=1 // loop_body
      %s35 = ssub.s32 %s30, 1
      %s36 = ssub.s32 %s30, 2
      %s43 = sadd.s32 1, %s38
      %p44 = scmp.ge.s32.totalorder %s43, 1
      %s45 = scalar_select %p44, 0, %s43
      %s46 = sadd.s32 1, %s37
      %s47 = scalar_select %p44, %s46, %s37
      %p48 = scmp.ge.s32.totalorder %s47, 2
      %s49 = scalar_select %p48, 0, %s47
      %s50 = ssub.s32 %s37, %s49
      %s51 = ssub.s32 %s38, %s45
      %s52 = sor.u32 %s50, %s51
      %p53 = scmp.eq.s32.totalorder %s52, 0
      %s55 = sadd.s32 %s54, 1
      %s56 = scalar_select %p53, %s54, %s55
      %p59 = pneg %p53
      %p60 = scmp.eq.s32.totalorder %s30, 1
      %p61 = por %p59, %p60
      %p62 = scmp.ne.s32.totalorder %s54, %s57
      %p63 = scmp.eq.s32.totalorder %s30, 0
      %p64 = por %p62, %p63
      %p65 = scmp.ne.s32.totalorder %s54, %s57
      %p66 = scmp.eq.s32.totalorder %s35, 1
      %p67 = por %p65, %p66
      %p68 = scmp.ne.s32.totalorder %s57, %s58
      %p69 = scmp.eq.s32.totalorder %s35, 0
      %p70 = por %p68, %p69
      %p71 = scmp.ne.s32.totalorder %s57, %s58
      %p72 = scmp.eq.s32.totalorder %s36, 1
      %p73 = por %p71, %p72
      %p75 = scmp.ne.s32.totalorder %s58, %s74
      %p76 = scmp.eq.s32.totalorder %s36, 0
      %p77 = por %p75, %p76
      %s78 = ssub.s32 1, %s37
      %s79 = ssub.s32 1, %s49
      %s80 = ssub.s32 %s78, %s79
      %s81 = ssub.s32 %s38, %s45
      %s82 = sor.u32 %s80, %s81
      %p83 = scmp.eq.s32.totalorder %s82, 0
      %s85 = sadd.s32 %s84, 1
      %s86 = scalar_select %p83, %s84, %s85
      %p89 = pneg %p83
      %p90 = scmp.eq.s32.totalorder %s30, 1
      %p91 = por %p89, %p90
      %p92 = scmp.ne.s32.totalorder %s84, %s87
      %p93 = scmp.eq.s32.totalorder %s30, 0
      %p94 = por %p92, %p93
      %p95 = scmp.ne.s32.totalorder %s84, %s87
      %p96 = scmp.eq.s32.totalorder %s35, 1
      %p97 = por %p95, %p96
      %p98 = scmp.ne.s32.totalorder %s87, %s88
      %p99 = scmp.eq.s32.totalorder %s35, 0
      %p100 = por %p98, %p99
      %p101 = scmp.ne.s32.totalorder %s87, %s88
      %p102 = scmp.eq.s32.totalorder %s36, 1
      %p103 = por %p101, %p102
      %p105 = scmp.ne.s32.totalorder %s88, %s104
      %p106 = scmp.eq.s32.totalorder %s36, 0
      %p107 = por %p105, %p106
      %s108 = ssub.s32 %s37, %s49
      %p109 = scmp.eq.s32.totalorder %s108, 0
      %s111 = sadd.s32 %s110, 1
      %s112 = scalar_select %p109, %s110, %s111
      %p115 = pneg %p109
      %p116 = scmp.eq.s32.totalorder %s30, 1
      %p117 = por %p115, %p116
      %p118 = scmp.ne.s32.totalorder %s110, %s113
      %p119 = scmp.eq.s32.totalorder %s30, 0
      %p120 = por %p118, %p119
      %p121 = scmp.ne.s32.totalorder %s110, %s113
      %p122 = scmp.eq.s32.totalorder %s35, 1
      %p123 = por %p121, %p122
      %p124 = scmp.ne.s32.totalorder %s113, %s114
      %p125 = scmp.eq.s32.totalorder %s35, 0
      %p126 = por %p124, %p125
      %p127 = scmp.ne.s32.totalorder %s113, %s114
      %p128 = scmp.eq.s32.totalorder %s36, 1
      %p129 = por %p127, %p128
      %p131 = scmp.ne.s32.totalorder %s114, %s130
      %p132 = scmp.eq.s32.totalorder %s36, 0
      %p133 = por %p131, %p132
      %s134 = ssub.s32 %s37, %s49
      %p135 = scmp.eq.s32.totalorder %s134, 0
      %s137 = sadd.s32 %s136, 1
      %s138 = scalar_select %p135, %s136, %s137
      %p141 = pneg %p135
      %p142 = scmp.eq.s32.totalorder %s30, 1
      %p143 = por %p141, %p142
      %p144 = scmp.ne.s32.totalorder %s136, %s139
      %p145 = scmp.eq.s32.totalorder %s30, 0
      %p146 = por %p144, %p145
      %p147 = scmp.ne.s32.totalorder %s136, %s139
      %p148 = scmp.eq.s32.totalorder %s35, 1
      %p149 = por %p147, %p148
      %p150 = scmp.ne.s32.totalorder %s139, %s140
      %p151 = scmp.eq.s32.totalorder %s35, 0
      %p152 = por %p150, %p151
      %p153 = scmp.ne.s32.totalorder %s139, %s140
      %p154 = scmp.eq.s32.totalorder %s36, 1
      %p155 = por %p153, %p154
      %p157 = scmp.ne.s32.totalorder %s140, %s156
      %p158 = scmp.eq.s32.totalorder %s36, 0
      %p159 = por %p157, %p158
      %s160 = ssub.s32 %s37, %s49
      %p161 = scmp.eq.s32.totalorder %s160, 0
      %s163 = sadd.s32 %s162, 1
      %s164 = scalar_select %p161, %s162, %s163
      %p167 = pneg %p161
      %p168 = scmp.eq.s32.totalorder %s30, 1
      %p169 = por %p167, %p168
      %p170 = scmp.ne.s32.totalorder %s162, %s165
      %p171 = scmp.eq.s32.totalorder %s30, 0
      %p172 = por %p170, %p171
      %p173 = scmp.ne.s32.totalorder %s162, %s165
      %p174 = scmp.eq.s32.totalorder %s35, 1
      %p175 = por %p173, %p174
      %p176 = scmp.ne.s32.totalorder %s165, %s166
      %p177 = scmp.eq.s32.totalorder %s35, 0
      %p178 = por %p176, %p177
      %p179 = scmp.ne.s32.totalorder %s165, %s166
      %p180 = scmp.eq.s32.totalorder %s36, 1
      %p181 = por %p179, %p180
      %p183 = scmp.ne.s32.totalorder %s166, %s182
      %p184 = scmp.eq.s32.totalorder %s36, 0
      %p185 = por %p183, %p184
      %s186 = ssub.s32 %s37, %s49
      %p187 = scmp.eq.s32.totalorder %s186, 0
      %s189 = sadd.s32 %s188, 1
      %s190 = scalar_select %p187, %s188, %s189
      %p193 = pneg %p187
      %p194 = scmp.eq.s32.totalorder %s30, 1
      %p195 = por %p193, %p194
      %p196 = scmp.ne.s32.totalorder %s188, %s191
      %p197 = scmp.eq.s32.totalorder %s30, 0
      %p198 = por %p196, %p197
      %p199 = scmp.ne.s32.totalorder %s188, %s191
      %p200 = scmp.eq.s32.totalorder %s35, 1
      %p201 = por %p199, %p200
      %p202 = scmp.ne.s32.totalorder %s191, %s192
      %p203 = scmp.eq.s32.totalorder %s35, 0
      %p204 = por %p202, %p203
      %p205 = scmp.ne.s32.totalorder %s191, %s192
      %p206 = scmp.eq.s32.totalorder %s36, 1
      %p207 = por %p205, %p206
      %p209 = scmp.ne.s32.totalorder %s192, %s208
      %p210 = scmp.eq.s32.totalorder %s36, 0
      %p211 = por %p209, %p210
      %s212 = ssub.s32 %s37, %s49
      %p213 = scmp.eq.s32.totalorder %s212, 0
      %s215 = sadd.s32 %s214, 1
      %s216 = scalar_select %p213, %s214, %s215
      %p219 = pneg %p213
      %p220 = scmp.eq.s32.totalorder %s30, 1
      %p221 = por %p219, %p220
      %p222 = scmp.ne.s32.totalorder %s214, %s217
      %p223 = scmp.eq.s32.totalorder %s30, 0
      %p224 = por %p222, %p223
      %p225 = scmp.ne.s32.totalorder %s214, %s217
      %p226 = scmp.eq.s32.totalorder %s35, 1
      %p227 = por %p225, %p226
      %p228 = scmp.ne.s32.totalorder %s217, %s218
      %p229 = scmp.eq.s32.totalorder %s35, 0
      %p230 = por %p228, %p229
      %p231 = scmp.ne.s32.totalorder %s217, %s218
      %p232 = scmp.eq.s32.totalorder %s36, 1
      %p233 = por %p231, %p232
      %p235 = scmp.ne.s32.totalorder %s218, %s234
      %p236 = scmp.eq.s32.totalorder %s36, 0
      %p237 = por %p235, %p236
      %s238 = ssub.s32 %s37, %s49
      %p239 = scmp.eq.s32.totalorder %s238, 0
      %s241 = sadd.s32 %s240, 1
      %s242 = scalar_select %p239, %s240, %s241
      %p245 = pneg %p239
      %p246 = scmp.eq.s32.totalorder %s30, 1
      %p247 = por %p245, %p246
      %p248 = scmp.ne.s32.totalorder %s240, %s243
      %p249 = scmp.eq.s32.totalorder %s30, 0
      %p250 = por %p248, %p249
      %p251 = scmp.ne.s32.totalorder %s240, %s243
      %p252 = scmp.eq.s32.totalorder %s35, 1
      %p253 = por %p251, %p252
      %p254 = scmp.ne.s32.totalorder %s243, %s244
      %p255 = scmp.eq.s32.totalorder %s35, 0
      %p256 = por %p254, %p255
      %p257 = scmp.ne.s32.totalorder %s243, %s244
      %p258 = scmp.eq.s32.totalorder %s36, 1
      %p259 = por %p257, %p258
      %p261 = scmp.ne.s32.totalorder %s244, %s260
      %p262 = scmp.eq.s32.totalorder %s36, 0
      %p263 = por %p261, %p262
      %s264 = ssub.s32 %s37, %s49
      %p265 = scmp.eq.s32.totalorder %s264, 0
      %s267 = sadd.s32 %s266, 1
      %s268 = scalar_select %p265, %s266, %s267
      %p271 = pneg %p265
      %p272 = scmp.eq.s32.totalorder %s30, 1
      %p273 = por %p271, %p272
      %p274 = scmp.ne.s32.totalorder %s266, %s269
      %p275 = scmp.eq.s32.totalorder %s30, 0
      %p276 = por %p274, %p275
      %p277 = scmp.ne.s32.totalorder %s266, %s269
      %p278 = scmp.eq.s32.totalorder %s35, 1
      %p279 = por %p277, %p278
      %p280 = scmp.ne.s32.totalorder %s269, %s270
      %p281 = scmp.eq.s32.totalorder %s35, 0
      %p282 = por %p280, %p281
      %p283 = scmp.ne.s32.totalorder %s269, %s270
      %p284 = scmp.eq.s32.totalorder %s36, 1
      %p285 = por %p283, %p284
      %p287 = scmp.ne.s32.totalorder %s270, %s286
      %p288 = scmp.eq.s32.totalorder %s36, 0
      %p289 = por %p287, %p288
      %s290 = ssub.s32 %s37, %s49
      %p291 = scmp.eq.s32.totalorder %s290, 0
      %s293 = sadd.s32 %s292, 1
      %s294 = scalar_select %p291, %s292, %s293
      %p297 = pneg %p291
      %p298 = scmp.eq.s32.totalorder %s30, 1
      %p299 = por %p297, %p298
      %p300 = scmp.ne.s32.totalorder %s292, %s295
      %p301 = scmp.eq.s32.totalorder %s30, 0
      %p302 = por %p300, %p301
      %p303 = scmp.ne.s32.totalorder %s292, %s295
      %p304 = scmp.eq.s32.totalorder %s35, 1
      %p305 = por %p303, %p304
      %p306 = scmp.ne.s32.totalorder %s295, %s296
      %p307 = scmp.eq.s32.totalorder %s35, 0
      %p308 = por %p306, %p307
      %p309 = scmp.ne.s32.totalorder %s295, %s296
      %p310 = scmp.eq.s32.totalorder %s36, 1
      %p311 = por %p309, %p310
      %p313 = scmp.ne.s32.totalorder %s296, %s312
      %p314 = scmp.eq.s32.totalorder %s36, 0
      %p315 = por %p313, %p314
      %s316 = ssub.s32 %s37, %s49
      %p317 = scmp.eq.s32.totalorder %s316, 0
      %s319 = sadd.s32 %s318, 1
      %s320 = scalar_select %p317, %s318, %s319
      %p323 = pneg %p317
      %p324 = scmp.eq.s32.totalorder %s30, 1
      %p325 = por %p323, %p324
      %p326 = scmp.ne.s32.totalorder %s318, %s321
      %p327 = scmp.eq.s32.totalorder %s30, 0
      %p328 = por %p326, %p327
      %p329 = scmp.ne.s32.totalorder %s318, %s321
      %p330 = scmp.eq.s32.totalorder %s35, 1
      %p331 = por %p329, %p330
      %p332 = scmp.ne.s32.totalorder %s321, %s322
      %p333 = scmp.eq.s32.totalorder %s35, 0
      %p334 = por %p332, %p333
      %p335 = scmp.ne.s32.totalorder %s321, %s322
      %p336 = scmp.eq.s32.totalorder %s36, 1
      %p337 = por %p335, %p336
      %p339 = scmp.ne.s32.totalorder %s322, %s338
      %p340 = scmp.eq.s32.totalorder %s36, 0
      %p341 = por %p339, %p340
      %s342 = ssub.s32 %s37, %s49
      %p343 = scmp.eq.s32.totalorder %s342, 0
      %s345 = sadd.s32 %s344, 1
      %s346 = scalar_select %p343, %s344, %s345
      %p349 = pneg %p343
      %p350 = scmp.eq.s32.totalorder %s30, 1
      %p351 = por %p349, %p350
      %p352 = scmp.ne.s32.totalorder %s344, %s347
      %p353 = scmp.eq.s32.totalorder %s30, 0
      %p354 = por %p352, %p353
      %p355 = scmp.ne.s32.totalorder %s344, %s347
      %p356 = scmp.eq.s32.totalorder %s35, 1
      %p357 = por %p355, %p356
      %p358 = scmp.ne.s32.totalorder %s347, %s348
      %p359 = scmp.eq.s32.totalorder %s35, 0
      %p360 = por %p358, %p359
      %p361 = scmp.ne.s32.totalorder %s347, %s348
      %p362 = scmp.eq.s32.totalorder %s36, 1
      %p363 = por %p361, %p362
      %p365 = scmp.ne.s32.totalorder %s348, %s364
      %p366 = scmp.eq.s32.totalorder %s36, 0
      %p367 = por %p365, %p366
      %s368 = ssub.s32 %s37, %s49
      %s369 = ssub.s32 %s38, %s45
      %s370 = sor.u32 %s368, %s369
      %p371 = scmp.eq.s32.totalorder %s370, 0
      %s373 = sadd.s32 %s372, 1
      %s374 = scalar_select %p371, %s372, %s373
      %p377 = pneg %p371
      %p378 = scmp.eq.s32.totalorder %s30, 1
      %p379 = por %p377, %p378
      %p380 = scmp.ne.s32.totalorder %s372, %s375
      %p381 = scmp.eq.s32.totalorder %s30, 0
      %p382 = por %p380, %p381
      %p383 = scmp.ne.s32.totalorder %s372, %s375
      %p384 = scmp.eq.s32.totalorder %s35, 1
      %p385 = por %p383, %p384
      %p386 = scmp.ne.s32.totalorder %s375, %s376
      %p387 = scmp.eq.s32.totalorder %s35, 0
      %p388 = por %p386, %p387
      %p389 = scmp.ne.s32.totalorder %s375, %s376
      %p390 = scmp.eq.s32.totalorder %s36, 1
      %p391 = por %p389, %p390
      %p393 = scmp.ne.s32.totalorder %s376, %s392
      %p394 = scmp.eq.s32.totalorder %s36, 0
      %p395 = por %p393, %p394
      %p396 = scmp.le.s32.totalorder 1, %s30
      %p397 = scmp.lt.s32.totalorder %s30, 3
      %p398 = pnand %p396, %p397
      %p399 = pneg %p398
      // Predicated region
      $region9: #{tpu_custom_call.1} parent=5 // pred_check
        _
      $region10: #{tpu_custom_call.1} parent=5 // pred_check_branch
        %401 = sbr.rel (%p398) target = $region12
      $region11: #{tpu_custom_call.1} parent=5 // pred_region
        %s402 = ssub.s32 %s30, 1
        // Predicated region
        $region13: #{tpu_custom_call.1} parent=11 // pred_check
          %p403 = pneg %p126
        $region14: #{tpu_custom_call.1} parent=11 // pred_check_branch
          %405 = sbr.rel (%p403) target = $region16
        $region15: #{tpu_custom_call.1} parent=11 // pred_region
          %407 = vsyncadd [#allocation6], 0
          %s408 = smul.addr %s39, 16
          %s409 = smul.addr %s408, 4
          %s410 = scalar_lea.hbm %s2, %s409
          %s411 = sshll.u32 %s410, 4
          %s412 = int_to_ptr.hbm [resolvable:$true] %s411
          %s413 = sshll.u32 [#allocation7], 4
          %s414 = int_to_ptr.vmem [resolvable:$true] %s413
          %419 = dma.hbm_to_vmem [thread:$0]  %s412, 1024, %s414, [#allocation6], 64, 64, 4
        $region16: #{tpu_custom_call.1} parent=11 // pred_fallthru
          _
        // Predicated region
        $region17: #{tpu_custom_call.1} parent=11 // pred_check
          %p420 = pneg %p152
        $region18: #{tpu_custom_call.1} parent=11 // pred_check_branch
          %422 = sbr.rel (%p420) target = $region20
        $region19: #{tpu_custom_call.1} parent=11 // pred_region
          %424 = vsyncadd [#allocation9], 0
          %s425 = scalar_lea.hbm %s3, %s39
          %s427 = sshll.u32 %s425, 4
          %s428 = int_to_ptr.hbm [resolvable:$true] %s427
          %s429 = sshll.u32 [#allocation8], 4
          %s430 = int_to_ptr.vmem [resolvable:$true] %s429
          %432 = dma.hbm_to_vmem [thread:$0]  %s428, 16, %s430, [#allocation9]
        $region20: #{tpu_custom_call.1} parent=11 // pred_fallthru
          _
        // Predicated region
        $region21: #{tpu_custom_call.1} parent=11 // pred_check
          %p433 = pneg %p178
        $region22: #{tpu_custom_call.1} parent=11 // pred_check_branch
          %435 = sbr.rel (%p433) target = $region24
        $region23: #{tpu_custom_call.1} parent=11 // pred_region
          %437 = vsyncadd [#allocation9], 0
          %s438 = smul.addr %s39, 32
          %s439 = smul.addr %s438, 4
          %s440 = scalar_lea.hbm %s4, %s439
          %s441 = sshll.u32 %s440, 4
          %s442 = int_to_ptr.hbm [resolvable:$true] %s441
          %s443 = sshll.u32 [#allocation10], 4
          %s444 = int_to_ptr.vmem [resolvable:$true] %s443
          %449 = dma.hbm_to_vmem [thread:$0]  %s442, 2048, %s444, [#allocation9], 128, 128, 8
        $region24: #{tpu_custom_call.1} parent=11 // pred_fallthru
          _
        // Predicated region
        $region25: #{tpu_custom_call.1} parent=11 // pred_check
          %p450 = pneg %p204
        $region26: #{tpu_custom_call.1} parent=11 // pred_check_branch
          %452 = sbr.rel (%p450) target = $region28
        $region27: #{tpu_custom_call.1} parent=11 // pred_region
          %p453 = scmp.lt.s32.totalorder %s39, 1
          %s454 = scalar_select %p453, %s39, 1
          %s455 = smul.addr %s454, 2
          %s456 = scalar_lea.vmem %s5, %s455
        $region28: #{tpu_custom_call.1} parent=11 // pred_fallthru
          _
        // Predicated region
        $region29: #{tpu_custom_call.1} parent=11 // pred_check
          %p457 = pneg %p230
        $region30: #{tpu_custom_call.1} parent=11 // pred_check_branch
          %459 = sbr.rel (%p457) target = $region32
        $region31: #{tpu_custom_call.1} parent=11 // pred_region
          %461 = vsyncadd [#allocation12], 0
          %s462 = smul.addr %s39, 64
          %s463 = smul.addr %s462, 4
          %s464 = scalar_lea.hbm %s6, %s463
          %s465 = sshll.u32 %s464, 4
          %s466 = int_to_ptr.hbm [resolvable:$true] %s465
          %s467 = sshll.u32 [#allocation11], 4
          %s468 = int_to_ptr.vmem [resolvable:$true] %s467
          %473 = dma.hbm_to_vmem [thread:$0]  %s466, 4096, %s468, [#allocation12], 256, 256, 16
        $region32: #{tpu_custom_call.1} parent=11 // pred_fallthru
          _
        // Predicated region
        $region33: #{tpu_custom_call.1} parent=11 // pred_check
          %p474 = pneg %p256
        $region34: #{tpu_custom_call.1} parent=11 // pred_check_branch
          %476 = sbr.rel (%p474) target = $region36
        $region35: #{tpu_custom_call.1} parent=11 // pred_region
          %478 = vsyncadd [#allocation12], 0
          %s479 = smul.addr %s39, 4
          %s480 = scalar_lea.hbm %s7, %s479
          %s482 = sshll.u32 %s480, 4
          %s483 = int_to_ptr.hbm [resolvable:$true] %s482
          %s484 = sshll.u32 [#allocation13], 4
          %s485 = int_to_ptr.vmem [resolvable:$true] %s484
          %487 = dma.hbm_to_vmem [thread:$0]  %s483, 64, %s485, [#allocation12]
        $region36: #{tpu_custom_call.1} parent=11 // pred_fallthru
          _
        // Predicated region
        $region37: #{tpu_custom_call.1} parent=11 // pred_check
          %p488 = pneg %p282
        $region38: #{tpu_custom_call.1} parent=11 // pred_check_branch
          %490 = sbr.rel (%p488) target = $region40
        $region39: #{tpu_custom_call.1} parent=11 // pred_region
          %492 = vsyncadd [#allocation15], 0
          %s493 = smul.addr %s39, 64
          %s494 = smul.addr %s493, 4
          %s495 = scalar_lea.hbm %s8, %s494
          %s496 = sshll.u32 %s495, 4
          %s497 = int_to_ptr.hbm [resolvable:$true] %s496
          %s498 = sshll.u32 [#allocation14], 4
          %s499 = int_to_ptr.vmem [resolvable:$true] %s498
          %504 = dma.hbm_to_vmem [thread:$0]  %s497, 4096, %s499, [#allocation15], 64, 64, 4
        $region40: #{tpu_custom_call.1} parent=11 // pred_fallthru
          _
        // Predicated region
        $region41: #{tpu_custom_call.1} parent=11 // pred_check
          %p505 = pneg %p308
        $region42: #{tpu_custom_call.1} parent=11 // pred_check_branch
          %507 = sbr.rel (%p505) target = $region44
        $region43: #{tpu_custom_call.1} parent=11 // pred_region
          %p508 = scmp.lt.s32.totalorder %s39, 1
          %s509 = scalar_select %p508, %s39, 1
          %s510 = scalar_lea.vmem %s9, %s509
        $region44: #{tpu_custom_call.1} parent=11 // pred_fallthru
          _
        // Predicated region
        $region45: #{tpu_custom_call.1} parent=11 // pred_check
          %p511 = pneg %p334
        $region46: #{tpu_custom_call.1} parent=11 // pred_check_branch
          %513 = sbr.rel (%p511) target = $region48
        $region47: #{tpu_custom_call.1} parent=11 // pred_region
          %p514 = scmp.lt.s32.totalorder %s39, 1
          %s515 = scalar_select %p514, %s39, 1
          %s516 = scalar_lea.vmem %s10, %s515
        $region48: #{tpu_custom_call.1} parent=11 // pred_fallthru
          _
        // Predicated region
        $region49: #{tpu_custom_call.1} parent=11 // pred_check
          %p517 = pneg %p360
        $region50: #{tpu_custom_call.1} parent=11 // pred_check_branch
          %519 = sbr.rel (%p517) target = $region52
        $region51: #{tpu_custom_call.1} parent=11 // pred_region
          %p520 = scmp.lt.s32.totalorder %s39, 1
          %s521 = scalar_select %p520, %s39, 1
          %s522 = scalar_lea.vmem %s11, %s521
        $region52: #{tpu_custom_call.1} parent=11 // pred_fallthru
          _
      $region12: #{tpu_custom_call.1} parent=5 // pred_fallthru
        _
      %p523 = scmp.lt.s32.totalorder %s30, 2
      // Predicated region
      $region53: #{tpu_custom_call.1} parent=5 // pred_check
        %p524 = pneg %p523
      $region54: #{tpu_custom_call.1} parent=5 // pred_check_branch
        %526 = sbr.rel (%p524) target = $region56
      $region55: #{tpu_custom_call.1} parent=5 // pred_region
        // Predicated region
        $region57: #{tpu_custom_call.1} parent=55 // pred_check
          %p527 = pneg %p64
        $region58: #{tpu_custom_call.1} parent=55 // pred_check_branch
          %529 = sbr.rel (%p527) target = $region60
        $region59: #{tpu_custom_call.1} parent=55 // pred_region
          %s530 = sand.u32 %s54, 1
          %s531 = scalar_lea.sflag [#allocation3], %s530
          %s532 = sand.u32 %s54, 1
          %s533 = smul.addr %s532, 128
          %s534 = scalar_lea.vmem [#allocation2], %s533
          %s535 = smul.u32 8, %s38
          %537 = vsyncadd %s531, 0
          %s538 = smul.addr %s535, 2
          %s539 = smul.addr %s37, 16
          %s540 = sadd.s32 %s538, %s539
          %s541 = smul.addr %s540, 8
          %s542 = scalar_lea.hbm %s0, %s541
          %s543 = sshll.u32 %s542, 4
          %s544 = int_to_ptr.hbm [resolvable:$true] %s543
          %s545 = sshll.u32 %s534, 4
          %s546 = int_to_ptr.vmem [resolvable:$true] %s545
          %551 = dma.hbm_to_vmem [thread:$0]  %s544, 2048, %s546, %s531, 128, 128, 8
        $region60: #{tpu_custom_call.1} parent=55 // pred_fallthru
          _
        // Predicated region
        $region61: #{tpu_custom_call.1} parent=55 // pred_check
          %p552 = pneg %p94
        $region62: #{tpu_custom_call.1} parent=55 // pred_check_branch
          %554 = sbr.rel (%p552) target = $region64
        $region63: #{tpu_custom_call.1} parent=55 // pred_region
          %s555 = sand.u32 %s30, 1
          %s556 = scalar_lea.sflag [#allocation6], %s555
          %s557 = sand.u32 %s84, 1
          %s558 = smul.addr %s557, 128
          %s559 = scalar_lea.vmem [#allocation5], %s558
          %s560 = ssub.s32 1, %s37
          %s561 = smul.u32 8, %s38
          %563 = vsyncadd %s556, 0
          %s564 = smul.addr %s561, 2
          %s565 = smul.addr %s560, 16
          %s566 = sadd.s32 %s564, %s565
          %s567 = smul.addr %s566, 8
          %s568 = scalar_lea.hbm %s1, %s567
          %s569 = sshll.u32 %s568, 4
          %s570 = int_to_ptr.hbm [resolvable:$true] %s569
          %s571 = sshll.u32 %s559, 4
          %s572 = int_to_ptr.vmem [resolvable:$true] %s571
          %577 = dma.hbm_to_vmem [thread:$0]  %s570, 2048, %s572, %s556, 128, 128, 8
        $region64: #{tpu_custom_call.1} parent=55 // pred_fallthru
          _
      $region56: #{tpu_custom_call.1} parent=5 // pred_fallthru
        _
      %p578 = scmp.le.s32.totalorder 1, %s30
      %p579 = scmp.lt.s32.totalorder %s30, 3
      %p580 = pnand %p578, %p579
      %p581 = pneg %p580
      // Predicated region
      $region65: #{tpu_custom_call.1} parent=5 // pred_check
        _
      $region66: #{tpu_custom_call.1} parent=5 // pred_check_branch
        %583 = sbr.rel (%p580) target = $region68
      $region67: #{tpu_custom_call.1} parent=5 // pred_region
        %s584 = ssub.s32 %s30, 1
        %s585 = sand.u32 %s57, 1
        %s586 = scalar_lea.sflag [#allocation3], %s585
        %s587 = sand.u32 %s57, 1
        %s588 = smul.addr %s587, 128
        %s589 = scalar_lea.vmem [#allocation2], %s588
        // Predicated region
        $region69: #{tpu_custom_call.1} parent=67 // pred_check
          %p590 = pneg %p70
        $region70: #{tpu_custom_call.1} parent=67 // pred_check_branch
          %592 = sbr.rel (%p590) target = $region72
        $region71: #{tpu_custom_call.1} parent=67 // pred_region
          %594 = dma.done %s586, 2048
        $region72: #{tpu_custom_call.1} parent=67 // pred_fallthru
          _
        %s595 = sand.u32 %s35, 1
        %s596 = scalar_lea.sflag [#allocation6], %s595
        %s597 = sand.u32 %s87, 1
        %s598 = smul.addr %s597, 128
        %s599 = scalar_lea.vmem [#allocation5], %s598
        // Predicated region
        $region73: #{tpu_custom_call.1} parent=67 // pred_check
          %p600 = pneg %p100
        $region74: #{tpu_custom_call.1} parent=67 // pred_check_branch
          %602 = sbr.rel (%p600) target = $region76
        $region75: #{tpu_custom_call.1} parent=67 // pred_region
          %604 = dma.done %s596, 2048
        $region76: #{tpu_custom_call.1} parent=67 // pred_fallthru
          _
        // Predicated region
        $region77: #{tpu_custom_call.1} parent=67 // pred_check
          %p605 = pneg %p126
        $region78: #{tpu_custom_call.1} parent=67 // pred_check_branch
          %607 = sbr.rel (%p605) target = $region80
        $region79: #{tpu_custom_call.1} parent=67 // pred_region
          %609 = dma.done [#allocation6], 1024
        $region80: #{tpu_custom_call.1} parent=67 // pred_fallthru
          _
        // Predicated region
        $region81: #{tpu_custom_call.1} parent=67 // pred_check
          %p610 = pneg %p152
        $region82: #{tpu_custom_call.1} parent=67 // pred_check_branch
          %612 = sbr.rel (%p610) target = $region84
        $region83: #{tpu_custom_call.1} parent=67 // pred_region
          %614 = dma.done [#allocation9], 16
        $region84: #{tpu_custom_call.1} parent=67 // pred_fallthru
          _
        // Predicated region
        $region85: #{tpu_custom_call.1} parent=67 // pred_check
          %p615 = pneg %p178
        $region86: #{tpu_custom_call.1} parent=67 // pred_check_branch
          %617 = sbr.rel (%p615) target = $region88
        $region87: #{tpu_custom_call.1} parent=67 // pred_region
          %619 = dma.done [#allocation9], 2048
        $region88: #{tpu_custom_call.1} parent=67 // pred_fallthru
          _
        // Predicated region
        $region89: #{tpu_custom_call.1} parent=67 // pred_check
          %p620 = pneg %p230
        $region90: #{tpu_custom_call.1} parent=67 // pred_check_branch
          %622 = sbr.rel (%p620) target = $region92
        $region91: #{tpu_custom_call.1} parent=67 // pred_region
          %624 = dma.done [#allocation12], 4096
        $region92: #{tpu_custom_call.1} parent=67 // pred_fallthru
          _
        // Predicated region
        $region93: #{tpu_custom_call.1} parent=67 // pred_check
          %p625 = pneg %p256
        $region94: #{tpu_custom_call.1} parent=67 // pred_check_branch
          %627 = sbr.rel (%p625) target = $region96
        $region95: #{tpu_custom_call.1} parent=67 // pred_region
          %629 = dma.done [#allocation12], 64
        $region96: #{tpu_custom_call.1} parent=67 // pred_fallthru
          _
        // Predicated region
        $region97: #{tpu_custom_call.1} parent=67 // pred_check
          %p630 = pneg %p282
        $region98: #{tpu_custom_call.1} parent=67 // pred_check_branch
          %632 = sbr.rel (%p630) target = $region100
        $region99: #{tpu_custom_call.1} parent=67 // pred_region
          %634 = dma.done [#allocation15], 4096
        $region100: #{tpu_custom_call.1} parent=67 // pred_fallthru
          _
        %s635 = sand.u32 %s57, 1
        %s636 = scalar_lea.sflag [#allocation3], %s635
        %s637 = sand.u32 %s57, 1
        %s638 = smul.addr %s637, 128
        %s639 = scalar_lea.vmem [#allocation2], %s638
        %p640 = pneg %p70
        %p641 = pneg %p67
        %s642 = sand.u32 %s35, 1
        %s643 = scalar_lea.sflag [#allocation6], %s642
        %s644 = sand.u32 %s87, 1
        %s645 = smul.addr %s644, 128
        %s646 = scalar_lea.vmem [#allocation5], %s645
        %p647 = pneg %p100
        %p648 = pneg %p97
        %p649 = pneg %p126
        %p650 = pneg %p123
        %p651 = pneg %p152
        %p652 = pneg %p149
        %p653 = pneg %p178
        %p654 = pneg %p175
        %p655 = scmp.lt.s32.totalorder %s39, 1
        %s656 = scalar_select %p655, %s39, 1
        %s657 = smul.addr %s656, 2
        %s658 = scalar_lea.vmem %s5, %s657
        %p659 = pneg %p204
        %p660 = pneg %p201
        %p661 = pneg %p230
        %p662 = pneg %p227
        %p663 = pneg %p256
        %p664 = pneg %p253
        %p665 = pneg %p282
        %p666 = pneg %p279
        %p667 = scmp.lt.s32.totalorder %s39, 1
        %s668 = scalar_select %p667, %s39, 1
        %s669 = scalar_lea.vmem %s9, %s668
        %p670 = pneg %p308
        %p671 = pneg %p305
        %p672 = scmp.lt.s32.totalorder %s39, 1
        %s673 = scalar_select %p672, %s39, 1
        %s674 = scalar_lea.vmem %s10, %s673
        %p675 = pneg %p334
        %p676 = pneg %p331
        %p677 = scmp.lt.s32.totalorder %s39, 1
        %s678 = scalar_select %p677, %s39, 1
        %s679 = scalar_lea.vmem %s11, %s678
        %p680 = pneg %p360
        %p681 = pneg %p357
        %p682 = pneg %p388
        %p683 = pneg %p385
        %s684 = sand.u32 %s375, 1
        %s685 = scalar_lea.sflag [#allocation4], %s684
        %s686 = sand.u32 %s375, 1
        %s687 = smul.addr %s686, 64
        %s688 = scalar_lea.vmem [#allocation16], %s687
        %s689 = smul.u32 8, %s40
        %s690 = ssub.s32 1, %s39
        %s691 = smul.u32 8, %s40
        %p692 = scmp.lt.s32.totalorder %s39, 1
        %s693 = scalar_select %p692, %s39, 1
        %s694 = smul.addr %s693, 2
        %s695 = scalar_lea.vmem %s5, %s694
        %p696 = scmp.lt.s32.totalorder %s39, 1
        %s697 = scalar_select %p696, %s39, 1
        %s698 = scalar_lea.vmem %s9, %s697
        %p699 = scmp.lt.s32.totalorder %s39, 1
        %s700 = scalar_select %p699, %s39, 1
        %s701 = scalar_lea.vmem %s10, %s700
        %p702 = scmp.lt.s32.totalorder %s39, 1
        %s703 = scalar_select %p702, %s39, 1
        %s704 = scalar_lea.vmem %s11, %s703
        %v706 = vld [vmem:[%s589] sm:$0xff]
        %v707 = vld [vmem:[%s589 + $0x8] sm:$0xff]
        %v708 = vld [vmem:[%s589 + $0x10] sm:$0xff]
        %v709 = vld [vmem:[%s589 + $0x18] sm:$0xff]
        %v710 = vld [vmem:[%s589 + $0x20] sm:$0xff]
        %v711 = vld [vmem:[%s589 + $0x28] sm:$0xff]
        %v712 = vld [vmem:[%s589 + $0x30] sm:$0xff]
        %v713 = vld [vmem:[%s589 + $0x38] sm:$0xff]
        %v714 = vld [vmem:[%s589 + $0x40] sm:$0xff]
        %v715 = vld [vmem:[%s589 + $0x48] sm:$0xff]
        %v716 = vld [vmem:[%s589 + $0x50] sm:$0xff]
        %v717 = vld [vmem:[%s589 + $0x58] sm:$0xff]
        %v718 = vld [vmem:[%s589 + $0x60] sm:$0xff]
        %v719 = vld [vmem:[%s589 + $0x68] sm:$0xff]
        %v720 = vld [vmem:[%s589 + $0x70] sm:$0xff]
        %v721 = vld [vmem:[%s589 + $0x78] sm:$0xff]
        %v722 = vld [vmem:[%s599] sm:$0xff]
        %v723 = vld [vmem:[%s599 + $0x8] sm:$0xff]
        %v724 = vld [vmem:[%s599 + $0x10] sm:$0xff]
        %v725 = vld [vmem:[%s599 + $0x18] sm:$0xff]
        %v726 = vld [vmem:[%s599 + $0x20] sm:$0xff]
        %v727 = vld [vmem:[%s599 + $0x28] sm:$0xff]
        %v728 = vld [vmem:[%s599 + $0x30] sm:$0xff]
        %v729 = vld [vmem:[%s599 + $0x38] sm:$0xff]
        %v730 = vld [vmem:[%s599 + $0x40] sm:$0xff]
        %v731 = vld [vmem:[%s599 + $0x48] sm:$0xff]
        %v732 = vld [vmem:[%s599 + $0x50] sm:$0xff]
        %v733 = vld [vmem:[%s599 + $0x58] sm:$0xff]
        %v734 = vld [vmem:[%s599 + $0x60] sm:$0xff]
        %v735 = vld [vmem:[%s599 + $0x68] sm:$0xff]
        %v736 = vld [vmem:[%s599 + $0x70] sm:$0xff]
        %v737 = vld [vmem:[%s599 + $0x78] sm:$0xff]
        %v738 = vpack.c.bf16 %v707, %v706
        %v739 = vpack.c.bf16 %v709, %v708
        %v740 = vpack.c.bf16 %v711, %v710
        %v741 = vpack.c.bf16 %v713, %v712
        %v742 = vpack.c.bf16 %v715, %v714
        %v743 = vpack.c.bf16 %v717, %v716
        %v744 = vpack.c.bf16 %v719, %v718
        %v745 = vpack.c.bf16 %v721, %v720
        %v746 = vld [vmem:[#allocation7] sm:$0xf]
        %v747 = vld [vmem:[#allocation7 + $0x4] sm:$0xf]
        %v748 = vld [vmem:[#allocation7 + $0x8] sm:$0xf]
        %v749 = vld [vmem:[#allocation7 + $0xc] sm:$0xf]
        %v750 = vld [vmem:[#allocation7 + $0x10] sm:$0xf]
        %v751 = vld [vmem:[#allocation7 + $0x14] sm:$0xf]
        %v752 = vld [vmem:[#allocation7 + $0x18] sm:$0xf]
        %v753 = vld [vmem:[#allocation7 + $0x1c] sm:$0xf]
        %v754 = vld [vmem:[#allocation7 + $0x20] sm:$0xf]
        %v755 = vld [vmem:[#allocation7 + $0x24] sm:$0xf]
        %v756 = vld [vmem:[#allocation7 + $0x28] sm:$0xf]
        %v757 = vld [vmem:[#allocation7 + $0x2c] sm:$0xf]
        %v758 = vld [vmem:[#allocation7 + $0x30] sm:$0xf]
        %v759 = vld [vmem:[#allocation7 + $0x34] sm:$0xf]
        %v760 = vld [vmem:[#allocation7 + $0x38] sm:$0xf]
        %v761 = vld [vmem:[#allocation7 + $0x3c] sm:$0xf]
        %v762 = vld [vmem:[#allocation8] sm:$0x1]
        %v764 = vperm.slane %v762, 0
        %v782 = vunpack.c.l.b16 %v746
        %v783 = vunpack.c.l.b16 %v747
        %v784 = vunpack.c.l.b16 %v748
        %v785 = vunpack.c.l.b16 %v749
        %v786 = vunpack.c.l.b16 %v750
        %v787 = vunpack.c.l.b16 %v751
        %v788 = vunpack.c.l.b16 %v752
        %v789 = vunpack.c.l.b16 %v753
        %v790 = vunpack.c.l.b16 %v754
        %v791 = vunpack.c.l.b16 %v755
        %v792 = vunpack.c.l.b16 %v756
        %v793 = vunpack.c.l.b16 %v757
        %v794 = vunpack.c.l.b16 %v758
        %v795 = vunpack.c.l.b16 %v759
        %v796 = vunpack.c.l.b16 %v760
        %v797 = vunpack.c.l.b16 %v761
        %v798 = vpack.c.b16 %v783, %v782
        %v799 = vpack.c.b16 %v785, %v784
        %v800 = vpack.c.b16 %v787, %v786
        %v801 = vpack.c.b16 %v789, %v788
        %v802 = vpack.c.b16 %v791, %v790
        %v803 = vpack.c.b16 %v793, %v792
        %v804 = vpack.c.b16 %v795, %v794
        %v805 = vpack.c.b16 %v797, %v796
        %814 = vmatpush.bf16.msra.mxu0 %v805
        %815 = vmatpush.bf16.msra.mxu0 %v804
        %816 = vmatpush.bf16.msra.mxu0 %v803
        %817 = vmatpush.bf16.msra.mxu0 %v802
        %818 = vmatpush.bf16.msra.mxu0 %v801
        %819 = vmatpush.bf16.msra.mxu0 %v800
        %820 = vmatpush.bf16.msra.mxu0 %v799
        %821 = vmatpush.bf16.msra.mxu0 %v798
        %822 = vmatmul.bf16.gmra.mxu0 %v738
        %v823 = vpop.f32.mrf.mxu0
        %v824 = vadd.f32 %v764, %v823
        %v825 = vpop.f32.mrf.mxu0
        %v826 = vadd.f32 %v764, %v825
        %827 = vmatmul.bf16.gmra.mxu0 %v739
        %v828 = vpop.f32.mrf.mxu0
        %v829 = vadd.f32 %v764, %v828
        %v830 = vpop.f32.mrf.mxu0
        %v831 = vadd.f32 %v764, %v830
        %832 = vmatmul.bf16.gmra.mxu0 %v740
        %v833 = vpop.f32.mrf.mxu0
        %v834 = vadd.f32 %v764, %v833
        %v835 = vpop.f32.mrf.mxu0
        %v836 = vadd.f32 %v764, %v835
        %837 = vmatmul.bf16.gmra.mxu0 %v741
        %v838 = vpop.f32.mrf.mxu0
        %v839 = vadd.f32 %v764, %v838
        %v840 = vpop.f32.mrf.mxu0
        %v841 = vadd.f32 %v764, %v840
        %842 = vmatmul.bf16.gmra.mxu0 %v742
        %v843 = vpop.f32.mrf.mxu0
        %v844 = vadd.f32 %v764, %v843
        %v845 = vpop.f32.mrf.mxu0
        %v846 = vadd.f32 %v764, %v845
        %847 = vmatmul.bf16.gmra.mxu0 %v743
        %v848 = vpop.f32.mrf.mxu0
        %v849 = vadd.f32 %v764, %v848
        %v850 = vpop.f32.mrf.mxu0
        %v851 = vadd.f32 %v764, %v850
        %852 = vmatmul.bf16.gmra.mxu0 %v744
        %v853 = vpop.f32.mrf.mxu0
        %v854 = vadd.f32 %v764, %v853
        %v855 = vpop.f32.mrf.mxu0
        %v856 = vadd.f32 %v764, %v855
        %857 = vmatmul.bf16.gmra.mxu0 %v745
        %v858 = vpop.f32.mrf.mxu0
        %v859 = vadd.f32 %v764, %v858
        %v860 = vpop.f32.mrf.mxu0
        %v861 = vadd.f32 %v764, %v860
        %862 = vdwg.mxu0
        %v863 = vpack.c.bf16 %v723, %v722
        %v864 = vpack.c.bf16 %v725, %v724
        %v865 = vpack.c.bf16 %v727, %v726
        %v866 = vpack.c.bf16 %v729, %v728
        %v867 = vpack.c.bf16 %v731, %v730
        %v868 = vpack.c.bf16 %v733, %v732
        %v869 = vpack.c.bf16 %v735, %v734
        %v870 = vpack.c.bf16 %v737, %v736
        %v871 = vld [vmem:[#allocation10] sm:$0xff]
        %v872 = vld [vmem:[#allocation10 + $0x8] sm:$0xff]
        %v873 = vld [vmem:[#allocation10 + $0x10] sm:$0xff]
        %v874 = vld [vmem:[#allocation10 + $0x18] sm:$0xff]
        %v875 = vld [vmem:[#allocation10 + $0x20] sm:$0xff]
        %v876 = vld [vmem:[#allocation10 + $0x28] sm:$0xff]
        %v877 = vld [vmem:[#allocation10 + $0x30] sm:$0xff]
        %v878 = vld [vmem:[#allocation10 + $0x38] sm:$0xff]
        %v879 = vld [vmem:[#allocation10 + $0x40] sm:$0xff]
        %v880 = vld [vmem:[#allocation10 + $0x48] sm:$0xff]
        %v881 = vld [vmem:[#allocation10 + $0x50] sm:$0xff]
        %v882 = vld [vmem:[#allocation10 + $0x58] sm:$0xff]
        %v883 = vld [vmem:[#allocation10 + $0x60] sm:$0xff]
        %v884 = vld [vmem:[#allocation10 + $0x68] sm:$0xff]
        %v885 = vld [vmem:[#allocation10 + $0x70] sm:$0xff]
        %v886 = vld [vmem:[#allocation10 + $0x78] sm:$0xff]
        %v887 = vld [vmem:[%s695] sm:$0x3]
        %v889 = vperm.slane %v887, 0
        %v890 = vperm.slane %v887, 1
        %v909 = vunpack.c.l.b16 %v871
        %v910 = vunpack.c.h.b16 %v871
        %v911 = vunpack.c.l.b16 %v872
        %v912 = vunpack.c.h.b16 %v872
        %v913 = vunpack.c.l.b16 %v873
        %v914 = vunpack.c.h.b16 %v873
        %v915 = vunpack.c.l.b16 %v874
        %v916 = vunpack.c.h.b16 %v874
        %v917 = vunpack.c.l.b16 %v875
        %v918 = vunpack.c.h.b16 %v875
        %v919 = vunpack.c.l.b16 %v876
        %v920 = vunpack.c.h.b16 %v876
        %v921 = vunpack.c.l.b16 %v877
        %v922 = vunpack.c.h.b16 %v877
        %v923 = vunpack.c.l.b16 %v878
        %v924 = vunpack.c.h.b16 %v878
        %v925 = vunpack.c.l.b16 %v879
        %v926 = vunpack.c.h.b16 %v879
        %v927 = vunpack.c.l.b16 %v880
        %v928 = vunpack.c.h.b16 %v880
        %v929 = vunpack.c.l.b16 %v881
        %v930 = vunpack.c.h.b16 %v881
        %v931 = vunpack.c.l.b16 %v882
        %v932 = vunpack.c.h.b16 %v882
        %v933 = vunpack.c.l.b16 %v883
        %v934 = vunpack.c.h.b16 %v883
        %v935 = vunpack.c.l.b16 %v884
        %v936 = vunpack.c.h.b16 %v884
        %v937 = vunpack.c.l.b16 %v885
        %v938 = vunpack.c.h.b16 %v885
        %v939 = vunpack.c.l.b16 %v886
        %v940 = vunpack.c.h.b16 %v886
        %v941 = vpack.c.b16 %v911, %v909
        %v942 = vpack.c.b16 %v912, %v910
        %v943 = vpack.c.b16 %v915, %v913
        %v944 = vpack.c.b16 %v916, %v914
        %v945 = vpack.c.b16 %v919, %v917
        %v946 = vpack.c.b16 %v920, %v918
        %v947 = vpack.c.b16 %v923, %v921
        %v948 = vpack.c.b16 %v924, %v922
        %v949 = vpack.c.b16 %v927, %v925
        %v950 = vpack.c.b16 %v928, %v926
        %v951 = vpack.c.b16 %v931, %v929
        %v952 = vpack.c.b16 %v932, %v930
        %v953 = vpack.c.b16 %v935, %v933
        %v954 = vpack.c.b16 %v936, %v934
        %v955 = vpack.c.b16 %v939, %v937
        %v956 = vpack.c.b16 %v940, %v938
        %973 = vmatpush.bf16.msra.mxu0 %v955
        %974 = vmatpush.bf16.msra.mxu0 %v953
        %975 = vmatpush.bf16.msra.mxu0 %v951
        %976 = vmatpush.bf16.msra.mxu0 %v949
        %977 = vmatpush.bf16.msra.mxu0 %v947
        %978 = vmatpush.bf16.msra.mxu0 %v945
        %979 = vmatpush.bf16.msra.mxu0 %v943
        %980 = vmatpush.bf16.msra.mxu0 %v941
        %981 = vmatmul.bf16.gmra.mxu0 %v863
        %v982 = vpop.f32.mrf.mxu0
        %v983 = vadd.f32 %v889, %v982
        %v984 = vpop.f32.mrf.mxu0
        %v985 = vadd.f32 %v889, %v984
        %986 = vmatmul.bf16.gmra.mxu0 %v864
        %v987 = vpop.f32.mrf.mxu0
        %v988 = vadd.f32 %v889, %v987
        %v989 = vpop.f32.mrf.mxu0
        %v990 = vadd.f32 %v889, %v989
        %991 = vmatmul.bf16.gmra.mxu0 %v865
        %v992 = vpop.f32.mrf.mxu0
        %v993 = vadd.f32 %v889, %v992
        %v994 = vpop.f32.mrf.mxu0
        %v995 = vadd.f32 %v889, %v994
        %996 = vmatmul.bf16.gmra.mxu0 %v866
        %v997 = vpop.f32.mrf.mxu0
        %v998 = vadd.f32 %v889, %v997
        %v999 = vpop.f32.mrf.mxu0
        %v1000 = vadd.f32 %v889, %v999
        %1001 = vmatmul.bf16.gmra.mxu0 %v867
        %v1002 = vpop.f32.mrf.mxu0
        %v1003 = vadd.f32 %v889, %v1002
        %v1004 = vpop.f32.mrf.mxu0
        %v1005 = vadd.f32 %v889, %v1004
        %1006 = vmatmul.bf16.gmra.mxu0 %v868
        %v1007 = vpop.f32.mrf.mxu0
        %v1008 = vadd.f32 %v889, %v1007
        %v1009 = vpop.f32.mrf.mxu0
        %v1010 = vadd.f32 %v889, %v1009
        %1011 = vmatmul.bf16.gmra.mxu0 %v869
        %v1012 = vpop.f32.mrf.mxu0
        %v1013 = vadd.f32 %v889, %v1012
        %v1014 = vpop.f32.mrf.mxu0
        %v1015 = vadd.f32 %v889, %v1014
        %1016 = vmatmul.bf16.gmra.mxu0 %v870
        %v1017 = vpop.f32.mrf.mxu0
        %v1018 = vadd.f32 %v889, %v1017
        %v1019 = vpop.f32.mrf.mxu0
        %v1020 = vadd.f32 %v889, %v1019
        %1021 = vdwg.mxu0
        %1022 = vmatpush.bf16.msra.mxu0 %v956
        %1023 = vmatpush.bf16.msra.mxu0 %v954
        %1024 = vmatpush.bf16.msra.mxu0 %v952
        %1025 = vmatpush.bf16.msra.mxu0 %v950
        %1026 = vmatpush.bf16.msra.mxu0 %v948
        %1027 = vmatpush.bf16.msra.mxu0 %v946
        %1028 = vmatpush.bf16.msra.mxu0 %v944
        %1029 = vmatpush.bf16.msra.mxu0 %v942
        %1030 = vmatmul.bf16.gmra.mxu0 %v863
        %v1031 = vpop.f32.mrf.mxu0
        %v1032 = vadd.f32 %v890, %v1031
        %v1033 = vpop.f32.mrf.mxu0
        %v1034 = vadd.f32 %v890, %v1033
        %1035 = vmatmul.bf16.gmra.mxu0 %v864
        %v1036 = vpop.f32.mrf.mxu0
        %v1037 = vadd.f32 %v890, %v1036
        %v1038 = vpop.f32.mrf.mxu0
        %v1039 = vadd.f32 %v890, %v1038
        %1040 = vmatmul.bf16.gmra.mxu0 %v865
        %v1041 = vpop.f32.mrf.mxu0
        %v1042 = vadd.f32 %v890, %v1041
        %v1043 = vpop.f32.mrf.mxu0
        %v1044 = vadd.f32 %v890, %v1043
        %1045 = vmatmul.bf16.gmra.mxu0 %v866
        %v1046 = vpop.f32.mrf.mxu0
        %v1047 = vadd.f32 %v890, %v1046
        %v1048 = vpop.f32.mrf.mxu0
        %v1049 = vadd.f32 %v890, %v1048
        %1050 = vmatmul.bf16.gmra.mxu0 %v867
        %v1051 = vpop.f32.mrf.mxu0
        %v1052 = vadd.f32 %v890, %v1051
        %v1053 = vpop.f32.mrf.mxu0
        %v1054 = vadd.f32 %v890, %v1053
        %1055 = vmatmul.bf16.gmra.mxu0 %v868
        %v1056 = vpop.f32.mrf.mxu0
        %v1057 = vadd.f32 %v890, %v1056
        %v1058 = vpop.f32.mrf.mxu0
        %v1059 = vadd.f32 %v890, %v1058
        %1060 = vmatmul.bf16.gmra.mxu0 %v869
        %v1061 = vpop.f32.mrf.mxu0
        %v1062 = vadd.f32 %v890, %v1061
        %v1063 = vpop.f32.mrf.mxu0
        %v1064 = vadd.f32 %v890, %v1063
        %1065 = vmatmul.bf16.gmra.mxu0 %v870
        %v1066 = vpop.f32.mrf.mxu0
        %v1067 = vadd.f32 %v890, %v1066
        %v1068 = vpop.f32.mrf.mxu0
        %v1069 = vadd.f32 %v890, %v1068
        %1070 = vdwg.mxu0
        %v1071 = vpack.c.bf16 %v824, %v824
        %v1072 = vpack.c.bf16 %v826, %v826
        %v1073 = vpack.c.bf16 %v829, %v829
        %v1074 = vpack.c.bf16 %v831, %v831
        %v1075 = vpack.c.bf16 %v834, %v834
        %v1076 = vpack.c.bf16 %v836, %v836
        %v1077 = vpack.c.bf16 %v839, %v839
        %v1078 = vpack.c.bf16 %v841, %v841
        %v1079 = vpack.c.bf16 %v844, %v844
        %v1080 = vpack.c.bf16 %v846, %v846
        %v1081 = vpack.c.bf16 %v849, %v849
        %v1082 = vpack.c.bf16 %v851, %v851
        %v1083 = vpack.c.bf16 %v854, %v854
        %v1084 = vpack.c.bf16 %v856, %v856
        %v1085 = vpack.c.bf16 %v859, %v859
        %v1086 = vpack.c.bf16 %v861, %v861
        %v1087 = vpack.c.bf16 %v983, %v983
        %v1088 = vpack.c.bf16 %v985, %v985
        %v1089 = vpack.c.bf16 %v988, %v988
        %v1090 = vpack.c.bf16 %v990, %v990
        %v1091 = vpack.c.bf16 %v993, %v993
        %v1092 = vpack.c.bf16 %v995, %v995
        %v1093 = vpack.c.bf16 %v998, %v998
        %v1094 = vpack.c.bf16 %v1000, %v1000
        %v1095 = vpack.c.bf16 %v1003, %v1003
        %v1096 = vpack.c.bf16 %v1005, %v1005
        %v1097 = vpack.c.bf16 %v1008, %v1008
        %v1098 = vpack.c.bf16 %v1010, %v1010
        %v1099 = vpack.c.bf16 %v1013, %v1013
        %v1100 = vpack.c.bf16 %v1015, %v1015
        %v1101 = vpack.c.bf16 %v1018, %v1018
        %v1102 = vpack.c.bf16 %v1020, %v1020
        %v1103 = vpack.c.bf16 %v1032, %v1032
        %v1104 = vpack.c.bf16 %v1034, %v1034
        %v1105 = vpack.c.bf16 %v1037, %v1037
        %v1106 = vpack.c.bf16 %v1039, %v1039
        %v1107 = vpack.c.bf16 %v1042, %v1042
        %v1108 = vpack.c.bf16 %v1044, %v1044
        %v1109 = vpack.c.bf16 %v1047, %v1047
        %v1110 = vpack.c.bf16 %v1049, %v1049
        %v1111 = vpack.c.bf16 %v1052, %v1052
        %v1112 = vpack.c.bf16 %v1054, %v1054
        %v1113 = vpack.c.bf16 %v1057, %v1057
        %v1114 = vpack.c.bf16 %v1059, %v1059
        %v1115 = vpack.c.bf16 %v1062, %v1062
        %v1116 = vpack.c.bf16 %v1064, %v1064
        %v1117 = vpack.c.bf16 %v1067, %v1067
        %v1118 = vpack.c.bf16 %v1069, %v1069
        %v1121 = vunpack.c.l.b16 %v1071
        %v1122 = vunpack.c.l.b16 %v1072
        %v1123 = vpack.c.b16 %v1122, %v1121
        %v1127 = vunpack.c.l.b16 %v1087
        %v1128 = vunpack.c.l.b16 %v1088
        %v1129 = vpack.c.b16 %v1128, %v1127
        %1131 = vmatpush.bf16.xpose.msra.mxu0 0
        %1132 = vmatpush.bf16.xpose.msra.mxu0 0
        %1133 = vmatpush.bf16.xpose.msra.mxu0 0
        %1134 = vmatpush.bf16.xpose.msra.mxu0 0
        %1135 = vmatpush.bf16.xpose.msra.mxu0 0
        %1136 = vmatpush.bf16.xpose.msra.mxu0 0
        %1137 = vmatpush.bf16.xpose.msra.mxu0 0
        %1138 = vmatpush.bf16.xpose.msra.mxu0 %v1129
        %1139 = vmatmul.bf16.gmra.mxu0 %v1123
        %v1140 = vpop.f32.mrf.mxu0
        %v1141 = vadd.f32 0.0, %v1140
        %v1142 = vpop.f32.mrf.mxu0
        %v1143 = vadd.f32 0.0, %v1142
        %1144 = vdwg.mxu0
        %v1147 = vunpack.c.l.b16 %v1073
        %v1148 = vunpack.c.l.b16 %v1074
        %v1149 = vpack.c.b16 %v1148, %v1147
        %v1153 = vunpack.c.l.b16 %v1089
        %v1154 = vunpack.c.l.b16 %v1090
        %v1155 = vpack.c.b16 %v1154, %v1153
        %1157 = vmatpush.bf16.xpose.msra.mxu0 0
        %1158 = vmatpush.bf16.xpose.msra.mxu0 0
        %1159 = vmatpush.bf16.xpose.msra.mxu0 0
        %1160 = vmatpush.bf16.xpose.msra.mxu0 0
        %1161 = vmatpush.bf16.xpose.msra.mxu0 0
        %1162 = vmatpush.bf16.xpose.msra.mxu0 0
        %1163 = vmatpush.bf16.xpose.msra.mxu0 0
        %1164 = vmatpush.bf16.xpose.msra.mxu0 %v1155
        %1165 = vmatmul.bf16.gmra.mxu0 %v1149
        %v1166 = vpop.f32.mrf.mxu0
        %v1167 = vadd.f32 0.0, %v1166
        %v1168 = vpop.f32.mrf.mxu0
        %v1169 = vadd.f32 0.0, %v1168
        %1170 = vdwg.mxu0
        %v1173 = vunpack.c.l.b16 %v1075
        %v1174 = vunpack.c.l.b16 %v1076
        %v1175 = vpack.c.b16 %v1174, %v1173
        %v1179 = vunpack.c.l.b16 %v1091
        %v1180 = vunpack.c.l.b16 %v1092
        %v1181 = vpack.c.b16 %v1180, %v1179
        %1183 = vmatpush.bf16.xpose.msra.mxu0 0
        %1184 = vmatpush.bf16.xpose.msra.mxu0 0
        %1185 = vmatpush.bf16.xpose.msra.mxu0 0
        %1186 = vmatpush.bf16.xpose.msra.mxu0 0
        %1187 = vmatpush.bf16.xpose.msra.mxu0 0
        %1188 = vmatpush.bf16.xpose.msra.mxu0 0
        %1189 = vmatpush.bf16.xpose.msra.mxu0 0
        %1190 = vmatpush.bf16.xpose.msra.mxu0 %v1181
        %1191 = vmatmul.bf16.gmra.mxu0 %v1175
        %v1192 = vpop.f32.mrf.mxu0
        %v1193 = vadd.f32 0.0, %v1192
        %v1194 = vpop.f32.mrf.mxu0
        %v1195 = vadd.f32 0.0, %v1194
        %1196 = vdwg.mxu0
        %v1199 = vunpack.c.l.b16 %v1077
        %v1200 = vunpack.c.l.b16 %v1078
        %v1201 = vpack.c.b16 %v1200, %v1199
        %v1205 = vunpack.c.l.b16 %v1093
        %v1206 = vunpack.c.l.b16 %v1094
        %v1207 = vpack.c.b16 %v1206, %v1205
        %1209 = vmatpush.bf16.xpose.msra.mxu0 0
        %1210 = vmatpush.bf16.xpose.msra.mxu0 0
        %1211 = vmatpush.bf16.xpose.msra.mxu0 0
        %1212 = vmatpush.bf16.xpose.msra.mxu0 0
        %1213 = vmatpush.bf16.xpose.msra.mxu0 0
        %1214 = vmatpush.bf16.xpose.msra.mxu0 0
        %1215 = vmatpush.bf16.xpose.msra.mxu0 0
        %1216 = vmatpush.bf16.xpose.msra.mxu0 %v1207
        %1217 = vmatmul.bf16.gmra.mxu0 %v1201
        %v1218 = vpop.f32.mrf.mxu0
        %v1219 = vadd.f32 0.0, %v1218
        %v1220 = vpop.f32.mrf.mxu0
        %v1221 = vadd.f32 0.0, %v1220
        %1222 = vdwg.mxu0
        %v1225 = vunpack.c.l.b16 %v1079
        %v1226 = vunpack.c.l.b16 %v1080
        %v1227 = vpack.c.b16 %v1226, %v1225
        %v1231 = vunpack.c.l.b16 %v1095
        %v1232 = vunpack.c.l.b16 %v1096
        %v1233 = vpack.c.b16 %v1232, %v1231
        %1235 = vmatpush.bf16.xpose.msra.mxu0 0
        %1236 = vmatpush.bf16.xpose.msra.mxu0 0
        %1237 = vmatpush.bf16.xpose.msra.mxu0 0
        %1238 = vmatpush.bf16.xpose.msra.mxu0 0
        %1239 = vmatpush.bf16.xpose.msra.mxu0 0
        %1240 = vmatpush.bf16.xpose.msra.mxu0 0
        %1241 = vmatpush.bf16.xpose.msra.mxu0 0
        %1242 = vmatpush.bf16.xpose.msra.mxu0 %v1233
        %1243 = vmatmul.bf16.gmra.mxu0 %v1227
        %v1244 = vpop.f32.mrf.mxu0
        %v1245 = vadd.f32 0.0, %v1244
        %v1246 = vpop.f32.mrf.mxu0
        %v1247 = vadd.f32 0.0, %v1246
        %1248 = vdwg.mxu0
        %v1251 = vunpack.c.l.b16 %v1081
        %v1252 = vunpack.c.l.b16 %v1082
        %v1253 = vpack.c.b16 %v1252, %v1251
        %v1257 = vunpack.c.l.b16 %v1097
        %v1258 = vunpack.c.l.b16 %v1098
        %v1259 = vpack.c.b16 %v1258, %v1257
        %1261 = vmatpush.bf16.xpose.msra.mxu0 0
        %1262 = vmatpush.bf16.xpose.msra.mxu0 0
        %1263 = vmatpush.bf16.xpose.msra.mxu0 0
        %1264 = vmatpush.bf16.xpose.msra.mxu0 0
        %1265 = vmatpush.bf16.xpose.msra.mxu0 0
        %1266 = vmatpush.bf16.xpose.msra.mxu0 0
        %1267 = vmatpush.bf16.xpose.msra.mxu0 0
        %1268 = vmatpush.bf16.xpose.msra.mxu0 %v1259
        %1269 = vmatmul.bf16.gmra.mxu0 %v1253
        %v1270 = vpop.f32.mrf.mxu0
        %v1271 = vadd.f32 0.0, %v1270
        %v1272 = vpop.f32.mrf.mxu0
        %v1273 = vadd.f32 0.0, %v1272
        %1274 = vdwg.mxu0
        %v1277 = vunpack.c.l.b16 %v1083
        %v1278 = vunpack.c.l.b16 %v1084
        %v1279 = vpack.c.b16 %v1278, %v1277
        %v1283 = vunpack.c.l.b16 %v1099
        %v1284 = vunpack.c.l.b16 %v1100
        %v1285 = vpack.c.b16 %v1284, %v1283
        %1287 = vmatpush.bf16.xpose.msra.mxu0 0
        %1288 = vmatpush.bf16.xpose.msra.mxu0 0
        %1289 = vmatpush.bf16.xpose.msra.mxu0 0
        %1290 = vmatpush.bf16.xpose.msra.mxu0 0
        %1291 = vmatpush.bf16.xpose.msra.mxu0 0
        %1292 = vmatpush.bf16.xpose.msra.mxu0 0
        %1293 = vmatpush.bf16.xpose.msra.mxu0 0
        %1294 = vmatpush.bf16.xpose.msra.mxu0 %v1285
        %1295 = vmatmul.bf16.gmra.mxu0 %v1279
        %v1296 = vpop.f32.mrf.mxu0
        %v1297 = vadd.f32 0.0, %v1296
        %v1298 = vpop.f32.mrf.mxu0
        %v1299 = vadd.f32 0.0, %v1298
        %1300 = vdwg.mxu0
        %v1303 = vunpack.c.l.b16 %v1085
        %v1304 = vunpack.c.l.b16 %v1086
        %v1305 = vpack.c.b16 %v1304, %v1303
        %v1309 = vunpack.c.l.b16 %v1101
        %v1310 = vunpack.c.l.b16 %v1102
        %v1311 = vpack.c.b16 %v1310, %v1309
        %1313 = vmatpush.bf16.xpose.msra.mxu0 0
        %1314 = vmatpush.bf16.xpose.msra.mxu0 0
        %1315 = vmatpush.bf16.xpose.msra.mxu0 0
        %1316 = vmatpush.bf16.xpose.msra.mxu0 0
        %1317 = vmatpush.bf16.xpose.msra.mxu0 0
        %1318 = vmatpush.bf16.xpose.msra.mxu0 0
        %1319 = vmatpush.bf16.xpose.msra.mxu0 0
        %1320 = vmatpush.bf16.xpose.msra.mxu0 %v1311
        %1321 = vmatmul.bf16.gmra.mxu0 %v1305
        %v1322 = vpop.f32.mrf.mxu0
        %v1323 = vadd.f32 0.0, %v1322
        %v1324 = vpop.f32.mrf.mxu0
        %v1325 = vadd.f32 0.0, %v1324
        %1326 = vdwg.mxu0
        %v1327 = vmul.f32 %v1141, 0.088388346
        %v1328 = vmul.f32 %v1143, 0.088388346
        %v1329 = vmul.f32 %v1167, 0.088388346
        %v1330 = vmul.f32 %v1169, 0.088388346
        %v1331 = vmul.f32 %v1193, 0.088388346
        %v1332 = vmul.f32 %v1195, 0.088388346
        %v1333 = vmul.f32 %v1219, 0.088388346
        %v1334 = vmul.f32 %v1221, 0.088388346
        %v1335 = vmul.f32 %v1245, 0.088388346
        %v1336 = vmul.f32 %v1247, 0.088388346
        %v1337 = vmul.f32 %v1271, 0.088388346
        %v1338 = vmul.f32 %v1273, 0.088388346
        %v1339 = vmul.f32 %v1297, 0.088388346
        %v1340 = vmul.f32 %v1299, 0.088388346
        %v1341 = vmul.f32 %v1323, 0.088388346
        %v1342 = vmul.f32 %v1325, 0.088388346
        %v1343 = vlaneseq
        %v1344 = vand.u32 %v1343, 127
        %vm1345 = vcmp.lt.s32.totalorder %v1344, 9
        %v1346 = vsel %vm1345, 0.0, -1e+30
        %v1347 = vadd.f32 %v1327, %v1346
        %v1348 = vadd.f32 %v1328, %v1346
        %v1349 = vadd.f32 %v1329, %v1346
        %v1350 = vadd.f32 %v1330, %v1346
        %v1351 = vadd.f32 %v1331, %v1346
        %v1352 = vadd.f32 %v1332, %v1346
        %v1353 = vadd.f32 %v1333, %v1346
        %v1354 = vadd.f32 %v1334, %v1346
        %v1355 = vadd.f32 %v1335, %v1346
        %v1356 = vadd.f32 %v1336, %v1346
        %v1357 = vadd.f32 %v1337, %v1346
        %v1358 = vadd.f32 %v1338, %v1346
        %v1359 = vadd.f32 %v1339, %v1346
        %v1360 = vadd.f32 %v1340, %v1346
        %v1361 = vadd.f32 %v1341, %v1346
        %v1362 = vadd.f32 %v1342, %v1346
        %vm1363 = vcmask 130048
        %v1364 = vsel %vm1363, %v1347, -inf
        %1365 = vmax.xlane.f32.xlu0 %v1364
        %v1366 = vpop.xlane.xlu0 %1365
        %v1367 = vsel %vm1363, %v1348, -inf
        %1368 = vmax.xlane.f32.xlu0 %v1367
        %v1369 = vpop.xlane.xlu0 %1368
        %v1370 = vsel %vm1363, %v1349, -inf
        %1371 = vmax.xlane.f32.xlu0 %v1370
        %v1372 = vpop.xlane.xlu0 %1371
        %v1373 = vsel %vm1363, %v1350, -inf
        %1374 = vmax.xlane.f32.xlu0 %v1373
        %v1375 = vpop.xlane.xlu0 %1374
        %v1376 = vsel %vm1363, %v1351, -inf
        %1377 = vmax.xlane.f32.xlu0 %v1376
        %v1378 = vpop.xlane.xlu0 %1377
        %v1379 = vsel %vm1363, %v1352, -inf
        %1380 = vmax.xlane.f32.xlu0 %v1379
        %v1381 = vpop.xlane.xlu0 %1380
        %v1382 = vsel %vm1363, %v1353, -inf
        %1383 = vmax.xlane.f32.xlu0 %v1382
        %v1384 = vpop.xlane.xlu0 %1383
        %v1385 = vsel %vm1363, %v1354, -inf
        %1386 = vmax.xlane.f32.xlu0 %v1385
        %v1387 = vpop.xlane.xlu0 %1386
        %v1388 = vsel %vm1363, %v1355, -inf
        %1389 = vmax.xlane.f32.xlu0 %v1388
        %v1390 = vpop.xlane.xlu0 %1389
        %v1391 = vsel %vm1363, %v1356, -inf
        %1392 = vmax.xlane.f32.xlu0 %v1391
        %v1393 = vpop.xlane.xlu0 %1392
        %v1394 = vsel %vm1363, %v1357, -inf
        %1395 = vmax.xlane.f32.xlu0 %v1394
        %v1396 = vpop.xlane.xlu0 %1395
        %v1397 = vsel %vm1363, %v1358, -inf
        %1398 = vmax.xlane.f32.xlu0 %v1397
        %v1399 = vpop.xlane.xlu0 %1398
        %v1400 = vsel %vm1363, %v1359, -inf
        %1401 = vmax.xlane.f32.xlu0 %v1400
        %v1402 = vpop.xlane.xlu0 %1401
        %v1403 = vsel %vm1363, %v1360, -inf
        %1404 = vmax.xlane.f32.xlu0 %v1403
        %v1405 = vpop.xlane.xlu0 %1404
        %v1406 = vsel %vm1363, %v1361, -inf
        %1407 = vmax.xlane.f32.xlu0 %v1406
        %v1408 = vpop.xlane.xlu0 %1407
        %v1409 = vsel %vm1363, %v1362, -inf
        %1410 = vmax.xlane.f32.xlu0 %v1409
        %v1411 = vpop.xlane.xlu0 %1410
        %v1412 = vsub.f32 %v1347, %v1366
        %v1413 = vsub.f32 %v1348, %v1369
        %v1414 = vsub.f32 %v1349, %v1372
        %v1415 = vsub.f32 %v1350, %v1375
        %v1416 = vsub.f32 %v1351, %v1378
        %v1417 = vsub.f32 %v1352, %v1381
        %v1418 = vsub.f32 %v1353, %v1384
        %v1419 = vsub.f32 %v1354, %v1387
        %v1420 = vsub.f32 %v1355, %v1390
        %v1421 = vsub.f32 %v1356, %v1393
        %v1422 = vsub.f32 %v1357, %v1396
        %v1423 = vsub.f32 %v1358, %v1399
        %v1424 = vsub.f32 %v1359, %v1402
        %v1425 = vsub.f32 %v1360, %v1405
        %v1426 = vsub.f32 %v1361, %v1408
        %v1427 = vsub.f32 %v1362, %v1411
        %v1428 = vmul.f32 %v1412, 1.442695
        %v1429 = vpow.pop %v1428
        %v1430 = vmul.f32 %v1413, 1.442695
        %v1431 = vpow.pop %v1430
        %v1432 = vmul.f32 %v1414, 1.442695
        %v1433 = vpow.pop %v1432
        %v1434 = vmul.f32 %v1415, 1.442695
        %v1435 = vpow.pop %v1434
        %v1436 = vmul.f32 %v1416, 1.442695
        %v1437 = vpow.pop %v1436
        %v1438 = vmul.f32 %v1417, 1.442695
        %v1439 = vpow.pop %v1438
        %v1440 = vmul.f32 %v1418, 1.442695
        %v1441 = vpow.pop %v1440
        %v1442 = vmul.f32 %v1419, 1.442695
        %v1443 = vpow.pop %v1442
        %v1444 = vmul.f32 %v1420, 1.442695
        %v1445 = vpow.pop %v1444
        %v1446 = vmul.f32 %v1421, 1.442695
        %v1447 = vpow.pop %v1446
        %v1448 = vmul.f32 %v1422, 1.442695
        %v1449 = vpow.pop %v1448
        %v1450 = vmul.f32 %v1423, 1.442695
        %v1451 = vpow.pop %v1450
        %v1452 = vmul.f32 %v1424, 1.442695
        %v1453 = vpow.pop %v1452
        %v1454 = vmul.f32 %v1425, 1.442695
        %v1455 = vpow.pop %v1454
        %v1456 = vmul.f32 %v1426, 1.442695
        %v1457 = vpow.pop %v1456
        %v1458 = vmul.f32 %v1427, 1.442695
        %v1459 = vpow.pop %v1458
        %v1460 = vsel %vm1363, %v1429, 0.0
        %1461 = vadd.xlane.f32.xlu0 %v1460
        %v1462 = vpop.xlane.xlu0 %1461
        %v1463 = vsel %vm1363, %v1431, 0.0
        %1464 = vadd.xlane.f32.xlu0 %v1463
        %v1465 = vpop.xlane.xlu0 %1464
        %v1466 = vsel %vm1363, %v1433, 0.0
        %1467 = vadd.xlane.f32.xlu0 %v1466
        %v1468 = vpop.xlane.xlu0 %1467
        %v1469 = vsel %vm1363, %v1435, 0.0
        %1470 = vadd.xlane.f32.xlu0 %v1469
        %v1471 = vpop.xlane.xlu0 %1470
        %v1472 = vsel %vm1363, %v1437, 0.0
        %1473 = vadd.xlane.f32.xlu0 %v1472
        %v1474 = vpop.xlane.xlu0 %1473
        %v1475 = vsel %vm1363, %v1439, 0.0
        %1476 = vadd.xlane.f32.xlu0 %v1475
        %v1477 = vpop.xlane.xlu0 %1476
        %v1478 = vsel %vm1363, %v1441, 0.0
        %1479 = vadd.xlane.f32.xlu0 %v1478
        %v1480 = vpop.xlane.xlu0 %1479
        %v1481 = vsel %vm1363, %v1443, 0.0
        %1482 = vadd.xlane.f32.xlu0 %v1481
        %v1483 = vpop.xlane.xlu0 %1482
        %v1484 = vsel %vm1363, %v1445, 0.0
        %1485 = vadd.xlane.f32.xlu0 %v1484
        %v1486 = vpop.xlane.xlu0 %1485
        %v1487 = vsel %vm1363, %v1447, 0.0
        %1488 = vadd.xlane.f32.xlu0 %v1487
        %v1489 = vpop.xlane.xlu0 %1488
        %v1490 = vsel %vm1363, %v1449, 0.0
        %1491 = vadd.xlane.f32.xlu0 %v1490
        %v1492 = vpop.xlane.xlu0 %1491
        %v1493 = vsel %vm1363, %v1451, 0.0
        %1494 = vadd.xlane.f32.xlu0 %v1493
        %v1495 = vpop.xlane.xlu0 %1494
        %v1496 = vsel %vm1363, %v1453, 0.0
        %1497 = vadd.xlane.f32.xlu0 %v1496
        %v1498 = vpop.xlane.xlu0 %1497
        %v1499 = vsel %vm1363, %v1455, 0.0
        %1500 = vadd.xlane.f32.xlu0 %v1499
        %v1501 = vpop.xlane.xlu0 %1500
        %v1502 = vsel %vm1363, %v1457, 0.0
        %1503 = vadd.xlane.f32.xlu0 %v1502
        %v1504 = vpop.xlane.xlu0 %1503
        %v1505 = vsel %vm1363, %v1459, 0.0
        %1506 = vadd.xlane.f32.xlu0 %v1505
        %v1507 = vpop.xlane.xlu0 %1506
        %v1508 = vrcp.pop %v1462
        %v1509 = vrcp.pop %v1465
        %v1510 = vrcp.pop %v1468
        %v1511 = vrcp.pop %v1471
        %v1512 = vrcp.pop %v1474
        %v1513 = vrcp.pop %v1477
        %v1514 = vrcp.pop %v1480
        %v1515 = vrcp.pop %v1483
        %v1516 = vrcp.pop %v1486
        %v1517 = vrcp.pop %v1489
        %v1518 = vrcp.pop %v1492
        %v1519 = vrcp.pop %v1495
        %v1520 = vrcp.pop %v1498
        %v1521 = vrcp.pop %v1501
        %v1522 = vrcp.pop %v1504
        %v1523 = vrcp.pop %v1507
        %v1524 = vmul.f32 %v1429, %v1508
        %v1525 = vmul.f32 %v1431, %v1509
        %v1526 = vmul.f32 %v1433, %v1510
        %v1527 = vmul.f32 %v1435, %v1511
        %v1528 = vmul.f32 %v1437, %v1512
        %v1529 = vmul.f32 %v1439, %v1513
        %v1530 = vmul.f32 %v1441, %v1514
        %v1531 = vmul.f32 %v1443, %v1515
        %v1532 = vmul.f32 %v1445, %v1516
        %v1533 = vmul.f32 %v1447, %v1517
        %v1534 = vmul.f32 %v1449, %v1518
        %v1535 = vmul.f32 %v1451, %v1519
        %v1536 = vmul.f32 %v1453, %v1520
        %v1537 = vmul.f32 %v1455, %v1521
        %v1538 = vmul.f32 %v1457, %v1522
        %v1539 = vmul.f32 %v1459, %v1523
        %v1540 = vpack.c.bf16 %v1524, %v1524
        %v1541 = vpack.c.bf16 %v1525, %v1525
        %v1542 = vpack.c.bf16 %v1526, %v1526
        %v1543 = vpack.c.bf16 %v1527, %v1527
        %v1544 = vpack.c.bf16 %v1528, %v1528
        %v1545 = vpack.c.bf16 %v1529, %v1529
        %v1546 = vpack.c.bf16 %v1530, %v1530
        %v1547 = vpack.c.bf16 %v1531, %v1531
        %v1548 = vpack.c.bf16 %v1532, %v1532
        %v1549 = vpack.c.bf16 %v1533, %v1533
        %v1550 = vpack.c.bf16 %v1534, %v1534
        %v1551 = vpack.c.bf16 %v1535, %v1535
        %v1552 = vpack.c.bf16 %v1536, %v1536
        %v1553 = vpack.c.bf16 %v1537, %v1537
        %v1554 = vpack.c.bf16 %v1538, %v1538
        %v1555 = vpack.c.bf16 %v1539, %v1539
        %v1558 = vunpack.c.l.b16 %v1540
        %v1559 = vunpack.c.l.b16 %v1541
        %v1560 = vpack.c.b16 %v1559, %v1558
        %v1563 = vunpack.c.l.b16 %v1103
        %v1564 = vunpack.c.l.b16 %v1104
        %v1565 = vpack.c.b16 %v1564, %v1563
        %v1568 = vsel %vm1363, %v1560, 0
        %1570 = vmatpush.bf16.msra.mxu0 0
        %1571 = vmatpush.bf16.msra.mxu0 0
        %1572 = vmatpush.bf16.msra.mxu0 0
        %1573 = vmatpush.bf16.msra.mxu0 0
        %1574 = vmatpush.bf16.msra.mxu0 0
        %1575 = vmatpush.bf16.msra.mxu0 0
        %1576 = vmatpush.bf16.msra.mxu0 0
        %1577 = vmatpush.bf16.msra.mxu0 %v1565
        %1578 = vmatmul.bf16.gmra.mxu0 %v1568
        %v1579 = vpop.f32.mrf.mxu0
        %v1580 = vadd.f32 0.0, %v1579
        %v1581 = vpop.f32.mrf.mxu0
        %v1582 = vadd.f32 0.0, %v1581
        %1583 = vdwg.mxu0
        %v1586 = vunpack.c.l.b16 %v1542
        %v1587 = vunpack.c.l.b16 %v1543
        %v1588 = vpack.c.b16 %v1587, %v1586
        %v1591 = vunpack.c.l.b16 %v1105
        %v1592 = vunpack.c.l.b16 %v1106
        %v1593 = vpack.c.b16 %v1592, %v1591
        %v1596 = vsel %vm1363, %v1588, 0
        %1598 = vmatpush.bf16.msra.mxu0 0
        %1599 = vmatpush.bf16.msra.mxu0 0
        %1600 = vmatpush.bf16.msra.mxu0 0
        %1601 = vmatpush.bf16.msra.mxu0 0
        %1602 = vmatpush.bf16.msra.mxu0 0
        %1603 = vmatpush.bf16.msra.mxu0 0
        %1604 = vmatpush.bf16.msra.mxu0 0
        %1605 = vmatpush.bf16.msra.mxu0 %v1593
        %1606 = vmatmul.bf16.gmra.mxu0 %v1596
        %v1607 = vpop.f32.mrf.mxu0
        %v1608 = vadd.f32 0.0, %v1607
        %v1609 = vpop.f32.mrf.mxu0
        %v1610 = vadd.f32 0.0, %v1609
        %1611 = vdwg.mxu0
        %v1614 = vunpack.c.l.b16 %v1544
        %v1615 = vunpack.c.l.b16 %v1545
        %v1616 = vpack.c.b16 %v1615, %v1614
        %v1619 = vunpack.c.l.b16 %v1107
        %v1620 = vunpack.c.l.b16 %v1108
        %v1621 = vpack.c.b16 %v1620, %v1619
        %v1624 = vsel %vm1363, %v1616, 0
        %1626 = vmatpush.bf16.msra.mxu0 0
        %1627 = vmatpush.bf16.msra.mxu0 0
        %1628 = vmatpush.bf16.msra.mxu0 0
        %1629 = vmatpush.bf16.msra.mxu0 0
        %1630 = vmatpush.bf16.msra.mxu0 0
        %1631 = vmatpush.bf16.msra.mxu0 0
        %1632 = vmatpush.bf16.msra.mxu0 0
        %1633 = vmatpush.bf16.msra.mxu0 %v1621
        %1634 = vmatmul.bf16.gmra.mxu0 %v1624
        %v1635 = vpop.f32.mrf.mxu0
        %v1636 = vadd.f32 0.0, %v1635
        %v1637 = vpop.f32.mrf.mxu0
        %v1638 = vadd.f32 0.0, %v1637
        %1639 = vdwg.mxu0
        %v1642 = vunpack.c.l.b16 %v1546
        %v1643 = vunpack.c.l.b16 %v1547
        %v1644 = vpack.c.b16 %v1643, %v1642
        %v1647 = vunpack.c.l.b16 %v1109
        %v1648 = vunpack.c.l.b16 %v1110
        %v1649 = vpack.c.b16 %v1648, %v1647
        %v1652 = vsel %vm1363, %v1644, 0
        %1654 = vmatpush.bf16.msra.mxu0 0
        %1655 = vmatpush.bf16.msra.mxu0 0
        %1656 = vmatpush.bf16.msra.mxu0 0
        %1657 = vmatpush.bf16.msra.mxu0 0
        %1658 = vmatpush.bf16.msra.mxu0 0
        %1659 = vmatpush.bf16.msra.mxu0 0
        %1660 = vmatpush.bf16.msra.mxu0 0
        %1661 = vmatpush.bf16.msra.mxu0 %v1649
        %1662 = vmatmul.bf16.gmra.mxu0 %v1652
        %v1663 = vpop.f32.mrf.mxu0
        %v1664 = vadd.f32 0.0, %v1663
        %v1665 = vpop.f32.mrf.mxu0
        %v1666 = vadd.f32 0.0, %v1665
        %1667 = vdwg.mxu0
        %v1670 = vunpack.c.l.b16 %v1548
        %v1671 = vunpack.c.l.b16 %v1549
        %v1672 = vpack.c.b16 %v1671, %v1670
        %v1675 = vunpack.c.l.b16 %v1111
        %v1676 = vunpack.c.l.b16 %v1112
        %v1677 = vpack.c.b16 %v1676, %v1675
        %v1680 = vsel %vm1363, %v1672, 0
        %1682 = vmatpush.bf16.msra.mxu0 0
        %1683 = vmatpush.bf16.msra.mxu0 0
        %1684 = vmatpush.bf16.msra.mxu0 0
        %1685 = vmatpush.bf16.msra.mxu0 0
        %1686 = vmatpush.bf16.msra.mxu0 0
        %1687 = vmatpush.bf16.msra.mxu0 0
        %1688 = vmatpush.bf16.msra.mxu0 0
        %1689 = vmatpush.bf16.msra.mxu0 %v1677
        %1690 = vmatmul.bf16.gmra.mxu0 %v1680
        %v1691 = vpop.f32.mrf.mxu0
        %v1692 = vadd.f32 0.0, %v1691
        %v1693 = vpop.f32.mrf.mxu0
        %v1694 = vadd.f32 0.0, %v1693
        %1695 = vdwg.mxu0
        %v1698 = vunpack.c.l.b16 %v1550
        %v1699 = vunpack.c.l.b16 %v1551
        %v1700 = vpack.c.b16 %v1699, %v1698
        %v1703 = vunpack.c.l.b16 %v1113
        %v1704 = vunpack.c.l.b16 %v1114
        %v1705 = vpack.c.b16 %v1704, %v1703
        %v1708 = vsel %vm1363, %v1700, 0
        %1710 = vmatpush.bf16.msra.mxu0 0
        %1711 = vmatpush.bf16.msra.mxu0 0
        %1712 = vmatpush.bf16.msra.mxu0 0
        %1713 = vmatpush.bf16.msra.mxu0 0
        %1714 = vmatpush.bf16.msra.mxu0 0
        %1715 = vmatpush.bf16.msra.mxu0 0
        %1716 = vmatpush.bf16.msra.mxu0 0
        %1717 = vmatpush.bf16.msra.mxu0 %v1705
        %1718 = vmatmul.bf16.gmra.mxu0 %v1708
        %v1719 = vpop.f32.mrf.mxu0
        %v1720 = vadd.f32 0.0, %v1719
        %v1721 = vpop.f32.mrf.mxu0
        %v1722 = vadd.f32 0.0, %v1721
        %1723 = vdwg.mxu0
        %v1726 = vunpack.c.l.b16 %v1552
        %v1727 = vunpack.c.l.b16 %v1553
        %v1728 = vpack.c.b16 %v1727, %v1726
        %v1731 = vunpack.c.l.b16 %v1115
        %v1732 = vunpack.c.l.b16 %v1116
        %v1733 = vpack.c.b16 %v1732, %v1731
        %v1736 = vsel %vm1363, %v1728, 0
        %1738 = vmatpush.bf16.msra.mxu0 0
        %1739 = vmatpush.bf16.msra.mxu0 0
        %1740 = vmatpush.bf16.msra.mxu0 0
        %1741 = vmatpush.bf16.msra.mxu0 0
        %1742 = vmatpush.bf16.msra.mxu0 0
        %1743 = vmatpush.bf16.msra.mxu0 0
        %1744 = vmatpush.bf16.msra.mxu0 0
        %1745 = vmatpush.bf16.msra.mxu0 %v1733
        %1746 = vmatmul.bf16.gmra.mxu0 %v1736
        %v1747 = vpop.f32.mrf.mxu0
        %v1748 = vadd.f32 0.0, %v1747
        %v1749 = vpop.f32.mrf.mxu0
        %v1750 = vadd.f32 0.0, %v1749
        %1751 = vdwg.mxu0
        %v1754 = vunpack.c.l.b16 %v1554
        %v1755 = vunpack.c.l.b16 %v1555
        %v1756 = vpack.c.b16 %v1755, %v1754
        %v1759 = vunpack.c.l.b16 %v1117
        %v1760 = vunpack.c.l.b16 %v1118
        %v1761 = vpack.c.b16 %v1760, %v1759
        %v1764 = vsel %vm1363, %v1756, 0
        %1766 = vmatpush.bf16.msra.mxu0 0
        %1767 = vmatpush.bf16.msra.mxu0 0
        %1768 = vmatpush.bf16.msra.mxu0 0
        %1769 = vmatpush.bf16.msra.mxu0 0
        %1770 = vmatpush.bf16.msra.mxu0 0
        %1771 = vmatpush.bf16.msra.mxu0 0
        %1772 = vmatpush.bf16.msra.mxu0 0
        %1773 = vmatpush.bf16.msra.mxu0 %v1761
        %1774 = vmatmul.bf16.gmra.mxu0 %v1764
        %v1775 = vpop.f32.mrf.mxu0
        %v1776 = vadd.f32 0.0, %v1775
        %v1777 = vpop.f32.mrf.mxu0
        %v1778 = vadd.f32 0.0, %v1777
        %1779 = vdwg.mxu0
        %v1780 = vpack.c.bf16 %v1582, %v1580
        %v1781 = vpack.c.bf16 %v1610, %v1608
        %v1782 = vpack.c.bf16 %v1638, %v1636
        %v1783 = vpack.c.bf16 %v1666, %v1664
        %v1784 = vpack.c.bf16 %v1694, %v1692
        %v1785 = vpack.c.bf16 %v1722, %v1720
        %v1786 = vpack.c.bf16 %v1750, %v1748
        %v1787 = vpack.c.bf16 %v1778, %v1776
        %v1788 = vld [vmem:[#allocation11] sm:$0xff]
        %v1789 = vld [vmem:[#allocation11 + $0x8] sm:$0xff]
        %v1790 = vld [vmem:[#allocation11 + $0x10] sm:$0xff]
        %v1791 = vld [vmem:[#allocation11 + $0x18] sm:$0xff]
        %v1792 = vld [vmem:[#allocation11 + $0x20] sm:$0xff]
        %v1793 = vld [vmem:[#allocation11 + $0x28] sm:$0xff]
        %v1794 = vld [vmem:[#allocation11 + $0x30] sm:$0xff]
        %v1795 = vld [vmem:[#allocation11 + $0x38] sm:$0xff]
        %v1796 = vld [vmem:[#allocation11 + $0x40] sm:$0xff]
        %v1797 = vld [vmem:[#allocation11 + $0x48] sm:$0xff]
        %v1798 = vld [vmem:[#allocation11 + $0x50] sm:$0xff]
        %v1799 = vld [vmem:[#allocation11 + $0x58] sm:$0xff]
        %v1800 = vld [vmem:[#allocation11 + $0x60] sm:$0xff]
        %v1801 = vld [vmem:[#allocation11 + $0x68] sm:$0xff]
        %v1802 = vld [vmem:[#allocation11 + $0x70] sm:$0xff]
        %v1803 = vld [vmem:[#allocation11 + $0x78] sm:$0xff]
        %v1804 = vld [vmem:[#allocation11 + $0x80] sm:$0xff]
        %v1805 = vld [vmem:[#allocation11 + $0x88] sm:$0xff]
        %v1806 = vld [vmem:[#allocation11 + $0x90] sm:$0xff]
        %v1807 = vld [vmem:[#allocation11 + $0x98] sm:$0xff]
        %v1808 = vld [vmem:[#allocation11 + $0xa0] sm:$0xff]
        %v1809 = vld [vmem:[#allocation11 + $0xa8] sm:$0xff]
        %v1810 = vld [vmem:[#allocation11 + $0xb0] sm:$0xff]
        %v1811 = vld [vmem:[#allocation11 + $0xb8] sm:$0xff]
        %v1812 = vld [vmem:[#allocation11 + $0xc0] sm:$0xff]
        %v1813 = vld [vmem:[#allocation11 + $0xc8] sm:$0xff]
        %v1814 = vld [vmem:[#allocation11 + $0xd0] sm:$0xff]
        %v1815 = vld [vmem:[#allocation11 + $0xd8] sm:$0xff]
        %v1816 = vld [vmem:[#allocation11 + $0xe0] sm:$0xff]
        %v1817 = vld [vmem:[#allocation11 + $0xe8] sm:$0xff]
        %v1818 = vld [vmem:[#allocation11 + $0xf0] sm:$0xff]
        %v1819 = vld [vmem:[#allocation11 + $0xf8] sm:$0xff]
        %v1820 = vld [vmem:[#allocation13] sm:$0xf]
        %v1822 = vperm.slane %v1820, 0
        %v1823 = vperm.slane %v1820, 1
        %v1824 = vperm.slane %v1820, 2
        %v1825 = vperm.slane %v1820, 3
        %v1862 = vunpack.c.l.b16 %v1788
        %v1863 = vunpack.c.h.b16 %v1788
        %v1864 = vunpack.c.l.b16 %v1789
        %v1865 = vunpack.c.h.b16 %v1789
        %v1866 = vunpack.c.l.b16 %v1790
        %v1867 = vunpack.c.h.b16 %v1790
        %v1868 = vunpack.c.l.b16 %v1791
        %v1869 = vunpack.c.h.b16 %v1791
        %v1870 = vunpack.c.l.b16 %v1792
        %v1871 = vunpack.c.h.b16 %v1792
        %v1872 = vunpack.c.l.b16 %v1793
        %v1873 = vunpack.c.h.b16 %v1793
        %v1874 = vunpack.c.l.b16 %v1794
        %v1875 = vunpack.c.h.b16 %v1794
        %v1876 = vunpack.c.l.b16 %v1795
        %v1877 = vunpack.c.h.b16 %v1795
        %v1878 = vunpack.c.l.b16 %v1796
        %v1879 = vunpack.c.h.b16 %v1796
        %v1880 = vunpack.c.l.b16 %v1797
        %v1881 = vunpack.c.h.b16 %v1797
        %v1882 = vunpack.c.l.b16 %v1798
        %v1883 = vunpack.c.h.b16 %v1798
        %v1884 = vunpack.c.l.b16 %v1799
        %v1885 = vunpack.c.h.b16 %v1799
        %v1886 = vunpack.c.l.b16 %v1800
        %v1887 = vunpack.c.h.b16 %v1800
        %v1888 = vunpack.c.l.b16 %v1801
        %v1889 = vunpack.c.h.b16 %v1801
        %v1890 = vunpack.c.l.b16 %v1802
        %v1891 = vunpack.c.h.b16 %v1802
        %v1892 = vunpack.c.l.b16 %v1803
        %v1893 = vunpack.c.h.b16 %v1803
        %v1894 = vunpack.c.l.b16 %v1804
        %v1895 = vunpack.c.h.b16 %v1804
        %v1896 = vunpack.c.l.b16 %v1805
        %v1897 = vunpack.c.h.b16 %v1805
        %v1898 = vunpack.c.l.b16 %v1806
        %v1899 = vunpack.c.h.b16 %v1806
        %v1900 = vunpack.c.l.b16 %v1807
        %v1901 = vunpack.c.h.b16 %v1807
        %v1902 = vunpack.c.l.b16 %v1808
        %v1903 = vunpack.c.h.b16 %v1808
        %v1904 = vunpack.c.l.b16 %v1809
        %v1905 = vunpack.c.h.b16 %v1809
        %v1906 = vunpack.c.l.b16 %v1810
        %v1907 = vunpack.c.h.b16 %v1810
        %v1908 = vunpack.c.l.b16 %v1811
        %v1909 = vunpack.c.h.b16 %v1811
        %v1910 = vunpack.c.l.b16 %v1812
        %v1911 = vunpack.c.h.b16 %v1812
        %v1912 = vunpack.c.l.b16 %v1813
        %v1913 = vunpack.c.h.b16 %v1813
        %v1914 = vunpack.c.l.b16 %v1814
        %v1915 = vunpack.c.h.b16 %v1814
        %v1916 = vunpack.c.l.b16 %v1815
        %v1917 = vunpack.c.h.b16 %v1815
        %v1918 = vunpack.c.l.b16 %v1816
        %v1919 = vunpack.c.h.b16 %v1816
        %v1920 = vunpack.c.l.b16 %v1817
        %v1921 = vunpack.c.h.b16 %v1817
        %v1922 = vunpack.c.l.b16 %v1818
        %v1923 = vunpack.c.h.b16 %v1818
        %v1924 = vunpack.c.l.b16 %v1819
        %v1925 = vunpack.c.h.b16 %v1819
        %v1926 = vpack.c.b16 %v1866, %v1862
        %v1927 = vpack.c.b16 %v1867, %v1863
        %v1928 = vpack.c.b16 %v1868, %v1864
        %v1929 = vpack.c.b16 %v1869, %v1865
        %v1930 = vpack.c.b16 %v1874, %v1870
        %v1931 = vpack.c.b16 %v1875, %v1871
        %v1932 = vpack.c.b16 %v1876, %v1872
        %v1933 = vpack.c.b16 %v1877, %v1873
        %v1934 = vpack.c.b16 %v1882, %v1878
        %v1935 = vpack.c.b16 %v1883, %v1879
        %v1936 = vpack.c.b16 %v1884, %v1880
        %v1937 = vpack.c.b16 %v1885, %v1881
        %v1938 = vpack.c.b16 %v1890, %v1886
        %v1939 = vpack.c.b16 %v1891, %v1887
        %v1940 = vpack.c.b16 %v1892, %v1888
        %v1941 = vpack.c.b16 %v1893, %v1889
        %v1942 = vpack.c.b16 %v1898, %v1894
        %v1943 = vpack.c.b16 %v1899, %v1895
        %v1944 = vpack.c.b16 %v1900, %v1896
        %v1945 = vpack.c.b16 %v1901, %v1897
        %v1946 = vpack.c.b16 %v1906, %v1902
        %v1947 = vpack.c.b16 %v1907, %v1903
        %v1948 = vpack.c.b16 %v1908, %v1904
        %v1949 = vpack.c.b16 %v1909, %v1905
        %v1950 = vpack.c.b16 %v1914, %v1910
        %v1951 = vpack.c.b16 %v1915, %v1911
        %v1952 = vpack.c.b16 %v1916, %v1912
        %v1953 = vpack.c.b16 %v1917, %v1913
        %v1954 = vpack.c.b16 %v1922, %v1918
        %v1955 = vpack.c.b16 %v1923, %v1919
        %v1956 = vpack.c.b16 %v1924, %v1920
        %v1957 = vpack.c.b16 %v1925, %v1921
        %1990 = vmatpush.bf16.msra.mxu0 %v1954
        %1991 = vmatpush.bf16.msra.mxu0 %v1950
        %1992 = vmatpush.bf16.msra.mxu0 %v1946
        %1993 = vmatpush.bf16.msra.mxu0 %v1942
        %1994 = vmatpush.bf16.msra.mxu0 %v1938
        %1995 = vmatpush.bf16.msra.mxu0 %v1934
        %1996 = vmatpush.bf16.msra.mxu0 %v1930
        %1997 = vmatpush.bf16.msra.mxu0 %v1926
        %1998 = vmatmul.bf16.gmra.mxu0 %v1780
        %v1999 = vpop.f32.mrf.mxu0
        %v2000 = vadd.f32 %v1822, %v1999
        %v2001 = vpop.f32.mrf.mxu0
        %v2002 = vadd.f32 %v1822, %v2001
        %2003 = vmatmul.bf16.gmra.mxu0 %v1781
        %v2004 = vpop.f32.mrf.mxu0
        %v2005 = vadd.f32 %v1822, %v2004
        %v2006 = vpop.f32.mrf.mxu0
        %v2007 = vadd.f32 %v1822, %v2006
        %2008 = vmatmul.bf16.gmra.mxu0 %v1782
        %v2009 = vpop.f32.mrf.mxu0
        %v2010 = vadd.f32 %v1822, %v2009
        %v2011 = vpop.f32.mrf.mxu0
        %v2012 = vadd.f32 %v1822, %v2011
        %2013 = vmatmul.bf16.gmra.mxu0 %v1783
        %v2014 = vpop.f32.mrf.mxu0
        %v2015 = vadd.f32 %v1822, %v2014
        %v2016 = vpop.f32.mrf.mxu0
        %v2017 = vadd.f32 %v1822, %v2016
        %2018 = vmatmul.bf16.gmra.mxu0 %v1784
        %v2019 = vpop.f32.mrf.mxu0
        %v2020 = vadd.f32 %v1822, %v2019
        %v2021 = vpop.f32.mrf.mxu0
        %v2022 = vadd.f32 %v1822, %v2021
        %2023 = vmatmul.bf16.gmra.mxu0 %v1785
        %v2024 = vpop.f32.mrf.mxu0
        %v2025 = vadd.f32 %v1822, %v2024
        %v2026 = vpop.f32.mrf.mxu0
        %v2027 = vadd.f32 %v1822, %v2026
        %2028 = vmatmul.bf16.gmra.mxu0 %v1786
        %v2029 = vpop.f32.mrf.mxu0
        %v2030 = vadd.f32 %v1822, %v2029
        %v2031 = vpop.f32.mrf.mxu0
        %v2032 = vadd.f32 %v1822, %v2031
        %2033 = vmatmul.bf16.gmra.mxu0 %v1787
        %v2034 = vpop.f32.mrf.mxu0
        %v2035 = vadd.f32 %v1822, %v2034
        %v2036 = vpop.f32.mrf.mxu0
        %v2037 = vadd.f32 %v1822, %v2036
        %2038 = vdwg.mxu0
        %2039 = vmatpush.bf16.msra.mxu0 %v1955
        %2040 = vmatpush.bf16.msra.mxu0 %v1951
        %2041 = vmatpush.bf16.msra.mxu0 %v1947
        %2042 = vmatpush.bf16.msra.mxu0 %v1943
        %2043 = vmatpush.bf16.msra.mxu0 %v1939
        %2044 = vmatpush.bf16.msra.mxu0 %v1935
        %2045 = vmatpush.bf16.msra.mxu0 %v1931
        %2046 = vmatpush.bf16.msra.mxu0 %v1927
        %2047 = vmatmul.bf16.gmra.mxu0 %v1780
        %v2048 = vpop.f32.mrf.mxu0
        %v2049 = vadd.f32 %v1823, %v2048
        %v2050 = vpop.f32.mrf.mxu0
        %v2051 = vadd.f32 %v1823, %v2050
        %2052 = vmatmul.bf16.gmra.mxu0 %v1781
        %v2053 = vpop.f32.mrf.mxu0
        %v2054 = vadd.f32 %v1823, %v2053
        %v2055 = vpop.f32.mrf.mxu0
        %v2056 = vadd.f32 %v1823, %v2055
        %2057 = vmatmul.bf16.gmra.mxu0 %v1782
        %v2058 = vpop.f32.mrf.mxu0
        %v2059 = vadd.f32 %v1823, %v2058
        %v2060 = vpop.f32.mrf.mxu0
        %v2061 = vadd.f32 %v1823, %v2060
        %2062 = vmatmul.bf16.gmra.mxu0 %v1783
        %v2063 = vpop.f32.mrf.mxu0
        %v2064 = vadd.f32 %v1823, %v2063
        %v2065 = vpop.f32.mrf.mxu0
        %v2066 = vadd.f32 %v1823, %v2065
        %2067 = vmatmul.bf16.gmra.mxu0 %v1784
        %v2068 = vpop.f32.mrf.mxu0
        %v2069 = vadd.f32 %v1823, %v2068
        %v2070 = vpop.f32.mrf.mxu0
        %v2071 = vadd.f32 %v1823, %v2070
        %2072 = vmatmul.bf16.gmra.mxu0 %v1785
        %v2073 = vpop.f32.mrf.mxu0
        %v2074 = vadd.f32 %v1823, %v2073
        %v2075 = vpop.f32.mrf.mxu0
        %v2076 = vadd.f32 %v1823, %v2075
        %2077 = vmatmul.bf16.gmra.mxu0 %v1786
        %v2078 = vpop.f32.mrf.mxu0
        %v2079 = vadd.f32 %v1823, %v2078
        %v2080 = vpop.f32.mrf.mxu0
        %v2081 = vadd.f32 %v1823, %v2080
        %2082 = vmatmul.bf16.gmra.mxu0 %v1787
        %v2083 = vpop.f32.mrf.mxu0
        %v2084 = vadd.f32 %v1823, %v2083
        %v2085 = vpop.f32.mrf.mxu0
        %v2086 = vadd.f32 %v1823, %v2085
        %2087 = vdwg.mxu0
        %2088 = vmatpush.bf16.msra.mxu0 %v1956
        %2089 = vmatpush.bf16.msra.mxu0 %v1952
        %2090 = vmatpush.bf16.msra.mxu0 %v1948
        %2091 = vmatpush.bf16.msra.mxu0 %v1944
        %2092 = vmatpush.bf16.msra.mxu0 %v1940
        %2093 = vmatpush.bf16.msra.mxu0 %v1936
        %2094 = vmatpush.bf16.msra.mxu0 %v1932
        %2095 = vmatpush.bf16.msra.mxu0 %v1928
        %2096 = vmatmul.bf16.gmra.mxu0 %v1780
        %v2097 = vpop.f32.mrf.mxu0
        %v2098 = vadd.f32 %v1824, %v2097
        %v2099 = vpop.f32.mrf.mxu0
        %v2100 = vadd.f32 %v1824, %v2099
        %2101 = vmatmul.bf16.gmra.mxu0 %v1781
        %v2102 = vpop.f32.mrf.mxu0
        %v2103 = vadd.f32 %v1824, %v2102
        %v2104 = vpop.f32.mrf.mxu0
        %v2105 = vadd.f32 %v1824, %v2104
        %2106 = vmatmul.bf16.gmra.mxu0 %v1782
        %v2107 = vpop.f32.mrf.mxu0
        %v2108 = vadd.f32 %v1824, %v2107
        %v2109 = vpop.f32.mrf.mxu0
        %v2110 = vadd.f32 %v1824, %v2109
        %2111 = vmatmul.bf16.gmra.mxu0 %v1783
        %v2112 = vpop.f32.mrf.mxu0
        %v2113 = vadd.f32 %v1824, %v2112
        %v2114 = vpop.f32.mrf.mxu0
        %v2115 = vadd.f32 %v1824, %v2114
        %2116 = vmatmul.bf16.gmra.mxu0 %v1784
        %v2117 = vpop.f32.mrf.mxu0
        %v2118 = vadd.f32 %v1824, %v2117
        %v2119 = vpop.f32.mrf.mxu0
        %v2120 = vadd.f32 %v1824, %v2119
        %2121 = vmatmul.bf16.gmra.mxu0 %v1785
        %v2122 = vpop.f32.mrf.mxu0
        %v2123 = vadd.f32 %v1824, %v2122
        %v2124 = vpop.f32.mrf.mxu0
        %v2125 = vadd.f32 %v1824, %v2124
        %2126 = vmatmul.bf16.gmra.mxu0 %v1786
        %v2127 = vpop.f32.mrf.mxu0
        %v2128 = vadd.f32 %v1824, %v2127
        %v2129 = vpop.f32.mrf.mxu0
        %v2130 = vadd.f32 %v1824, %v2129
        %2131 = vmatmul.bf16.gmra.mxu0 %v1787
        %v2132 = vpop.f32.mrf.mxu0
        %v2133 = vadd.f32 %v1824, %v2132
        %v2134 = vpop.f32.mrf.mxu0
        %v2135 = vadd.f32 %v1824, %v2134
        %2136 = vdwg.mxu0
        %2137 = vmatpush.bf16.msra.mxu0 %v1957
        %2138 = vmatpush.bf16.msra.mxu0 %v1953
        %2139 = vmatpush.bf16.msra.mxu0 %v1949
        %2140 = vmatpush.bf16.msra.mxu0 %v1945
        %2141 = vmatpush.bf16.msra.mxu0 %v1941
        %2142 = vmatpush.bf16.msra.mxu0 %v1937
        %2143 = vmatpush.bf16.msra.mxu0 %v1933
        %2144 = vmatpush.bf16.msra.mxu0 %v1929
        %2145 = vmatmul.bf16.gmra.mxu0 %v1780
        %v2146 = vpop.f32.mrf.mxu0
        %v2147 = vadd.f32 %v1825, %v2146
        %v2148 = vpop.f32.mrf.mxu0
        %v2149 = vadd.f32 %v1825, %v2148
        %2150 = vmatmul.bf16.gmra.mxu0 %v1781
        %v2151 = vpop.f32.mrf.mxu0
        %v2152 = vadd.f32 %v1825, %v2151
        %v2153 = vpop.f32.mrf.mxu0
        %v2154 = vadd.f32 %v1825, %v2153
        %2155 = vmatmul.bf16.gmra.mxu0 %v1782
        %v2156 = vpop.f32.mrf.mxu0
        %v2157 = vadd.f32 %v1825, %v2156
        %v2158 = vpop.f32.mrf.mxu0
        %v2159 = vadd.f32 %v1825, %v2158
        %2160 = vmatmul.bf16.gmra.mxu0 %v1783
        %v2161 = vpop.f32.mrf.mxu0
        %v2162 = vadd.f32 %v1825, %v2161
        %v2163 = vpop.f32.mrf.mxu0
        %v2164 = vadd.f32 %v1825, %v2163
        %2165 = vmatmul.bf16.gmra.mxu0 %v1784
        %v2166 = vpop.f32.mrf.mxu0
        %v2167 = vadd.f32 %v1825, %v2166
        %v2168 = vpop.f32.mrf.mxu0
        %v2169 = vadd.f32 %v1825, %v2168
        %2170 = vmatmul.bf16.gmra.mxu0 %v1785
        %v2171 = vpop.f32.mrf.mxu0
        %v2172 = vadd.f32 %v1825, %v2171
        %v2173 = vpop.f32.mrf.mxu0
        %v2174 = vadd.f32 %v1825, %v2173
        %2175 = vmatmul.bf16.gmra.mxu0 %v1786
        %v2176 = vpop.f32.mrf.mxu0
        %v2177 = vadd.f32 %v1825, %v2176
        %v2178 = vpop.f32.mrf.mxu0
        %v2179 = vadd.f32 %v1825, %v2178
        %2180 = vmatmul.bf16.gmra.mxu0 %v1787
        %v2181 = vpop.f32.mrf.mxu0
        %v2182 = vadd.f32 %v1825, %v2181
        %v2183 = vpop.f32.mrf.mxu0
        %v2184 = vadd.f32 %v1825, %v2183
        %2185 = vdwg.mxu0
        %v2186 = vmul.f32 %v2000, %v2000
        %v2187 = vmul.f32 %v2049, %v2049
        %v2188 = vmul.f32 %v2098, %v2098
        %v2189 = vmul.f32 %v2147, %v2147
        %v2190 = vmul.f32 %v2002, %v2002
        %v2191 = vmul.f32 %v2051, %v2051
        %v2192 = vmul.f32 %v2100, %v2100
        %v2193 = vmul.f32 %v2149, %v2149
        %v2194 = vmul.f32 %v2005, %v2005
        %v2195 = vmul.f32 %v2054, %v2054
        %v2196 = vmul.f32 %v2103, %v2103
        %v2197 = vmul.f32 %v2152, %v2152
        %v2198 = vmul.f32 %v2007, %v2007
        %v2199 = vmul.f32 %v2056, %v2056
        %v2200 = vmul.f32 %v2105, %v2105
        %v2201 = vmul.f32 %v2154, %v2154
        %v2202 = vmul.f32 %v2010, %v2010
        %v2203 = vmul.f32 %v2059, %v2059
        %v2204 = vmul.f32 %v2108, %v2108
        %v2205 = vmul.f32 %v2157, %v2157
        %v2206 = vmul.f32 %v2012, %v2012
        %v2207 = vmul.f32 %v2061, %v2061
        %v2208 = vmul.f32 %v2110, %v2110
        %v2209 = vmul.f32 %v2159, %v2159
        %v2210 = vmul.f32 %v2015, %v2015
        %v2211 = vmul.f32 %v2064, %v2064
        %v2212 = vmul.f32 %v2113, %v2113
        %v2213 = vmul.f32 %v2162, %v2162
        %v2214 = vmul.f32 %v2017, %v2017
        %v2215 = vmul.f32 %v2066, %v2066
        %v2216 = vmul.f32 %v2115, %v2115
        %v2217 = vmul.f32 %v2164, %v2164
        %v2218 = vmul.f32 %v2020, %v2020
        %v2219 = vmul.f32 %v2069, %v2069
        %v2220 = vmul.f32 %v2118, %v2118
        %v2221 = vmul.f32 %v2167, %v2167
        %v2222 = vmul.f32 %v2022, %v2022
        %v2223 = vmul.f32 %v2071, %v2071
        %v2224 = vmul.f32 %v2120, %v2120
        %v2225 = vmul.f32 %v2169, %v2169
        %v2226 = vmul.f32 %v2025, %v2025
        %v2227 = vmul.f32 %v2074, %v2074
        %v2228 = vmul.f32 %v2123, %v2123
        %v2229 = vmul.f32 %v2172, %v2172
        %v2230 = vmul.f32 %v2027, %v2027
        %v2231 = vmul.f32 %v2076, %v2076
        %v2232 = vmul.f32 %v2125, %v2125
        %v2233 = vmul.f32 %v2174, %v2174
        %v2234 = vmul.f32 %v2030, %v2030
        %v2235 = vmul.f32 %v2079, %v2079
        %v2236 = vmul.f32 %v2128, %v2128
        %v2237 = vmul.f32 %v2177, %v2177
        %v2238 = vmul.f32 %v2032, %v2032
        %v2239 = vmul.f32 %v2081, %v2081
        %v2240 = vmul.f32 %v2130, %v2130
        %v2241 = vmul.f32 %v2179, %v2179
        %v2242 = vmul.f32 %v2035, %v2035
        %v2243 = vmul.f32 %v2084, %v2084
        %v2244 = vmul.f32 %v2133, %v2133
        %v2245 = vmul.f32 %v2182, %v2182
        %v2246 = vmul.f32 %v2037, %v2037
        %v2247 = vmul.f32 %v2086, %v2086
        %v2248 = vmul.f32 %v2135, %v2135
        %v2249 = vmul.f32 %v2184, %v2184
        %v2250 = vmul.f32 %v2000, %v2186
        %v2251 = vmul.f32 %v2049, %v2187
        %v2252 = vmul.f32 %v2098, %v2188
        %v2253 = vmul.f32 %v2147, %v2189
        %v2254 = vmul.f32 %v2002, %v2190
        %v2255 = vmul.f32 %v2051, %v2191
        %v2256 = vmul.f32 %v2100, %v2192
        %v2257 = vmul.f32 %v2149, %v2193
        %v2258 = vmul.f32 %v2005, %v2194
        %v2259 = vmul.f32 %v2054, %v2195
        %v2260 = vmul.f32 %v2103, %v2196
        %v2261 = vmul.f32 %v2152, %v2197
        %v2262 = vmul.f32 %v2007, %v2198
        %v2263 = vmul.f32 %v2056, %v2199
        %v2264 = vmul.f32 %v2105, %v2200
        %v2265 = vmul.f32 %v2154, %v2201
        %v2266 = vmul.f32 %v2010, %v2202
        %v2267 = vmul.f32 %v2059, %v2203
        %v2268 = vmul.f32 %v2108, %v2204
        %v2269 = vmul.f32 %v2157, %v2205
        %v2270 = vmul.f32 %v2012, %v2206
        %v2271 = vmul.f32 %v2061, %v2207
        %v2272 = vmul.f32 %v2110, %v2208
        %v2273 = vmul.f32 %v2159, %v2209
        %v2274 = vmul.f32 %v2015, %v2210
        %v2275 = vmul.f32 %v2064, %v2211
        %v2276 = vmul.f32 %v2113, %v2212
        %v2277 = vmul.f32 %v2162, %v2213
        %v2278 = vmul.f32 %v2017, %v2214
        %v2279 = vmul.f32 %v2066, %v2215
        %v2280 = vmul.f32 %v2115, %v2216
        %v2281 = vmul.f32 %v2164, %v2217
        %v2282 = vmul.f32 %v2020, %v2218
        %v2283 = vmul.f32 %v2069, %v2219
        %v2284 = vmul.f32 %v2118, %v2220
        %v2285 = vmul.f32 %v2167, %v2221
        %v2286 = vmul.f32 %v2022, %v2222
        %v2287 = vmul.f32 %v2071, %v2223
        %v2288 = vmul.f32 %v2120, %v2224
        %v2289 = vmul.f32 %v2169, %v2225
        %v2290 = vmul.f32 %v2025, %v2226
        %v2291 = vmul.f32 %v2074, %v2227
        %v2292 = vmul.f32 %v2123, %v2228
        %v2293 = vmul.f32 %v2172, %v2229
        %v2294 = vmul.f32 %v2027, %v2230
        %v2295 = vmul.f32 %v2076, %v2231
        %v2296 = vmul.f32 %v2125, %v2232
        %v2297 = vmul.f32 %v2174, %v2233
        %v2298 = vmul.f32 %v2030, %v2234
        %v2299 = vmul.f32 %v2079, %v2235
        %v2300 = vmul.f32 %v2128, %v2236
        %v2301 = vmul.f32 %v2177, %v2237
        %v2302 = vmul.f32 %v2032, %v2238
        %v2303 = vmul.f32 %v2081, %v2239
        %v2304 = vmul.f32 %v2130, %v2240
        %v2305 = vmul.f32 %v2179, %v2241
        %v2306 = vmul.f32 %v2035, %v2242
        %v2307 = vmul.f32 %v2084, %v2243
        %v2308 = vmul.f32 %v2133, %v2244
        %v2309 = vmul.f32 %v2182, %v2245
        %v2310 = vmul.f32 %v2037, %v2246
        %v2311 = vmul.f32 %v2086, %v2247
        %v2312 = vmul.f32 %v2135, %v2248
        %v2313 = vmul.f32 %v2184, %v2249
        %v2314 = vmul.f32 %v2250, 0.044715
        %v2315 = vmul.f32 %v2251, 0.044715
        %v2316 = vmul.f32 %v2252, 0.044715
        %v2317 = vmul.f32 %v2253, 0.044715
        %v2318 = vmul.f32 %v2254, 0.044715
        %v2319 = vmul.f32 %v2255, 0.044715
        %v2320 = vmul.f32 %v2256, 0.044715
        %v2321 = vmul.f32 %v2257, 0.044715
        %v2322 = vmul.f32 %v2258, 0.044715
        %v2323 = vmul.f32 %v2259, 0.044715
        %v2324 = vmul.f32 %v2260, 0.044715
        %v2325 = vmul.f32 %v2261, 0.044715
        %v2326 = vmul.f32 %v2262, 0.044715
        %v2327 = vmul.f32 %v2263, 0.044715
        %v2328 = vmul.f32 %v2264, 0.044715
        %v2329 = vmul.f32 %v2265, 0.044715
        %v2330 = vmul.f32 %v2266, 0.044715
        %v2331 = vmul.f32 %v2267, 0.044715
        %v2332 = vmul.f32 %v2268, 0.044715
        %v2333 = vmul.f32 %v2269, 0.044715
        %v2334 = vmul.f32 %v2270, 0.044715
        %v2335 = vmul.f32 %v2271, 0.044715
        %v2336 = vmul.f32 %v2272, 0.044715
        %v2337 = vmul.f32 %v2273, 0.044715
        %v2338 = vmul.f32 %v2274, 0.044715
        %v2339 = vmul.f32 %v2275, 0.044715
        %v2340 = vmul.f32 %v2276, 0.044715
        %v2341 = vmul.f32 %v2277, 0.044715
        %v2342 = vmul.f32 %v2278, 0.044715
        %v2343 = vmul.f32 %v2279, 0.044715
        %v2344 = vmul.f32 %v2280, 0.044715
        %v2345 = vmul.f32 %v2281, 0.044715
        %v2346 = vmul.f32 %v2282, 0.044715
        %v2347 = vmul.f32 %v2283, 0.044715
        %v2348 = vmul.f32 %v2284, 0.044715
        %v2349 = vmul.f32 %v2285, 0.044715
        %v2350 = vmul.f32 %v2286, 0.044715
        %v2351 = vmul.f32 %v2287, 0.044715
        %v2352 = vmul.f32 %v2288, 0.044715
        %v2353 = vmul.f32 %v2289, 0.044715
        %v2354 = vmul.f32 %v2290, 0.044715
        %v2355 = vmul.f32 %v2291, 0.044715
        %v2356 = vmul.f32 %v2292, 0.044715
        %v2357 = vmul.f32 %v2293, 0.044715
        %v2358 = vmul.f32 %v2294, 0.044715
        %v2359 = vmul.f32 %v2295, 0.044715
        %v2360 = vmul.f32 %v2296, 0.044715
        %v2361 = vmul.f32 %v2297, 0.044715
        %v2362 = vmul.f32 %v2298, 0.044715
        %v2363 = vmul.f32 %v2299, 0.044715
        %v2364 = vmul.f32 %v2300, 0.044715
        %v2365 = vmul.f32 %v2301, 0.044715
        %v2366 = vmul.f32 %v2302, 0.044715
        %v2367 = vmul.f32 %v2303, 0.044715
        %v2368 = vmul.f32 %v2304, 0.044715
        %v2369 = vmul.f32 %v2305, 0.044715
        %v2370 = vmul.f32 %v2306, 0.044715
        %v2371 = vmul.f32 %v2307, 0.044715
        %v2372 = vmul.f32 %v2308, 0.044715
        %v2373 = vmul.f32 %v2309, 0.044715
        %v2374 = vmul.f32 %v2310, 0.044715
        %v2375 = vmul.f32 %v2311, 0.044715
        %v2376 = vmul.f32 %v2312, 0.044715
        %v2377 = vmul.f32 %v2313, 0.044715
        %v2378 = vadd.f32 %v2000, %v2314
        %v2379 = vadd.f32 %v2049, %v2315
        %v2380 = vadd.f32 %v2098, %v2316
        %v2381 = vadd.f32 %v2147, %v2317
        %v2382 = vadd.f32 %v2002, %v2318
        %v2383 = vadd.f32 %v2051, %v2319
        %v2384 = vadd.f32 %v2100, %v2320
        %v2385 = vadd.f32 %v2149, %v2321
        %v2386 = vadd.f32 %v2005, %v2322
        %v2387 = vadd.f32 %v2054, %v2323
        %v2388 = vadd.f32 %v2103, %v2324
        %v2389 = vadd.f32 %v2152, %v2325
        %v2390 = vadd.f32 %v2007, %v2326
        %v2391 = vadd.f32 %v2056, %v2327
        %v2392 = vadd.f32 %v2105, %v2328
        %v2393 = vadd.f32 %v2154, %v2329
        %v2394 = vadd.f32 %v2010, %v2330
        %v2395 = vadd.f32 %v2059, %v2331
        %v2396 = vadd.f32 %v2108, %v2332
        %v2397 = vadd.f32 %v2157, %v2333
        %v2398 = vadd.f32 %v2012, %v2334
        %v2399 = vadd.f32 %v2061, %v2335
        %v2400 = vadd.f32 %v2110, %v2336
        %v2401 = vadd.f32 %v2159, %v2337
        %v2402 = vadd.f32 %v2015, %v2338
        %v2403 = vadd.f32 %v2064, %v2339
        %v2404 = vadd.f32 %v2113, %v2340
        %v2405 = vadd.f32 %v2162, %v2341
        %v2406 = vadd.f32 %v2017, %v2342
        %v2407 = vadd.f32 %v2066, %v2343
        %v2408 = vadd.f32 %v2115, %v2344
        %v2409 = vadd.f32 %v2164, %v2345
        %v2410 = vadd.f32 %v2020, %v2346
        %v2411 = vadd.f32 %v2069, %v2347
        %v2412 = vadd.f32 %v2118, %v2348
        %v2413 = vadd.f32 %v2167, %v2349
        %v2414 = vadd.f32 %v2022, %v2350
        %v2415 = vadd.f32 %v2071, %v2351
        %v2416 = vadd.f32 %v2120, %v2352
        %v2417 = vadd.f32 %v2169, %v2353
        %v2418 = vadd.f32 %v2025, %v2354
        %v2419 = vadd.f32 %v2074, %v2355
        %v2420 = vadd.f32 %v2123, %v2356
        %v2421 = vadd.f32 %v2172, %v2357
        %v2422 = vadd.f32 %v2027, %v2358
        %v2423 = vadd.f32 %v2076, %v2359
        %v2424 = vadd.f32 %v2125, %v2360
        %v2425 = vadd.f32 %v2174, %v2361
        %v2426 = vadd.f32 %v2030, %v2362
        %v2427 = vadd.f32 %v2079, %v2363
        %v2428 = vadd.f32 %v2128, %v2364
        %v2429 = vadd.f32 %v2177, %v2365
        %v2430 = vadd.f32 %v2032, %v2366
        %v2431 = vadd.f32 %v2081, %v2367
        %v2432 = vadd.f32 %v2130, %v2368
        %v2433 = vadd.f32 %v2179, %v2369
        %v2434 = vadd.f32 %v2035, %v2370
        %v2435 = vadd.f32 %v2084, %v2371
        %v2436 = vadd.f32 %v2133, %v2372
        %v2437 = vadd.f32 %v2182, %v2373
        %v2438 = vadd.f32 %v2037, %v2374
        %v2439 = vadd.f32 %v2086, %v2375
        %v2440 = vadd.f32 %v2135, %v2376
        %v2441 = vadd.f32 %v2184, %v2377
        %v2442 = vmul.f32 %v2378, 0.7978846
        %v2443 = vmul.f32 %v2379, 0.7978846
        %v2444 = vmul.f32 %v2380, 0.7978846
        %v2445 = vmul.f32 %v2381, 0.7978846
        %v2446 = vmul.f32 %v2382, 0.7978846
        %v2447 = vmul.f32 %v2383, 0.7978846
        %v2448 = vmul.f32 %v2384, 0.7978846
        %v2449 = vmul.f32 %v2385, 0.7978846
        %v2450 = vmul.f32 %v2386, 0.7978846
        %v2451 = vmul.f32 %v2387, 0.7978846
        %v2452 = vmul.f32 %v2388, 0.7978846
        %v2453 = vmul.f32 %v2389, 0.7978846
        %v2454 = vmul.f32 %v2390, 0.7978846
        %v2455 = vmul.f32 %v2391, 0.7978846
        %v2456 = vmul.f32 %v2392, 0.7978846
        %v2457 = vmul.f32 %v2393, 0.7978846
        %v2458 = vmul.f32 %v2394, 0.7978846
        %v2459 = vmul.f32 %v2395, 0.7978846
        %v2460 = vmul.f32 %v2396, 0.7978846
        %v2461 = vmul.f32 %v2397, 0.7978846
        %v2462 = vmul.f32 %v2398, 0.7978846
        %v2463 = vmul.f32 %v2399, 0.7978846
        %v2464 = vmul.f32 %v2400, 0.7978846
        %v2465 = vmul.f32 %v2401, 0.7978846
        %v2466 = vmul.f32 %v2402, 0.7978846
        %v2467 = vmul.f32 %v2403, 0.7978846
        %v2468 = vmul.f32 %v2404, 0.7978846
        %v2469 = vmul.f32 %v2405, 0.7978846
        %v2470 = vmul.f32 %v2406, 0.7978846
        %v2471 = vmul.f32 %v2407, 0.7978846
        %v2472 = vmul.f32 %v2408, 0.7978846
        %v2473 = vmul.f32 %v2409, 0.7978846
        %v2474 = vmul.f32 %v2410, 0.7978846
        %v2475 = vmul.f32 %v2411, 0.7978846
        %v2476 = vmul.f32 %v2412, 0.7978846
        %v2477 = vmul.f32 %v2413, 0.7978846
        %v2478 = vmul.f32 %v2414, 0.7978846
        %v2479 = vmul.f32 %v2415, 0.7978846
        %v2480 = vmul.f32 %v2416, 0.7978846
        %v2481 = vmul.f32 %v2417, 0.7978846
        %v2482 = vmul.f32 %v2418, 0.7978846
        %v2483 = vmul.f32 %v2419, 0.7978846
        %v2484 = vmul.f32 %v2420, 0.7978846
        %v2485 = vmul.f32 %v2421, 0.7978846
        %v2486 = vmul.f32 %v2422, 0.7978846
        %v2487 = vmul.f32 %v2423, 0.7978846
        %v2488 = vmul.f32 %v2424, 0.7978846
        %v2489 = vmul.f32 %v2425, 0.7978846
        %v2490 = vmul.f32 %v2426, 0.7978846
        %v2491 = vmul.f32 %v2427, 0.7978846
        %v2492 = vmul.f32 %v2428, 0.7978846
        %v2493 = vmul.f32 %v2429, 0.7978846
        %v2494 = vmul.f32 %v2430, 0.7978846
        %v2495 = vmul.f32 %v2431, 0.7978846
        %v2496 = vmul.f32 %v2432, 0.7978846
        %v2497 = vmul.f32 %v2433, 0.7978846
        %v2498 = vmul.f32 %v2434, 0.7978846
        %v2499 = vmul.f32 %v2435, 0.7978846
        %v2500 = vmul.f32 %v2436, 0.7978846
        %v2501 = vmul.f32 %v2437, 0.7978846
        %v2502 = vmul.f32 %v2438, 0.7978846
        %v2503 = vmul.f32 %v2439, 0.7978846
        %v2504 = vmul.f32 %v2440, 0.7978846
        %v2505 = vmul.f32 %v2441, 0.7978846
        %v2506 = vtanh.pop %v2442
        %v2507 = vtanh.pop %v2443
        %v2508 = vtanh.pop %v2444
        %v2509 = vtanh.pop %v2445
        %v2510 = vtanh.pop %v2446
        %v2511 = vtanh.pop %v2447
        %v2512 = vtanh.pop %v2448
        %v2513 = vtanh.pop %v2449
        %v2514 = vtanh.pop %v2450
        %v2515 = vtanh.pop %v2451
        %v2516 = vtanh.pop %v2452
        %v2517 = vtanh.pop %v2453
        %v2518 = vtanh.pop %v2454
        %v2519 = vtanh.pop %v2455
        %v2520 = vtanh.pop %v2456
        %v2521 = vtanh.pop %v2457
        %v2522 = vtanh.pop %v2458
        %v2523 = vtanh.pop %v2459
        %v2524 = vtanh.pop %v2460
        %v2525 = vtanh.pop %v2461
        %v2526 = vtanh.pop %v2462
        %v2527 = vtanh.pop %v2463
        %v2528 = vtanh.pop %v2464
        %v2529 = vtanh.pop %v2465
        %v2530 = vtanh.pop %v2466
        %v2531 = vtanh.pop %v2467
        %v2532 = vtanh.pop %v2468
        %v2533 = vtanh.pop %v2469
        %v2534 = vtanh.pop %v2470
        %v2535 = vtanh.pop %v2471
        %v2536 = vtanh.pop %v2472
        %v2537 = vtanh.pop %v2473
        %v2538 = vtanh.pop %v2474
        %v2539 = vtanh.pop %v2475
        %v2540 = vtanh.pop %v2476
        %v2541 = vtanh.pop %v2477
        %v2542 = vtanh.pop %v2478
        %v2543 = vtanh.pop %v2479
        %v2544 = vtanh.pop %v2480
        %v2545 = vtanh.pop %v2481
        %v2546 = vtanh.pop %v2482
        %v2547 = vtanh.pop %v2483
        %v2548 = vtanh.pop %v2484
        %v2549 = vtanh.pop %v2485
        %v2550 = vtanh.pop %v2486
        %v2551 = vtanh.pop %v2487
        %v2552 = vtanh.pop %v2488
        %v2553 = vtanh.pop %v2489
        %v2554 = vtanh.pop %v2490
        %v2555 = vtanh.pop %v2491
        %v2556 = vtanh.pop %v2492
        %v2557 = vtanh.pop %v2493
        %v2558 = vtanh.pop %v2494
        %v2559 = vtanh.pop %v2495
        %v2560 = vtanh.pop %v2496
        %v2561 = vtanh.pop %v2497
        %v2562 = vtanh.pop %v2498
        %v2563 = vtanh.pop %v2499
        %v2564 = vtanh.pop %v2500
        %v2565 = vtanh.pop %v2501
        %v2566 = vtanh.pop %v2502
        %v2567 = vtanh.pop %v2503
        %v2568 = vtanh.pop %v2504
        %v2569 = vtanh.pop %v2505
        %v2570 = vadd.f32 %v2506, 1.0
        %v2571 = vadd.f32 %v2507, 1.0
        %v2572 = vadd.f32 %v2508, 1.0
        %v2573 = vadd.f32 %v2509, 1.0
        %v2574 = vadd.f32 %v2510, 1.0
        %v2575 = vadd.f32 %v2511, 1.0
        %v2576 = vadd.f32 %v2512, 1.0
        %v2577 = vadd.f32 %v2513, 1.0
        %v2578 = vadd.f32 %v2514, 1.0
        %v2579 = vadd.f32 %v2515, 1.0
        %v2580 = vadd.f32 %v2516, 1.0
        %v2581 = vadd.f32 %v2517, 1.0
        %v2582 = vadd.f32 %v2518, 1.0
        %v2583 = vadd.f32 %v2519, 1.0
        %v2584 = vadd.f32 %v2520, 1.0
        %v2585 = vadd.f32 %v2521, 1.0
        %v2586 = vadd.f32 %v2522, 1.0
        %v2587 = vadd.f32 %v2523, 1.0
        %v2588 = vadd.f32 %v2524, 1.0
        %v2589 = vadd.f32 %v2525, 1.0
        %v2590 = vadd.f32 %v2526, 1.0
        %v2591 = vadd.f32 %v2527, 1.0
        %v2592 = vadd.f32 %v2528, 1.0
        %v2593 = vadd.f32 %v2529, 1.0
        %v2594 = vadd.f32 %v2530, 1.0
        %v2595 = vadd.f32 %v2531, 1.0
        %v2596 = vadd.f32 %v2532, 1.0
        %v2597 = vadd.f32 %v2533, 1.0
        %v2598 = vadd.f32 %v2534, 1.0
        %v2599 = vadd.f32 %v2535, 1.0
        %v2600 = vadd.f32 %v2536, 1.0
        %v2601 = vadd.f32 %v2537, 1.0
        %v2602 = vadd.f32 %v2538, 1.0
        %v2603 = vadd.f32 %v2539, 1.0
        %v2604 = vadd.f32 %v2540, 1.0
        %v2605 = vadd.f32 %v2541, 1.0
        %v2606 = vadd.f32 %v2542, 1.0
        %v2607 = vadd.f32 %v2543, 1.0
        %v2608 = vadd.f32 %v2544, 1.0
        %v2609 = vadd.f32 %v2545, 1.0
        %v2610 = vadd.f32 %v2546, 1.0
        %v2611 = vadd.f32 %v2547, 1.0
        %v2612 = vadd.f32 %v2548, 1.0
        %v2613 = vadd.f32 %v2549, 1.0
        %v2614 = vadd.f32 %v2550, 1.0
        %v2615 = vadd.f32 %v2551, 1.0
        %v2616 = vadd.f32 %v2552, 1.0
        %v2617 = vadd.f32 %v2553, 1.0
        %v2618 = vadd.f32 %v2554, 1.0
        %v2619 = vadd.f32 %v2555, 1.0
        %v2620 = vadd.f32 %v2556, 1.0
        %v2621 = vadd.f32 %v2557, 1.0
        %v2622 = vadd.f32 %v2558, 1.0
        %v2623 = vadd.f32 %v2559, 1.0
        %v2624 = vadd.f32 %v2560, 1.0
        %v2625 = vadd.f32 %v2561, 1.0
        %v2626 = vadd.f32 %v2562, 1.0
        %v2627 = vadd.f32 %v2563, 1.0
        %v2628 = vadd.f32 %v2564, 1.0
        %v2629 = vadd.f32 %v2565, 1.0
        %v2630 = vadd.f32 %v2566, 1.0
        %v2631 = vadd.f32 %v2567, 1.0
        %v2632 = vadd.f32 %v2568, 1.0
        %v2633 = vadd.f32 %v2569, 1.0
        %v2634 = vmul.f32 %v2570, 0.5
        %v2635 = vmul.f32 %v2571, 0.5
        %v2636 = vmul.f32 %v2572, 0.5
        %v2637 = vmul.f32 %v2573, 0.5
        %v2638 = vmul.f32 %v2574, 0.5
        %v2639 = vmul.f32 %v2575, 0.5
        %v2640 = vmul.f32 %v2576, 0.5
        %v2641 = vmul.f32 %v2577, 0.5
        %v2642 = vmul.f32 %v2578, 0.5
        %v2643 = vmul.f32 %v2579, 0.5
        %v2644 = vmul.f32 %v2580, 0.5
        %v2645 = vmul.f32 %v2581, 0.5
        %v2646 = vmul.f32 %v2582, 0.5
        %v2647 = vmul.f32 %v2583, 0.5
        %v2648 = vmul.f32 %v2584, 0.5
        %v2649 = vmul.f32 %v2585, 0.5
        %v2650 = vmul.f32 %v2586, 0.5
        %v2651 = vmul.f32 %v2587, 0.5
        %v2652 = vmul.f32 %v2588, 0.5
        %v2653 = vmul.f32 %v2589, 0.5
        %v2654 = vmul.f32 %v2590, 0.5
        %v2655 = vmul.f32 %v2591, 0.5
        %v2656 = vmul.f32 %v2592, 0.5
        %v2657 = vmul.f32 %v2593, 0.5
        %v2658 = vmul.f32 %v2594, 0.5
        %v2659 = vmul.f32 %v2595, 0.5
        %v2660 = vmul.f32 %v2596, 0.5
        %v2661 = vmul.f32 %v2597, 0.5
        %v2662 = vmul.f32 %v2598, 0.5
        %v2663 = vmul.f32 %v2599, 0.5
        %v2664 = vmul.f32 %v2600, 0.5
        %v2665 = vmul.f32 %v2601, 0.5
        %v2666 = vmul.f32 %v2602, 0.5
        %v2667 = vmul.f32 %v2603, 0.5
        %v2668 = vmul.f32 %v2604, 0.5
        %v2669 = vmul.f32 %v2605, 0.5
        %v2670 = vmul.f32 %v2606, 0.5
        %v2671 = vmul.f32 %v2607, 0.5
        %v2672 = vmul.f32 %v2608, 0.5
        %v2673 = vmul.f32 %v2609, 0.5
        %v2674 = vmul.f32 %v2610, 0.5
        %v2675 = vmul.f32 %v2611, 0.5
        %v2676 = vmul.f32 %v2612, 0.5
        %v2677 = vmul.f32 %v2613, 0.5
        %v2678 = vmul.f32 %v2614, 0.5
        %v2679 = vmul.f32 %v2615, 0.5
        %v2680 = vmul.f32 %v2616, 0.5
        %v2681 = vmul.f32 %v2617, 0.5
        %v2682 = vmul.f32 %v2618, 0.5
        %v2683 = vmul.f32 %v2619, 0.5
        %v2684 = vmul.f32 %v2620, 0.5
        %v2685 = vmul.f32 %v2621, 0.5
        %v2686 = vmul.f32 %v2622, 0.5
        %v2687 = vmul.f32 %v2623, 0.5
        %v2688 = vmul.f32 %v2624, 0.5
        %v2689 = vmul.f32 %v2625, 0.5
        %v2690 = vmul.f32 %v2626, 0.5
        %v2691 = vmul.f32 %v2627, 0.5
        %v2692 = vmul.f32 %v2628, 0.5
        %v2693 = vmul.f32 %v2629, 0.5
        %v2694 = vmul.f32 %v2630, 0.5
        %v2695 = vmul.f32 %v2631, 0.5
        %v2696 = vmul.f32 %v2632, 0.5
        %v2697 = vmul.f32 %v2633, 0.5
        %v2698 = vmul.f32 %v2000, %v2634
        %v2699 = vmul.f32 %v2049, %v2635
        %v2700 = vmul.f32 %v2098, %v2636
        %v2701 = vmul.f32 %v2147, %v2637
        %v2702 = vmul.f32 %v2002, %v2638
        %v2703 = vmul.f32 %v2051, %v2639
        %v2704 = vmul.f32 %v2100, %v2640
        %v2705 = vmul.f32 %v2149, %v2641
        %v2706 = vmul.f32 %v2005, %v2642
        %v2707 = vmul.f32 %v2054, %v2643
        %v2708 = vmul.f32 %v2103, %v2644
        %v2709 = vmul.f32 %v2152, %v2645
        %v2710 = vmul.f32 %v2007, %v2646
        %v2711 = vmul.f32 %v2056, %v2647
        %v2712 = vmul.f32 %v2105, %v2648
        %v2713 = vmul.f32 %v2154, %v2649
        %v2714 = vmul.f32 %v2010, %v2650
        %v2715 = vmul.f32 %v2059, %v2651
        %v2716 = vmul.f32 %v2108, %v2652
        %v2717 = vmul.f32 %v2157, %v2653
        %v2718 = vmul.f32 %v2012, %v2654
        %v2719 = vmul.f32 %v2061, %v2655
        %v2720 = vmul.f32 %v2110, %v2656
        %v2721 = vmul.f32 %v2159, %v2657
        %v2722 = vmul.f32 %v2015, %v2658
        %v2723 = vmul.f32 %v2064, %v2659
        %v2724 = vmul.f32 %v2113, %v2660
        %v2725 = vmul.f32 %v2162, %v2661
        %v2726 = vmul.f32 %v2017, %v2662
        %v2727 = vmul.f32 %v2066, %v2663
        %v2728 = vmul.f32 %v2115, %v2664
        %v2729 = vmul.f32 %v2164, %v2665
        %v2730 = vmul.f32 %v2020, %v2666
        %v2731 = vmul.f32 %v2069, %v2667
        %v2732 = vmul.f32 %v2118, %v2668
        %v2733 = vmul.f32 %v2167, %v2669
        %v2734 = vmul.f32 %v2022, %v2670
        %v2735 = vmul.f32 %v2071, %v2671
        %v2736 = vmul.f32 %v2120, %v2672
        %v2737 = vmul.f32 %v2169, %v2673
        %v2738 = vmul.f32 %v2025, %v2674
        %v2739 = vmul.f32 %v2074, %v2675
        %v2740 = vmul.f32 %v2123, %v2676
        %v2741 = vmul.f32 %v2172, %v2677
        %v2742 = vmul.f32 %v2027, %v2678
        %v2743 = vmul.f32 %v2076, %v2679
        %v2744 = vmul.f32 %v2125, %v2680
        %v2745 = vmul.f32 %v2174, %v2681
        %v2746 = vmul.f32 %v2030, %v2682
        %v2747 = vmul.f32 %v2079, %v2683
        %v2748 = vmul.f32 %v2128, %v2684
        %v2749 = vmul.f32 %v2177, %v2685
        %v2750 = vmul.f32 %v2032, %v2686
        %v2751 = vmul.f32 %v2081, %v2687
        %v2752 = vmul.f32 %v2130, %v2688
        %v2753 = vmul.f32 %v2179, %v2689
        %v2754 = vmul.f32 %v2035, %v2690
        %v2755 = vmul.f32 %v2084, %v2691
        %v2756 = vmul.f32 %v2133, %v2692
        %v2757 = vmul.f32 %v2182, %v2693
        %v2758 = vmul.f32 %v2037, %v2694
        %v2759 = vmul.f32 %v2086, %v2695
        %v2760 = vmul.f32 %v2135, %v2696
        %v2761 = vmul.f32 %v2184, %v2697
        %v2762 = vpack.c.bf16 %v2702, %v2698
        %v2763 = vpack.c.bf16 %v2703, %v2699
        %v2764 = vpack.c.bf16 %v2704, %v2700
        %v2765 = vpack.c.bf16 %v2705, %v2701
        %v2766 = vpack.c.bf16 %v2710, %v2706
        %v2767 = vpack.c.bf16 %v2711, %v2707
        %v2768 = vpack.c.bf16 %v2712, %v2708
        %v2769 = vpack.c.bf16 %v2713, %v2709
        %v2770 = vpack.c.bf16 %v2718, %v2714
        %v2771 = vpack.c.bf16 %v2719, %v2715
        %v2772 = vpack.c.bf16 %v2720, %v2716
        %v2773 = vpack.c.bf16 %v2721, %v2717
        %v2774 = vpack.c.bf16 %v2726, %v2722
        %v2775 = vpack.c.bf16 %v2727, %v2723
        %v2776 = vpack.c.bf16 %v2728, %v2724
        %v2777 = vpack.c.bf16 %v2729, %v2725
        %v2778 = vpack.c.bf16 %v2734, %v2730
        %v2779 = vpack.c.bf16 %v2735, %v2731
        %v2780 = vpack.c.bf16 %v2736, %v2732
        %v2781 = vpack.c.bf16 %v2737, %v2733
        %v2782 = vpack.c.bf16 %v2742, %v2738
        %v2783 = vpack.c.bf16 %v2743, %v2739
        %v2784 = vpack.c.bf16 %v2744, %v2740
        %v2785 = vpack.c.bf16 %v2745, %v2741
        %v2786 = vpack.c.bf16 %v2750, %v2746
        %v2787 = vpack.c.bf16 %v2751, %v2747
        %v2788 = vpack.c.bf16 %v2752, %v2748
        %v2789 = vpack.c.bf16 %v2753, %v2749
        %v2790 = vpack.c.bf16 %v2758, %v2754
        %v2791 = vpack.c.bf16 %v2759, %v2755
        %v2792 = vpack.c.bf16 %v2760, %v2756
        %v2793 = vpack.c.bf16 %v2761, %v2757
        %v2794 = vld [vmem:[#allocation14] sm:$0xf]
        %v2795 = vld [vmem:[#allocation14 + $0x4] sm:$0xf]
        %v2796 = vld [vmem:[#allocation14 + $0x8] sm:$0xf]
        %v2797 = vld [vmem:[#allocation14 + $0xc] sm:$0xf]
        %v2798 = vld [vmem:[#allocation14 + $0x10] sm:$0xf]
        %v2799 = vld [vmem:[#allocation14 + $0x14] sm:$0xf]
        %v2800 = vld [vmem:[#allocation14 + $0x18] sm:$0xf]
        %v2801 = vld [vmem:[#allocation14 + $0x1c] sm:$0xf]
        %v2802 = vld [vmem:[#allocation14 + $0x20] sm:$0xf]
        %v2803 = vld [vmem:[#allocation14 + $0x24] sm:$0xf]
        %v2804 = vld [vmem:[#allocation14 + $0x28] sm:$0xf]
        %v2805 = vld [vmem:[#allocation14 + $0x2c] sm:$0xf]
        %v2806 = vld [vmem:[#allocation14 + $0x30] sm:$0xf]
        %v2807 = vld [vmem:[#allocation14 + $0x34] sm:$0xf]
        %v2808 = vld [vmem:[#allocation14 + $0x38] sm:$0xf]
        %v2809 = vld [vmem:[#allocation14 + $0x3c] sm:$0xf]
        %v2810 = vld [vmem:[#allocation14 + $0x40] sm:$0xf]
        %v2811 = vld [vmem:[#allocation14 + $0x44] sm:$0xf]
        %v2812 = vld [vmem:[#allocation14 + $0x48] sm:$0xf]
        %v2813 = vld [vmem:[#allocation14 + $0x4c] sm:$0xf]
        %v2814 = vld [vmem:[#allocation14 + $0x50] sm:$0xf]
        %v2815 = vld [vmem:[#allocation14 + $0x54] sm:$0xf]
        %v2816 = vld [vmem:[#allocation14 + $0x58] sm:$0xf]
        %v2817 = vld [vmem:[#allocation14 + $0x5c] sm:$0xf]
        %v2818 = vld [vmem:[#allocation14 + $0x60] sm:$0xf]
        %v2819 = vld [vmem:[#allocation14 + $0x64] sm:$0xf]
        %v2820 = vld [vmem:[#allocation14 + $0x68] sm:$0xf]
        %v2821 = vld [vmem:[#allocation14 + $0x6c] sm:$0xf]
        %v2822 = vld [vmem:[#allocation14 + $0x70] sm:$0xf]
        %v2823 = vld [vmem:[#allocation14 + $0x74] sm:$0xf]
        %v2824 = vld [vmem:[#allocation14 + $0x78] sm:$0xf]
        %v2825 = vld [vmem:[#allocation14 + $0x7c] sm:$0xf]
        %v2826 = vld [vmem:[#allocation14 + $0x80] sm:$0xf]
        %v2827 = vld [vmem:[#allocation14 + $0x84] sm:$0xf]
        %v2828 = vld [vmem:[#allocation14 + $0x88] sm:$0xf]
        %v2829 = vld [vmem:[#allocation14 + $0x8c] sm:$0xf]
        %v2830 = vld [vmem:[#allocation14 + $0x90] sm:$0xf]
        %v2831 = vld [vmem:[#allocation14 + $0x94] sm:$0xf]
        %v2832 = vld [vmem:[#allocation14 + $0x98] sm:$0xf]
        %v2833 = vld [vmem:[#allocation14 + $0x9c] sm:$0xf]
        %v2834 = vld [vmem:[#allocation14 + $0xa0] sm:$0xf]
        %v2835 = vld [vmem:[#allocation14 + $0xa4] sm:$0xf]
        %v2836 = vld [vmem:[#allocation14 + $0xa8] sm:$0xf]
        %v2837 = vld [vmem:[#allocation14 + $0xac] sm:$0xf]
        %v2838 = vld [vmem:[#allocation14 + $0xb0] sm:$0xf]
        %v2839 = vld [vmem:[#allocation14 + $0xb4] sm:$0xf]
        %v2840 = vld [vmem:[#allocation14 + $0xb8] sm:$0xf]
        %v2841 = vld [vmem:[#allocation14 + $0xbc] sm:$0xf]
        %v2842 = vld [vmem:[#allocation14 + $0xc0] sm:$0xf]
        %v2843 = vld [vmem:[#allocation14 + $0xc4] sm:$0xf]
        %v2844 = vld [vmem:[#allocation14 + $0xc8] sm:$0xf]
        %v2845 = vld [vmem:[#allocation14 + $0xcc] sm:$0xf]
        %v2846 = vld [vmem:[#allocation14 + $0xd0] sm:$0xf]
        %v2847 = vld [vmem:[#allocation14 + $0xd4] sm:$0xf]
        %v2848 = vld [vmem:[#allocation14 + $0xd8] sm:$0xf]
        %v2849 = vld [vmem:[#allocation14 + $0xdc] sm:$0xf]
        %v2850 = vld [vmem:[#allocation14 + $0xe0] sm:$0xf]
        %v2851 = vld [vmem:[#allocation14 + $0xe4] sm:$0xf]
        %v2852 = vld [vmem:[#allocation14 + $0xe8] sm:$0xf]
        %v2853 = vld [vmem:[#allocation14 + $0xec] sm:$0xf]
        %v2854 = vld [vmem:[#allocation14 + $0xf0] sm:$0xf]
        %v2855 = vld [vmem:[#allocation14 + $0xf4] sm:$0xf]
        %v2856 = vld [vmem:[#allocation14 + $0xf8] sm:$0xf]
        %v2857 = vld [vmem:[#allocation14 + $0xfc] sm:$0xf]
        %v2858 = vld [vmem:[%s698] sm:$0x1]
        %v2860 = vperm.slane %v2858, 0
        %v2926 = vunpack.c.l.b16 %v2794
        %v2927 = vunpack.c.l.b16 %v2795
        %v2928 = vunpack.c.l.b16 %v2796
        %v2929 = vunpack.c.l.b16 %v2797
        %v2930 = vunpack.c.l.b16 %v2798
        %v2931 = vunpack.c.l.b16 %v2799
        %v2932 = vunpack.c.l.b16 %v2800
        %v2933 = vunpack.c.l.b16 %v2801
        %v2934 = vunpack.c.l.b16 %v2802
        %v2935 = vunpack.c.l.b16 %v2803
        %v2936 = vunpack.c.l.b16 %v2804
        %v2937 = vunpack.c.l.b16 %v2805
        %v2938 = vunpack.c.l.b16 %v2806
        %v2939 = vunpack.c.l.b16 %v2807
        %v2940 = vunpack.c.l.b16 %v2808
        %v2941 = vunpack.c.l.b16 %v2809
        %v2942 = vunpack.c.l.b16 %v2810
        %v2943 = vunpack.c.l.b16 %v2811
        %v2944 = vunpack.c.l.b16 %v2812
        %v2945 = vunpack.c.l.b16 %v2813
        %v2946 = vunpack.c.l.b16 %v2814
        %v2947 = vunpack.c.l.b16 %v2815
        %v2948 = vunpack.c.l.b16 %v2816
        %v2949 = vunpack.c.l.b16 %v2817
        %v2950 = vunpack.c.l.b16 %v2818
        %v2951 = vunpack.c.l.b16 %v2819
        %v2952 = vunpack.c.l.b16 %v2820
        %v2953 = vunpack.c.l.b16 %v2821
        %v2954 = vunpack.c.l.b16 %v2822
        %v2955 = vunpack.c.l.b16 %v2823
        %v2956 = vunpack.c.l.b16 %v2824
        %v2957 = vunpack.c.l.b16 %v2825
        %v2958 = vunpack.c.l.b16 %v2826
        %v2959 = vunpack.c.l.b16 %v2827
        %v2960 = vunpack.c.l.b16 %v2828
        %v2961 = vunpack.c.l.b16 %v2829
        %v2962 = vunpack.c.l.b16 %v2830
        %v2963 = vunpack.c.l.b16 %v2831
        %v2964 = vunpack.c.l.b16 %v2832
        %v2965 = vunpack.c.l.b16 %v2833
        %v2966 = vunpack.c.l.b16 %v2834
        %v2967 = vunpack.c.l.b16 %v2835
        %v2968 = vunpack.c.l.b16 %v2836
        %v2969 = vunpack.c.l.b16 %v2837
        %v2970 = vunpack.c.l.b16 %v2838
        %v2971 = vunpack.c.l.b16 %v2839
        %v2972 = vunpack.c.l.b16 %v2840
        %v2973 = vunpack.c.l.b16 %v2841
        %v2974 = vunpack.c.l.b16 %v2842
        %v2975 = vunpack.c.l.b16 %v2843
        %v2976 = vunpack.c.l.b16 %v2844
        %v2977 = vunpack.c.l.b16 %v2845
        %v2978 = vunpack.c.l.b16 %v2846
        %v2979 = vunpack.c.l.b16 %v2847
        %v2980 = vunpack.c.l.b16 %v2848
        %v2981 = vunpack.c.l.b16 %v2849
        %v2982 = vunpack.c.l.b16 %v2850
        %v2983 = vunpack.c.l.b16 %v2851
        %v2984 = vunpack.c.l.b16 %v2852
        %v2985 = vunpack.c.l.b16 %v2853
        %v2986 = vunpack.c.l.b16 %v2854
        %v2987 = vunpack.c.l.b16 %v2855
        %v2988 = vunpack.c.l.b16 %v2856
        %v2989 = vunpack.c.l.b16 %v2857
        %v2990 = vpack.c.b16 %v2927, %v2926
        %v2991 = vpack.c.b16 %v2929, %v2928
        %v2992 = vpack.c.b16 %v2931, %v2930
        %v2993 = vpack.c.b16 %v2933, %v2932
        %v2994 = vpack.c.b16 %v2935, %v2934
        %v2995 = vpack.c.b16 %v2937, %v2936
        %v2996 = vpack.c.b16 %v2939, %v2938
        %v2997 = vpack.c.b16 %v2941, %v2940
        %v2998 = vpack.c.b16 %v2943, %v2942
        %v2999 = vpack.c.b16 %v2945, %v2944
        %v3000 = vpack.c.b16 %v2947, %v2946
        %v3001 = vpack.c.b16 %v2949, %v2948
        %v3002 = vpack.c.b16 %v2951, %v2950
        %v3003 = vpack.c.b16 %v2953, %v2952
        %v3004 = vpack.c.b16 %v2955, %v2954
        %v3005 = vpack.c.b16 %v2957, %v2956
        %v3006 = vpack.c.b16 %v2959, %v2958
        %v3007 = vpack.c.b16 %v2961, %v2960
        %v3008 = vpack.c.b16 %v2963, %v2962
        %v3009 = vpack.c.b16 %v2965, %v2964
        %v3010 = vpack.c.b16 %v2967, %v2966
        %v3011 = vpack.c.b16 %v2969, %v2968
        %v3012 = vpack.c.b16 %v2971, %v2970
        %v3013 = vpack.c.b16 %v2973, %v2972
        %v3014 = vpack.c.b16 %v2975, %v2974
        %v3015 = vpack.c.b16 %v2977, %v2976
        %v3016 = vpack.c.b16 %v2979, %v2978
        %v3017 = vpack.c.b16 %v2981, %v2980
        %v3018 = vpack.c.b16 %v2983, %v2982
        %v3019 = vpack.c.b16 %v2985, %v2984
        %v3020 = vpack.c.b16 %v2987, %v2986
        %v3021 = vpack.c.b16 %v2989, %v2988
        %3054 = vmatpush.bf16.msra.mxu0 %v2997
        %3055 = vmatpush.bf16.msra.mxu0 %v2996
        %3056 = vmatpush.bf16.msra.mxu0 %v2995
        %3057 = vmatpush.bf16.msra.mxu0 %v2994
        %3058 = vmatpush.bf16.msra.mxu0 %v2993
        %3059 = vmatpush.bf16.msra.mxu0 %v2992
        %3060 = vmatpush.bf16.msra.mxu0 %v2991
        %3061 = vmatpush.bf16.msra.mxu0 %v2990
        %3062 = vmatmul.bf16.gmra.mxu0 %v2762
        %v3063 = vpop.f32.mrf.mxu0
        %v3064 = vadd.f32 %v2860, %v3063
        %v3065 = vpop.f32.mrf.mxu0
        %v3066 = vadd.f32 %v2860, %v3065
        %3067 = vmatmul.bf16.gmra.mxu0 %v2766
        %v3068 = vpop.f32.mrf.mxu0
        %v3069 = vadd.f32 %v2860, %v3068
        %v3070 = vpop.f32.mrf.mxu0
        %v3071 = vadd.f32 %v2860, %v3070
        %3072 = vmatmul.bf16.gmra.mxu0 %v2770
        %v3073 = vpop.f32.mrf.mxu0
        %v3074 = vadd.f32 %v2860, %v3073
        %v3075 = vpop.f32.mrf.mxu0
        %v3076 = vadd.f32 %v2860, %v3075
        %3077 = vmatmul.bf16.gmra.mxu0 %v2774
        %v3078 = vpop.f32.mrf.mxu0
        %v3079 = vadd.f32 %v2860, %v3078
        %v3080 = vpop.f32.mrf.mxu0
        %v3081 = vadd.f32 %v2860, %v3080
        %3082 = vmatmul.bf16.gmra.mxu0 %v2778
        %v3083 = vpop.f32.mrf.mxu0
        %v3084 = vadd.f32 %v2860, %v3083
        %v3085 = vpop.f32.mrf.mxu0
        %v3086 = vadd.f32 %v2860, %v3085
        %3087 = vmatmul.bf16.gmra.mxu0 %v2782
        %v3088 = vpop.f32.mrf.mxu0
        %v3089 = vadd.f32 %v2860, %v3088
        %v3090 = vpop.f32.mrf.mxu0
        %v3091 = vadd.f32 %v2860, %v3090
        %3092 = vmatmul.bf16.gmra.mxu0 %v2786
        %v3093 = vpop.f32.mrf.mxu0
        %v3094 = vadd.f32 %v2860, %v3093
        %v3095 = vpop.f32.mrf.mxu0
        %v3096 = vadd.f32 %v2860, %v3095
        %3097 = vmatmul.bf16.gmra.mxu0 %v2790
        %v3098 = vpop.f32.mrf.mxu0
        %v3099 = vadd.f32 %v2860, %v3098
        %v3100 = vpop.f32.mrf.mxu0
        %v3101 = vadd.f32 %v2860, %v3100
        %3102 = vdwg.mxu0
        %3103 = vmatpush.bf16.msra.mxu0 %v3005
        %3104 = vmatpush.bf16.msra.mxu0 %v3004
        %3105 = vmatpush.bf16.msra.mxu0 %v3003
        %3106 = vmatpush.bf16.msra.mxu0 %v3002
        %3107 = vmatpush.bf16.msra.mxu0 %v3001
        %3108 = vmatpush.bf16.msra.mxu0 %v3000
        %3109 = vmatpush.bf16.msra.mxu0 %v2999
        %3110 = vmatpush.bf16.msra.mxu0 %v2998
        %3111 = vmatmul.bf16.gmra.mxu0 %v2763
        %v3112 = vpop.f32.mrf.mxu0
        %v3113 = vadd.f32 %v3064, %v3112
        %v3114 = vpop.f32.mrf.mxu0
        %v3115 = vadd.f32 %v3066, %v3114
        %3116 = vmatmul.bf16.gmra.mxu0 %v2767
        %v3117 = vpop.f32.mrf.mxu0
        %v3118 = vadd.f32 %v3069, %v3117
        %v3119 = vpop.f32.mrf.mxu0
        %v3120 = vadd.f32 %v3071, %v3119
        %3121 = vmatmul.bf16.gmra.mxu0 %v2771
        %v3122 = vpop.f32.mrf.mxu0
        %v3123 = vadd.f32 %v3074, %v3122
        %v3124 = vpop.f32.mrf.mxu0
        %v3125 = vadd.f32 %v3076, %v3124
        %3126 = vmatmul.bf16.gmra.mxu0 %v2775
        %v3127 = vpop.f32.mrf.mxu0
        %v3128 = vadd.f32 %v3079, %v3127
        %v3129 = vpop.f32.mrf.mxu0
        %v3130 = vadd.f32 %v3081, %v3129
        %3131 = vmatmul.bf16.gmra.mxu0 %v2779
        %v3132 = vpop.f32.mrf.mxu0
        %v3133 = vadd.f32 %v3084, %v3132
        %v3134 = vpop.f32.mrf.mxu0
        %v3135 = vadd.f32 %v3086, %v3134
        %3136 = vmatmul.bf16.gmra.mxu0 %v2783
        %v3137 = vpop.f32.mrf.mxu0
        %v3138 = vadd.f32 %v3089, %v3137
        %v3139 = vpop.f32.mrf.mxu0
        %v3140 = vadd.f32 %v3091, %v3139
        %3141 = vmatmul.bf16.gmra.mxu0 %v2787
        %v3142 = vpop.f32.mrf.mxu0
        %v3143 = vadd.f32 %v3094, %v3142
        %v3144 = vpop.f32.mrf.mxu0
        %v3145 = vadd.f32 %v3096, %v3144
        %3146 = vmatmul.bf16.gmra.mxu0 %v2791
        %v3147 = vpop.f32.mrf.mxu0
        %v3148 = vadd.f32 %v3099, %v3147
        %v3149 = vpop.f32.mrf.mxu0
        %v3150 = vadd.f32 %v3101, %v3149
        %3151 = vdwg.mxu0
        %3152 = vmatpush.bf16.msra.mxu0 %v3013
        %3153 = vmatpush.bf16.msra.mxu0 %v3012
        %3154 = vmatpush.bf16.msra.mxu0 %v3011
        %3155 = vmatpush.bf16.msra.mxu0 %v3010
        %3156 = vmatpush.bf16.msra.mxu0 %v3009
        %3157 = vmatpush.bf16.msra.mxu0 %v3008
        %3158 = vmatpush.bf16.msra.mxu0 %v3007
        %3159 = vmatpush.bf16.msra.mxu0 %v3006
        %3160 = vmatmul.bf16.gmra.mxu0 %v2764
        %v3161 = vpop.f32.mrf.mxu0
        %v3162 = vadd.f32 %v3113, %v3161
        %v3163 = vpop.f32.mrf.mxu0
        %v3164 = vadd.f32 %v3115, %v3163
        %3165 = vmatmul.bf16.gmra.mxu0 %v2768
        %v3166 = vpop.f32.mrf.mxu0
        %v3167 = vadd.f32 %v3118, %v3166
        %v3168 = vpop.f32.mrf.mxu0
        %v3169 = vadd.f32 %v3120, %v3168
        %3170 = vmatmul.bf16.gmra.mxu0 %v2772
        %v3171 = vpop.f32.mrf.mxu0
        %v3172 = vadd.f32 %v3123, %v3171
        %v3173 = vpop.f32.mrf.mxu0
        %v3174 = vadd.f32 %v3125, %v3173
        %3175 = vmatmul.bf16.gmra.mxu0 %v2776
        %v3176 = vpop.f32.mrf.mxu0
        %v3177 = vadd.f32 %v3128, %v3176
        %v3178 = vpop.f32.mrf.mxu0
        %v3179 = vadd.f32 %v3130, %v3178
        %3180 = vmatmul.bf16.gmra.mxu0 %v2780
        %v3181 = vpop.f32.mrf.mxu0
        %v3182 = vadd.f32 %v3133, %v3181
        %v3183 = vpop.f32.mrf.mxu0
        %v3184 = vadd.f32 %v3135, %v3183
        %3185 = vmatmul.bf16.gmra.mxu0 %v2784
        %v3186 = vpop.f32.mrf.mxu0
        %v3187 = vadd.f32 %v3138, %v3186
        %v3188 = vpop.f32.mrf.mxu0
        %v3189 = vadd.f32 %v3140, %v3188
        %3190 = vmatmul.bf16.gmra.mxu0 %v2788
        %v3191 = vpop.f32.mrf.mxu0
        %v3192 = vadd.f32 %v3143, %v3191
        %v3193 = vpop.f32.mrf.mxu0
        %v3194 = vadd.f32 %v3145, %v3193
        %3195 = vmatmul.bf16.gmra.mxu0 %v2792
        %v3196 = vpop.f32.mrf.mxu0
        %v3197 = vadd.f32 %v3148, %v3196
        %v3198 = vpop.f32.mrf.mxu0
        %v3199 = vadd.f32 %v3150, %v3198
        %3200 = vdwg.mxu0
        %3201 = vmatpush.bf16.msra.mxu0 %v3021
        %3202 = vmatpush.bf16.msra.mxu0 %v3020
        %3203 = vmatpush.bf16.msra.mxu0 %v3019
        %3204 = vmatpush.bf16.msra.mxu0 %v3018
        %3205 = vmatpush.bf16.msra.mxu0 %v3017
        %3206 = vmatpush.bf16.msra.mxu0 %v3016
        %3207 = vmatpush.bf16.msra.mxu0 %v3015
        %3208 = vmatpush.bf16.msra.mxu0 %v3014
        %3209 = vmatmul.bf16.gmra.mxu0 %v2765
        %v3210 = vpop.f32.mrf.mxu0
        %v3211 = vadd.f32 %v3162, %v3210
        %v3212 = vpop.f32.mrf.mxu0
        %v3213 = vadd.f32 %v3164, %v3212
        %3214 = vmatmul.bf16.gmra.mxu0 %v2769
        %v3215 = vpop.f32.mrf.mxu0
        %v3216 = vadd.f32 %v3167, %v3215
        %v3217 = vpop.f32.mrf.mxu0
        %v3218 = vadd.f32 %v3169, %v3217
        %3219 = vmatmul.bf16.gmra.mxu0 %v2773
        %v3220 = vpop.f32.mrf.mxu0
        %v3221 = vadd.f32 %v3172, %v3220
        %v3222 = vpop.f32.mrf.mxu0
        %v3223 = vadd.f32 %v3174, %v3222
        %3224 = vmatmul.bf16.gmra.mxu0 %v2777
        %v3225 = vpop.f32.mrf.mxu0
        %v3226 = vadd.f32 %v3177, %v3225
        %v3227 = vpop.f32.mrf.mxu0
        %v3228 = vadd.f32 %v3179, %v3227
        %3229 = vmatmul.bf16.gmra.mxu0 %v2781
        %v3230 = vpop.f32.mrf.mxu0
        %v3231 = vadd.f32 %v3182, %v3230
        %v3232 = vpop.f32.mrf.mxu0
        %v3233 = vadd.f32 %v3184, %v3232
        %3234 = vmatmul.bf16.gmra.mxu0 %v2785
        %v3235 = vpop.f32.mrf.mxu0
        %v3236 = vadd.f32 %v3187, %v3235
        %v3237 = vpop.f32.mrf.mxu0
        %v3238 = vadd.f32 %v3189, %v3237
        %3239 = vmatmul.bf16.gmra.mxu0 %v2789
        %v3240 = vpop.f32.mrf.mxu0
        %v3241 = vadd.f32 %v3192, %v3240
        %v3242 = vpop.f32.mrf.mxu0
        %v3243 = vadd.f32 %v3194, %v3242
        %3244 = vmatmul.bf16.gmra.mxu0 %v2793
        %v3245 = vpop.f32.mrf.mxu0
        %v3246 = vadd.f32 %v3197, %v3245
        %v3247 = vpop.f32.mrf.mxu0
        %v3248 = vadd.f32 %v3199, %v3247
        %3249 = vdwg.mxu0
        %v3250 = vadd.f32 %v3211, %v706
        %v3251 = vadd.f32 %v3213, %v707
        %v3252 = vadd.f32 %v3216, %v708
        %v3253 = vadd.f32 %v3218, %v709
        %v3254 = vadd.f32 %v3221, %v710
        %v3255 = vadd.f32 %v3223, %v711
        %v3256 = vadd.f32 %v3226, %v712
        %v3257 = vadd.f32 %v3228, %v713
        %v3258 = vadd.f32 %v3231, %v714
        %v3259 = vadd.f32 %v3233, %v715
        %v3260 = vadd.f32 %v3236, %v716
        %v3261 = vadd.f32 %v3238, %v717
        %v3262 = vadd.f32 %v3241, %v718
        %v3263 = vadd.f32 %v3243, %v719
        %v3264 = vadd.f32 %v3246, %v720
        %v3265 = vadd.f32 %v3248, %v721
        %3266 = vadd.xlane.f32.xlu0 %v3250
        %v3267 = vpop.xlane.xlu0 %3266
        %3268 = vadd.xlane.f32.xlu0 %v3251
        %v3269 = vpop.xlane.xlu0 %3268
        %3270 = vadd.xlane.f32.xlu0 %v3252
        %v3271 = vpop.xlane.xlu0 %3270
        %3272 = vadd.xlane.f32.xlu0 %v3253
        %v3273 = vpop.xlane.xlu0 %3272
        %3274 = vadd.xlane.f32.xlu0 %v3254
        %v3275 = vpop.xlane.xlu0 %3274
        %3276 = vadd.xlane.f32.xlu0 %v3255
        %v3277 = vpop.xlane.xlu0 %3276
        %3278 = vadd.xlane.f32.xlu0 %v3256
        %v3279 = vpop.xlane.xlu0 %3278
        %3280 = vadd.xlane.f32.xlu0 %v3257
        %v3281 = vpop.xlane.xlu0 %3280
        %3282 = vadd.xlane.f32.xlu0 %v3258
        %v3283 = vpop.xlane.xlu0 %3282
        %3284 = vadd.xlane.f32.xlu0 %v3259
        %v3285 = vpop.xlane.xlu0 %3284
        %3286 = vadd.xlane.f32.xlu0 %v3260
        %v3287 = vpop.xlane.xlu0 %3286
        %3288 = vadd.xlane.f32.xlu0 %v3261
        %v3289 = vpop.xlane.xlu0 %3288
        %3290 = vadd.xlane.f32.xlu0 %v3262
        %v3291 = vpop.xlane.xlu0 %3290
        %3292 = vadd.xlane.f32.xlu0 %v3263
        %v3293 = vpop.xlane.xlu0 %3292
        %3294 = vadd.xlane.f32.xlu0 %v3264
        %v3295 = vpop.xlane.xlu0 %3294
        %3296 = vadd.xlane.f32.xlu0 %v3265
        %v3297 = vpop.xlane.xlu0 %3296
        %v3298 = vrcp.pop 128.0
        %v3299 = vmul.f32 128.0, %v3298
        %v3300 = vsub.f32 1.0, %v3299
        %v3301 = vmul.f32 %v3298, %v3300
        %v3302 = vadd.f32 %v3298, %v3301
        %vm3303 = vweird.f32 %v3298
        %v3304 = vsel %vm3303, %v3298, %v3302
        %v3305 = vmul.f32 %v3267, %v3304
        %v3306 = vmul.f32 %v3269, %v3304
        %v3307 = vmul.f32 %v3271, %v3304
        %v3308 = vmul.f32 %v3273, %v3304
        %v3309 = vmul.f32 %v3275, %v3304
        %v3310 = vmul.f32 %v3277, %v3304
        %v3311 = vmul.f32 %v3279, %v3304
        %v3312 = vmul.f32 %v3281, %v3304
        %v3313 = vmul.f32 %v3283, %v3304
        %v3314 = vmul.f32 %v3285, %v3304
        %v3315 = vmul.f32 %v3287, %v3304
        %v3316 = vmul.f32 %v3289, %v3304
        %v3317 = vmul.f32 %v3291, %v3304
        %v3318 = vmul.f32 %v3293, %v3304
        %v3319 = vmul.f32 %v3295, %v3304
        %v3320 = vmul.f32 %v3297, %v3304
        %v3321 = vsub.f32 %v3250, %v3305
        %v3322 = vsub.f32 %v3251, %v3306
        %v3323 = vsub.f32 %v3252, %v3307
        %v3324 = vsub.f32 %v3253, %v3308
        %v3325 = vsub.f32 %v3254, %v3309
        %v3326 = vsub.f32 %v3255, %v3310
        %v3327 = vsub.f32 %v3256, %v3311
        %v3328 = vsub.f32 %v3257, %v3312
        %v3329 = vsub.f32 %v3258, %v3313
        %v3330 = vsub.f32 %v3259, %v3314
        %v3331 = vsub.f32 %v3260, %v3315
        %v3332 = vsub.f32 %v3261, %v3316
        %v3333 = vsub.f32 %v3262, %v3317
        %v3334 = vsub.f32 %v3263, %v3318
        %v3335 = vsub.f32 %v3264, %v3319
        %v3336 = vsub.f32 %v3265, %v3320
        %v3337 = vmul.f32 %v3321, %v3321
        %v3338 = vmul.f32 %v3322, %v3322
        %v3339 = vmul.f32 %v3323, %v3323
        %v3340 = vmul.f32 %v3324, %v3324
        %v3341 = vmul.f32 %v3325, %v3325
        %v3342 = vmul.f32 %v3326, %v3326
        %v3343 = vmul.f32 %v3327, %v3327
        %v3344 = vmul.f32 %v3328, %v3328
        %v3345 = vmul.f32 %v3329, %v3329
        %v3346 = vmul.f32 %v3330, %v3330
        %v3347 = vmul.f32 %v3331, %v3331
        %v3348 = vmul.f32 %v3332, %v3332
        %v3349 = vmul.f32 %v3333, %v3333
        %v3350 = vmul.f32 %v3334, %v3334
        %v3351 = vmul.f32 %v3335, %v3335
        %v3352 = vmul.f32 %v3336, %v3336
        %3353 = vadd.xlane.f32.xlu0 %v3337
        %v3354 = vpop.xlane.xlu0 %3353
        %3355 = vadd.xlane.f32.xlu0 %v3338
        %v3356 = vpop.xlane.xlu0 %3355
        %3357 = vadd.xlane.f32.xlu0 %v3339
        %v3358 = vpop.xlane.xlu0 %3357
        %3359 = vadd.xlane.f32.xlu0 %v3340
        %v3360 = vpop.xlane.xlu0 %3359
        %3361 = vadd.xlane.f32.xlu0 %v3341
        %v3362 = vpop.xlane.xlu0 %3361
        %3363 = vadd.xlane.f32.xlu0 %v3342
        %v3364 = vpop.xlane.xlu0 %3363
        %3365 = vadd.xlane.f32.xlu0 %v3343
        %v3366 = vpop.xlane.xlu0 %3365
        %3367 = vadd.xlane.f32.xlu0 %v3344
        %v3368 = vpop.xlane.xlu0 %3367
        %3369 = vadd.xlane.f32.xlu0 %v3345
        %v3370 = vpop.xlane.xlu0 %3369
        %3371 = vadd.xlane.f32.xlu0 %v3346
        %v3372 = vpop.xlane.xlu0 %3371
        %3373 = vadd.xlane.f32.xlu0 %v3347
        %v3374 = vpop.xlane.xlu0 %3373
        %3375 = vadd.xlane.f32.xlu0 %v3348
        %v3376 = vpop.xlane.xlu0 %3375
        %3377 = vadd.xlane.f32.xlu0 %v3349
        %v3378 = vpop.xlane.xlu0 %3377
        %3379 = vadd.xlane.f32.xlu0 %v3350
        %v3380 = vpop.xlane.xlu0 %3379
        %3381 = vadd.xlane.f32.xlu0 %v3351
        %v3382 = vpop.xlane.xlu0 %3381
        %3383 = vadd.xlane.f32.xlu0 %v3352
        %v3384 = vpop.xlane.xlu0 %3383
        %v3385 = vmul.f32 %v3354, %v3304
        %v3386 = vmul.f32 %v3356, %v3304
        %v3387 = vmul.f32 %v3358, %v3304
        %v3388 = vmul.f32 %v3360, %v3304
        %v3389 = vmul.f32 %v3362, %v3304
        %v3390 = vmul.f32 %v3364, %v3304
        %v3391 = vmul.f32 %v3366, %v3304
        %v3392 = vmul.f32 %v3368, %v3304
        %v3393 = vmul.f32 %v3370, %v3304
        %v3394 = vmul.f32 %v3372, %v3304
        %v3395 = vmul.f32 %v3374, %v3304
        %v3396 = vmul.f32 %v3376, %v3304
        %v3397 = vmul.f32 %v3378, %v3304
        %v3398 = vmul.f32 %v3380, %v3304
        %v3399 = vmul.f32 %v3382, %v3304
        %v3400 = vmul.f32 %v3384, %v3304
        %v3401 = vadd.f32 %v3385, 1e-12
        %v3402 = vadd.f32 %v3386, 1e-12
        %v3403 = vadd.f32 %v3387, 1e-12
        %v3404 = vadd.f32 %v3388, 1e-12
        %v3405 = vadd.f32 %v3389, 1e-12
        %v3406 = vadd.f32 %v3390, 1e-12
        %v3407 = vadd.f32 %v3391, 1e-12
        %v3408 = vadd.f32 %v3392, 1e-12
        %v3409 = vadd.f32 %v3393, 1e-12
        %v3410 = vadd.f32 %v3394, 1e-12
        %v3411 = vadd.f32 %v3395, 1e-12
        %v3412 = vadd.f32 %v3396, 1e-12
        %v3413 = vadd.f32 %v3397, 1e-12
        %v3414 = vadd.f32 %v3398, 1e-12
        %v3415 = vadd.f32 %v3399, 1e-12
        %v3416 = vadd.f32 %v3400, 1e-12
        %v3417 = vrsqrt.pop %v3401
        %v3418 = vmul.f32 %v3417, %v3401
        %v3419 = vmul.f32 %v3418, %v3417
        %v3420 = vmul.f32 0.5, %v3419
        %v3421 = vsub.f32 1.5, %v3420
        %v3422 = vmul.f32 %v3417, %v3421
        %vm3423 = vweird.f32 %v3401
        %vm3424 = vweird.f32 %v3417
        %vm3425 = vmor %vm3423, %vm3424
        %v3426 = vsel %vm3425, %v3417, %v3422
        %v3427 = vrsqrt.pop %v3402
        %v3428 = vmul.f32 %v3427, %v3402
        %v3429 = vmul.f32 %v3428, %v3427
        %v3430 = vmul.f32 0.5, %v3429
        %v3431 = vsub.f32 1.5, %v3430
        %v3432 = vmul.f32 %v3427, %v3431
        %vm3433 = vweird.f32 %v3402
        %vm3434 = vweird.f32 %v3427
        %vm3435 = vmor %vm3433, %vm3434
        %v3436 = vsel %vm3435, %v3427, %v3432
        %v3437 = vrsqrt.pop %v3403
        %v3438 = vmul.f32 %v3437, %v3403
        %v3439 = vmul.f32 %v3438, %v3437
        %v3440 = vmul.f32 0.5, %v3439
        %v3441 = vsub.f32 1.5, %v3440
        %v3442 = vmul.f32 %v3437, %v3441
        %vm3443 = vweird.f32 %v3403
        %vm3444 = vweird.f32 %v3437
        %vm3445 = vmor %vm3443, %vm3444
        %v3446 = vsel %vm3445, %v3437, %v3442
        %v3447 = vrsqrt.pop %v3404
        %v3448 = vmul.f32 %v3447, %v3404
        %v3449 = vmul.f32 %v3448, %v3447
        %v3450 = vmul.f32 0.5, %v3449
        %v3451 = vsub.f32 1.5, %v3450
        %v3452 = vmul.f32 %v3447, %v3451
        %vm3453 = vweird.f32 %v3404
        %vm3454 = vweird.f32 %v3447
        %vm3455 = vmor %vm3453, %vm3454
        %v3456 = vsel %vm3455, %v3447, %v3452
        %v3457 = vrsqrt.pop %v3405
        %v3458 = vmul.f32 %v3457, %v3405
        %v3459 = vmul.f32 %v3458, %v3457
        %v3460 = vmul.f32 0.5, %v3459
        %v3461 = vsub.f32 1.5, %v3460
        %v3462 = vmul.f32 %v3457, %v3461
        %vm3463 = vweird.f32 %v3405
        %vm3464 = vweird.f32 %v3457
        %vm3465 = vmor %vm3463, %vm3464
        %v3466 = vsel %vm3465, %v3457, %v3462
        %v3467 = vrsqrt.pop %v3406
        %v3468 = vmul.f32 %v3467, %v3406
        %v3469 = vmul.f32 %v3468, %v3467
        %v3470 = vmul.f32 0.5, %v3469
        %v3471 = vsub.f32 1.5, %v3470
        %v3472 = vmul.f32 %v3467, %v3471
        %vm3473 = vweird.f32 %v3406
        %vm3474 = vweird.f32 %v3467
        %vm3475 = vmor %vm3473, %vm3474
        %v3476 = vsel %vm3475, %v3467, %v3472
        %v3477 = vrsqrt.pop %v3407
        %v3478 = vmul.f32 %v3477, %v3407
        %v3479 = vmul.f32 %v3478, %v3477
        %v3480 = vmul.f32 0.5, %v3479
        %v3481 = vsub.f32 1.5, %v3480
        %v3482 = vmul.f32 %v3477, %v3481
        %vm3483 = vweird.f32 %v3407
        %vm3484 = vweird.f32 %v3477
        %vm3485 = vmor %vm3483, %vm3484
        %v3486 = vsel %vm3485, %v3477, %v3482
        %v3487 = vrsqrt.pop %v3408
        %v3488 = vmul.f32 %v3487, %v3408
        %v3489 = vmul.f32 %v3488, %v3487
        %v3490 = vmul.f32 0.5, %v3489
        %v3491 = vsub.f32 1.5, %v3490
        %v3492 = vmul.f32 %v3487, %v3491
        %vm3493 = vweird.f32 %v3408
        %vm3494 = vweird.f32 %v3487
        %vm3495 = vmor %vm3493, %vm3494
        %v3496 = vsel %vm3495, %v3487, %v3492
        %v3497 = vrsqrt.pop %v3409
        %v3498 = vmul.f32 %v3497, %v3409
        %v3499 = vmul.f32 %v3498, %v3497
        %v3500 = vmul.f32 0.5, %v3499
        %v3501 = vsub.f32 1.5, %v3500
        %v3502 = vmul.f32 %v3497, %v3501
        %vm3503 = vweird.f32 %v3409
        %vm3504 = vweird.f32 %v3497
        %vm3505 = vmor %vm3503, %vm3504
        %v3506 = vsel %vm3505, %v3497, %v3502
        %v3507 = vrsqrt.pop %v3410
        %v3508 = vmul.f32 %v3507, %v3410
        %v3509 = vmul.f32 %v3508, %v3507
        %v3510 = vmul.f32 0.5, %v3509
        %v3511 = vsub.f32 1.5, %v3510
        %v3512 = vmul.f32 %v3507, %v3511
        %vm3513 = vweird.f32 %v3410
        %vm3514 = vweird.f32 %v3507
        %vm3515 = vmor %vm3513, %vm3514
        %v3516 = vsel %vm3515, %v3507, %v3512
        %v3517 = vrsqrt.pop %v3411
        %v3518 = vmul.f32 %v3517, %v3411
        %v3519 = vmul.f32 %v3518, %v3517
        %v3520 = vmul.f32 0.5, %v3519
        %v3521 = vsub.f32 1.5, %v3520
        %v3522 = vmul.f32 %v3517, %v3521
        %vm3523 = vweird.f32 %v3411
        %vm3524 = vweird.f32 %v3517
        %vm3525 = vmor %vm3523, %vm3524
        %v3526 = vsel %vm3525, %v3517, %v3522
        %v3527 = vrsqrt.pop %v3412
        %v3528 = vmul.f32 %v3527, %v3412
        %v3529 = vmul.f32 %v3528, %v3527
        %v3530 = vmul.f32 0.5, %v3529
        %v3531 = vsub.f32 1.5, %v3530
        %v3532 = vmul.f32 %v3527, %v3531
        %vm3533 = vweird.f32 %v3412
        %vm3534 = vweird.f32 %v3527
        %vm3535 = vmor %vm3533, %vm3534
        %v3536 = vsel %vm3535, %v3527, %v3532
        %v3537 = vrsqrt.pop %v3413
        %v3538 = vmul.f32 %v3537, %v3413
        %v3539 = vmul.f32 %v3538, %v3537
        %v3540 = vmul.f32 0.5, %v3539
        %v3541 = vsub.f32 1.5, %v3540
        %v3542 = vmul.f32 %v3537, %v3541
        %vm3543 = vweird.f32 %v3413
        %vm3544 = vweird.f32 %v3537
        %vm3545 = vmor %vm3543, %vm3544
        %v3546 = vsel %vm3545, %v3537, %v3542
        %v3547 = vrsqrt.pop %v3414
        %v3548 = vmul.f32 %v3547, %v3414
        %v3549 = vmul.f32 %v3548, %v3547
        %v3550 = vmul.f32 0.5, %v3549
        %v3551 = vsub.f32 1.5, %v3550
        %v3552 = vmul.f32 %v3547, %v3551
        %vm3553 = vweird.f32 %v3414
        %vm3554 = vweird.f32 %v3547
        %vm3555 = vmor %vm3553, %vm3554
        %v3556 = vsel %vm3555, %v3547, %v3552
        %v3557 = vrsqrt.pop %v3415
        %v3558 = vmul.f32 %v3557, %v3415
        %v3559 = vmul.f32 %v3558, %v3557
        %v3560 = vmul.f32 0.5, %v3559
        %v3561 = vsub.f32 1.5, %v3560
        %v3562 = vmul.f32 %v3557, %v3561
        %vm3563 = vweird.f32 %v3415
        %vm3564 = vweird.f32 %v3557
        %vm3565 = vmor %vm3563, %vm3564
        %v3566 = vsel %vm3565, %v3557, %v3562
        %v3567 = vrsqrt.pop %v3416
        %v3568 = vmul.f32 %v3567, %v3416
        %v3569 = vmul.f32 %v3568, %v3567
        %v3570 = vmul.f32 0.5, %v3569
        %v3571 = vsub.f32 1.5, %v3570
        %v3572 = vmul.f32 %v3567, %v3571
        %vm3573 = vweird.f32 %v3416
        %vm3574 = vweird.f32 %v3567
        %vm3575 = vmor %vm3573, %vm3574
        %v3576 = vsel %vm3575, %v3567, %v3572
        %v3577 = vmul.f32 %v3321, %v3426
        %v3578 = vmul.f32 %v3322, %v3436
        %v3579 = vmul.f32 %v3323, %v3446
        %v3580 = vmul.f32 %v3324, %v3456
        %v3581 = vmul.f32 %v3325, %v3466
        %v3582 = vmul.f32 %v3326, %v3476
        %v3583 = vmul.f32 %v3327, %v3486
        %v3584 = vmul.f32 %v3328, %v3496
        %v3585 = vmul.f32 %v3329, %v3506
        %v3586 = vmul.f32 %v3330, %v3516
        %v3587 = vmul.f32 %v3331, %v3526
        %v3588 = vmul.f32 %v3332, %v3536
        %v3589 = vmul.f32 %v3333, %v3546
        %v3590 = vmul.f32 %v3334, %v3556
        %v3591 = vmul.f32 %v3335, %v3566
        %v3592 = vmul.f32 %v3336, %v3576
        %v3593 = vld [vmem:[%s701] sm:$0x1]
        %v3595 = vperm.slane %v3593, 0
        %v3597 = vmul.f32 %v3577, %v3595
        %v3598 = vmul.f32 %v3578, %v3595
        %v3599 = vmul.f32 %v3579, %v3595
        %v3600 = vmul.f32 %v3580, %v3595
        %v3601 = vmul.f32 %v3581, %v3595
        %v3602 = vmul.f32 %v3582, %v3595
        %v3603 = vmul.f32 %v3583, %v3595
        %v3604 = vmul.f32 %v3584, %v3595
        %v3605 = vmul.f32 %v3585, %v3595
        %v3606 = vmul.f32 %v3586, %v3595
        %v3607 = vmul.f32 %v3587, %v3595
        %v3608 = vmul.f32 %v3588, %v3595
        %v3609 = vmul.f32 %v3589, %v3595
        %v3610 = vmul.f32 %v3590, %v3595
        %v3611 = vmul.f32 %v3591, %v3595
        %v3612 = vmul.f32 %v3592, %v3595
        %v3613 = vld [vmem:[%s704] sm:$0x1]
        %v3615 = vperm.slane %v3613, 0
        %v3617 = vadd.f32 %v3597, %v3615
        %v3618 = vadd.f32 %v3598, %v3615
        %v3619 = vadd.f32 %v3599, %v3615
        %v3620 = vadd.f32 %v3600, %v3615
        %v3621 = vadd.f32 %v3601, %v3615
        %v3622 = vadd.f32 %v3602, %v3615
        %v3623 = vadd.f32 %v3603, %v3615
        %v3624 = vadd.f32 %v3604, %v3615
        %v3625 = vadd.f32 %v3605, %v3615
        %v3626 = vadd.f32 %v3606, %v3615
        %v3627 = vadd.f32 %v3607, %v3615
        %v3628 = vadd.f32 %v3608, %v3615
        %v3629 = vadd.f32 %v3609, %v3615
        %v3630 = vadd.f32 %v3610, %v3615
        %v3631 = vadd.f32 %v3611, %v3615
        %v3632 = vadd.f32 %v3612, %v3615
        %v3633 = vpack.c.bf16 %v3617, %v3617
        %v3634 = vpack.c.bf16 %v3618, %v3618
        %v3635 = vpack.c.bf16 %v3619, %v3619
        %v3636 = vpack.c.bf16 %v3620, %v3620
        %v3637 = vpack.c.bf16 %v3621, %v3621
        %v3638 = vpack.c.bf16 %v3622, %v3622
        %v3639 = vpack.c.bf16 %v3623, %v3623
        %v3640 = vpack.c.bf16 %v3624, %v3624
        %v3641 = vpack.c.bf16 %v3625, %v3625
        %v3642 = vpack.c.bf16 %v3626, %v3626
        %v3643 = vpack.c.bf16 %v3627, %v3627
        %v3644 = vpack.c.bf16 %v3628, %v3628
        %v3645 = vpack.c.bf16 %v3629, %v3629
        %v3646 = vpack.c.bf16 %v3630, %v3630
        %v3647 = vpack.c.bf16 %v3631, %v3631
        %v3648 = vpack.c.bf16 %v3632, %v3632
        %v3649 = vrot.slane %v3641, 4
        %vm3650 = vcmask 1047556
        %v3651 = vsel %vm3650, %v3649, %v3633
        %v3653 = vunpack.c.l.s4 1983009808
        %v3654 = vunpack.c.0.s8 %v3653
        %v3655 = vperm.slane %v3651, %v3654
        %v3656 = vrot.slane %v3645, 4
        %v3657 = vsel %vm3650, %v3656, %v3637
        %v3659 = vunpack.c.l.s4 1983009808
        %v3660 = vunpack.c.0.s8 %v3659
        %v3661 = vperm.slane %v3657, %v3660
        %v3662 = vrot.slane %v3661, 4
        %v3663 = vsel %vm3650, %v3662, %v3655
        %v3664 = vrot.slane %v3655, 4
        %v3665 = vsel %vm3650, %v3661, %v3664
        %v3667 = vunpack.c.l.s4 1934713408
        %v3668 = vunpack.c.0.s8 %v3667
        %v3669 = vperm.slane %v3663, %v3668
        %v3671 = vunpack.c.l.s4 1934713408
        %v3672 = vunpack.c.0.s8 %v3671
        %v3673 = vperm.slane %v3665, %v3672
        %v3674 = vrot.slane %v3669, 4
        %v3675 = vsel %vm3650, 0, %v3674
        %v3676 = vrot.slane %v3673, 4
        %v3677 = vsel %vm3650, 0, %v3676
        %v3678 = vrot.slane %v3643, 4
        %v3679 = vsel %vm3650, %v3678, %v3635
        %v3681 = vunpack.c.l.s4 1983009808
        %v3682 = vunpack.c.0.s8 %v3681
        %v3683 = vperm.slane %v3679, %v3682
        %v3684 = vrot.slane %v3647, 4
        %v3685 = vsel %vm3650, %v3684, %v3639
        %v3687 = vunpack.c.l.s4 1983009808
        %v3688 = vunpack.c.0.s8 %v3687
        %v3689 = vperm.slane %v3685, %v3688
        %v3690 = vrot.slane %v3689, 4
        %v3691 = vsel %vm3650, %v3690, %v3683
        %v3692 = vrot.slane %v3683, 4
        %v3693 = vsel %vm3650, %v3689, %v3692
        %v3695 = vunpack.c.l.s4 1934713408
        %v3696 = vunpack.c.0.s8 %v3695
        %v3697 = vperm.slane %v3691, %v3696
        %v3699 = vunpack.c.l.s4 1934713408
        %v3700 = vunpack.c.0.s8 %v3699
        %v3701 = vperm.slane %v3693, %v3700
        %v3702 = vrot.slane %v3697, 4
        %v3703 = vsel %vm3650, 0, %v3702
        %v3704 = vrot.slane %v3701, 4
        %v3705 = vsel %vm3650, 0, %v3704
        %v3706 = vrot.slane %v3642, 4
        %v3707 = vsel %vm3650, %v3706, %v3634
        %v3709 = vunpack.c.l.s4 1983009808
        %v3710 = vunpack.c.0.s8 %v3709
        %v3711 = vperm.slane %v3707, %v3710
        %v3712 = vrot.slane %v3646, 4
        %v3713 = vsel %vm3650, %v3712, %v3638
        %v3715 = vunpack.c.l.s4 1983009808
        %v3716 = vunpack.c.0.s8 %v3715
        %v3717 = vperm.slane %v3713, %v3716
        %v3718 = vrot.slane %v3717, 4
        %v3719 = vsel %vm3650, %v3718, %v3711
        %v3720 = vrot.slane %v3711, 4
        %v3721 = vsel %vm3650, %v3717, %v3720
        %v3723 = vunpack.c.l.s4 1934713408
        %v3724 = vunpack.c.0.s8 %v3723
        %v3725 = vperm.slane %v3719, %v3724
        %v3727 = vunpack.c.l.s4 1934713408
        %v3728 = vunpack.c.0.s8 %v3727
        %v3729 = vperm.slane %v3721, %v3728
        %v3730 = vrot.slane %v3725, 4
        %v3731 = vsel %vm3650, 0, %v3730
        %v3732 = vrot.slane %v3729, 4
        %v3733 = vsel %vm3650, 0, %v3732
        %v3734 = vrot.slane %v3644, 4
        %v3735 = vsel %vm3650, %v3734, %v3636
        %v3737 = vunpack.c.l.s4 1983009808
        %v3738 = vunpack.c.0.s8 %v3737
        %v3739 = vperm.slane %v3735, %v3738
        %v3740 = vrot.slane %v3648, 4
        %v3741 = vsel %vm3650, %v3740, %v3640
        %v3743 = vunpack.c.l.s4 1983009808
        %v3744 = vunpack.c.0.s8 %v3743
        %v3745 = vperm.slane %v3741, %v3744
        %v3746 = vrot.slane %v3745, 4
        %v3747 = vsel %vm3650, %v3746, %v3739
        %v3748 = vrot.slane %v3739, 4
        %v3749 = vsel %vm3650, %v3745, %v3748
        %v3751 = vunpack.c.l.s4 1934713408
        %v3752 = vunpack.c.0.s8 %v3751
        %v3753 = vperm.slane %v3747, %v3752
        %v3755 = vunpack.c.l.s4 1934713408
        %v3756 = vunpack.c.0.s8 %v3755
        %v3757 = vperm.slane %v3749, %v3756
        %v3758 = vrot.slane %v3753, 4
        %v3759 = vsel %vm3650, 0, %v3758
        %v3760 = vrot.slane %v3757, 4
        %v3761 = vsel %vm3650, 0, %v3760
        %v3764 = vpack.i.b16 %v3697, %v3669
        %v3766 = vshrl.u32 %v3669, 16
        %v3767 = vshrl.u32 %v3697, 16
        %v3768 = vpack.i.b16 %v3767, %v3766
        %v3772 = vpack.i.b16 %v3703, %v3675
        %v3774 = vshrl.u32 %v3675, 16
        %v3775 = vshrl.u32 %v3703, 16
        %v3776 = vpack.i.b16 %v3775, %v3774
        %v3780 = vpack.i.b16 %v3701, %v3673
        %v3782 = vshrl.u32 %v3673, 16
        %v3783 = vshrl.u32 %v3701, 16
        %v3784 = vpack.i.b16 %v3783, %v3782
        %v3788 = vpack.i.b16 %v3705, %v3677
        %v3790 = vshrl.u32 %v3677, 16
        %v3791 = vshrl.u32 %v3705, 16
        %v3792 = vpack.i.b16 %v3791, %v3790
        %v3796 = vpack.i.b16 %v3753, %v3725
        %v3798 = vshrl.u32 %v3725, 16
        %v3799 = vshrl.u32 %v3753, 16
        %v3800 = vpack.i.b16 %v3799, %v3798
        %v3804 = vpack.i.b16 %v3759, %v3731
        %v3806 = vshrl.u32 %v3731, 16
        %v3807 = vshrl.u32 %v3759, 16
        %v3808 = vpack.i.b16 %v3807, %v3806
        %v3812 = vpack.i.b16 %v3757, %v3729
        %v3814 = vshrl.u32 %v3729, 16
        %v3815 = vshrl.u32 %v3757, 16
        %v3816 = vpack.i.b16 %v3815, %v3814
        %v3820 = vpack.i.b16 %v3761, %v3733
        %v3822 = vshrl.u32 %v3733, 16
        %v3823 = vshrl.u32 %v3761, 16
        %v3824 = vpack.i.b16 %v3823, %v3822
        %3826 = vst [vmem:[%s688] sm:$0xf] %v3764
        %3827 = vst [vmem:[%s688 + $0x4] sm:$0xf] %v3768
        %3828 = vst [vmem:[%s688 + $0x8] sm:$0xf] %v3772
        %3829 = vst [vmem:[%s688 + $0xc] sm:$0xf] %v3776
        %3830 = vst [vmem:[%s688 + $0x10] sm:$0xf] %v3780
        %3831 = vst [vmem:[%s688 + $0x14] sm:$0xf] %v3784
        %3832 = vst [vmem:[%s688 + $0x18] sm:$0xf] %v3788
        %3833 = vst [vmem:[%s688 + $0x1c] sm:$0xf] %v3792
        %3834 = vst [vmem:[%s688 + $0x20] sm:$0xf] %v3796
        %3835 = vst [vmem:[%s688 + $0x24] sm:$0xf] %v3800
        %3836 = vst [vmem:[%s688 + $0x28] sm:$0xf] %v3804
        %3837 = vst [vmem:[%s688 + $0x2c] sm:$0xf] %v3808
        %3838 = vst [vmem:[%s688 + $0x30] sm:$0xf] %v3812
        %3839 = vst [vmem:[%s688 + $0x34] sm:$0xf] %v3816
        %3840 = vst [vmem:[%s688 + $0x38] sm:$0xf] %v3820
        %3841 = vst [vmem:[%s688 + $0x3c] sm:$0xf] %v3824
        %s3842 = sand.u32 %s375, 1
        %s3843 = scalar_lea.sflag [#allocation4], %s3842
        %s3844 = sand.u32 %s375, 1
        %s3845 = smul.addr %s3844, 64
        %s3846 = scalar_lea.vmem [#allocation16], %s3845
        // Predicated region
        $region101: #{tpu_custom_call.1} parent=67 // pred_check
          %p3847 = pneg %p385
        $region102: #{tpu_custom_call.1} parent=67 // pred_check_branch
          %3849 = sbr.rel (%p3847) target = $region104
        $region103: #{tpu_custom_call.1} parent=67 // pred_region
          %3851 = vsyncadd %s3843, 0
          %s3852 = smul.addr %s39, 16
          %s3853 = sadd.s32 %s40, %s3852
          %s3854 = smul.addr %s3853, 4
          %s3855 = scalar_lea.hbm %s12, %s3854
          %s3856 = sshll.u32 %s3846, 4
          %s3857 = int_to_ptr.vmem [resolvable:$true] %s3856
          %s3858 = sshll.u32 %s3855, 4
          %s3859 = int_to_ptr.hbm [resolvable:$true] %s3858
          %3864 = dma.vmem_to_hbm [thread:$0]  %s3857, 1024, %s3859, %s3843, 64, 64, 4
        $region104: #{tpu_custom_call.1} parent=67 // pred_fallthru
          _
      $region68: #{tpu_custom_call.1} parent=5 // pred_fallthru
        _
      %p3865 = scmp.le.s32.totalorder 2, %s30
      // Predicated region
      $region105: #{tpu_custom_call.1} parent=5 // pred_check
        %p3866 = pneg %p3865
      $region106: #{tpu_custom_call.1} parent=5 // pred_check_branch
        %3868 = sbr.rel (%p3866) target = $region108
      $region107: #{tpu_custom_call.1} parent=5 // pred_region
        %s3869 = ssub.s32 %s30, 2
        // Predicated region
        $region109: #{tpu_custom_call.1} parent=107 // pred_check
          %p3870 = pneg %p391
        $region110: #{tpu_custom_call.1} parent=107 // pred_check_branch
          %3872 = sbr.rel (%p3870) target = $region112
        $region111: #{tpu_custom_call.1} parent=107 // pred_region
          %s3873 = sand.u32 %s376, 1
          %s3874 = scalar_lea.sflag [#allocation4], %s3873
          %s3875 = sand.u32 %s376, 1
          %s3876 = smul.addr %s3875, 64
          %s3877 = scalar_lea.vmem [#allocation16], %s3876
          %3879 = dma.done %s3874, 1024
        $region112: #{tpu_custom_call.1} parent=107 // pred_fallthru
          _
      $region108: #{tpu_custom_call.1} parent=5 // pred_fallthru
        _
    $region6: #{tpu_custom_call.1} parent=1 // loop_footer
      %s34 = sadd.s32 1, %s30
    $region7: #{tpu_custom_call.1} parent=1 // loop_footer_branch
      %29 = sbr.rel target = $region3
    $region8: #{tpu_custom_call.1} parent=1 // loop_exit
      _
    %3880 = vsyncpa [#allocation3], 1
    %s3881 = scalar_lea.sflag [#allocation3], 1
    %3882 = vsyncpa %s3881, 1
    %3883 = vsyncpa [#allocation6], 1
    %s3884 = scalar_lea.sflag [#allocation6], 1
    %3885 = vsyncpa %s3884, 1
    %3886 = vsyncpa [#allocation9], 1
    %3887 = vsyncpa [#allocation12], 1
    %3888 = vsyncpa [#allocation15], 1
    %3889 = vsyncpa [#allocation4], 1
    %s3890 = scalar_lea.sflag [#allocation4], 1
    %3891 = vsyncpa %s3890, 1

// kernel: tpu_custom_call.1
$region0: #{tpu_custom_call.1}
  #allocation0 [shape = 'u32[]', space=smem, size = 0x4, offset = 0x4, fixed_abs, tag = 'smem constant byte address 0x4 - core index']
  #allocation1 [shape = 'u32[72,128]{1,0:T(1,128)}', space=vmem, size = 0x9000, scoped, tag = 'internal scratch']
  %s0 = inlined_call_operand.hbm [shape: f32[2,8,16,128], index: 0, kind: input, shape index: {}]
  %s1 = inlined_call_operand.hbm [shape: f32[2,8,16,128], index: 1, kind: input, shape index: {}]
  %s2 = inlined_call_operand.hbm [shape: bf16[2,128,128], index: 2, kind: input, shape index: {}]
  %s3 = inlined_call_operand.hbm [shape: f32[2,1,128], index: 3, kind: input, shape index: {}]
  %s4 = inlined_call_operand.hbm [shape: bf16[2,128,256], index: 4, kind: input, shape index: {}]
  %s5 = inlined_call_operand.vmem [shape: f32[2,1,256], index: 5, kind: input, shape index: {}]
  %s6 = inlined_call_operand.hbm [shape: bf16[2,128,512], index: 6, kind: input, shape index: {}]
  %s7 = inlined_call_operand.hbm [shape: f32[2,1,512], index: 7, kind: input, shape index: {}]
  %s8 = inlined_call_operand.hbm [shape: bf16[2,512,128], index: 8, kind: input, shape index: {}]
  %s9 = inlined_call_operand.vmem [shape: f32[2,1,128], index: 9, kind: input, shape index: {}]
  %s10 = inlined_call_operand.vmem [shape: f32[2,1,128], index: 10, kind: input, shape index: {}]
  %s11 = inlined_call_operand.vmem [shape: f32[2,1,128], index: 11, kind: input, shape index: {}]
  %s12 = inlined_call_operand.hbm [shape: bf16[2,16,8,128], index: 12, kind: output, shape index: {}]
  %s13 = sld [smem:[#allocation0]]
  $region113: #{tpu_custom_call.1} parent=0
    _
  %s15 = ssub.s32 1, %s13
  %s16 = scalar_select 0, %s15, %s13
  $region1: #{tpu_custom_call.1} parent=0
    #allocation2 [shape = 'u8[131072]{0}', space=vmem, size = 0x20000, scoped, tag = 'input window, operand 0']
    #allocation3 [shape = 's32[2]{0}', space=sflag, size = 0x8, scoped, tag = 'scoped memory for tpu_custom_call.1']
    #allocation4 [shape = 's32[2]{0}', space=sflag, size = 0x8, scoped, tag = 'scoped memory for tpu_custom_call.1']
    #allocation5 [shape = 'u8[131072]{0}', space=vmem, size = 0x20000, scoped, tag = 'input window, operand 1']
    #allocation6 [shape = 's32[2]{0}', space=sflag, size = 0x8, scoped, tag = 'scoped memory for tpu_custom_call.1']
    #allocation7 [shape = 'u8[65536]{0}', space=vmem, size = 0x10000, scoped, tag = 'input window, operand 2']
    #allocation8 [shape = 'u8[1024]{0}', space=vmem, size = 0x400, scoped, tag = 'input window, operand 3']
    #allocation9 [shape = 's32[2]{0}', space=sflag, size = 0x8, scoped, tag = 'scoped memory for tpu_custom_call.1']
    #allocation10 [shape = 'u8[131072]{0}', space=vmem, size = 0x20000, scoped, tag = 'input window, operand 4']
    #allocation11 [shape = 'u8[262144]{0}', space=vmem, size = 0x40000, scoped, tag = 'input window, operand 6']
    #allocation12 [shape = 's32[2]{0}', space=sflag, size = 0x8, scoped, tag = 'scoped memory for tpu_custom_call.1']
    #allocation13 [shape = 'u8[4096]{0}', space=vmem, size = 0x1000, scoped, tag = 'input window, operand 7']
    #allocation14 [shape = 'u8[262144]{0}', space=vmem, size = 0x40000, scoped, tag = 'input window, operand 8']
    #allocation15 [shape = 's32[2]{0}', space=sflag, size = 0x8, scoped, tag = 'scoped memory for tpu_custom_call.1']
    #allocation16 [shape = 'u8[65536]{0}', space=vmem, size = 0x10000, scoped, tag = 'output window, operand 0']
    %17 = vsyncpa [#allocation3], 0
    %s18 = scalar_lea.sflag [#allocation3], 1
    %19 = vsyncpa %s18, 0
    %20 = vsyncpa [#allocation6], 0
    %s21 = scalar_lea.sflag [#allocation6], 1
    %22 = vsyncpa %s21, 0
    %23 = vsyncpa [#allocation9], 0
    %s24 = scalar_lea.sflag [#allocation9], 1
    %25 = vsyncpa %s24, 0
    %26 = vsyncpa [#allocation12], 0
    %s27 = scalar_lea.sflag [#allocation12], 1
    %28 = vsyncpa %s27, 0
    %29 = vsyncpa [#allocation15], 0
    %s30 = scalar_lea.sflag [#allocation15], 1
    %31 = vsyncpa %s30, 0
    %32 = vsyncpa [#allocation4], 0
    %s33 = scalar_lea.sflag [#allocation4], 1
    %34 = vsyncpa %s33, 0
    loop: start=0, step=1, limit=4
    $region2: #{tpu_custom_call.1} parent=1 // loop_pre_header
      _
    $region3: #{tpu_custom_call.1} parent=1 // loop_header
      %s36 = sphi 0, %s40
      %p37 = scmp.ge.s32.totalorder %s36, 4
      %s43 = sphi 0, %s55
      %s44 = sphi 0, %s51
      %s45 = sphi 0, %s43
      %s46 = sphi 0, %s44
      %s47 = sphi 0, %s45
      %s48 = sphi 0, %s46
      %s60 = sphi 0, %s62
      %s63 = sphi 0, %s60
      %s64 = sphi 0, %s63
      %s80 = sphi 0, %s64
      %s90 = sphi 0, %s92
      %s93 = sphi 0, %s90
      %s94 = sphi 0, %s93
      %s110 = sphi 0, %s94
      %s116 = sphi 0, %s118
      %s119 = sphi 0, %s116
      %s120 = sphi 0, %s119
      %s136 = sphi 0, %s120
      %s142 = sphi 0, %s144
      %s145 = sphi 0, %s142
      %s146 = sphi 0, %s145
      %s162 = sphi 0, %s146
      %s168 = sphi 0, %s170
      %s171 = sphi 0, %s168
      %s172 = sphi 0, %s171
      %s188 = sphi 0, %s172
      %s194 = sphi 0, %s196
      %s197 = sphi 0, %s194
      %s198 = sphi 0, %s197
      %s214 = sphi 0, %s198
      %s220 = sphi 0, %s222
      %s223 = sphi 0, %s220
      %s224 = sphi 0, %s223
      %s240 = sphi 0, %s224
      %s246 = sphi 0, %s248
      %s249 = sphi 0, %s246
      %s250 = sphi 0, %s249
      %s266 = sphi 0, %s250
      %s272 = sphi 0, %s274
      %s275 = sphi 0, %s272
      %s276 = sphi 0, %s275
      %s292 = sphi 0, %s276
      %s298 = sphi 0, %s300
      %s301 = sphi 0, %s298
      %s302 = sphi 0, %s301
      %s318 = sphi 0, %s302
      %s324 = sphi 0, %s326
      %s327 = sphi 0, %s324
      %s328 = sphi 0, %s327
      %s344 = sphi 0, %s328
      %s350 = sphi 0, %s352
      %s353 = sphi 0, %s350
      %s354 = sphi 0, %s353
      %s370 = sphi 0, %s354
      %s378 = sphi 0, %s380
      %s381 = sphi 0, %s378
      %s382 = sphi 0, %s381
      %s398 = sphi 0, %s382
    $region4: #{tpu_custom_call.1} parent=1 // loop_header_branch
      %39 = sbr.rel (%p37) target = $region8
    $region5: #{tpu_custom_call.1} parent=1 // loop_body
      %s41 = ssub.s32 %s36, 1
      %s42 = ssub.s32 %s36, 2
      %s49 = sadd.s32 1, %s44
      %p50 = scmp.ge.s32.totalorder %s49, 1
      %s51 = scalar_select %p50, 0, %s49
      %s52 = sadd.s32 1, %s43
      %s53 = scalar_select %p50, %s52, %s43
      %p54 = scmp.ge.s32.totalorder %s53, 2
      %s55 = scalar_select %p54, 0, %s53
      %s56 = ssub.s32 %s43, %s55
      %s57 = ssub.s32 %s44, %s51
      %s58 = sor.u32 %s56, %s57
      %p59 = scmp.eq.s32.totalorder %s58, 0
      %s61 = sadd.s32 %s60, 1
      %s62 = scalar_select %p59, %s60, %s61
      %p65 = pneg %p59
      %p66 = scmp.eq.s32.totalorder %s36, 1
      %p67 = por %p65, %p66
      %p68 = scmp.ne.s32.totalorder %s60, %s63
      %p69 = scmp.eq.s32.totalorder %s36, 0
      %p70 = por %p68, %p69
      %p71 = scmp.ne.s32.totalorder %s60, %s63
      %p72 = scmp.eq.s32.totalorder %s41, 1
      %p73 = por %p71, %p72
      %p74 = scmp.ne.s32.totalorder %s63, %s64
      %p75 = scmp.eq.s32.totalorder %s41, 0
      %p76 = por %p74, %p75
      %p77 = scmp.ne.s32.totalorder %s63, %s64
      %p78 = scmp.eq.s32.totalorder %s42, 1
      %p79 = por %p77, %p78
      %p81 = scmp.ne.s32.totalorder %s64, %s80
      %p82 = scmp.eq.s32.totalorder %s42, 0
      %p83 = por %p81, %p82
      %s84 = ssub.s32 1, %s43
      %s85 = ssub.s32 1, %s55
      %s86 = ssub.s32 %s84, %s85
      %s87 = ssub.s32 %s44, %s51
      %s88 = sor.u32 %s86, %s87
      %p89 = scmp.eq.s32.totalorder %s88, 0
      %s91 = sadd.s32 %s90, 1
      %s92 = scalar_select %p89, %s90, %s91
      %p95 = pneg %p89
      %p96 = scmp.eq.s32.totalorder %s36, 1
      %p97 = por %p95, %p96
      %p98 = scmp.ne.s32.totalorder %s90, %s93
      %p99 = scmp.eq.s32.totalorder %s36, 0
      %p100 = por %p98, %p99
      %p101 = scmp.ne.s32.totalorder %s90, %s93
      %p102 = scmp.eq.s32.totalorder %s41, 1
      %p103 = por %p101, %p102
      %p104 = scmp.ne.s32.totalorder %s93, %s94
      %p105 = scmp.eq.s32.totalorder %s41, 0
      %p106 = por %p104, %p105
      %p107 = scmp.ne.s32.totalorder %s93, %s94
      %p108 = scmp.eq.s32.totalorder %s42, 1
      %p109 = por %p107, %p108
      %p111 = scmp.ne.s32.totalorder %s94, %s110
      %p112 = scmp.eq.s32.totalorder %s42, 0
      %p113 = por %p111, %p112
      %s114 = ssub.s32 %s43, %s55
      %p115 = scmp.eq.s32.totalorder %s114, 0
      %s117 = sadd.s32 %s116, 1
      %s118 = scalar_select %p115, %s116, %s117
      %p121 = pneg %p115
      %p122 = scmp.eq.s32.totalorder %s36, 1
      %p123 = por %p121, %p122
      %p124 = scmp.ne.s32.totalorder %s116, %s119
      %p125 = scmp.eq.s32.totalorder %s36, 0
      %p126 = por %p124, %p125
      %p127 = scmp.ne.s32.totalorder %s116, %s119
      %p128 = scmp.eq.s32.totalorder %s41, 1
      %p129 = por %p127, %p128
      %p130 = scmp.ne.s32.totalorder %s119, %s120
      %p131 = scmp.eq.s32.totalorder %s41, 0
      %p132 = por %p130, %p131
      %p133 = scmp.ne.s32.totalorder %s119, %s120
      %p134 = scmp.eq.s32.totalorder %s42, 1
      %p135 = por %p133, %p134
      %p137 = scmp.ne.s32.totalorder %s120, %s136
      %p138 = scmp.eq.s32.totalorder %s42, 0
      %p139 = por %p137, %p138
      %s140 = ssub.s32 %s43, %s55
      %p141 = scmp.eq.s32.totalorder %s140, 0
      %s143 = sadd.s32 %s142, 1
      %s144 = scalar_select %p141, %s142, %s143
      %p147 = pneg %p141
      %p148 = scmp.eq.s32.totalorder %s36, 1
      %p149 = por %p147, %p148
      %p150 = scmp.ne.s32.totalorder %s142, %s145
      %p151 = scmp.eq.s32.totalorder %s36, 0
      %p152 = por %p150, %p151
      %p153 = scmp.ne.s32.totalorder %s142, %s145
      %p154 = scmp.eq.s32.totalorder %s41, 1
      %p155 = por %p153, %p154
      %p156 = scmp.ne.s32.totalorder %s145, %s146
      %p157 = scmp.eq.s32.totalorder %s41, 0
      %p158 = por %p156, %p157
      %p159 = scmp.ne.s32.totalorder %s145, %s146
      %p160 = scmp.eq.s32.totalorder %s42, 1
      %p161 = por %p159, %p160
      %p163 = scmp.ne.s32.totalorder %s146, %s162
      %p164 = scmp.eq.s32.totalorder %s42, 0
      %p165 = por %p163, %p164
      %s166 = ssub.s32 %s43, %s55
      %p167 = scmp.eq.s32.totalorder %s166, 0
      %s169 = sadd.s32 %s168, 1
      %s170 = scalar_select %p167, %s168, %s169
      %p173 = pneg %p167
      %p174 = scmp.eq.s32.totalorder %s36, 1
      %p175 = por %p173, %p174
      %p176 = scmp.ne.s32.totalorder %s168, %s171
      %p177 = scmp.eq.s32.totalorder %s36, 0
      %p178 = por %p176, %p177
      %p179 = scmp.ne.s32.totalorder %s168, %s171
      %p180 = scmp.eq.s32.totalorder %s41, 1
      %p181 = por %p179, %p180
      %p182 = scmp.ne.s32.totalorder %s171, %s172
      %p183 = scmp.eq.s32.totalorder %s41, 0
      %p184 = por %p182, %p183
      %p185 = scmp.ne.s32.totalorder %s171, %s172
      %p186 = scmp.eq.s32.totalorder %s42, 1
      %p187 = por %p185, %p186
      %p189 = scmp.ne.s32.totalorder %s172, %s188
      %p190 = scmp.eq.s32.totalorder %s42, 0
      %p191 = por %p189, %p190
      %s192 = ssub.s32 %s43, %s55
      %p193 = scmp.eq.s32.totalorder %s192, 0
      %s195 = sadd.s32 %s194, 1
      %s196 = scalar_select %p193, %s194, %s195
      %p199 = pneg %p193
      %p200 = scmp.eq.s32.totalorder %s36, 1
      %p201 = por %p199, %p200
      %p202 = scmp.ne.s32.totalorder %s194, %s197
      %p203 = scmp.eq.s32.totalorder %s36, 0
      %p204 = por %p202, %p203
      %p205 = scmp.ne.s32.totalorder %s194, %s197
      %p206 = scmp.eq.s32.totalorder %s41, 1
      %p207 = por %p205, %p206
      %p208 = scmp.ne.s32.totalorder %s197, %s198
      %p209 = scmp.eq.s32.totalorder %s41, 0
      %p210 = por %p208, %p209
      %p211 = scmp.ne.s32.totalorder %s197, %s198
      %p212 = scmp.eq.s32.totalorder %s42, 1
      %p213 = por %p211, %p212
      %p215 = scmp.ne.s32.totalorder %s198, %s214
      %p216 = scmp.eq.s32.totalorder %s42, 0
      %p217 = por %p215, %p216
      %s218 = ssub.s32 %s43, %s55
      %p219 = scmp.eq.s32.totalorder %s218, 0
      %s221 = sadd.s32 %s220, 1
      %s222 = scalar_select %p219, %s220, %s221
      %p225 = pneg %p219
      %p226 = scmp.eq.s32.totalorder %s36, 1
      %p227 = por %p225, %p226
      %p228 = scmp.ne.s32.totalorder %s220, %s223
      %p229 = scmp.eq.s32.totalorder %s36, 0
      %p230 = por %p228, %p229
      %p231 = scmp.ne.s32.totalorder %s220, %s223
      %p232 = scmp.eq.s32.totalorder %s41, 1
      %p233 = por %p231, %p232
      %p234 = scmp.ne.s32.totalorder %s223, %s224
      %p235 = scmp.eq.s32.totalorder %s41, 0
      %p236 = por %p234, %p235
      %p237 = scmp.ne.s32.totalorder %s223, %s224
      %p238 = scmp.eq.s32.totalorder %s42, 1
      %p239 = por %p237, %p238
      %p241 = scmp.ne.s32.totalorder %s224, %s240
      %p242 = scmp.eq.s32.totalorder %s42, 0
      %p243 = por %p241, %p242
      %s244 = ssub.s32 %s43, %s55
      %p245 = scmp.eq.s32.totalorder %s244, 0
      %s247 = sadd.s32 %s246, 1
      %s248 = scalar_select %p245, %s246, %s247
      %p251 = pneg %p245
      %p252 = scmp.eq.s32.totalorder %s36, 1
      %p253 = por %p251, %p252
      %p254 = scmp.ne.s32.totalorder %s246, %s249
      %p255 = scmp.eq.s32.totalorder %s36, 0
      %p256 = por %p254, %p255
      %p257 = scmp.ne.s32.totalorder %s246, %s249
      %p258 = scmp.eq.s32.totalorder %s41, 1
      %p259 = por %p257, %p258
      %p260 = scmp.ne.s32.totalorder %s249, %s250
      %p261 = scmp.eq.s32.totalorder %s41, 0
      %p262 = por %p260, %p261
      %p263 = scmp.ne.s32.totalorder %s249, %s250
      %p264 = scmp.eq.s32.totalorder %s42, 1
      %p265 = por %p263, %p264
      %p267 = scmp.ne.s32.totalorder %s250, %s266
      %p268 = scmp.eq.s32.totalorder %s42, 0
      %p269 = por %p267, %p268
      %s270 = ssub.s32 %s43, %s55
      %p271 = scmp.eq.s32.totalorder %s270, 0
      %s273 = sadd.s32 %s272, 1
      %s274 = scalar_select %p271, %s272, %s273
      %p277 = pneg %p271
      %p278 = scmp.eq.s32.totalorder %s36, 1
      %p279 = por %p277, %p278
      %p280 = scmp.ne.s32.totalorder %s272, %s275
      %p281 = scmp.eq.s32.totalorder %s36, 0
      %p282 = por %p280, %p281
      %p283 = scmp.ne.s32.totalorder %s272, %s275
      %p284 = scmp.eq.s32.totalorder %s41, 1
      %p285 = por %p283, %p284
      %p286 = scmp.ne.s32.totalorder %s275, %s276
      %p287 = scmp.eq.s32.totalorder %s41, 0
      %p288 = por %p286, %p287
      %p289 = scmp.ne.s32.totalorder %s275, %s276
      %p290 = scmp.eq.s32.totalorder %s42, 1
      %p291 = por %p289, %p290
      %p293 = scmp.ne.s32.totalorder %s276, %s292
      %p294 = scmp.eq.s32.totalorder %s42, 0
      %p295 = por %p293, %p294
      %s296 = ssub.s32 %s43, %s55
      %p297 = scmp.eq.s32.totalorder %s296, 0
      %s299 = sadd.s32 %s298, 1
      %s300 = scalar_select %p297, %s298, %s299
      %p303 = pneg %p297
      %p304 = scmp.eq.s32.totalorder %s36, 1
      %p305 = por %p303, %p304
      %p306 = scmp.ne.s32.totalorder %s298, %s301
      %p307 = scmp.eq.s32.totalorder %s36, 0
      %p308 = por %p306, %p307
      %p309 = scmp.ne.s32.totalorder %s298, %s301
      %p310 = scmp.eq.s32.totalorder %s41, 1
      %p311 = por %p309, %p310
      %p312 = scmp.ne.s32.totalorder %s301, %s302
      %p313 = scmp.eq.s32.totalorder %s41, 0
      %p314 = por %p312, %p313
      %p315 = scmp.ne.s32.totalorder %s301, %s302
      %p316 = scmp.eq.s32.totalorder %s42, 1
      %p317 = por %p315, %p316
      %p319 = scmp.ne.s32.totalorder %s302, %s318
      %p320 = scmp.eq.s32.totalorder %s42, 0
      %p321 = por %p319, %p320
      %s322 = ssub.s32 %s43, %s55
      %p323 = scmp.eq.s32.totalorder %s322, 0
      %s325 = sadd.s32 %s324, 1
      %s326 = scalar_select %p323, %s324, %s325
      %p329 = pneg %p323
      %p330 = scmp.eq.s32.totalorder %s36, 1
      %p331 = por %p329, %p330
      %p332 = scmp.ne.s32.totalorder %s324, %s327
      %p333 = scmp.eq.s32.totalorder %s36, 0
      %p334 = por %p332, %p333
      %p335 = scmp.ne.s32.totalorder %s324, %s327
      %p336 = scmp.eq.s32.totalorder %s41, 1
      %p337 = por %p335, %p336
      %p338 = scmp.ne.s32.totalorder %s327, %s328
      %p339 = scmp.eq.s32.totalorder %s41, 0
      %p340 = por %p338, %p339
      %p341 = scmp.ne.s32.totalorder %s327, %s328
      %p342 = scmp.eq.s32.totalorder %s42, 1
      %p343 = por %p341, %p342
      %p345 = scmp.ne.s32.totalorder %s328, %s344
      %p346 = scmp.eq.s32.totalorder %s42, 0
      %p347 = por %p345, %p346
      %s348 = ssub.s32 %s43, %s55
      %p349 = scmp.eq.s32.totalorder %s348, 0
      %s351 = sadd.s32 %s350, 1
      %s352 = scalar_select %p349, %s350, %s351
      %p355 = pneg %p349
      %p356 = scmp.eq.s32.totalorder %s36, 1
      %p357 = por %p355, %p356
      %p358 = scmp.ne.s32.totalorder %s350, %s353
      %p359 = scmp.eq.s32.totalorder %s36, 0
      %p360 = por %p358, %p359
      %p361 = scmp.ne.s32.totalorder %s350, %s353
      %p362 = scmp.eq.s32.totalorder %s41, 1
      %p363 = por %p361, %p362
      %p364 = scmp.ne.s32.totalorder %s353, %s354
      %p365 = scmp.eq.s32.totalorder %s41, 0
      %p366 = por %p364, %p365
      %p367 = scmp.ne.s32.totalorder %s353, %s354
      %p368 = scmp.eq.s32.totalorder %s42, 1
      %p369 = por %p367, %p368
      %p371 = scmp.ne.s32.totalorder %s354, %s370
      %p372 = scmp.eq.s32.totalorder %s42, 0
      %p373 = por %p371, %p372
      %s374 = ssub.s32 %s43, %s55
      %s375 = ssub.s32 %s44, %s51
      %s376 = sor.u32 %s374, %s375
      %p377 = scmp.eq.s32.totalorder %s376, 0
      %s379 = sadd.s32 %s378, 1
      %s380 = scalar_select %p377, %s378, %s379
      %p383 = pneg %p377
      %p384 = scmp.eq.s32.totalorder %s36, 1
      %p385 = por %p383, %p384
      %p386 = scmp.ne.s32.totalorder %s378, %s381
      %p387 = scmp.eq.s32.totalorder %s36, 0
      %p388 = por %p386, %p387
      %p389 = scmp.ne.s32.totalorder %s378, %s381
      %p390 = scmp.eq.s32.totalorder %s41, 1
      %p391 = por %p389, %p390
      %p392 = scmp.ne.s32.totalorder %s381, %s382
      %p393 = scmp.eq.s32.totalorder %s41, 0
      %p394 = por %p392, %p393
      %p395 = scmp.ne.s32.totalorder %s381, %s382
      %p396 = scmp.eq.s32.totalorder %s42, 1
      %p397 = por %p395, %p396
      %p399 = scmp.ne.s32.totalorder %s382, %s398
      %p400 = scmp.eq.s32.totalorder %s42, 0
      %p401 = por %p399, %p400
      %p402 = scmp.le.s32.totalorder 1, %s36
      %p403 = scmp.lt.s32.totalorder %s36, 3
      %p404 = pnand %p402, %p403
      %p405 = pneg %p404
      // Predicated region
      $region9: #{tpu_custom_call.1} parent=5 // pred_check
        _
      $region10: #{tpu_custom_call.1} parent=5 // pred_check_branch
        %407 = sbr.rel (%p404) target = $region12
      $region11: #{tpu_custom_call.1} parent=5 // pred_region
        %s408 = ssub.s32 %s36, 1
      $region12: #{tpu_custom_call.1} parent=5 // pred_fallthru
        _
      %p409 = scmp.lt.s32.totalorder %s36, 2
      // Predicated region
      $region13: #{tpu_custom_call.1} parent=5 // pred_check
        %p410 = pneg %p409
      $region14: #{tpu_custom_call.1} parent=5 // pred_check_branch
        %412 = sbr.rel (%p410) target = $region16
      $region15: #{tpu_custom_call.1} parent=5 // pred_region
        // Predicated region
        $region17: #{tpu_custom_call.1} parent=15 // pred_check
          %p413 = pneg %p70
        $region18: #{tpu_custom_call.1} parent=15 // pred_check_branch
          %415 = sbr.rel (%p413) target = $region20
        $region19: #{tpu_custom_call.1} parent=15 // pred_region
          %s416 = sand.u32 %s60, 1
          %s417 = scalar_lea.sflag [#allocation3], %s416
          %s418 = sand.u32 %s60, 1
          %s419 = smul.addr %s418, 128
          %s420 = scalar_lea.vmem [#allocation2], %s419
          %s421 = smul.u32 8, %s44
          %423 = vsyncadd %s417, 0
          %s424 = smul.addr %s421, 2
          %s425 = smul.addr %s43, 16
          %s426 = sadd.s32 %s424, %s425
          %s427 = smul.addr %s426, 8
          %s428 = scalar_lea.hbm %s0, %s427
          %s429 = sshll.u32 %s428, 4
          %s430 = int_to_ptr.hbm [resolvable:$true] %s429
          %s431 = sshll.u32 %s420, 4
          %s432 = int_to_ptr.vmem [resolvable:$true] %s431
          %437 = dma.hbm_to_vmem [thread:$0]  %s430, 2048, %s432, %s417, 128, 128, 8
        $region20: #{tpu_custom_call.1} parent=15 // pred_fallthru
          _
        // Predicated region
        $region21: #{tpu_custom_call.1} parent=15 // pred_check
          %p438 = pneg %p100
        $region22: #{tpu_custom_call.1} parent=15 // pred_check_branch
          %440 = sbr.rel (%p438) target = $region24
        $region23: #{tpu_custom_call.1} parent=15 // pred_region
          %s441 = sand.u32 %s36, 1
          %s442 = scalar_lea.sflag [#allocation6], %s441
          %s443 = sand.u32 %s90, 1
          %s444 = smul.addr %s443, 128
          %s445 = scalar_lea.vmem [#allocation5], %s444
          %s446 = ssub.s32 1, %s43
          %s447 = smul.u32 8, %s44
          %449 = vsyncadd %s442, 0
          %s450 = smul.addr %s447, 2
          %s451 = smul.addr %s446, 16
          %s452 = sadd.s32 %s450, %s451
          %s453 = smul.addr %s452, 8
          %s454 = scalar_lea.hbm %s1, %s453
          %s455 = sshll.u32 %s454, 4
          %s456 = int_to_ptr.hbm [resolvable:$true] %s455
          %s457 = sshll.u32 %s445, 4
          %s458 = int_to_ptr.vmem [resolvable:$true] %s457
          %463 = dma.hbm_to_vmem [thread:$0]  %s456, 2048, %s458, %s442, 128, 128, 8
        $region24: #{tpu_custom_call.1} parent=15 // pred_fallthru
          _
        // Predicated region
        $region25: #{tpu_custom_call.1} parent=15 // pred_check
          %p464 = pneg %p126
        $region26: #{tpu_custom_call.1} parent=15 // pred_check_branch
          %466 = sbr.rel (%p464) target = $region28
        $region27: #{tpu_custom_call.1} parent=15 // pred_region
          %s467 = sand.u32 %s36, 1
          %s468 = scalar_lea.sflag [#allocation6], %s467
          %s469 = sand.u32 %s116, 1
          %s470 = smul.addr %s469, 64
          %s471 = scalar_lea.vmem [#allocation7], %s470
          %473 = vsyncadd %s468, 0
          %s474 = smul.addr %s43, 16
          %s475 = smul.addr %s474, 4
          %s476 = scalar_lea.hbm %s2, %s475
          %s477 = sshll.u32 %s476, 4
          %s478 = int_to_ptr.hbm [resolvable:$true] %s477
          %s479 = sshll.u32 %s471, 4
          %s480 = int_to_ptr.vmem [resolvable:$true] %s479
          %485 = dma.hbm_to_vmem [thread:$0]  %s478, 1024, %s480, %s468, 64, 64, 4
        $region28: #{tpu_custom_call.1} parent=15 // pred_fallthru
          _
        // Predicated region
        $region29: #{tpu_custom_call.1} parent=15 // pred_check
          %p486 = pneg %p152
        $region30: #{tpu_custom_call.1} parent=15 // pred_check_branch
          %488 = sbr.rel (%p486) target = $region32
        $region31: #{tpu_custom_call.1} parent=15 // pred_region
          %s489 = sand.u32 %s36, 1
          %s490 = scalar_lea.sflag [#allocation9], %s489
          %s491 = sand.u32 %s142, 1
          %s492 = scalar_lea.vmem [#allocation8], %s491
          %494 = vsyncadd %s490, 0
          %s495 = scalar_lea.hbm %s3, %s43
          %s497 = sshll.u32 %s495, 4
          %s498 = int_to_ptr.hbm [resolvable:$true] %s497
          %s499 = sshll.u32 %s492, 4
          %s500 = int_to_ptr.vmem [resolvable:$true] %s499
          %502 = dma.hbm_to_vmem [thread:$0]  %s498, 16, %s500, %s490
        $region32: #{tpu_custom_call.1} parent=15 // pred_fallthru
          _
        // Predicated region
        $region33: #{tpu_custom_call.1} parent=15 // pred_check
          %p503 = pneg %p178
        $region34: #{tpu_custom_call.1} parent=15 // pred_check_branch
          %505 = sbr.rel (%p503) target = $region36
        $region35: #{tpu_custom_call.1} parent=15 // pred_region
          %s506 = sand.u32 %s36, 1
          %s507 = scalar_lea.sflag [#allocation9], %s506
          %s508 = sand.u32 %s168, 1
          %s509 = smul.addr %s508, 128
          %s510 = scalar_lea.vmem [#allocation10], %s509
          %512 = vsyncadd %s507, 0
          %s513 = smul.addr %s43, 32
          %s514 = smul.addr %s513, 4
          %s515 = scalar_lea.hbm %s4, %s514
          %s516 = sshll.u32 %s515, 4
          %s517 = int_to_ptr.hbm [resolvable:$true] %s516
          %s518 = sshll.u32 %s510, 4
          %s519 = int_to_ptr.vmem [resolvable:$true] %s518
          %524 = dma.hbm_to_vmem [thread:$0]  %s517, 2048, %s519, %s507, 128, 128, 8
        $region36: #{tpu_custom_call.1} parent=15 // pred_fallthru
          _
        // Predicated region
        $region37: #{tpu_custom_call.1} parent=15 // pred_check
          %p525 = pneg %p204
        $region38: #{tpu_custom_call.1} parent=15 // pred_check_branch
          %527 = sbr.rel (%p525) target = $region40
        $region39: #{tpu_custom_call.1} parent=15 // pred_region
          %p528 = scmp.lt.s32.totalorder %s43, 1
          %s529 = scalar_select %p528, %s43, 1
          %s530 = smul.addr %s529, 2
          %s531 = scalar_lea.vmem %s5, %s530
        $region40: #{tpu_custom_call.1} parent=15 // pred_fallthru
          _
        // Predicated region
        $region41: #{tpu_custom_call.1} parent=15 // pred_check
          %p532 = pneg %p230
        $region42: #{tpu_custom_call.1} parent=15 // pred_check_branch
          %534 = sbr.rel (%p532) target = $region44
        $region43: #{tpu_custom_call.1} parent=15 // pred_region
          %s535 = sand.u32 %s36, 1
          %s536 = scalar_lea.sflag [#allocation12], %s535
          %s537 = sand.u32 %s220, 1
          %s538 = smul.addr %s537, 256
          %s539 = scalar_lea.vmem [#allocation11], %s538
          %541 = vsyncadd %s536, 0
          %s542 = smul.addr %s43, 64
          %s543 = smul.addr %s542, 4
          %s544 = scalar_lea.hbm %s6, %s543
          %s545 = sshll.u32 %s544, 4
          %s546 = int_to_ptr.hbm [resolvable:$true] %s545
          %s547 = sshll.u32 %s539, 4
          %s548 = int_to_ptr.vmem [resolvable:$true] %s547
          %553 = dma.hbm_to_vmem [thread:$0]  %s546, 4096, %s548, %s536, 256, 256, 16
        $region44: #{tpu_custom_call.1} parent=15 // pred_fallthru
          _
        // Predicated region
        $region45: #{tpu_custom_call.1} parent=15 // pred_check
          %p554 = pneg %p256
        $region46: #{tpu_custom_call.1} parent=15 // pred_check_branch
          %556 = sbr.rel (%p554) target = $region48
        $region47: #{tpu_custom_call.1} parent=15 // pred_region
          %s557 = sand.u32 %s36, 1
          %s558 = scalar_lea.sflag [#allocation12], %s557
          %s559 = sand.u32 %s246, 1
          %s560 = smul.addr %s559, 4
          %s561 = scalar_lea.vmem [#allocation13], %s560
          %563 = vsyncadd %s558, 0
          %s564 = smul.addr %s43, 4
          %s565 = scalar_lea.hbm %s7, %s564
          %s567 = sshll.u32 %s565, 4
          %s568 = int_to_ptr.hbm [resolvable:$true] %s567
          %s569 = sshll.u32 %s561, 4
          %s570 = int_to_ptr.vmem [resolvable:$true] %s569
          %572 = dma.hbm_to_vmem [thread:$0]  %s568, 64, %s570, %s558
        $region48: #{tpu_custom_call.1} parent=15 // pred_fallthru
          _
        // Predicated region
        $region49: #{tpu_custom_call.1} parent=15 // pred_check
          %p573 = pneg %p282
        $region50: #{tpu_custom_call.1} parent=15 // pred_check_branch
          %575 = sbr.rel (%p573) target = $region52
        $region51: #{tpu_custom_call.1} parent=15 // pred_region
          %s576 = sand.u32 %s272, 1
          %s577 = scalar_lea.sflag [#allocation15], %s576
          %s578 = sand.u32 %s272, 1
          %s579 = smul.addr %s578, 256
          %s580 = scalar_lea.vmem [#allocation14], %s579
          %582 = vsyncadd %s577, 0
          %s583 = smul.addr %s43, 64
          %s584 = smul.addr %s583, 4
          %s585 = scalar_lea.hbm %s8, %s584
          %s586 = sshll.u32 %s585, 4
          %s587 = int_to_ptr.hbm [resolvable:$true] %s586
          %s588 = sshll.u32 %s580, 4
          %s589 = int_to_ptr.vmem [resolvable:$true] %s588
          %594 = dma.hbm_to_vmem [thread:$0]  %s587, 4096, %s589, %s577, 64, 64, 4
        $region52: #{tpu_custom_call.1} parent=15 // pred_fallthru
          _
        // Predicated region
        $region53: #{tpu_custom_call.1} parent=15 // pred_check
          %p595 = pneg %p308
        $region54: #{tpu_custom_call.1} parent=15 // pred_check_branch
          %597 = sbr.rel (%p595) target = $region56
        $region55: #{tpu_custom_call.1} parent=15 // pred_region
          %p598 = scmp.lt.s32.totalorder %s43, 1
          %s599 = scalar_select %p598, %s43, 1
          %s600 = scalar_lea.vmem %s9, %s599
        $region56: #{tpu_custom_call.1} parent=15 // pred_fallthru
          _
        // Predicated region
        $region57: #{tpu_custom_call.1} parent=15 // pred_check
          %p601 = pneg %p334
        $region58: #{tpu_custom_call.1} parent=15 // pred_check_branch
          %603 = sbr.rel (%p601) target = $region60
        $region59: #{tpu_custom_call.1} parent=15 // pred_region
          %p604 = scmp.lt.s32.totalorder %s43, 1
          %s605 = scalar_select %p604, %s43, 1
          %s606 = scalar_lea.vmem %s10, %s605
        $region60: #{tpu_custom_call.1} parent=15 // pred_fallthru
          _
        // Predicated region
        $region61: #{tpu_custom_call.1} parent=15 // pred_check
          %p607 = pneg %p360
        $region62: #{tpu_custom_call.1} parent=15 // pred_check_branch
          %609 = sbr.rel (%p607) target = $region64
        $region63: #{tpu_custom_call.1} parent=15 // pred_region
          %p610 = scmp.lt.s32.totalorder %s43, 1
          %s611 = scalar_select %p610, %s43, 1
          %s612 = scalar_lea.vmem %s11, %s611
        $region64: #{tpu_custom_call.1} parent=15 // pred_fallthru
          _
      $region16: #{tpu_custom_call.1} parent=5 // pred_fallthru
        _
      %p613 = scmp.le.s32.totalorder 1, %s36
      %p614 = scmp.lt.s32.totalorder %s36, 3
      %p615 = pnand %p613, %p614
      %p616 = pneg %p615
      // Predicated region
      $region65: #{tpu_custom_call.1} parent=5 // pred_check
        _
      $region66: #{tpu_custom_call.1} parent=5 // pred_check_branch
        %618 = sbr.rel (%p615) target = $region68
      $region67: #{tpu_custom_call.1} parent=5 // pred_region
        %s619 = ssub.s32 %s36, 1
        %s620 = sand.u32 %s63, 1
        %s621 = scalar_lea.sflag [#allocation3], %s620
        %s622 = sand.u32 %s63, 1
        %s623 = smul.addr %s622, 128
        %s624 = scalar_lea.vmem [#allocation2], %s623
        // Predicated region
        $region69: #{tpu_custom_call.1} parent=67 // pred_check
          %p625 = pneg %p76
        $region70: #{tpu_custom_call.1} parent=67 // pred_check_branch
          %627 = sbr.rel (%p625) target = $region72
        $region71: #{tpu_custom_call.1} parent=67 // pred_region
          %629 = dma.done %s621, 2048
        $region72: #{tpu_custom_call.1} parent=67 // pred_fallthru
          _
        %s630 = sand.u32 %s41, 1
        %s631 = scalar_lea.sflag [#allocation6], %s630
        %s632 = sand.u32 %s93, 1
        %s633 = smul.addr %s632, 128
        %s634 = scalar_lea.vmem [#allocation5], %s633
        // Predicated region
        $region73: #{tpu_custom_call.1} parent=67 // pred_check
          %p635 = pneg %p106
        $region74: #{tpu_custom_call.1} parent=67 // pred_check_branch
          %637 = sbr.rel (%p635) target = $region76
        $region75: #{tpu_custom_call.1} parent=67 // pred_region
          %639 = dma.done %s631, 2048
        $region76: #{tpu_custom_call.1} parent=67 // pred_fallthru
          _
        %s640 = sand.u32 %s41, 1
        %s641 = scalar_lea.sflag [#allocation6], %s640
        %s642 = sand.u32 %s119, 1
        %s643 = smul.addr %s642, 64
        %s644 = scalar_lea.vmem [#allocation7], %s643
        // Predicated region
        $region77: #{tpu_custom_call.1} parent=67 // pred_check
          %p645 = pneg %p132
        $region78: #{tpu_custom_call.1} parent=67 // pred_check_branch
          %647 = sbr.rel (%p645) target = $region80
        $region79: #{tpu_custom_call.1} parent=67 // pred_region
          %649 = dma.done %s641, 1024
        $region80: #{tpu_custom_call.1} parent=67 // pred_fallthru
          _
        %s650 = sand.u32 %s41, 1
        %s651 = scalar_lea.sflag [#allocation9], %s650
        %s652 = sand.u32 %s145, 1
        %s653 = scalar_lea.vmem [#allocation8], %s652
        // Predicated region
        $region81: #{tpu_custom_call.1} parent=67 // pred_check
          %p654 = pneg %p158
        $region82: #{tpu_custom_call.1} parent=67 // pred_check_branch
          %656 = sbr.rel (%p654) target = $region84
        $region83: #{tpu_custom_call.1} parent=67 // pred_region
          %658 = dma.done %s651, 16
        $region84: #{tpu_custom_call.1} parent=67 // pred_fallthru
          _
        %s659 = sand.u32 %s41, 1
        %s660 = scalar_lea.sflag [#allocation9], %s659
        %s661 = sand.u32 %s171, 1
        %s662 = smul.addr %s661, 128
        %s663 = scalar_lea.vmem [#allocation10], %s662
        // Predicated region
        $region85: #{tpu_custom_call.1} parent=67 // pred_check
          %p664 = pneg %p184
        $region86: #{tpu_custom_call.1} parent=67 // pred_check_branch
          %666 = sbr.rel (%p664) target = $region88
        $region87: #{tpu_custom_call.1} parent=67 // pred_region
          %668 = dma.done %s660, 2048
        $region88: #{tpu_custom_call.1} parent=67 // pred_fallthru
          _
        %s669 = sand.u32 %s41, 1
        %s670 = scalar_lea.sflag [#allocation12], %s669
        %s671 = sand.u32 %s223, 1
        %s672 = smul.addr %s671, 256
        %s673 = scalar_lea.vmem [#allocation11], %s672
        // Predicated region
        $region89: #{tpu_custom_call.1} parent=67 // pred_check
          %p674 = pneg %p236
        $region90: #{tpu_custom_call.1} parent=67 // pred_check_branch
          %676 = sbr.rel (%p674) target = $region92
        $region91: #{tpu_custom_call.1} parent=67 // pred_region
          %678 = dma.done %s670, 4096
        $region92: #{tpu_custom_call.1} parent=67 // pred_fallthru
          _
        %s679 = sand.u32 %s41, 1
        %s680 = scalar_lea.sflag [#allocation12], %s679
        %s681 = sand.u32 %s249, 1
        %s682 = smul.addr %s681, 4
        %s683 = scalar_lea.vmem [#allocation13], %s682
        // Predicated region
        $region93: #{tpu_custom_call.1} parent=67 // pred_check
          %p684 = pneg %p262
        $region94: #{tpu_custom_call.1} parent=67 // pred_check_branch
          %686 = sbr.rel (%p684) target = $region96
        $region95: #{tpu_custom_call.1} parent=67 // pred_region
          %688 = dma.done %s680, 64
        $region96: #{tpu_custom_call.1} parent=67 // pred_fallthru
          _
        %s689 = sand.u32 %s275, 1
        %s690 = scalar_lea.sflag [#allocation15], %s689
        %s691 = sand.u32 %s275, 1
        %s692 = smul.addr %s691, 256
        %s693 = scalar_lea.vmem [#allocation14], %s692
        // Predicated region
        $region97: #{tpu_custom_call.1} parent=67 // pred_check
          %p694 = pneg %p288
        $region98: #{tpu_custom_call.1} parent=67 // pred_check_branch
          %696 = sbr.rel (%p694) target = $region100
        $region99: #{tpu_custom_call.1} parent=67 // pred_region
          %698 = dma.done %s690, 4096
        $region100: #{tpu_custom_call.1} parent=67 // pred_fallthru
          _
        %s699 = sand.u32 %s63, 1
        %s700 = scalar_lea.sflag [#allocation3], %s699
        %s701 = sand.u32 %s63, 1
        %s702 = smul.addr %s701, 128
        %s703 = scalar_lea.vmem [#allocation2], %s702
        %p704 = pneg %p76
        %p705 = pneg %p73
        %s706 = sand.u32 %s41, 1
        %s707 = scalar_lea.sflag [#allocation6], %s706
        %s708 = sand.u32 %s93, 1
        %s709 = smul.addr %s708, 128
        %s710 = scalar_lea.vmem [#allocation5], %s709
        %p711 = pneg %p106
        %p712 = pneg %p103
        %s713 = sand.u32 %s41, 1
        %s714 = scalar_lea.sflag [#allocation6], %s713
        %s715 = sand.u32 %s119, 1
        %s716 = smul.addr %s715, 64
        %s717 = scalar_lea.vmem [#allocation7], %s716
        %p718 = pneg %p132
        %p719 = pneg %p129
        %s720 = sand.u32 %s41, 1
        %s721 = scalar_lea.sflag [#allocation9], %s720
        %s722 = sand.u32 %s145, 1
        %s723 = scalar_lea.vmem [#allocation8], %s722
        %p724 = pneg %p158
        %p725 = pneg %p155
        %s726 = sand.u32 %s41, 1
        %s727 = scalar_lea.sflag [#allocation9], %s726
        %s728 = sand.u32 %s171, 1
        %s729 = smul.addr %s728, 128
        %s730 = scalar_lea.vmem [#allocation10], %s729
        %p731 = pneg %p184
        %p732 = pneg %p181
        %p733 = scmp.lt.s32.totalorder %s45, 1
        %s734 = scalar_select %p733, %s45, 1
        %s735 = smul.addr %s734, 2
        %s736 = scalar_lea.vmem %s5, %s735
        %p737 = pneg %p210
        %p738 = pneg %p207
        %s739 = sand.u32 %s41, 1
        %s740 = scalar_lea.sflag [#allocation12], %s739
        %s741 = sand.u32 %s223, 1
        %s742 = smul.addr %s741, 256
        %s743 = scalar_lea.vmem [#allocation11], %s742
        %p744 = pneg %p236
        %p745 = pneg %p233
        %s746 = sand.u32 %s41, 1
        %s747 = scalar_lea.sflag [#allocation12], %s746
        %s748 = sand.u32 %s249, 1
        %s749 = smul.addr %s748, 4
        %s750 = scalar_lea.vmem [#allocation13], %s749
        %p751 = pneg %p262
        %p752 = pneg %p259
        %s753 = sand.u32 %s275, 1
        %s754 = scalar_lea.sflag [#allocation15], %s753
        %s755 = sand.u32 %s275, 1
        %s756 = smul.addr %s755, 256
        %s757 = scalar_lea.vmem [#allocation14], %s756
        %p758 = pneg %p288
        %p759 = pneg %p285
        %p760 = scmp.lt.s32.totalorder %s45, 1
        %s761 = scalar_select %p760, %s45, 1
        %s762 = scalar_lea.vmem %s9, %s761
        %p763 = pneg %p314
        %p764 = pneg %p311
        %p765 = scmp.lt.s32.totalorder %s45, 1
        %s766 = scalar_select %p765, %s45, 1
        %s767 = scalar_lea.vmem %s10, %s766
        %p768 = pneg %p340
        %p769 = pneg %p337
        %p770 = scmp.lt.s32.totalorder %s45, 1
        %s771 = scalar_select %p770, %s45, 1
        %s772 = scalar_lea.vmem %s11, %s771
        %p773 = pneg %p366
        %p774 = pneg %p363
        %p775 = pneg %p394
        %p776 = pneg %p391
        %s777 = sand.u32 %s381, 1
        %s778 = scalar_lea.sflag [#allocation4], %s777
        %s779 = sand.u32 %s381, 1
        %s780 = smul.addr %s779, 64
        %s781 = scalar_lea.vmem [#allocation16], %s780
        %s782 = smul.u32 8, %s46
        %s783 = ssub.s32 1, %s45
        %s784 = smul.u32 8, %s46
        %p785 = scmp.lt.s32.totalorder %s45, 1
        %s786 = scalar_select %p785, %s45, 1
        %s787 = smul.addr %s786, 2
        %s788 = scalar_lea.vmem %s5, %s787
        %p789 = scmp.lt.s32.totalorder %s45, 1
        %s790 = scalar_select %p789, %s45, 1
        %s791 = scalar_lea.vmem %s9, %s790
        %p792 = scmp.lt.s32.totalorder %s45, 1
        %s793 = scalar_select %p792, %s45, 1
        %s794 = scalar_lea.vmem %s10, %s793
        %p795 = scmp.lt.s32.totalorder %s45, 1
        %s796 = scalar_select %p795, %s45, 1
        %s797 = scalar_lea.vmem %s11, %s796
        %v799 = vld [vmem:[%s624] sm:$0xff]
        %v800 = vld [vmem:[%s624 + $0x8] sm:$0xff]
        %v801 = vld [vmem:[%s624 + $0x10] sm:$0xff]
        %v802 = vld [vmem:[%s624 + $0x18] sm:$0xff]
        %v803 = vld [vmem:[%s624 + $0x20] sm:$0xff]
        %v804 = vld [vmem:[%s624 + $0x28] sm:$0xff]
        %v805 = vld [vmem:[%s624 + $0x30] sm:$0xff]
        %v806 = vld [vmem:[%s624 + $0x38] sm:$0xff]
        %v807 = vld [vmem:[%s624 + $0x40] sm:$0xff]
        %v808 = vld [vmem:[%s624 + $0x48] sm:$0xff]
        %v809 = vld [vmem:[%s624 + $0x50] sm:$0xff]
        %v810 = vld [vmem:[%s624 + $0x58] sm:$0xff]
        %v811 = vld [vmem:[%s624 + $0x60] sm:$0xff]
        %v812 = vld [vmem:[%s624 + $0x68] sm:$0xff]
        %v813 = vld [vmem:[%s624 + $0x70] sm:$0xff]
        %v814 = vld [vmem:[%s624 + $0x78] sm:$0xff]
        %v815 = vld [vmem:[%s634] sm:$0xff]
        %v816 = vld [vmem:[%s634 + $0x8] sm:$0xff]
        %v817 = vld [vmem:[%s634 + $0x10] sm:$0xff]
        %v818 = vld [vmem:[%s634 + $0x18] sm:$0xff]
        %v819 = vld [vmem:[%s634 + $0x20] sm:$0xff]
        %v820 = vld [vmem:[%s634 + $0x28] sm:$0xff]
        %v821 = vld [vmem:[%s634 + $0x30] sm:$0xff]
        %v822 = vld [vmem:[%s634 + $0x38] sm:$0xff]
        %v823 = vld [vmem:[%s634 + $0x40] sm:$0xff]
        %v824 = vld [vmem:[%s634 + $0x48] sm:$0xff]
        %v825 = vld [vmem:[%s634 + $0x50] sm:$0xff]
        %v826 = vld [vmem:[%s634 + $0x58] sm:$0xff]
        %v827 = vld [vmem:[%s634 + $0x60] sm:$0xff]
        %v828 = vld [vmem:[%s634 + $0x68] sm:$0xff]
        %v829 = vld [vmem:[%s634 + $0x70] sm:$0xff]
        %v830 = vld [vmem:[%s634 + $0x78] sm:$0xff]
        %v831 = vpack.c.bf16 %v800, %v799
        %v832 = vpack.c.bf16 %v802, %v801
        %v833 = vpack.c.bf16 %v804, %v803
        %v834 = vpack.c.bf16 %v806, %v805
        %v835 = vpack.c.bf16 %v808, %v807
        %v836 = vpack.c.bf16 %v810, %v809
        %v837 = vpack.c.bf16 %v812, %v811
        %v838 = vpack.c.bf16 %v814, %v813
        %v839 = vld [vmem:[%s644] sm:$0xf]
        %v840 = vld [vmem:[%s644 + $0x4] sm:$0xf]
        %v841 = vld [vmem:[%s644 + $0x8] sm:$0xf]
        %v842 = vld [vmem:[%s644 + $0xc] sm:$0xf]
        %v843 = vld [vmem:[%s644 + $0x10] sm:$0xf]
        %v844 = vld [vmem:[%s644 + $0x14] sm:$0xf]
        %v845 = vld [vmem:[%s644 + $0x18] sm:$0xf]
        %v846 = vld [vmem:[%s644 + $0x1c] sm:$0xf]
        %v847 = vld [vmem:[%s644 + $0x20] sm:$0xf]
        %v848 = vld [vmem:[%s644 + $0x24] sm:$0xf]
        %v849 = vld [vmem:[%s644 + $0x28] sm:$0xf]
        %v850 = vld [vmem:[%s644 + $0x2c] sm:$0xf]
        %v851 = vld [vmem:[%s644 + $0x30] sm:$0xf]
        %v852 = vld [vmem:[%s644 + $0x34] sm:$0xf]
        %v853 = vld [vmem:[%s644 + $0x38] sm:$0xf]
        %v854 = vld [vmem:[%s644 + $0x3c] sm:$0xf]
        %v855 = vld [vmem:[%s653] sm:$0x1]
        %v857 = vperm.slane %v855, 0
        %v875 = vunpack.c.l.b16 %v839
        %v876 = vunpack.c.l.b16 %v840
        %v877 = vunpack.c.l.b16 %v841
        %v878 = vunpack.c.l.b16 %v842
        %v879 = vunpack.c.l.b16 %v843
        %v880 = vunpack.c.l.b16 %v844
        %v881 = vunpack.c.l.b16 %v845
        %v882 = vunpack.c.l.b16 %v846
        %v883 = vunpack.c.l.b16 %v847
        %v884 = vunpack.c.l.b16 %v848
        %v885 = vunpack.c.l.b16 %v849
        %v886 = vunpack.c.l.b16 %v850
        %v887 = vunpack.c.l.b16 %v851
        %v888 = vunpack.c.l.b16 %v852
        %v889 = vunpack.c.l.b16 %v853
        %v890 = vunpack.c.l.b16 %v854
        %v891 = vpack.c.b16 %v876, %v875
        %v892 = vpack.c.b16 %v878, %v877
        %v893 = vpack.c.b16 %v880, %v879
        %v894 = vpack.c.b16 %v882, %v881
        %v895 = vpack.c.b16 %v884, %v883
        %v896 = vpack.c.b16 %v886, %v885
        %v897 = vpack.c.b16 %v888, %v887
        %v898 = vpack.c.b16 %v890, %v889
        %907 = vmatpush.bf16.msra.mxu0 %v898
        %908 = vmatpush.bf16.msra.mxu0 %v897
        %909 = vmatpush.bf16.msra.mxu0 %v896
        %910 = vmatpush.bf16.msra.mxu0 %v895
        %911 = vmatpush.bf16.msra.mxu0 %v894
        %912 = vmatpush.bf16.msra.mxu0 %v893
        %913 = vmatpush.bf16.msra.mxu0 %v892
        %914 = vmatpush.bf16.msra.mxu0 %v891
        %915 = vmatmul.bf16.gmra.mxu0 %v831
        %v916 = vpop.f32.mrf.mxu0
        %v917 = vadd.f32 %v857, %v916
        %v918 = vpop.f32.mrf.mxu0
        %v919 = vadd.f32 %v857, %v918
        %920 = vmatmul.bf16.gmra.mxu0 %v832
        %v921 = vpop.f32.mrf.mxu0
        %v922 = vadd.f32 %v857, %v921
        %v923 = vpop.f32.mrf.mxu0
        %v924 = vadd.f32 %v857, %v923
        %925 = vmatmul.bf16.gmra.mxu0 %v833
        %v926 = vpop.f32.mrf.mxu0
        %v927 = vadd.f32 %v857, %v926
        %v928 = vpop.f32.mrf.mxu0
        %v929 = vadd.f32 %v857, %v928
        %930 = vmatmul.bf16.gmra.mxu0 %v834
        %v931 = vpop.f32.mrf.mxu0
        %v932 = vadd.f32 %v857, %v931
        %v933 = vpop.f32.mrf.mxu0
        %v934 = vadd.f32 %v857, %v933
        %935 = vmatmul.bf16.gmra.mxu0 %v835
        %v936 = vpop.f32.mrf.mxu0
        %v937 = vadd.f32 %v857, %v936
        %v938 = vpop.f32.mrf.mxu0
        %v939 = vadd.f32 %v857, %v938
        %940 = vmatmul.bf16.gmra.mxu0 %v836
        %v941 = vpop.f32.mrf.mxu0
        %v942 = vadd.f32 %v857, %v941
        %v943 = vpop.f32.mrf.mxu0
        %v944 = vadd.f32 %v857, %v943
        %945 = vmatmul.bf16.gmra.mxu0 %v837
        %v946 = vpop.f32.mrf.mxu0
        %v947 = vadd.f32 %v857, %v946
        %v948 = vpop.f32.mrf.mxu0
        %v949 = vadd.f32 %v857, %v948
        %950 = vmatmul.bf16.gmra.mxu0 %v838
        %v951 = vpop.f32.mrf.mxu0
        %v952 = vadd.f32 %v857, %v951
        %v953 = vpop.f32.mrf.mxu0
        %v954 = vadd.f32 %v857, %v953
        %955 = vdwg.mxu0
        %v956 = vpack.c.bf16 %v816, %v815
        %v957 = vpack.c.bf16 %v818, %v817
        %v958 = vpack.c.bf16 %v820, %v819
        %v959 = vpack.c.bf16 %v822, %v821
        %v960 = vpack.c.bf16 %v824, %v823
        %v961 = vpack.c.bf16 %v826, %v825
        %v962 = vpack.c.bf16 %v828, %v827
        %v963 = vpack.c.bf16 %v830, %v829
        %v964 = vld [vmem:[%s663] sm:$0xff]
        %v965 = vld [vmem:[%s663 + $0x8] sm:$0xff]
        %v966 = vld [vmem:[%s663 + $0x10] sm:$0xff]
        %v967 = vld [vmem:[%s663 + $0x18] sm:$0xff]
        %v968 = vld [vmem:[%s663 + $0x20] sm:$0xff]
        %v969 = vld [vmem:[%s663 + $0x28] sm:$0xff]
        %v970 = vld [vmem:[%s663 + $0x30] sm:$0xff]
        %v971 = vld [vmem:[%s663 + $0x38] sm:$0xff]
        %v972 = vld [vmem:[%s663 + $0x40] sm:$0xff]
        %v973 = vld [vmem:[%s663 + $0x48] sm:$0xff]
        %v974 = vld [vmem:[%s663 + $0x50] sm:$0xff]
        %v975 = vld [vmem:[%s663 + $0x58] sm:$0xff]
        %v976 = vld [vmem:[%s663 + $0x60] sm:$0xff]
        %v977 = vld [vmem:[%s663 + $0x68] sm:$0xff]
        %v978 = vld [vmem:[%s663 + $0x70] sm:$0xff]
        %v979 = vld [vmem:[%s663 + $0x78] sm:$0xff]
        %v980 = vld [vmem:[%s788] sm:$0x3]
        %v982 = vperm.slane %v980, 0
        %v983 = vperm.slane %v980, 1
        %v1002 = vunpack.c.l.b16 %v964
        %v1003 = vunpack.c.h.b16 %v964
        %v1004 = vunpack.c.l.b16 %v965
        %v1005 = vunpack.c.h.b16 %v965
        %v1006 = vunpack.c.l.b16 %v966
        %v1007 = vunpack.c.h.b16 %v966
        %v1008 = vunpack.c.l.b16 %v967
        %v1009 = vunpack.c.h.b16 %v967
        %v1010 = vunpack.c.l.b16 %v968
        %v1011 = vunpack.c.h.b16 %v968
        %v1012 = vunpack.c.l.b16 %v969
        %v1013 = vunpack.c.h.b16 %v969
        %v1014 = vunpack.c.l.b16 %v970
        %v1015 = vunpack.c.h.b16 %v970
        %v1016 = vunpack.c.l.b16 %v971
        %v1017 = vunpack.c.h.b16 %v971
        %v1018 = vunpack.c.l.b16 %v972
        %v1019 = vunpack.c.h.b16 %v972
        %v1020 = vunpack.c.l.b16 %v973
        %v1021 = vunpack.c.h.b16 %v973
        %v1022 = vunpack.c.l.b16 %v974
        %v1023 = vunpack.c.h.b16 %v974
        %v1024 = vunpack.c.l.b16 %v975
        %v1025 = vunpack.c.h.b16 %v975
        %v1026 = vunpack.c.l.b16 %v976
        %v1027 = vunpack.c.h.b16 %v976
        %v1028 = vunpack.c.l.b16 %v977
        %v1029 = vunpack.c.h.b16 %v977
        %v1030 = vunpack.c.l.b16 %v978
        %v1031 = vunpack.c.h.b16 %v978
        %v1032 = vunpack.c.l.b16 %v979
        %v1033 = vunpack.c.h.b16 %v979
        %v1034 = vpack.c.b16 %v1004, %v1002
        %v1035 = vpack.c.b16 %v1005, %v1003
        %v1036 = vpack.c.b16 %v1008, %v1006
        %v1037 = vpack.c.b16 %v1009, %v1007
        %v1038 = vpack.c.b16 %v1012, %v1010
        %v1039 = vpack.c.b16 %v1013, %v1011
        %v1040 = vpack.c.b16 %v1016, %v1014
        %v1041 = vpack.c.b16 %v1017, %v1015
        %v1042 = vpack.c.b16 %v1020, %v1018
        %v1043 = vpack.c.b16 %v1021, %v1019
        %v1044 = vpack.c.b16 %v1024, %v1022
        %v1045 = vpack.c.b16 %v1025, %v1023
        %v1046 = vpack.c.b16 %v1028, %v1026
        %v1047 = vpack.c.b16 %v1029, %v1027
        %v1048 = vpack.c.b16 %v1032, %v1030
        %v1049 = vpack.c.b16 %v1033, %v1031
        %1066 = vmatpush.bf16.msra.mxu0 %v1048
        %1067 = vmatpush.bf16.msra.mxu0 %v1046
        %1068 = vmatpush.bf16.msra.mxu0 %v1044
        %1069 = vmatpush.bf16.msra.mxu0 %v1042
        %1070 = vmatpush.bf16.msra.mxu0 %v1040
        %1071 = vmatpush.bf16.msra.mxu0 %v1038
        %1072 = vmatpush.bf16.msra.mxu0 %v1036
        %1073 = vmatpush.bf16.msra.mxu0 %v1034
        %1074 = vmatmul.bf16.gmra.mxu0 %v956
        %v1075 = vpop.f32.mrf.mxu0
        %v1076 = vadd.f32 %v982, %v1075
        %v1077 = vpop.f32.mrf.mxu0
        %v1078 = vadd.f32 %v982, %v1077
        %1079 = vmatmul.bf16.gmra.mxu0 %v957
        %v1080 = vpop.f32.mrf.mxu0
        %v1081 = vadd.f32 %v982, %v1080
        %v1082 = vpop.f32.mrf.mxu0
        %v1083 = vadd.f32 %v982, %v1082
        %1084 = vmatmul.bf16.gmra.mxu0 %v958
        %v1085 = vpop.f32.mrf.mxu0
        %v1086 = vadd.f32 %v982, %v1085
        %v1087 = vpop.f32.mrf.mxu0
        %v1088 = vadd.f32 %v982, %v1087
        %1089 = vmatmul.bf16.gmra.mxu0 %v959
        %v1090 = vpop.f32.mrf.mxu0
        %v1091 = vadd.f32 %v982, %v1090
        %v1092 = vpop.f32.mrf.mxu0
        %v1093 = vadd.f32 %v982, %v1092
        %1094 = vmatmul.bf16.gmra.mxu0 %v960
        %v1095 = vpop.f32.mrf.mxu0
        %v1096 = vadd.f32 %v982, %v1095
        %v1097 = vpop.f32.mrf.mxu0
        %v1098 = vadd.f32 %v982, %v1097
        %1099 = vmatmul.bf16.gmra.mxu0 %v961
        %v1100 = vpop.f32.mrf.mxu0
        %v1101 = vadd.f32 %v982, %v1100
        %v1102 = vpop.f32.mrf.mxu0
        %v1103 = vadd.f32 %v982, %v1102
        %1104 = vmatmul.bf16.gmra.mxu0 %v962
        %v1105 = vpop.f32.mrf.mxu0
        %v1106 = vadd.f32 %v982, %v1105
        %v1107 = vpop.f32.mrf.mxu0
        %v1108 = vadd.f32 %v982, %v1107
        %1109 = vmatmul.bf16.gmra.mxu0 %v963
        %v1110 = vpop.f32.mrf.mxu0
        %v1111 = vadd.f32 %v982, %v1110
        %v1112 = vpop.f32.mrf.mxu0
        %v1113 = vadd.f32 %v982, %v1112
        %1114 = vdwg.mxu0
        %1115 = vmatpush.bf16.msra.mxu0 %v1049
        %1116 = vmatpush.bf16.msra.mxu0 %v1047
        %1117 = vmatpush.bf16.msra.mxu0 %v1045
        %1118 = vmatpush.bf16.msra.mxu0 %v1043
        %1119 = vmatpush.bf16.msra.mxu0 %v1041
        %1120 = vmatpush.bf16.msra.mxu0 %v1039
        %1121 = vmatpush.bf16.msra.mxu0 %v1037
        %1122 = vmatpush.bf16.msra.mxu0 %v1035
        %1123 = vmatmul.bf16.gmra.mxu0 %v956
        %v1124 = vpop.f32.mrf.mxu0
        %v1125 = vadd.f32 %v983, %v1124
        %v1126 = vpop.f32.mrf.mxu0
        %v1127 = vadd.f32 %v983, %v1126
        %1128 = vmatmul.bf16.gmra.mxu0 %v957
        %v1129 = vpop.f32.mrf.mxu0
        %v1130 = vadd.f32 %v983, %v1129
        %v1131 = vpop.f32.mrf.mxu0
        %v1132 = vadd.f32 %v983, %v1131
        %1133 = vmatmul.bf16.gmra.mxu0 %v958
        %v1134 = vpop.f32.mrf.mxu0
        %v1135 = vadd.f32 %v983, %v1134
        %v1136 = vpop.f32.mrf.mxu0
        %v1137 = vadd.f32 %v983, %v1136
        %1138 = vmatmul.bf16.gmra.mxu0 %v959
        %v1139 = vpop.f32.mrf.mxu0
        %v1140 = vadd.f32 %v983, %v1139
        %v1141 = vpop.f32.mrf.mxu0
        %v1142 = vadd.f32 %v983, %v1141
        %1143 = vmatmul.bf16.gmra.mxu0 %v960
        %v1144 = vpop.f32.mrf.mxu0
        %v1145 = vadd.f32 %v983, %v1144
        %v1146 = vpop.f32.mrf.mxu0
        %v1147 = vadd.f32 %v983, %v1146
        %1148 = vmatmul.bf16.gmra.mxu0 %v961
        %v1149 = vpop.f32.mrf.mxu0
        %v1150 = vadd.f32 %v983, %v1149
        %v1151 = vpop.f32.mrf.mxu0
        %v1152 = vadd.f32 %v983, %v1151
        %1153 = vmatmul.bf16.gmra.mxu0 %v962
        %v1154 = vpop.f32.mrf.mxu0
        %v1155 = vadd.f32 %v983, %v1154
        %v1156 = vpop.f32.mrf.mxu0
        %v1157 = vadd.f32 %v983, %v1156
        %1158 = vmatmul.bf16.gmra.mxu0 %v963
        %v1159 = vpop.f32.mrf.mxu0
        %v1160 = vadd.f32 %v983, %v1159
        %v1161 = vpop.f32.mrf.mxu0
        %v1162 = vadd.f32 %v983, %v1161
        %1163 = vdwg.mxu0
        %v1164 = vpack.c.bf16 %v917, %v917
        %v1165 = vpack.c.bf16 %v919, %v919
        %v1166 = vpack.c.bf16 %v922, %v922
        %v1167 = vpack.c.bf16 %v924, %v924
        %v1168 = vpack.c.bf16 %v927, %v927
        %v1169 = vpack.c.bf16 %v929, %v929
        %v1170 = vpack.c.bf16 %v932, %v932
        %v1171 = vpack.c.bf16 %v934, %v934
        %v1172 = vpack.c.bf16 %v937, %v937
        %v1173 = vpack.c.bf16 %v939, %v939
        %v1174 = vpack.c.bf16 %v942, %v942
        %v1175 = vpack.c.bf16 %v944, %v944
        %v1176 = vpack.c.bf16 %v947, %v947
        %v1177 = vpack.c.bf16 %v949, %v949
        %v1178 = vpack.c.bf16 %v952, %v952
        %v1179 = vpack.c.bf16 %v954, %v954
        %v1180 = vpack.c.bf16 %v1076, %v1076
        %v1181 = vpack.c.bf16 %v1078, %v1078
        %v1182 = vpack.c.bf16 %v1081, %v1081
        %v1183 = vpack.c.bf16 %v1083, %v1083
        %v1184 = vpack.c.bf16 %v1086, %v1086
        %v1185 = vpack.c.bf16 %v1088, %v1088
        %v1186 = vpack.c.bf16 %v1091, %v1091
        %v1187 = vpack.c.bf16 %v1093, %v1093
        %v1188 = vpack.c.bf16 %v1096, %v1096
        %v1189 = vpack.c.bf16 %v1098, %v1098
        %v1190 = vpack.c.bf16 %v1101, %v1101
        %v1191 = vpack.c.bf16 %v1103, %v1103
        %v1192 = vpack.c.bf16 %v1106, %v1106
        %v1193 = vpack.c.bf16 %v1108, %v1108
        %v1194 = vpack.c.bf16 %v1111, %v1111
        %v1195 = vpack.c.bf16 %v1113, %v1113
        %v1196 = vpack.c.bf16 %v1125, %v1125
        %v1197 = vpack.c.bf16 %v1127, %v1127
        %v1198 = vpack.c.bf16 %v1130, %v1130
        %v1199 = vpack.c.bf16 %v1132, %v1132
        %v1200 = vpack.c.bf16 %v1135, %v1135
        %v1201 = vpack.c.bf16 %v1137, %v1137
        %v1202 = vpack.c.bf16 %v1140, %v1140
        %v1203 = vpack.c.bf16 %v1142, %v1142
        %v1204 = vpack.c.bf16 %v1145, %v1145
        %v1205 = vpack.c.bf16 %v1147, %v1147
        %v1206 = vpack.c.bf16 %v1150, %v1150
        %v1207 = vpack.c.bf16 %v1152, %v1152
        %v1208 = vpack.c.bf16 %v1155, %v1155
        %v1209 = vpack.c.bf16 %v1157, %v1157
        %v1210 = vpack.c.bf16 %v1160, %v1160
        %v1211 = vpack.c.bf16 %v1162, %v1162
        %v1214 = vunpack.c.l.b16 %v1164
        %v1215 = vunpack.c.l.b16 %v1165
        %v1216 = vpack.c.b16 %v1215, %v1214
        %v1220 = vunpack.c.l.b16 %v1180
        %v1221 = vunpack.c.l.b16 %v1181
        %v1222 = vpack.c.b16 %v1221, %v1220
        %1224 = vmatpush.bf16.xpose.msra.mxu0 0
        %1225 = vmatpush.bf16.xpose.msra.mxu0 0
        %1226 = vmatpush.bf16.xpose.msra.mxu0 0
        %1227 = vmatpush.bf16.xpose.msra.mxu0 0
        %1228 = vmatpush.bf16.xpose.msra.mxu0 0
        %1229 = vmatpush.bf16.xpose.msra.mxu0 0
        %1230 = vmatpush.bf16.xpose.msra.mxu0 0
        %1231 = vmatpush.bf16.xpose.msra.mxu0 %v1222
        %1232 = vmatmul.bf16.gmra.mxu0 %v1216
        %v1233 = vpop.f32.mrf.mxu0
        %v1234 = vadd.f32 0.0, %v1233
        %v1235 = vpop.f32.mrf.mxu0
        %v1236 = vadd.f32 0.0, %v1235
        %1237 = vdwg.mxu0
        %v1240 = vunpack.c.l.b16 %v1166
        %v1241 = vunpack.c.l.b16 %v1167
        %v1242 = vpack.c.b16 %v1241, %v1240
        %v1246 = vunpack.c.l.b16 %v1182
        %v1247 = vunpack.c.l.b16 %v1183
        %v1248 = vpack.c.b16 %v1247, %v1246
        %1250 = vmatpush.bf16.xpose.msra.mxu0 0
        %1251 = vmatpush.bf16.xpose.msra.mxu0 0
        %1252 = vmatpush.bf16.xpose.msra.mxu0 0
        %1253 = vmatpush.bf16.xpose.msra.mxu0 0
        %1254 = vmatpush.bf16.xpose.msra.mxu0 0
        %1255 = vmatpush.bf16.xpose.msra.mxu0 0
        %1256 = vmatpush.bf16.xpose.msra.mxu0 0
        %1257 = vmatpush.bf16.xpose.msra.mxu0 %v1248
        %1258 = vmatmul.bf16.gmra.mxu0 %v1242
        %v1259 = vpop.f32.mrf.mxu0
        %v1260 = vadd.f32 0.0, %v1259
        %v1261 = vpop.f32.mrf.mxu0
        %v1262 = vadd.f32 0.0, %v1261
        %1263 = vdwg.mxu0
        %v1266 = vunpack.c.l.b16 %v1168
        %v1267 = vunpack.c.l.b16 %v1169
        %v1268 = vpack.c.b16 %v1267, %v1266
        %v1272 = vunpack.c.l.b16 %v1184
        %v1273 = vunpack.c.l.b16 %v1185
        %v1274 = vpack.c.b16 %v1273, %v1272
        %1276 = vmatpush.bf16.xpose.msra.mxu0 0
        %1277 = vmatpush.bf16.xpose.msra.mxu0 0
        %1278 = vmatpush.bf16.xpose.msra.mxu0 0
        %1279 = vmatpush.bf16.xpose.msra.mxu0 0
        %1280 = vmatpush.bf16.xpose.msra.mxu0 0
        %1281 = vmatpush.bf16.xpose.msra.mxu0 0
        %1282 = vmatpush.bf16.xpose.msra.mxu0 0
        %1283 = vmatpush.bf16.xpose.msra.mxu0 %v1274
        %1284 = vmatmul.bf16.gmra.mxu0 %v1268
        %v1285 = vpop.f32.mrf.mxu0
        %v1286 = vadd.f32 0.0, %v1285
        %v1287 = vpop.f32.mrf.mxu0
        %v1288 = vadd.f32 0.0, %v1287
        %1289 = vdwg.mxu0
        %v1292 = vunpack.c.l.b16 %v1170
        %v1293 = vunpack.c.l.b16 %v1171
        %v1294 = vpack.c.b16 %v1293, %v1292
        %v1298 = vunpack.c.l.b16 %v1186
        %v1299 = vunpack.c.l.b16 %v1187
        %v1300 = vpack.c.b16 %v1299, %v1298
        %1302 = vmatpush.bf16.xpose.msra.mxu0 0
        %1303 = vmatpush.bf16.xpose.msra.mxu0 0
        %1304 = vmatpush.bf16.xpose.msra.mxu0 0
        %1305 = vmatpush.bf16.xpose.msra.mxu0 0
        %1306 = vmatpush.bf16.xpose.msra.mxu0 0
        %1307 = vmatpush.bf16.xpose.msra.mxu0 0
        %1308 = vmatpush.bf16.xpose.msra.mxu0 0
        %1309 = vmatpush.bf16.xpose.msra.mxu0 %v1300
        %1310 = vmatmul.bf16.gmra.mxu0 %v1294
        %v1311 = vpop.f32.mrf.mxu0
        %v1312 = vadd.f32 0.0, %v1311
        %v1313 = vpop.f32.mrf.mxu0
        %v1314 = vadd.f32 0.0, %v1313
        %1315 = vdwg.mxu0
        %v1318 = vunpack.c.l.b16 %v1172
        %v1319 = vunpack.c.l.b16 %v1173
        %v1320 = vpack.c.b16 %v1319, %v1318
        %v1324 = vunpack.c.l.b16 %v1188
        %v1325 = vunpack.c.l.b16 %v1189
        %v1326 = vpack.c.b16 %v1325, %v1324
        %1328 = vmatpush.bf16.xpose.msra.mxu0 0
        %1329 = vmatpush.bf16.xpose.msra.mxu0 0
        %1330 = vmatpush.bf16.xpose.msra.mxu0 0
        %1331 = vmatpush.bf16.xpose.msra.mxu0 0
        %1332 = vmatpush.bf16.xpose.msra.mxu0 0
        %1333 = vmatpush.bf16.xpose.msra.mxu0 0
        %1334 = vmatpush.bf16.xpose.msra.mxu0 0
        %1335 = vmatpush.bf16.xpose.msra.mxu0 %v1326
        %1336 = vmatmul.bf16.gmra.mxu0 %v1320
        %v1337 = vpop.f32.mrf.mxu0
        %v1338 = vadd.f32 0.0, %v1337
        %v1339 = vpop.f32.mrf.mxu0
        %v1340 = vadd.f32 0.0, %v1339
        %1341 = vdwg.mxu0
        %v1344 = vunpack.c.l.b16 %v1174
        %v1345 = vunpack.c.l.b16 %v1175
        %v1346 = vpack.c.b16 %v1345, %v1344
        %v1350 = vunpack.c.l.b16 %v1190
        %v1351 = vunpack.c.l.b16 %v1191
        %v1352 = vpack.c.b16 %v1351, %v1350
        %1354 = vmatpush.bf16.xpose.msra.mxu0 0
        %1355 = vmatpush.bf16.xpose.msra.mxu0 0
        %1356 = vmatpush.bf16.xpose.msra.mxu0 0
        %1357 = vmatpush.bf16.xpose.msra.mxu0 0
        %1358 = vmatpush.bf16.xpose.msra.mxu0 0
        %1359 = vmatpush.bf16.xpose.msra.mxu0 0
        %1360 = vmatpush.bf16.xpose.msra.mxu0 0
        %1361 = vmatpush.bf16.xpose.msra.mxu0 %v1352
        %1362 = vmatmul.bf16.gmra.mxu0 %v1346
        %v1363 = vpop.f32.mrf.mxu0
        %v1364 = vadd.f32 0.0, %v1363
        %v1365 = vpop.f32.mrf.mxu0
        %v1366 = vadd.f32 0.0, %v1365
        %1367 = vdwg.mxu0
        %v1370 = vunpack.c.l.b16 %v1176
        %v1371 = vunpack.c.l.b16 %v1177
        %v1372 = vpack.c.b16 %v1371, %v1370
        %v1376 = vunpack.c.l.b16 %v1192
        %v1377 = vunpack.c.l.b16 %v1193
        %v1378 = vpack.c.b16 %v1377, %v1376
        %1380 = vmatpush.bf16.xpose.msra.mxu0 0
        %1381 = vmatpush.bf16.xpose.msra.mxu0 0
        %1382 = vmatpush.bf16.xpose.msra.mxu0 0
        %1383 = vmatpush.bf16.xpose.msra.mxu0 0
        %1384 = vmatpush.bf16.xpose.msra.mxu0 0
        %1385 = vmatpush.bf16.xpose.msra.mxu0 0
        %1386 = vmatpush.bf16.xpose.msra.mxu0 0
        %1387 = vmatpush.bf16.xpose.msra.mxu0 %v1378
        %1388 = vmatmul.bf16.gmra.mxu0 %v1372
        %v1389 = vpop.f32.mrf.mxu0
        %v1390 = vadd.f32 0.0, %v1389
        %v1391 = vpop.f32.mrf.mxu0
        %v1392 = vadd.f32 0.0, %v1391
        %1393 = vdwg.mxu0
        %v1396 = vunpack.c.l.b16 %v1178
        %v1397 = vunpack.c.l.b16 %v1179
        %v1398 = vpack.c.b16 %v1397, %v1396
        %v1402 = vunpack.c.l.b16 %v1194
        %v1403 = vunpack.c.l.b16 %v1195
        %v1404 = vpack.c.b16 %v1403, %v1402
        %1406 = vmatpush.bf16.xpose.msra.mxu0 0
        %1407 = vmatpush.bf16.xpose.msra.mxu0 0
        %1408 = vmatpush.bf16.xpose.msra.mxu0 0
        %1409 = vmatpush.bf16.xpose.msra.mxu0 0
        %1410 = vmatpush.bf16.xpose.msra.mxu0 0
        %1411 = vmatpush.bf16.xpose.msra.mxu0 0
        %1412 = vmatpush.bf16.xpose.msra.mxu0 0
        %1413 = vmatpush.bf16.xpose.msra.mxu0 %v1404
        %1414 = vmatmul.bf16.gmra.mxu0 %v1398
        %v1415 = vpop.f32.mrf.mxu0
        %v1416 = vadd.f32 0.0, %v1415
        %v1417 = vpop.f32.mrf.mxu0
        %v1418 = vadd.f32 0.0, %v1417
        %1419 = vdwg.mxu0
        %v1420 = vmul.f32 %v1234, 0.088388346
        %v1421 = vmul.f32 %v1236, 0.088388346
        %v1422 = vmul.f32 %v1260, 0.088388346
        %v1423 = vmul.f32 %v1262, 0.088388346
        %v1424 = vmul.f32 %v1286, 0.088388346
        %v1425 = vmul.f32 %v1288, 0.088388346
        %v1426 = vmul.f32 %v1312, 0.088388346
        %v1427 = vmul.f32 %v1314, 0.088388346
        %v1428 = vmul.f32 %v1338, 0.088388346
        %v1429 = vmul.f32 %v1340, 0.088388346
        %v1430 = vmul.f32 %v1364, 0.088388346
        %v1431 = vmul.f32 %v1366, 0.088388346
        %v1432 = vmul.f32 %v1390, 0.088388346
        %v1433 = vmul.f32 %v1392, 0.088388346
        %v1434 = vmul.f32 %v1416, 0.088388346
        %v1435 = vmul.f32 %v1418, 0.088388346
        %v1436 = vlaneseq
        %v1437 = vand.u32 %v1436, 127
        %vm1438 = vcmp.lt.s32.totalorder %v1437, 9
        %v1439 = vsel %vm1438, 0.0, -1e+30
        %v1440 = vadd.f32 %v1420, %v1439
        %v1441 = vadd.f32 %v1421, %v1439
        %v1442 = vadd.f32 %v1422, %v1439
        %v1443 = vadd.f32 %v1423, %v1439
        %v1444 = vadd.f32 %v1424, %v1439
        %v1445 = vadd.f32 %v1425, %v1439
        %v1446 = vadd.f32 %v1426, %v1439
        %v1447 = vadd.f32 %v1427, %v1439
        %v1448 = vadd.f32 %v1428, %v1439
        %v1449 = vadd.f32 %v1429, %v1439
        %v1450 = vadd.f32 %v1430, %v1439
        %v1451 = vadd.f32 %v1431, %v1439
        %v1452 = vadd.f32 %v1432, %v1439
        %v1453 = vadd.f32 %v1433, %v1439
        %v1454 = vadd.f32 %v1434, %v1439
        %v1455 = vadd.f32 %v1435, %v1439
        %vm1456 = vcmask 130048
        %v1457 = vsel %vm1456, %v1440, -inf
        %1458 = vmax.xlane.f32.xlu0 %v1457
        %v1459 = vpop.xlane.xlu0 %1458
        %v1460 = vsel %vm1456, %v1441, -inf
        %1461 = vmax.xlane.f32.xlu0 %v1460
        %v1462 = vpop.xlane.xlu0 %1461
        %v1463 = vsel %vm1456, %v1442, -inf
        %1464 = vmax.xlane.f32.xlu0 %v1463
        %v1465 = vpop.xlane.xlu0 %1464
        %v1466 = vsel %vm1456, %v1443, -inf
        %1467 = vmax.xlane.f32.xlu0 %v1466
        %v1468 = vpop.xlane.xlu0 %1467
        %v1469 = vsel %vm1456, %v1444, -inf
        %1470 = vmax.xlane.f32.xlu0 %v1469
        %v1471 = vpop.xlane.xlu0 %1470
        %v1472 = vsel %vm1456, %v1445, -inf
        %1473 = vmax.xlane.f32.xlu0 %v1472
        %v1474 = vpop.xlane.xlu0 %1473
        %v1475 = vsel %vm1456, %v1446, -inf
        %1476 = vmax.xlane.f32.xlu0 %v1475
        %v1477 = vpop.xlane.xlu0 %1476
        %v1478 = vsel %vm1456, %v1447, -inf
        %1479 = vmax.xlane.f32.xlu0 %v1478
        %v1480 = vpop.xlane.xlu0 %1479
        %v1481 = vsel %vm1456, %v1448, -inf
        %1482 = vmax.xlane.f32.xlu0 %v1481
        %v1483 = vpop.xlane.xlu0 %1482
        %v1484 = vsel %vm1456, %v1449, -inf
        %1485 = vmax.xlane.f32.xlu0 %v1484
        %v1486 = vpop.xlane.xlu0 %1485
        %v1487 = vsel %vm1456, %v1450, -inf
        %1488 = vmax.xlane.f32.xlu0 %v1487
        %v1489 = vpop.xlane.xlu0 %1488
        %v1490 = vsel %vm1456, %v1451, -inf
        %1491 = vmax.xlane.f32.xlu0 %v1490
        %v1492 = vpop.xlane.xlu0 %1491
        %v1493 = vsel %vm1456, %v1452, -inf
        %1494 = vmax.xlane.f32.xlu0 %v1493
        %v1495 = vpop.xlane.xlu0 %1494
        %v1496 = vsel %vm1456, %v1453, -inf
        %1497 = vmax.xlane.f32.xlu0 %v1496
        %v1498 = vpop.xlane.xlu0 %1497
        %v1499 = vsel %vm1456, %v1454, -inf
        %1500 = vmax.xlane.f32.xlu0 %v1499
        %v1501 = vpop.xlane.xlu0 %1500
        %v1502 = vsel %vm1456, %v1455, -inf
        %1503 = vmax.xlane.f32.xlu0 %v1502
        %v1504 = vpop.xlane.xlu0 %1503
        %v1505 = vsub.f32 %v1440, %v1459
        %v1506 = vsub.f32 %v1441, %v1462
        %v1507 = vsub.f32 %v1442, %v1465
        %v1508 = vsub.f32 %v1443, %v1468
        %v1509 = vsub.f32 %v1444, %v1471
        %v1510 = vsub.f32 %v1445, %v1474
        %v1511 = vsub.f32 %v1446, %v1477
        %v1512 = vsub.f32 %v1447, %v1480
        %v1513 = vsub.f32 %v1448, %v1483
        %v1514 = vsub.f32 %v1449, %v1486
        %v1515 = vsub.f32 %v1450, %v1489
        %v1516 = vsub.f32 %v1451, %v1492
        %v1517 = vsub.f32 %v1452, %v1495
        %v1518 = vsub.f32 %v1453, %v1498
        %v1519 = vsub.f32 %v1454, %v1501
        %v1520 = vsub.f32 %v1455, %v1504
        %v1521 = vmul.f32 %v1505, 1.442695
        %v1522 = vpow.pop %v1521
        %v1523 = vmul.f32 %v1506, 1.442695
        %v1524 = vpow.pop %v1523
        %v1525 = vmul.f32 %v1507, 1.442695
        %v1526 = vpow.pop %v1525
        %v1527 = vmul.f32 %v1508, 1.442695
        %v1528 = vpow.pop %v1527
        %v1529 = vmul.f32 %v1509, 1.442695
        %v1530 = vpow.pop %v1529
        %v1531 = vmul.f32 %v1510, 1.442695
        %v1532 = vpow.pop %v1531
        %v1533 = vmul.f32 %v1511, 1.442695
        %v1534 = vpow.pop %v1533
        %v1535 = vmul.f32 %v1512, 1.442695
        %v1536 = vpow.pop %v1535
        %v1537 = vmul.f32 %v1513, 1.442695
        %v1538 = vpow.pop %v1537
        %v1539 = vmul.f32 %v1514, 1.442695
        %v1540 = vpow.pop %v1539
        %v1541 = vmul.f32 %v1515, 1.442695
        %v1542 = vpow.pop %v1541
        %v1543 = vmul.f32 %v1516, 1.442695
        %v1544 = vpow.pop %v1543
        %v1545 = vmul.f32 %v1517, 1.442695
        %v1546 = vpow.pop %v1545
        %v1547 = vmul.f32 %v1518, 1.442695
        %v1548 = vpow.pop %v1547
        %v1549 = vmul.f32 %v1519, 1.442695
        %v1550 = vpow.pop %v1549
        %v1551 = vmul.f32 %v1520, 1.442695
        %v1552 = vpow.pop %v1551
        %v1553 = vsel %vm1456, %v1522, 0.0
        %1554 = vadd.xlane.f32.xlu0 %v1553
        %v1555 = vpop.xlane.xlu0 %1554
        %v1556 = vsel %vm1456, %v1524, 0.0
        %1557 = vadd.xlane.f32.xlu0 %v1556
        %v1558 = vpop.xlane.xlu0 %1557
        %v1559 = vsel %vm1456, %v1526, 0.0
        %1560 = vadd.xlane.f32.xlu0 %v1559
        %v1561 = vpop.xlane.xlu0 %1560
        %v1562 = vsel %vm1456, %v1528, 0.0
        %1563 = vadd.xlane.f32.xlu0 %v1562
        %v1564 = vpop.xlane.xlu0 %1563
        %v1565 = vsel %vm1456, %v1530, 0.0
        %1566 = vadd.xlane.f32.xlu0 %v1565
        %v1567 = vpop.xlane.xlu0 %1566
        %v1568 = vsel %vm1456, %v1532, 0.0
        %1569 = vadd.xlane.f32.xlu0 %v1568
        %v1570 = vpop.xlane.xlu0 %1569
        %v1571 = vsel %vm1456, %v1534, 0.0
        %1572 = vadd.xlane.f32.xlu0 %v1571
        %v1573 = vpop.xlane.xlu0 %1572
        %v1574 = vsel %vm1456, %v1536, 0.0
        %1575 = vadd.xlane.f32.xlu0 %v1574
        %v1576 = vpop.xlane.xlu0 %1575
        %v1577 = vsel %vm1456, %v1538, 0.0
        %1578 = vadd.xlane.f32.xlu0 %v1577
        %v1579 = vpop.xlane.xlu0 %1578
        %v1580 = vsel %vm1456, %v1540, 0.0
        %1581 = vadd.xlane.f32.xlu0 %v1580
        %v1582 = vpop.xlane.xlu0 %1581
        %v1583 = vsel %vm1456, %v1542, 0.0
        %1584 = vadd.xlane.f32.xlu0 %v1583
        %v1585 = vpop.xlane.xlu0 %1584
        %v1586 = vsel %vm1456, %v1544, 0.0
        %1587 = vadd.xlane.f32.xlu0 %v1586
        %v1588 = vpop.xlane.xlu0 %1587
        %v1589 = vsel %vm1456, %v1546, 0.0
        %1590 = vadd.xlane.f32.xlu0 %v1589
        %v1591 = vpop.xlane.xlu0 %1590
        %v1592 = vsel %vm1456, %v1548, 0.0
        %1593 = vadd.xlane.f32.xlu0 %v1592
        %v1594 = vpop.xlane.xlu0 %1593
        %v1595 = vsel %vm1456, %v1550, 0.0
        %1596 = vadd.xlane.f32.xlu0 %v1595
        %v1597 = vpop.xlane.xlu0 %1596
        %v1598 = vsel %vm1456, %v1552, 0.0
        %1599 = vadd.xlane.f32.xlu0 %v1598
        %v1600 = vpop.xlane.xlu0 %1599
        %v1601 = vrcp.pop %v1555
        %v1602 = vrcp.pop %v1558
        %v1603 = vrcp.pop %v1561
        %v1604 = vrcp.pop %v1564
        %v1605 = vrcp.pop %v1567
        %v1606 = vrcp.pop %v1570
        %v1607 = vrcp.pop %v1573
        %v1608 = vrcp.pop %v1576
        %v1609 = vrcp.pop %v1579
        %v1610 = vrcp.pop %v1582
        %v1611 = vrcp.pop %v1585
        %v1612 = vrcp.pop %v1588
        %v1613 = vrcp.pop %v1591
        %v1614 = vrcp.pop %v1594
        %v1615 = vrcp.pop %v1597
        %v1616 = vrcp.pop %v1600
        %v1617 = vmul.f32 %v1522, %v1601
        %v1618 = vmul.f32 %v1524, %v1602
        %v1619 = vmul.f32 %v1526, %v1603
        %v1620 = vmul.f32 %v1528, %v1604
        %v1621 = vmul.f32 %v1530, %v1605
        %v1622 = vmul.f32 %v1532, %v1606
        %v1623 = vmul.f32 %v1534, %v1607
        %v1624 = vmul.f32 %v1536, %v1608
        %v1625 = vmul.f32 %v1538, %v1609
        %v1626 = vmul.f32 %v1540, %v1610
        %v1627 = vmul.f32 %v1542, %v1611
        %v1628 = vmul.f32 %v1544, %v1612
        %v1629 = vmul.f32 %v1546, %v1613
        %v1630 = vmul.f32 %v1548, %v1614
        %v1631 = vmul.f32 %v1550, %v1615
        %v1632 = vmul.f32 %v1552, %v1616
        %v1633 = vpack.c.bf16 %v1617, %v1617
        %v1634 = vpack.c.bf16 %v1618, %v1618
        %v1635 = vpack.c.bf16 %v1619, %v1619
        %v1636 = vpack.c.bf16 %v1620, %v1620
        %v1637 = vpack.c.bf16 %v1621, %v1621
        %v1638 = vpack.c.bf16 %v1622, %v1622
        %v1639 = vpack.c.bf16 %v1623, %v1623
        %v1640 = vpack.c.bf16 %v1624, %v1624
        %v1641 = vpack.c.bf16 %v1625, %v1625
        %v1642 = vpack.c.bf16 %v1626, %v1626
        %v1643 = vpack.c.bf16 %v1627, %v1627
        %v1644 = vpack.c.bf16 %v1628, %v1628
        %v1645 = vpack.c.bf16 %v1629, %v1629
        %v1646 = vpack.c.bf16 %v1630, %v1630
        %v1647 = vpack.c.bf16 %v1631, %v1631
        %v1648 = vpack.c.bf16 %v1632, %v1632
        %v1651 = vunpack.c.l.b16 %v1633
        %v1652 = vunpack.c.l.b16 %v1634
        %v1653 = vpack.c.b16 %v1652, %v1651
        %v1656 = vunpack.c.l.b16 %v1196
        %v1657 = vunpack.c.l.b16 %v1197
        %v1658 = vpack.c.b16 %v1657, %v1656
        %v1661 = vsel %vm1456, %v1653, 0
        %1663 = vmatpush.bf16.msra.mxu0 0
        %1664 = vmatpush.bf16.msra.mxu0 0
        %1665 = vmatpush.bf16.msra.mxu0 0
        %1666 = vmatpush.bf16.msra.mxu0 0
        %1667 = vmatpush.bf16.msra.mxu0 0
        %1668 = vmatpush.bf16.msra.mxu0 0
        %1669 = vmatpush.bf16.msra.mxu0 0
        %1670 = vmatpush.bf16.msra.mxu0 %v1658
        %1671 = vmatmul.bf16.gmra.mxu0 %v1661
        %v1672 = vpop.f32.mrf.mxu0
        %v1673 = vadd.f32 0.0, %v1672
        %v1674 = vpop.f32.mrf.mxu0
        %v1675 = vadd.f32 0.0, %v1674
        %1676 = vdwg.mxu0
        %v1679 = vunpack.c.l.b16 %v1635
        %v1680 = vunpack.c.l.b16 %v1636
        %v1681 = vpack.c.b16 %v1680, %v1679
        %v1684 = vunpack.c.l.b16 %v1198
        %v1685 = vunpack.c.l.b16 %v1199
        %v1686 = vpack.c.b16 %v1685, %v1684
        %v1689 = vsel %vm1456, %v1681, 0
        %1691 = vmatpush.bf16.msra.mxu0 0
        %1692 = vmatpush.bf16.msra.mxu0 0
        %1693 = vmatpush.bf16.msra.mxu0 0
        %1694 = vmatpush.bf16.msra.mxu0 0
        %1695 = vmatpush.bf16.msra.mxu0 0
        %1696 = vmatpush.bf16.msra.mxu0 0
        %1697 = vmatpush.bf16.msra.mxu0 0
        %1698 = vmatpush.bf16.msra.mxu0 %v1686
        %1699 = vmatmul.bf16.gmra.mxu0 %v1689
        %v1700 = vpop.f32.mrf.mxu0
        %v1701 = vadd.f32 0.0, %v1700
        %v1702 = vpop.f32.mrf.mxu0
        %v1703 = vadd.f32 0.0, %v1702
        %1704 = vdwg.mxu0
        %v1707 = vunpack.c.l.b16 %v1637
        %v1708 = vunpack.c.l.b16 %v1638
        %v1709 = vpack.c.b16 %v1708, %v1707
        %v1712 = vunpack.c.l.b16 %v1200
        %v1713 = vunpack.c.l.b16 %v1201
        %v1714 = vpack.c.b16 %v1713, %v1712
        %v1717 = vsel %vm1456, %v1709, 0
        %1719 = vmatpush.bf16.msra.mxu0 0
        %1720 = vmatpush.bf16.msra.mxu0 0
        %1721 = vmatpush.bf16.msra.mxu0 0
        %1722 = vmatpush.bf16.msra.mxu0 0
        %1723 = vmatpush.bf16.msra.mxu0 0
        %1724 = vmatpush.bf16.msra.mxu0 0
        %1725 = vmatpush.bf16.msra.mxu0 0
        %1726 = vmatpush.bf16.msra.mxu0 %v1714
        %1727 = vmatmul.bf16.gmra.mxu0 %v1717
        %v1728 = vpop.f32.mrf.mxu0
        %v1729 = vadd.f32 0.0, %v1728
        %v1730 = vpop.f32.mrf.mxu0
        %v1731 = vadd.f32 0.0, %v1730
        %1732 = vdwg.mxu0
        %v1735 = vunpack.c.l.b16 %v1639
        %v1736 = vunpack.c.l.b16 %v1640
        %v1737 = vpack.c.b16 %v1736, %v1735
        %v1740 = vunpack.c.l.b16 %v1202
        %v1741 = vunpack.c.l.b16 %v1203
        %v1742 = vpack.c.b16 %v1741, %v1740
        %v1745 = vsel %vm1456, %v1737, 0
        %1747 = vmatpush.bf16.msra.mxu0 0
        %1748 = vmatpush.bf16.msra.mxu0 0
        %1749 = vmatpush.bf16.msra.mxu0 0
        %1750 = vmatpush.bf16.msra.mxu0 0
        %1751 = vmatpush.bf16.msra.mxu0 0
        %1752 = vmatpush.bf16.msra.mxu0 0
        %1753 = vmatpush.bf16.msra.mxu0 0
        %1754 = vmatpush.bf16.msra.mxu0 %v1742
        %1755 = vmatmul.bf16.gmra.mxu0 %v1745
        %v1756 = vpop.f32.mrf.mxu0
        %v1757 = vadd.f32 0.0, %v1756
        %v1758 = vpop.f32.mrf.mxu0
        %v1759 = vadd.f32 0.0, %v1758
        %1760 = vdwg.mxu0
        %v1763 = vunpack.c.l.b16 %v1641
        %v1764 = vunpack.c.l.b16 %v1642
        %v1765 = vpack.c.b16 %v1764, %v1763
        %v1768 = vunpack.c.l.b16 %v1204
        %v1769 = vunpack.c.l.b16 %v1205
        %v1770 = vpack.c.b16 %v1769, %v1768
        %v1773 = vsel %vm1456, %v1765, 0
        %1775 = vmatpush.bf16.msra.mxu0 0
        %1776 = vmatpush.bf16.msra.mxu0 0
        %1777 = vmatpush.bf16.msra.mxu0 0
        %1778 = vmatpush.bf16.msra.mxu0 0
        %1779 = vmatpush.bf16.msra.mxu0 0
        %1780 = vmatpush.bf16.msra.mxu0 0
        %1781 = vmatpush.bf16.msra.mxu0 0
        %1782 = vmatpush.bf16.msra.mxu0 %v1770
        %1783 = vmatmul.bf16.gmra.mxu0 %v1773
        %v1784 = vpop.f32.mrf.mxu0
        %v1785 = vadd.f32 0.0, %v1784
        %v1786 = vpop.f32.mrf.mxu0
        %v1787 = vadd.f32 0.0, %v1786
        %1788 = vdwg.mxu0
        %v1791 = vunpack.c.l.b16 %v1643
        %v1792 = vunpack.c.l.b16 %v1644
        %v1793 = vpack.c.b16 %v1792, %v1791
        %v1796 = vunpack.c.l.b16 %v1206
        %v1797 = vunpack.c.l.b16 %v1207
        %v1798 = vpack.c.b16 %v1797, %v1796
        %v1801 = vsel %vm1456, %v1793, 0
        %1803 = vmatpush.bf16.msra.mxu0 0
        %1804 = vmatpush.bf16.msra.mxu0 0
        %1805 = vmatpush.bf16.msra.mxu0 0
        %1806 = vmatpush.bf16.msra.mxu0 0
        %1807 = vmatpush.bf16.msra.mxu0 0
        %1808 = vmatpush.bf16.msra.mxu0 0
        %1809 = vmatpush.bf16.msra.mxu0 0
        %1810 = vmatpush.bf16.msra.mxu0 %v1798
        %1811 = vmatmul.bf16.gmra.mxu0 %v1801
        %v1812 = vpop.f32.mrf.mxu0
        %v1813 = vadd.f32 0.0, %v1812
        %v1814 = vpop.f32.mrf.mxu0
        %v1815 = vadd.f32 0.0, %v1814
        %1816 = vdwg.mxu0
        %v1819 = vunpack.c.l.b16 %v1645
        %v1820 = vunpack.c.l.b16 %v1646
        %v1821 = vpack.c.b16 %v1820, %v1819
        %v1824 = vunpack.c.l.b16 %v1208
        %v1825 = vunpack.c.l.b16 %v1209
        %v1826 = vpack.c.b16 %v1825, %v1824
        %v1829 = vsel %vm1456, %v1821, 0
        %1831 = vmatpush.bf16.msra.mxu0 0
        %1832 = vmatpush.bf16.msra.mxu0 0
        %1833 = vmatpush.bf16.msra.mxu0 0
        %1834 = vmatpush.bf16.msra.mxu0 0
        %1835 = vmatpush.bf16.msra.mxu0 0
        %1836 = vmatpush.bf16.msra.mxu0 0
        %1837 = vmatpush.bf16.msra.mxu0 0
        %1838 = vmatpush.bf16.msra.mxu0 %v1826
        %1839 = vmatmul.bf16.gmra.mxu0 %v1829
        %v1840 = vpop.f32.mrf.mxu0
        %v1841 = vadd.f32 0.0, %v1840
        %v1842 = vpop.f32.mrf.mxu0
        %v1843 = vadd.f32 0.0, %v1842
        %1844 = vdwg.mxu0
        %v1847 = vunpack.c.l.b16 %v1647
        %v1848 = vunpack.c.l.b16 %v1648
        %v1849 = vpack.c.b16 %v1848, %v1847
        %v1852 = vunpack.c.l.b16 %v1210
        %v1853 = vunpack.c.l.b16 %v1211
        %v1854 = vpack.c.b16 %v1853, %v1852
        %v1857 = vsel %vm1456, %v1849, 0
        %1859 = vmatpush.bf16.msra.mxu0 0
        %1860 = vmatpush.bf16.msra.mxu0 0
        %1861 = vmatpush.bf16.msra.mxu0 0
        %1862 = vmatpush.bf16.msra.mxu0 0
        %1863 = vmatpush.bf16.msra.mxu0 0
        %1864 = vmatpush.bf16.msra.mxu0 0
        %1865 = vmatpush.bf16.msra.mxu0 0
        %1866 = vmatpush.bf16.msra.mxu0 %v1854
        %1867 = vmatmul.bf16.gmra.mxu0 %v1857
        %v1868 = vpop.f32.mrf.mxu0
        %v1869 = vadd.f32 0.0, %v1868
        %v1870 = vpop.f32.mrf.mxu0
        %v1871 = vadd.f32 0.0, %v1870
        %1872 = vdwg.mxu0
        %v1873 = vpack.c.bf16 %v1675, %v1673
        %v1874 = vpack.c.bf16 %v1703, %v1701
        %v1875 = vpack.c.bf16 %v1731, %v1729
        %v1876 = vpack.c.bf16 %v1759, %v1757
        %v1877 = vpack.c.bf16 %v1787, %v1785
        %v1878 = vpack.c.bf16 %v1815, %v1813
        %v1879 = vpack.c.bf16 %v1843, %v1841
        %v1880 = vpack.c.bf16 %v1871, %v1869
        %v1881 = vld [vmem:[%s673] sm:$0xff]
        %v1882 = vld [vmem:[%s673 + $0x8] sm:$0xff]
        %v1883 = vld [vmem:[%s673 + $0x10] sm:$0xff]
        %v1884 = vld [vmem:[%s673 + $0x18] sm:$0xff]
        %v1885 = vld [vmem:[%s673 + $0x20] sm:$0xff]
        %v1886 = vld [vmem:[%s673 + $0x28] sm:$0xff]
        %v1887 = vld [vmem:[%s673 + $0x30] sm:$0xff]
        %v1888 = vld [vmem:[%s673 + $0x38] sm:$0xff]
        %v1889 = vld [vmem:[%s673 + $0x40] sm:$0xff]
        %v1890 = vld [vmem:[%s673 + $0x48] sm:$0xff]
        %v1891 = vld [vmem:[%s673 + $0x50] sm:$0xff]
        %v1892 = vld [vmem:[%s673 + $0x58] sm:$0xff]
        %v1893 = vld [vmem:[%s673 + $0x60] sm:$0xff]
        %v1894 = vld [vmem:[%s673 + $0x68] sm:$0xff]
        %v1895 = vld [vmem:[%s673 + $0x70] sm:$0xff]
        %v1896 = vld [vmem:[%s673 + $0x78] sm:$0xff]
        %v1897 = vld [vmem:[%s673 + $0x80] sm:$0xff]
        %v1898 = vld [vmem:[%s673 + $0x88] sm:$0xff]
        %v1899 = vld [vmem:[%s673 + $0x90] sm:$0xff]
        %v1900 = vld [vmem:[%s673 + $0x98] sm:$0xff]
        %v1901 = vld [vmem:[%s673 + $0xa0] sm:$0xff]
        %v1902 = vld [vmem:[%s673 + $0xa8] sm:$0xff]
        %v1903 = vld [vmem:[%s673 + $0xb0] sm:$0xff]
        %v1904 = vld [vmem:[%s673 + $0xb8] sm:$0xff]
        %v1905 = vld [vmem:[%s673 + $0xc0] sm:$0xff]
        %v1906 = vld [vmem:[%s673 + $0xc8] sm:$0xff]
        %v1907 = vld [vmem:[%s673 + $0xd0] sm:$0xff]
        %v1908 = vld [vmem:[%s673 + $0xd8] sm:$0xff]
        %v1909 = vld [vmem:[%s673 + $0xe0] sm:$0xff]
        %v1910 = vld [vmem:[%s673 + $0xe8] sm:$0xff]
        %v1911 = vld [vmem:[%s673 + $0xf0] sm:$0xff]
        %v1912 = vld [vmem:[%s673 + $0xf8] sm:$0xff]
        %v1913 = vld [vmem:[%s683] sm:$0xf]
        %v1915 = vperm.slane %v1913, 0
        %v1916 = vperm.slane %v1913, 1
        %v1917 = vperm.slane %v1913, 2
        %v1918 = vperm.slane %v1913, 3
        %v1955 = vunpack.c.l.b16 %v1881
        %v1956 = vunpack.c.h.b16 %v1881
        %v1957 = vunpack.c.l.b16 %v1882
        %v1958 = vunpack.c.h.b16 %v1882
        %v1959 = vunpack.c.l.b16 %v1883
        %v1960 = vunpack.c.h.b16 %v1883
        %v1961 = vunpack.c.l.b16 %v1884
        %v1962 = vunpack.c.h.b16 %v1884
        %v1963 = vunpack.c.l.b16 %v1885
        %v1964 = vunpack.c.h.b16 %v1885
        %v1965 = vunpack.c.l.b16 %v1886
        %v1966 = vunpack.c.h.b16 %v1886
        %v1967 = vunpack.c.l.b16 %v1887
        %v1968 = vunpack.c.h.b16 %v1887
        %v1969 = vunpack.c.l.b16 %v1888
        %v1970 = vunpack.c.h.b16 %v1888
        %v1971 = vunpack.c.l.b16 %v1889
        %v1972 = vunpack.c.h.b16 %v1889
        %v1973 = vunpack.c.l.b16 %v1890
        %v1974 = vunpack.c.h.b16 %v1890
        %v1975 = vunpack.c.l.b16 %v1891
        %v1976 = vunpack.c.h.b16 %v1891
        %v1977 = vunpack.c.l.b16 %v1892
        %v1978 = vunpack.c.h.b16 %v1892
        %v1979 = vunpack.c.l.b16 %v1893
        %v1980 = vunpack.c.h.b16 %v1893
        %v1981 = vunpack.c.l.b16 %v1894
        %v1982 = vunpack.c.h.b16 %v1894
        %v1983 = vunpack.c.l.b16 %v1895
        %v1984 = vunpack.c.h.b16 %v1895
        %v1985 = vunpack.c.l.b16 %v1896
        %v1986 = vunpack.c.h.b16 %v1896
        %v1987 = vunpack.c.l.b16 %v1897
        %v1988 = vunpack.c.h.b16 %v1897
        %v1989 = vunpack.c.l.b16 %v1898
        %v1990 = vunpack.c.h.b16 %v1898
        %v1991 = vunpack.c.l.b16 %v1899
        %v1992 = vunpack.c.h.b16 %v1899
        %v1993 = vunpack.c.l.b16 %v1900
        %v1994 = vunpack.c.h.b16 %v1900
        %v1995 = vunpack.c.l.b16 %v1901
        %v1996 = vunpack.c.h.b16 %v1901
        %v1997 = vunpack.c.l.b16 %v1902
        %v1998 = vunpack.c.h.b16 %v1902
        %v1999 = vunpack.c.l.b16 %v1903
        %v2000 = vunpack.c.h.b16 %v1903
        %v2001 = vunpack.c.l.b16 %v1904
        %v2002 = vunpack.c.h.b16 %v1904
        %v2003 = vunpack.c.l.b16 %v1905
        %v2004 = vunpack.c.h.b16 %v1905
        %v2005 = vunpack.c.l.b16 %v1906
        %v2006 = vunpack.c.h.b16 %v1906
        %v2007 = vunpack.c.l.b16 %v1907
        %v2008 = vunpack.c.h.b16 %v1907
        %v2009 = vunpack.c.l.b16 %v1908
        %v2010 = vunpack.c.h.b16 %v1908
        %v2011 = vunpack.c.l.b16 %v1909
        %v2012 = vunpack.c.h.b16 %v1909
        %v2013 = vunpack.c.l.b16 %v1910
        %v2014 = vunpack.c.h.b16 %v1910
        %v2015 = vunpack.c.l.b16 %v1911
        %v2016 = vunpack.c.h.b16 %v1911
        %v2017 = vunpack.c.l.b16 %v1912
        %v2018 = vunpack.c.h.b16 %v1912
        %v2019 = vpack.c.b16 %v1959, %v1955
        %v2020 = vpack.c.b16 %v1960, %v1956
        %v2021 = vpack.c.b16 %v1961, %v1957
        %v2022 = vpack.c.b16 %v1962, %v1958
        %v2023 = vpack.c.b16 %v1967, %v1963
        %v2024 = vpack.c.b16 %v1968, %v1964
        %v2025 = vpack.c.b16 %v1969, %v1965
        %v2026 = vpack.c.b16 %v1970, %v1966
        %v2027 = vpack.c.b16 %v1975, %v1971
        %v2028 = vpack.c.b16 %v1976, %v1972
        %v2029 = vpack.c.b16 %v1977, %v1973
        %v2030 = vpack.c.b16 %v1978, %v1974
        %v2031 = vpack.c.b16 %v1983, %v1979
        %v2032 = vpack.c.b16 %v1984, %v1980
        %v2033 = vpack.c.b16 %v1985, %v1981
        %v2034 = vpack.c.b16 %v1986, %v1982
        %v2035 = vpack.c.b16 %v1991, %v1987
        %v2036 = vpack.c.b16 %v1992, %v1988
        %v2037 = vpack.c.b16 %v1993, %v1989
        %v2038 = vpack.c.b16 %v1994, %v1990
        %v2039 = vpack.c.b16 %v1999, %v1995
        %v2040 = vpack.c.b16 %v2000, %v1996
        %v2041 = vpack.c.b16 %v2001, %v1997
        %v2042 = vpack.c.b16 %v2002, %v1998
        %v2043 = vpack.c.b16 %v2007, %v2003
        %v2044 = vpack.c.b16 %v2008, %v2004
        %v2045 = vpack.c.b16 %v2009, %v2005
        %v2046 = vpack.c.b16 %v2010, %v2006
        %v2047 = vpack.c.b16 %v2015, %v2011
        %v2048 = vpack.c.b16 %v2016, %v2012
        %v2049 = vpack.c.b16 %v2017, %v2013
        %v2050 = vpack.c.b16 %v2018, %v2014
        %2083 = vmatpush.bf16.msra.mxu0 %v2047
        %2084 = vmatpush.bf16.msra.mxu0 %v2043
        %2085 = vmatpush.bf16.msra.mxu0 %v2039
        %2086 = vmatpush.bf16.msra.mxu0 %v2035
        %2087 = vmatpush.bf16.msra.mxu0 %v2031
        %2088 = vmatpush.bf16.msra.mxu0 %v2027
        %2089 = vmatpush.bf16.msra.mxu0 %v2023
        %2090 = vmatpush.bf16.msra.mxu0 %v2019
        %2091 = vmatmul.bf16.gmra.mxu0 %v1873
        %v2092 = vpop.f32.mrf.mxu0
        %v2093 = vadd.f32 %v1915, %v2092
        %v2094 = vpop.f32.mrf.mxu0
        %v2095 = vadd.f32 %v1915, %v2094
        %2096 = vmatmul.bf16.gmra.mxu0 %v1874
        %v2097 = vpop.f32.mrf.mxu0
        %v2098 = vadd.f32 %v1915, %v2097
        %v2099 = vpop.f32.mrf.mxu0
        %v2100 = vadd.f32 %v1915, %v2099
        %2101 = vmatmul.bf16.gmra.mxu0 %v1875
        %v2102 = vpop.f32.mrf.mxu0
        %v2103 = vadd.f32 %v1915, %v2102
        %v2104 = vpop.f32.mrf.mxu0
        %v2105 = vadd.f32 %v1915, %v2104
        %2106 = vmatmul.bf16.gmra.mxu0 %v1876
        %v2107 = vpop.f32.mrf.mxu0
        %v2108 = vadd.f32 %v1915, %v2107
        %v2109 = vpop.f32.mrf.mxu0
        %v2110 = vadd.f32 %v1915, %v2109
        %2111 = vmatmul.bf16.gmra.mxu0 %v1877
        %v2112 = vpop.f32.mrf.mxu0
        %v2113 = vadd.f32 %v1915, %v2112
        %v2114 = vpop.f32.mrf.mxu0
        %v2115 = vadd.f32 %v1915, %v2114
        %2116 = vmatmul.bf16.gmra.mxu0 %v1878
        %v2117 = vpop.f32.mrf.mxu0
        %v2118 = vadd.f32 %v1915, %v2117
        %v2119 = vpop.f32.mrf.mxu0
        %v2120 = vadd.f32 %v1915, %v2119
        %2121 = vmatmul.bf16.gmra.mxu0 %v1879
        %v2122 = vpop.f32.mrf.mxu0
        %v2123 = vadd.f32 %v1915, %v2122
        %v2124 = vpop.f32.mrf.mxu0
        %v2125 = vadd.f32 %v1915, %v2124
        %2126 = vmatmul.bf16.gmra.mxu0 %v1880
        %v2127 = vpop.f32.mrf.mxu0
        %v2128 = vadd.f32 %v1915, %v2127
        %v2129 = vpop.f32.mrf.mxu0
        %v2130 = vadd.f32 %v1915, %v2129
        %2131 = vdwg.mxu0
        %2132 = vmatpush.bf16.msra.mxu0 %v2048
        %2133 = vmatpush.bf16.msra.mxu0 %v2044
        %2134 = vmatpush.bf16.msra.mxu0 %v2040
        %2135 = vmatpush.bf16.msra.mxu0 %v2036
        %2136 = vmatpush.bf16.msra.mxu0 %v2032
        %2137 = vmatpush.bf16.msra.mxu0 %v2028
        %2138 = vmatpush.bf16.msra.mxu0 %v2024
        %2139 = vmatpush.bf16.msra.mxu0 %v2020
        %2140 = vmatmul.bf16.gmra.mxu0 %v1873
        %v2141 = vpop.f32.mrf.mxu0
        %v2142 = vadd.f32 %v1916, %v2141
        %v2143 = vpop.f32.mrf.mxu0
        %v2144 = vadd.f32 %v1916, %v2143
        %2145 = vmatmul.bf16.gmra.mxu0 %v1874
        %v2146 = vpop.f32.mrf.mxu0
        %v2147 = vadd.f32 %v1916, %v2146
        %v2148 = vpop.f32.mrf.mxu0
        %v2149 = vadd.f32 %v1916, %v2148
        %2150 = vmatmul.bf16.gmra.mxu0 %v1875
        %v2151 = vpop.f32.mrf.mxu0
        %v2152 = vadd.f32 %v1916, %v2151
        %v2153 = vpop.f32.mrf.mxu0
        %v2154 = vadd.f32 %v1916, %v2153
        %2155 = vmatmul.bf16.gmra.mxu0 %v1876
        %v2156 = vpop.f32.mrf.mxu0
        %v2157 = vadd.f32 %v1916, %v2156
        %v2158 = vpop.f32.mrf.mxu0
        %v2159 = vadd.f32 %v1916, %v2158
        %2160 = vmatmul.bf16.gmra.mxu0 %v1877
        %v2161 = vpop.f32.mrf.mxu0
        %v2162 = vadd.f32 %v1916, %v2161
        %v2163 = vpop.f32.mrf.mxu0
        %v2164 = vadd.f32 %v1916, %v2163
        %2165 = vmatmul.bf16.gmra.mxu0 %v1878
        %v2166 = vpop.f32.mrf.mxu0
        %v2167 = vadd.f32 %v1916, %v2166
        %v2168 = vpop.f32.mrf.mxu0
        %v2169 = vadd.f32 %v1916, %v2168
        %2170 = vmatmul.bf16.gmra.mxu0 %v1879
        %v2171 = vpop.f32.mrf.mxu0
        %v2172 = vadd.f32 %v1916, %v2171
        %v2173 = vpop.f32.mrf.mxu0
        %v2174 = vadd.f32 %v1916, %v2173
        %2175 = vmatmul.bf16.gmra.mxu0 %v1880
        %v2176 = vpop.f32.mrf.mxu0
        %v2177 = vadd.f32 %v1916, %v2176
        %v2178 = vpop.f32.mrf.mxu0
        %v2179 = vadd.f32 %v1916, %v2178
        %2180 = vdwg.mxu0
        %2181 = vmatpush.bf16.msra.mxu0 %v2049
        %2182 = vmatpush.bf16.msra.mxu0 %v2045
        %2183 = vmatpush.bf16.msra.mxu0 %v2041
        %2184 = vmatpush.bf16.msra.mxu0 %v2037
        %2185 = vmatpush.bf16.msra.mxu0 %v2033
        %2186 = vmatpush.bf16.msra.mxu0 %v2029
        %2187 = vmatpush.bf16.msra.mxu0 %v2025
        %2188 = vmatpush.bf16.msra.mxu0 %v2021
        %2189 = vmatmul.bf16.gmra.mxu0 %v1873
        %v2190 = vpop.f32.mrf.mxu0
        %v2191 = vadd.f32 %v1917, %v2190
        %v2192 = vpop.f32.mrf.mxu0
        %v2193 = vadd.f32 %v1917, %v2192
        %2194 = vmatmul.bf16.gmra.mxu0 %v1874
        %v2195 = vpop.f32.mrf.mxu0
        %v2196 = vadd.f32 %v1917, %v2195
        %v2197 = vpop.f32.mrf.mxu0
        %v2198 = vadd.f32 %v1917, %v2197
        %2199 = vmatmul.bf16.gmra.mxu0 %v1875
        %v2200 = vpop.f32.mrf.mxu0
        %v2201 = vadd.f32 %v1917, %v2200
        %v2202 = vpop.f32.mrf.mxu0
        %v2203 = vadd.f32 %v1917, %v2202
        %2204 = vmatmul.bf16.gmra.mxu0 %v1876
        %v2205 = vpop.f32.mrf.mxu0
        %v2206 = vadd.f32 %v1917, %v2205
        %v2207 = vpop.f32.mrf.mxu0
        %v2208 = vadd.f32 %v1917, %v2207
        %2209 = vmatmul.bf16.gmra.mxu0 %v1877
        %v2210 = vpop.f32.mrf.mxu0
        %v2211 = vadd.f32 %v1917, %v2210
        %v2212 = vpop.f32.mrf.mxu0
        %v2213 = vadd.f32 %v1917, %v2212
        %2214 = vmatmul.bf16.gmra.mxu0 %v1878
        %v2215 = vpop.f32.mrf.mxu0
        %v2216 = vadd.f32 %v1917, %v2215
        %v2217 = vpop.f32.mrf.mxu0
        %v2218 = vadd.f32 %v1917, %v2217
        %2219 = vmatmul.bf16.gmra.mxu0 %v1879
        %v2220 = vpop.f32.mrf.mxu0
        %v2221 = vadd.f32 %v1917, %v2220
        %v2222 = vpop.f32.mrf.mxu0
        %v2223 = vadd.f32 %v1917, %v2222
        %2224 = vmatmul.bf16.gmra.mxu0 %v1880
        %v2225 = vpop.f32.mrf.mxu0
        %v2226 = vadd.f32 %v1917, %v2225
        %v2227 = vpop.f32.mrf.mxu0
        %v2228 = vadd.f32 %v1917, %v2227
        %2229 = vdwg.mxu0
        %2230 = vmatpush.bf16.msra.mxu0 %v2050
        %2231 = vmatpush.bf16.msra.mxu0 %v2046
        %2232 = vmatpush.bf16.msra.mxu0 %v2042
        %2233 = vmatpush.bf16.msra.mxu0 %v2038
        %2234 = vmatpush.bf16.msra.mxu0 %v2034
        %2235 = vmatpush.bf16.msra.mxu0 %v2030
        %2236 = vmatpush.bf16.msra.mxu0 %v2026
        %2237 = vmatpush.bf16.msra.mxu0 %v2022
        %2238 = vmatmul.bf16.gmra.mxu0 %v1873
        %v2239 = vpop.f32.mrf.mxu0
        %v2240 = vadd.f32 %v1918, %v2239
        %v2241 = vpop.f32.mrf.mxu0
        %v2242 = vadd.f32 %v1918, %v2241
        %2243 = vmatmul.bf16.gmra.mxu0 %v1874
        %v2244 = vpop.f32.mrf.mxu0
        %v2245 = vadd.f32 %v1918, %v2244
        %v2246 = vpop.f32.mrf.mxu0
        %v2247 = vadd.f32 %v1918, %v2246
        %2248 = vmatmul.bf16.gmra.mxu0 %v1875
        %v2249 = vpop.f32.mrf.mxu0
        %v2250 = vadd.f32 %v1918, %v2249
        %v2251 = vpop.f32.mrf.mxu0
        %v2252 = vadd.f32 %v1918, %v2251
        %2253 = vmatmul.bf16.gmra.mxu0 %v1876
        %v2254 = vpop.f32.mrf.mxu0
        %v2255 = vadd.f32 %v1918, %v2254
        %v2256 = vpop.f32.mrf.mxu0
        %v2257 = vadd.f32 %v1918, %v2256
        %2258 = vmatmul.bf16.gmra.mxu0 %v1877
        %v2259 = vpop.f32.mrf.mxu0
        %v2260 = vadd.f32 %v1918, %v2259
        %v2261 = vpop.f32.mrf.mxu0
        %v2262 = vadd.f32 %v1918, %v2261
        %2263 = vmatmul.bf16.gmra.mxu0 %v1878
        %v2264 = vpop.f32.mrf.mxu0
        %v2265 = vadd.f32 %v1918, %v2264
        %v2266 = vpop.f32.mrf.mxu0
        %v2267 = vadd.f32 %v1918, %v2266
        %2268 = vmatmul.bf16.gmra.mxu0 %v1879
        %v2269 = vpop.f32.mrf.mxu0
        %v2270 = vadd.f32 %v1918, %v2269
        %v2271 = vpop.f32.mrf.mxu0
        %v2272 = vadd.f32 %v1918, %v2271
        %2273 = vmatmul.bf16.gmra.mxu0 %v1880
        %v2274 = vpop.f32.mrf.mxu0
        %v2275 = vadd.f32 %v1918, %v2274
        %v2276 = vpop.f32.mrf.mxu0
        %v2277 = vadd.f32 %v1918, %v2276
        %2278 = vdwg.mxu0
        %v2279 = vmul.f32 %v2093, %v2093
        %v2280 = vmul.f32 %v2142, %v2142
        %v2281 = vmul.f32 %v2191, %v2191
        %v2282 = vmul.f32 %v2240, %v2240
        %v2283 = vmul.f32 %v2095, %v2095
        %v2284 = vmul.f32 %v2144, %v2144
        %v2285 = vmul.f32 %v2193, %v2193
        %v2286 = vmul.f32 %v2242, %v2242
        %v2287 = vmul.f32 %v2098, %v2098
        %v2288 = vmul.f32 %v2147, %v2147
        %v2289 = vmul.f32 %v2196, %v2196
        %v2290 = vmul.f32 %v2245, %v2245
        %v2291 = vmul.f32 %v2100, %v2100
        %v2292 = vmul.f32 %v2149, %v2149
        %v2293 = vmul.f32 %v2198, %v2198
        %v2294 = vmul.f32 %v2247, %v2247
        %v2295 = vmul.f32 %v2103, %v2103
        %v2296 = vmul.f32 %v2152, %v2152
        %v2297 = vmul.f32 %v2201, %v2201
        %v2298 = vmul.f32 %v2250, %v2250
        %v2299 = vmul.f32 %v2105, %v2105
        %v2300 = vmul.f32 %v2154, %v2154
        %v2301 = vmul.f32 %v2203, %v2203
        %v2302 = vmul.f32 %v2252, %v2252
        %v2303 = vmul.f32 %v2108, %v2108
        %v2304 = vmul.f32 %v2157, %v2157
        %v2305 = vmul.f32 %v2206, %v2206
        %v2306 = vmul.f32 %v2255, %v2255
        %v2307 = vmul.f32 %v2110, %v2110
        %v2308 = vmul.f32 %v2159, %v2159
        %v2309 = vmul.f32 %v2208, %v2208
        %v2310 = vmul.f32 %v2257, %v2257
        %v2311 = vmul.f32 %v2113, %v2113
        %v2312 = vmul.f32 %v2162, %v2162
        %v2313 = vmul.f32 %v2211, %v2211
        %v2314 = vmul.f32 %v2260, %v2260
        %v2315 = vmul.f32 %v2115, %v2115
        %v2316 = vmul.f32 %v2164, %v2164
        %v2317 = vmul.f32 %v2213, %v2213
        %v2318 = vmul.f32 %v2262, %v2262
        %v2319 = vmul.f32 %v2118, %v2118
        %v2320 = vmul.f32 %v2167, %v2167
        %v2321 = vmul.f32 %v2216, %v2216
        %v2322 = vmul.f32 %v2265, %v2265
        %v2323 = vmul.f32 %v2120, %v2120
        %v2324 = vmul.f32 %v2169, %v2169
        %v2325 = vmul.f32 %v2218, %v2218
        %v2326 = vmul.f32 %v2267, %v2267
        %v2327 = vmul.f32 %v2123, %v2123
        %v2328 = vmul.f32 %v2172, %v2172
        %v2329 = vmul.f32 %v2221, %v2221
        %v2330 = vmul.f32 %v2270, %v2270
        %v2331 = vmul.f32 %v2125, %v2125
        %v2332 = vmul.f32 %v2174, %v2174
        %v2333 = vmul.f32 %v2223, %v2223
        %v2334 = vmul.f32 %v2272, %v2272
        %v2335 = vmul.f32 %v2128, %v2128
        %v2336 = vmul.f32 %v2177, %v2177
        %v2337 = vmul.f32 %v2226, %v2226
        %v2338 = vmul.f32 %v2275, %v2275
        %v2339 = vmul.f32 %v2130, %v2130
        %v2340 = vmul.f32 %v2179, %v2179
        %v2341 = vmul.f32 %v2228, %v2228
        %v2342 = vmul.f32 %v2277, %v2277
        %v2343 = vmul.f32 %v2093, %v2279
        %v2344 = vmul.f32 %v2142, %v2280
        %v2345 = vmul.f32 %v2191, %v2281
        %v2346 = vmul.f32 %v2240, %v2282
        %v2347 = vmul.f32 %v2095, %v2283
        %v2348 = vmul.f32 %v2144, %v2284
        %v2349 = vmul.f32 %v2193, %v2285
        %v2350 = vmul.f32 %v2242, %v2286
        %v2351 = vmul.f32 %v2098, %v2287
        %v2352 = vmul.f32 %v2147, %v2288
        %v2353 = vmul.f32 %v2196, %v2289
        %v2354 = vmul.f32 %v2245, %v2290
        %v2355 = vmul.f32 %v2100, %v2291
        %v2356 = vmul.f32 %v2149, %v2292
        %v2357 = vmul.f32 %v2198, %v2293
        %v2358 = vmul.f32 %v2247, %v2294
        %v2359 = vmul.f32 %v2103, %v2295
        %v2360 = vmul.f32 %v2152, %v2296
        %v2361 = vmul.f32 %v2201, %v2297
        %v2362 = vmul.f32 %v2250, %v2298
        %v2363 = vmul.f32 %v2105, %v2299
        %v2364 = vmul.f32 %v2154, %v2300
        %v2365 = vmul.f32 %v2203, %v2301
        %v2366 = vmul.f32 %v2252, %v2302
        %v2367 = vmul.f32 %v2108, %v2303
        %v2368 = vmul.f32 %v2157, %v2304
        %v2369 = vmul.f32 %v2206, %v2305
        %v2370 = vmul.f32 %v2255, %v2306
        %v2371 = vmul.f32 %v2110, %v2307
        %v2372 = vmul.f32 %v2159, %v2308
        %v2373 = vmul.f32 %v2208, %v2309
        %v2374 = vmul.f32 %v2257, %v2310
        %v2375 = vmul.f32 %v2113, %v2311
        %v2376 = vmul.f32 %v2162, %v2312
        %v2377 = vmul.f32 %v2211, %v2313
        %v2378 = vmul.f32 %v2260, %v2314
        %v2379 = vmul.f32 %v2115, %v2315
        %v2380 = vmul.f32 %v2164, %v2316
        %v2381 = vmul.f32 %v2213, %v2317
        %v2382 = vmul.f32 %v2262, %v2318
        %v2383 = vmul.f32 %v2118, %v2319
        %v2384 = vmul.f32 %v2167, %v2320
        %v2385 = vmul.f32 %v2216, %v2321
        %v2386 = vmul.f32 %v2265, %v2322
        %v2387 = vmul.f32 %v2120, %v2323
        %v2388 = vmul.f32 %v2169, %v2324
        %v2389 = vmul.f32 %v2218, %v2325
        %v2390 = vmul.f32 %v2267, %v2326
        %v2391 = vmul.f32 %v2123, %v2327
        %v2392 = vmul.f32 %v2172, %v2328
        %v2393 = vmul.f32 %v2221, %v2329
        %v2394 = vmul.f32 %v2270, %v2330
        %v2395 = vmul.f32 %v2125, %v2331
        %v2396 = vmul.f32 %v2174, %v2332
        %v2397 = vmul.f32 %v2223, %v2333
        %v2398 = vmul.f32 %v2272, %v2334
        %v2399 = vmul.f32 %v2128, %v2335
        %v2400 = vmul.f32 %v2177, %v2336
        %v2401 = vmul.f32 %v2226, %v2337
        %v2402 = vmul.f32 %v2275, %v2338
        %v2403 = vmul.f32 %v2130, %v2339
        %v2404 = vmul.f32 %v2179, %v2340
        %v2405 = vmul.f32 %v2228, %v2341
        %v2406 = vmul.f32 %v2277, %v2342
        %v2407 = vmul.f32 %v2343, 0.044715
        %v2408 = vmul.f32 %v2344, 0.044715
        %v2409 = vmul.f32 %v2345, 0.044715
        %v2410 = vmul.f32 %v2346, 0.044715
        %v2411 = vmul.f32 %v2347, 0.044715
        %v2412 = vmul.f32 %v2348, 0.044715
        %v2413 = vmul.f32 %v2349, 0.044715
        %v2414 = vmul.f32 %v2350, 0.044715
        %v2415 = vmul.f32 %v2351, 0.044715
        %v2416 = vmul.f32 %v2352, 0.044715
        %v2417 = vmul.f32 %v2353, 0.044715
        %v2418 = vmul.f32 %v2354, 0.044715
        %v2419 = vmul.f32 %v2355, 0.044715
        %v2420 = vmul.f32 %v2356, 0.044715
        %v2421 = vmul.f32 %v2357, 0.044715
        %v2422 = vmul.f32 %v2358, 0.044715
        %v2423 = vmul.f32 %v2359, 0.044715
        %v2424 = vmul.f32 %v2360, 0.044715
        %v2425 = vmul.f32 %v2361, 0.044715
        %v2426 = vmul.f32 %v2362, 0.044715
        %v2427 = vmul.f32 %v2363, 0.044715
        %v2428 = vmul.f32 %v2364, 0.044715
        %v2429 = vmul.f32 %v2365, 0.044715
        %v2430 = vmul.f32 %v2366, 0.044715
        %v2431 = vmul.f32 %v2367, 0.044715
        %v2432 = vmul.f32 %v2368, 0.044715
        %v2433 = vmul.f32 %v2369, 0.044715
        %v2434 = vmul.f32 %v2370, 0.044715
        %v2435 = vmul.f32 %v2371, 0.044715
        %v2436 = vmul.f32 %v2372, 0.044715
        %v2437 = vmul.f32 %v2373, 0.044715
        %v2438 = vmul.f32 %v2374, 0.044715
        %v2439 = vmul.f32 %v2375, 0.044715
        %v2440 = vmul.f32 %v2376, 0.044715
        %v2441 = vmul.f32 %v2377, 0.044715
        %v2442 = vmul.f32 %v2378, 0.044715
        %v2443 = vmul.f32 %v2379, 0.044715
        %v2444 = vmul.f32 %v2380, 0.044715
        %v2445 = vmul.f32 %v2381, 0.044715
        %v2446 = vmul.f32 %v2382, 0.044715
        %v2447 = vmul.f32 %v2383, 0.044715
        %v2448 = vmul.f32 %v2384, 0.044715
        %v2449 = vmul.f32 %v2385, 0.044715
        %v2450 = vmul.f32 %v2386, 0.044715
        %v2451 = vmul.f32 %v2387, 0.044715
        %v2452 = vmul.f32 %v2388, 0.044715
        %v2453 = vmul.f32 %v2389, 0.044715
        %v2454 = vmul.f32 %v2390, 0.044715
        %v2455 = vmul.f32 %v2391, 0.044715
        %v2456 = vmul.f32 %v2392, 0.044715
        %v2457 = vmul.f32 %v2393, 0.044715
        %v2458 = vmul.f32 %v2394, 0.044715
        %v2459 = vmul.f32 %v2395, 0.044715
        %v2460 = vmul.f32 %v2396, 0.044715
        %v2461 = vmul.f32 %v2397, 0.044715
        %v2462 = vmul.f32 %v2398, 0.044715
        %v2463 = vmul.f32 %v2399, 0.044715
        %v2464 = vmul.f32 %v2400, 0.044715
        %v2465 = vmul.f32 %v2401, 0.044715
        %v2466 = vmul.f32 %v2402, 0.044715
        %v2467 = vmul.f32 %v2403, 0.044715
        %v2468 = vmul.f32 %v2404, 0.044715
        %v2469 = vmul.f32 %v2405, 0.044715
        %v2470 = vmul.f32 %v2406, 0.044715
        %v2471 = vadd.f32 %v2093, %v2407
        %v2472 = vadd.f32 %v2142, %v2408
        %v2473 = vadd.f32 %v2191, %v2409
        %v2474 = vadd.f32 %v2240, %v2410
        %v2475 = vadd.f32 %v2095, %v2411
        %v2476 = vadd.f32 %v2144, %v2412
        %v2477 = vadd.f32 %v2193, %v2413
        %v2478 = vadd.f32 %v2242, %v2414
        %v2479 = vadd.f32 %v2098, %v2415
        %v2480 = vadd.f32 %v2147, %v2416
        %v2481 = vadd.f32 %v2196, %v2417
        %v2482 = vadd.f32 %v2245, %v2418
        %v2483 = vadd.f32 %v2100, %v2419
        %v2484 = vadd.f32 %v2149, %v2420
        %v2485 = vadd.f32 %v2198, %v2421
        %v2486 = vadd.f32 %v2247, %v2422
        %v2487 = vadd.f32 %v2103, %v2423
        %v2488 = vadd.f32 %v2152, %v2424
        %v2489 = vadd.f32 %v2201, %v2425
        %v2490 = vadd.f32 %v2250, %v2426
        %v2491 = vadd.f32 %v2105, %v2427
        %v2492 = vadd.f32 %v2154, %v2428
        %v2493 = vadd.f32 %v2203, %v2429
        %v2494 = vadd.f32 %v2252, %v2430
        %v2495 = vadd.f32 %v2108, %v2431
        %v2496 = vadd.f32 %v2157, %v2432
        %v2497 = vadd.f32 %v2206, %v2433
        %v2498 = vadd.f32 %v2255, %v2434
        %v2499 = vadd.f32 %v2110, %v2435
        %v2500 = vadd.f32 %v2159, %v2436
        %v2501 = vadd.f32 %v2208, %v2437
        %v2502 = vadd.f32 %v2257, %v2438
        %v2503 = vadd.f32 %v2113, %v2439
        %v2504 = vadd.f32 %v2162, %v2440
        %v2505 = vadd.f32 %v2211, %v2441
        %v2506 = vadd.f32 %v2260, %v2442
        %v2507 = vadd.f32 %v2115, %v2443
        %v2508 = vadd.f32 %v2164, %v2444
        %v2509 = vadd.f32 %v2213, %v2445
        %v2510 = vadd.f32 %v2262, %v2446
        %v2511 = vadd.f32 %v2118, %v2447
        %v2512 = vadd.f32 %v2167, %v2448
        %v2513 = vadd.f32 %v2216, %v2449
        %v2514 = vadd.f32 %v2265, %v2450
        %v2515 = vadd.f32 %v2120, %v2451
        %v2516 = vadd.f32 %v2169, %v2452
        %v2517 = vadd.f32 %v2218, %v2453
        %v2518 = vadd.f32 %v2267, %v2454
        %v2519 = vadd.f32 %v2123, %v2455
        %v2520 = vadd.f32 %v2172, %v2456
        %v2521 = vadd.f32 %v2221, %v2457
        %v2522 = vadd.f32 %v2270, %v2458
        %v2523 = vadd.f32 %v2125, %v2459
        %v2524 = vadd.f32 %v2174, %v2460
        %v2525 = vadd.f32 %v2223, %v2461
        %v2526 = vadd.f32 %v2272, %v2462
        %v2527 = vadd.f32 %v2128, %v2463
        %v2528 = vadd.f32 %v2177, %v2464
        %v2529 = vadd.f32 %v2226, %v2465
        %v2530 = vadd.f32 %v2275, %v2466
        %v2531 = vadd.f32 %v2130, %v2467
        %v2532 = vadd.f32 %v2179, %v2468
        %v2533 = vadd.f32 %v2228, %v2469
        %v2534 = vadd.f32 %v2277, %v2470
        %v2535 = vmul.f32 %v2471, 0.7978846
        %v2536 = vmul.f32 %v2472, 0.7978846
        %v2537 = vmul.f32 %v2473, 0.7978846
        %v2538 = vmul.f32 %v2474, 0.7978846
        %v2539 = vmul.f32 %v2475, 0.7978846
        %v2540 = vmul.f32 %v2476, 0.7978846
        %v2541 = vmul.f32 %v2477, 0.7978846
        %v2542 = vmul.f32 %v2478, 0.7978846
        %v2543 = vmul.f32 %v2479, 0.7978846
        %v2544 = vmul.f32 %v2480, 0.7978846
        %v2545 = vmul.f32 %v2481, 0.7978846
        %v2546 = vmul.f32 %v2482, 0.7978846
        %v2547 = vmul.f32 %v2483, 0.7978846
        %v2548 = vmul.f32 %v2484, 0.7978846
        %v2549 = vmul.f32 %v2485, 0.7978846
        %v2550 = vmul.f32 %v2486, 0.7978846
        %v2551 = vmul.f32 %v2487, 0.7978846
        %v2552 = vmul.f32 %v2488, 0.7978846
        %v2553 = vmul.f32 %v2489, 0.7978846
        %v2554 = vmul.f32 %v2490, 0.7978846
        %v2555 = vmul.f32 %v2491, 0.7978846
        %v2556 = vmul.f32 %v2492, 0.7978846
        %v2557 = vmul.f32 %v2493, 0.7978846
        %v2558 = vmul.f32 %v2494, 0.7978846
        %v2559 = vmul.f32 %v2495, 0.7978846
        %v2560 = vmul.f32 %v2496, 0.7978846
        %v2561 = vmul.f32 %v2497, 0.7978846
        %v2562 = vmul.f32 %v2498, 0.7978846
        %v2563 = vmul.f32 %v2499, 0.7978846
        %v2564 = vmul.f32 %v2500, 0.7978846
        %v2565 = vmul.f32 %v2501, 0.7978846
        %v2566 = vmul.f32 %v2502, 0.7978846
        %v2567 = vmul.f32 %v2503, 0.7978846
        %v2568 = vmul.f32 %v2504, 0.7978846
        %v2569 = vmul.f32 %v2505, 0.7978846
        %v2570 = vmul.f32 %v2506, 0.7978846
        %v2571 = vmul.f32 %v2507, 0.7978846
        %v2572 = vmul.f32 %v2508, 0.7978846
        %v2573 = vmul.f32 %v2509, 0.7978846
        %v2574 = vmul.f32 %v2510, 0.7978846
        %v2575 = vmul.f32 %v2511, 0.7978846
        %v2576 = vmul.f32 %v2512, 0.7978846
        %v2577 = vmul.f32 %v2513, 0.7978846
        %v2578 = vmul.f32 %v2514, 0.7978846
        %v2579 = vmul.f32 %v2515, 0.7978846
        %v2580 = vmul.f32 %v2516, 0.7978846
        %v2581 = vmul.f32 %v2517, 0.7978846
        %v2582 = vmul.f32 %v2518, 0.7978846
        %v2583 = vmul.f32 %v2519, 0.7978846
        %v2584 = vmul.f32 %v2520, 0.7978846
        %v2585 = vmul.f32 %v2521, 0.7978846
        %v2586 = vmul.f32 %v2522, 0.7978846
        %v2587 = vmul.f32 %v2523, 0.7978846
        %v2588 = vmul.f32 %v2524, 0.7978846
        %v2589 = vmul.f32 %v2525, 0.7978846
        %v2590 = vmul.f32 %v2526, 0.7978846
        %v2591 = vmul.f32 %v2527, 0.7978846
        %v2592 = vmul.f32 %v2528, 0.7978846
        %v2593 = vmul.f32 %v2529, 0.7978846
        %v2594 = vmul.f32 %v2530, 0.7978846
        %v2595 = vmul.f32 %v2531, 0.7978846
        %v2596 = vmul.f32 %v2532, 0.7978846
        %v2597 = vmul.f32 %v2533, 0.7978846
        %v2598 = vmul.f32 %v2534, 0.7978846
        %v2599 = vtanh.pop %v2535
        %v2600 = vtanh.pop %v2536
        %v2601 = vtanh.pop %v2537
        %v2602 = vtanh.pop %v2538
        %v2603 = vtanh.pop %v2539
        %v2604 = vtanh.pop %v2540
        %v2605 = vtanh.pop %v2541
        %v2606 = vtanh.pop %v2542
        %v2607 = vtanh.pop %v2543
        %v2608 = vtanh.pop %v2544
        %v2609 = vtanh.pop %v2545
        %v2610 = vtanh.pop %v2546
        %v2611 = vtanh.pop %v2547
        %v2612 = vtanh.pop %v2548
        %v2613 = vtanh.pop %v2549
        %v2614 = vtanh.pop %v2550
        %v2615 = vtanh.pop %v2551
        %v2616 = vtanh.pop %v2552
        %v2617 = vtanh.pop %v2553
        %v2618 = vtanh.pop %v2554
        %v2619 = vtanh.pop %v2555
        %v2620 = vtanh.pop %v2556
        %v2621 = vtanh.pop %v2557
        %v2622 = vtanh.pop %v2558
        %v2623 = vtanh.pop %v2559
        %v2624 = vtanh.pop %v2560
        %v2625 = vtanh.pop %v2561
        %v2626 = vtanh.pop %v2562
        %v2627 = vtanh.pop %v2563
        %v2628 = vtanh.pop %v2564
        %v2629 = vtanh.pop %v2565
        %v2630 = vtanh.pop %v2566
        %v2631 = vtanh.pop %v2567
        %v2632 = vtanh.pop %v2568
        %v2633 = vtanh.pop %v2569
        %v2634 = vtanh.pop %v2570
        %v2635 = vtanh.pop %v2571
        %v2636 = vtanh.pop %v2572
        %v2637 = vtanh.pop %v2573
        %v2638 = vtanh.pop %v2574
        %v2639 = vtanh.pop %v2575
        %v2640 = vtanh.pop %v2576
        %v2641 = vtanh.pop %v2577
        %v2642 = vtanh.pop %v2578
        %v2643 = vtanh.pop %v2579
        %v2644 = vtanh.pop %v2580
        %v2645 = vtanh.pop %v2581
        %v2646 = vtanh.pop %v2582
        %v2647 = vtanh.pop %v2583
        %v2648 = vtanh.pop %v2584
        %v2649 = vtanh.pop %v2585
        %v2650 = vtanh.pop %v2586
        %v2651 = vtanh.pop %v2587
        %v2652 = vtanh.pop %v2588
        %v2653 = vtanh.pop %v2589
        %v2654 = vtanh.pop %v2590
        %v2655 = vtanh.pop %v2591
        %v2656 = vtanh.pop %v2592
        %v2657 = vtanh.pop %v2593
        %v2658 = vtanh.pop %v2594
        %v2659 = vtanh.pop %v2595
        %v2660 = vtanh.pop %v2596
        %v2661 = vtanh.pop %v2597
        %v2662 = vtanh.pop %v2598
        %v2663 = vadd.f32 %v2599, 1.0
        %v2664 = vadd.f32 %v2600, 1.0
        %v2665 = vadd.f32 %v2601, 1.0
        %v2666 = vadd.f32 %v2602, 1.0
        %v2667 = vadd.f32 %v2603, 1.0
        %v2668 = vadd.f32 %v2604, 1.0
        %v2669 = vadd.f32 %v2605, 1.0
        %v2670 = vadd.f32 %v2606, 1.0
        %v2671 = vadd.f32 %v2607, 1.0
        %v2672 = vadd.f32 %v2608, 1.0
        %v2673 = vadd.f32 %v2609, 1.0
        %v2674 = vadd.f32 %v2610, 1.0
        %v2675 = vadd.f32 %v2611, 1.0
        %v2676 = vadd.f32 %v2612, 1.0
        %v2677 = vadd.f32 %v2613, 1.0
        %v2678 = vadd.f32 %v2614, 1.0
        %v2679 = vadd.f32 %v2615, 1.0
        %v2680 = vadd.f32 %v2616, 1.0
        %v2681 = vadd.f32 %v2617, 1.0
        %v2682 = vadd.f32 %v2618, 1.0
        %v2683 = vadd.f32 %v2619, 1.0
        %v2684 = vadd.f32 %v2620, 1.0
        %v2685 = vadd.f32 %v2621, 1.0
        %v2686 = vadd.f32 %v2622, 1.0
        %v2687 = vadd.f32 %v2623, 1.0
        %v2688 = vadd.f32 %v2624, 1.0
        %v2689 = vadd.f32 %v2625, 1.0
        %v2690 = vadd.f32 %v2626, 1.0
        %v2691 = vadd.f32 %v2627, 1.0
        %v2692 = vadd.f32 %v2628, 1.0
        %v2693 = vadd.f32 %v2629, 1.0
        %v2694 = vadd.f32 %v2630, 1.0
        %v2695 = vadd.f32 %v2631, 1.0
        %v2696 = vadd.f32 %v2632, 1.0
        %v2697 = vadd.f32 %v2633, 1.0
        %v2698 = vadd.f32 %v2634, 1.0
        %v2699 = vadd.f32 %v2635, 1.0
        %v2700 = vadd.f32 %v2636, 1.0
        %v2701 = vadd.f32 %v2637, 1.0
        %v2702 = vadd.f32 %v2638, 1.0
        %v2703 = vadd.f32 %v2639, 1.0
        %v2704 = vadd.f32 %v2640, 1.0
        %v2705 = vadd.f32 %v2641, 1.0
        %v2706 = vadd.f32 %v2642, 1.0
        %v2707 = vadd.f32 %v2643, 1.0
        %v2708 = vadd.f32 %v2644, 1.0
        %v2709 = vadd.f32 %v2645, 1.0
        %v2710 = vadd.f32 %v2646, 1.0
        %v2711 = vadd.f32 %v2647, 1.0
        %v2712 = vadd.f32 %v2648, 1.0
        %v2713 = vadd.f32 %v2649, 1.0
        %v2714 = vadd.f32 %v2650, 1.0
        %v2715 = vadd.f32 %v2651, 1.0
        %v2716 = vadd.f32 %v2652, 1.0
        %v2717 = vadd.f32 %v2653, 1.0
        %v2718 = vadd.f32 %v2654, 1.0
        %v2719 = vadd.f32 %v2655, 1.0
        %v2720 = vadd.f32 %v2656, 1.0
        %v2721 = vadd.f32 %v2657, 1.0
        %v2722 = vadd.f32 %v2658, 1.0
        %v2723 = vadd.f32 %v2659, 1.0
        %v2724 = vadd.f32 %v2660, 1.0
        %v2725 = vadd.f32 %v2661, 1.0
        %v2726 = vadd.f32 %v2662, 1.0
        %v2727 = vmul.f32 %v2663, 0.5
        %v2728 = vmul.f32 %v2664, 0.5
        %v2729 = vmul.f32 %v2665, 0.5
        %v2730 = vmul.f32 %v2666, 0.5
        %v2731 = vmul.f32 %v2667, 0.5
        %v2732 = vmul.f32 %v2668, 0.5
        %v2733 = vmul.f32 %v2669, 0.5
        %v2734 = vmul.f32 %v2670, 0.5
        %v2735 = vmul.f32 %v2671, 0.5
        %v2736 = vmul.f32 %v2672, 0.5
        %v2737 = vmul.f32 %v2673, 0.5
        %v2738 = vmul.f32 %v2674, 0.5
        %v2739 = vmul.f32 %v2675, 0.5
        %v2740 = vmul.f32 %v2676, 0.5
        %v2741 = vmul.f32 %v2677, 0.5
        %v2742 = vmul.f32 %v2678, 0.5
        %v2743 = vmul.f32 %v2679, 0.5
        %v2744 = vmul.f32 %v2680, 0.5
        %v2745 = vmul.f32 %v2681, 0.5
        %v2746 = vmul.f32 %v2682, 0.5
        %v2747 = vmul.f32 %v2683, 0.5
        %v2748 = vmul.f32 %v2684, 0.5
        %v2749 = vmul.f32 %v2685, 0.5
        %v2750 = vmul.f32 %v2686, 0.5
        %v2751 = vmul.f32 %v2687, 0.5
        %v2752 = vmul.f32 %v2688, 0.5
        %v2753 = vmul.f32 %v2689, 0.5
        %v2754 = vmul.f32 %v2690, 0.5
        %v2755 = vmul.f32 %v2691, 0.5
        %v2756 = vmul.f32 %v2692, 0.5
        %v2757 = vmul.f32 %v2693, 0.5
        %v2758 = vmul.f32 %v2694, 0.5
        %v2759 = vmul.f32 %v2695, 0.5
        %v2760 = vmul.f32 %v2696, 0.5
        %v2761 = vmul.f32 %v2697, 0.5
        %v2762 = vmul.f32 %v2698, 0.5
        %v2763 = vmul.f32 %v2699, 0.5
        %v2764 = vmul.f32 %v2700, 0.5
        %v2765 = vmul.f32 %v2701, 0.5
        %v2766 = vmul.f32 %v2702, 0.5
        %v2767 = vmul.f32 %v2703, 0.5
        %v2768 = vmul.f32 %v2704, 0.5
        %v2769 = vmul.f32 %v2705, 0.5
        %v2770 = vmul.f32 %v2706, 0.5
        %v2771 = vmul.f32 %v2707, 0.5
        %v2772 = vmul.f32 %v2708, 0.5
        %v2773 = vmul.f32 %v2709, 0.5
        %v2774 = vmul.f32 %v2710, 0.5
        %v2775 = vmul.f32 %v2711, 0.5
        %v2776 = vmul.f32 %v2712, 0.5
        %v2777 = vmul.f32 %v2713, 0.5
        %v2778 = vmul.f32 %v2714, 0.5
        %v2779 = vmul.f32 %v2715, 0.5
        %v2780 = vmul.f32 %v2716, 0.5
        %v2781 = vmul.f32 %v2717, 0.5
        %v2782 = vmul.f32 %v2718, 0.5
        %v2783 = vmul.f32 %v2719, 0.5
        %v2784 = vmul.f32 %v2720, 0.5
        %v2785 = vmul.f32 %v2721, 0.5
        %v2786 = vmul.f32 %v2722, 0.5
        %v2787 = vmul.f32 %v2723, 0.5
        %v2788 = vmul.f32 %v2724, 0.5
        %v2789 = vmul.f32 %v2725, 0.5
        %v2790 = vmul.f32 %v2726, 0.5
        %v2791 = vmul.f32 %v2093, %v2727
        %v2792 = vmul.f32 %v2142, %v2728
        %v2793 = vmul.f32 %v2191, %v2729
        %v2794 = vmul.f32 %v2240, %v2730
        %v2795 = vmul.f32 %v2095, %v2731
        %v2796 = vmul.f32 %v2144, %v2732
        %v2797 = vmul.f32 %v2193, %v2733
        %v2798 = vmul.f32 %v2242, %v2734
        %v2799 = vmul.f32 %v2098, %v2735
        %v2800 = vmul.f32 %v2147, %v2736
        %v2801 = vmul.f32 %v2196, %v2737
        %v2802 = vmul.f32 %v2245, %v2738
        %v2803 = vmul.f32 %v2100, %v2739
        %v2804 = vmul.f32 %v2149, %v2740
        %v2805 = vmul.f32 %v2198, %v2741
        %v2806 = vmul.f32 %v2247, %v2742
        %v2807 = vmul.f32 %v2103, %v2743
        %v2808 = vmul.f32 %v2152, %v2744
        %v2809 = vmul.f32 %v2201, %v2745
        %v2810 = vmul.f32 %v2250, %v2746
        %v2811 = vmul.f32 %v2105, %v2747
        %v2812 = vmul.f32 %v2154, %v2748
        %v2813 = vmul.f32 %v2203, %v2749
        %v2814 = vmul.f32 %v2252, %v2750
        %v2815 = vmul.f32 %v2108, %v2751
        %v2816 = vmul.f32 %v2157, %v2752
        %v2817 = vmul.f32 %v2206, %v2753
        %v2818 = vmul.f32 %v2255, %v2754
        %v2819 = vmul.f32 %v2110, %v2755
        %v2820 = vmul.f32 %v2159, %v2756
        %v2821 = vmul.f32 %v2208, %v2757
        %v2822 = vmul.f32 %v2257, %v2758
        %v2823 = vmul.f32 %v2113, %v2759
        %v2824 = vmul.f32 %v2162, %v2760
        %v2825 = vmul.f32 %v2211, %v2761
        %v2826 = vmul.f32 %v2260, %v2762
        %v2827 = vmul.f32 %v2115, %v2763
        %v2828 = vmul.f32 %v2164, %v2764
        %v2829 = vmul.f32 %v2213, %v2765
        %v2830 = vmul.f32 %v2262, %v2766
        %v2831 = vmul.f32 %v2118, %v2767
        %v2832 = vmul.f32 %v2167, %v2768
        %v2833 = vmul.f32 %v2216, %v2769
        %v2834 = vmul.f32 %v2265, %v2770
        %v2835 = vmul.f32 %v2120, %v2771
        %v2836 = vmul.f32 %v2169, %v2772
        %v2837 = vmul.f32 %v2218, %v2773
        %v2838 = vmul.f32 %v2267, %v2774
        %v2839 = vmul.f32 %v2123, %v2775
        %v2840 = vmul.f32 %v2172, %v2776
        %v2841 = vmul.f32 %v2221, %v2777
        %v2842 = vmul.f32 %v2270, %v2778
        %v2843 = vmul.f32 %v2125, %v2779
        %v2844 = vmul.f32 %v2174, %v2780
        %v2845 = vmul.f32 %v2223, %v2781
        %v2846 = vmul.f32 %v2272, %v2782
        %v2847 = vmul.f32 %v2128, %v2783
        %v2848 = vmul.f32 %v2177, %v2784
        %v2849 = vmul.f32 %v2226, %v2785
        %v2850 = vmul.f32 %v2275, %v2786
        %v2851 = vmul.f32 %v2130, %v2787
        %v2852 = vmul.f32 %v2179, %v2788
        %v2853 = vmul.f32 %v2228, %v2789
        %v2854 = vmul.f32 %v2277, %v2790
        %v2855 = vpack.c.bf16 %v2795, %v2791
        %v2856 = vpack.c.bf16 %v2796, %v2792
        %v2857 = vpack.c.bf16 %v2797, %v2793
        %v2858 = vpack.c.bf16 %v2798, %v2794
        %v2859 = vpack.c.bf16 %v2803, %v2799
        %v2860 = vpack.c.bf16 %v2804, %v2800
        %v2861 = vpack.c.bf16 %v2805, %v2801
        %v2862 = vpack.c.bf16 %v2806, %v2802
        %v2863 = vpack.c.bf16 %v2811, %v2807
        %v2864 = vpack.c.bf16 %v2812, %v2808
        %v2865 = vpack.c.bf16 %v2813, %v2809
        %v2866 = vpack.c.bf16 %v2814, %v2810
        %v2867 = vpack.c.bf16 %v2819, %v2815
        %v2868 = vpack.c.bf16 %v2820, %v2816
        %v2869 = vpack.c.bf16 %v2821, %v2817
        %v2870 = vpack.c.bf16 %v2822, %v2818
        %v2871 = vpack.c.bf16 %v2827, %v2823
        %v2872 = vpack.c.bf16 %v2828, %v2824
        %v2873 = vpack.c.bf16 %v2829, %v2825
        %v2874 = vpack.c.bf16 %v2830, %v2826
        %v2875 = vpack.c.bf16 %v2835, %v2831
        %v2876 = vpack.c.bf16 %v2836, %v2832
        %v2877 = vpack.c.bf16 %v2837, %v2833
        %v2878 = vpack.c.bf16 %v2838, %v2834
        %v2879 = vpack.c.bf16 %v2843, %v2839
        %v2880 = vpack.c.bf16 %v2844, %v2840
        %v2881 = vpack.c.bf16 %v2845, %v2841
        %v2882 = vpack.c.bf16 %v2846, %v2842
        %v2883 = vpack.c.bf16 %v2851, %v2847
        %v2884 = vpack.c.bf16 %v2852, %v2848
        %v2885 = vpack.c.bf16 %v2853, %v2849
        %v2886 = vpack.c.bf16 %v2854, %v2850
        %v2887 = vld [vmem:[%s693] sm:$0xf]
        %v2888 = vld [vmem:[%s693 + $0x4] sm:$0xf]
        %v2889 = vld [vmem:[%s693 + $0x8] sm:$0xf]
        %v2890 = vld [vmem:[%s693 + $0xc] sm:$0xf]
        %v2891 = vld [vmem:[%s693 + $0x10] sm:$0xf]
        %v2892 = vld [vmem:[%s693 + $0x14] sm:$0xf]
        %v2893 = vld [vmem:[%s693 + $0x18] sm:$0xf]
        %v2894 = vld [vmem:[%s693 + $0x1c] sm:$0xf]
        %v2895 = vld [vmem:[%s693 + $0x20] sm:$0xf]
        %v2896 = vld [vmem:[%s693 + $0x24] sm:$0xf]
        %v2897 = vld [vmem:[%s693 + $0x28] sm:$0xf]
        %v2898 = vld [vmem:[%s693 + $0x2c] sm:$0xf]
        %v2899 = vld [vmem:[%s693 + $0x30] sm:$0xf]
        %v2900 = vld [vmem:[%s693 + $0x34] sm:$0xf]
        %v2901 = vld [vmem:[%s693 + $0x38] sm:$0xf]
        %v2902 = vld [vmem:[%s693 + $0x3c] sm:$0xf]
        %v2903 = vld [vmem:[%s693 + $0x40] sm:$0xf]
        %v2904 = vld [vmem:[%s693 + $0x44] sm:$0xf]
        %v2905 = vld [vmem:[%s693 + $0x48] sm:$0xf]
        %v2906 = vld [vmem:[%s693 + $0x4c] sm:$0xf]
        %v2907 = vld [vmem:[%s693 + $0x50] sm:$0xf]
        %v2908 = vld [vmem:[%s693 + $0x54] sm:$0xf]
        %v2909 = vld [vmem:[%s693 + $0x58] sm:$0xf]
        %v2910 = vld [vmem:[%s693 + $0x5c] sm:$0xf]
        %v2911 = vld [vmem:[%s693 + $0x60] sm:$0xf]
        %v2912 = vld [vmem:[%s693 + $0x64] sm:$0xf]
        %v2913 = vld [vmem:[%s693 + $0x68] sm:$0xf]
        %v2914 = vld [vmem:[%s693 + $0x6c] sm:$0xf]
        %v2915 = vld [vmem:[%s693 + $0x70] sm:$0xf]
        %v2916 = vld [vmem:[%s693 + $0x74] sm:$0xf]
        %v2917 = vld [vmem:[%s693 + $0x78] sm:$0xf]
        %v2918 = vld [vmem:[%s693 + $0x7c] sm:$0xf]
        %v2919 = vld [vmem:[%s693 + $0x80] sm:$0xf]
        %v2920 = vld [vmem:[%s693 + $0x84] sm:$0xf]
        %v2921 = vld [vmem:[%s693 + $0x88] sm:$0xf]
        %v2922 = vld [vmem:[%s693 + $0x8c] sm:$0xf]
        %v2923 = vld [vmem:[%s693 + $0x90] sm:$0xf]
        %v2924 = vld [vmem:[%s693 + $0x94] sm:$0xf]
        %v2925 = vld [vmem:[%s693 + $0x98] sm:$0xf]
        %v2926 = vld [vmem:[%s693 + $0x9c] sm:$0xf]
        %v2927 = vld [vmem:[%s693 + $0xa0] sm:$0xf]
        %v2928 = vld [vmem:[%s693 + $0xa4] sm:$0xf]
        %v2929 = vld [vmem:[%s693 + $0xa8] sm:$0xf]
        %v2930 = vld [vmem:[%s693 + $0xac] sm:$0xf]
        %v2931 = vld [vmem:[%s693 + $0xb0] sm:$0xf]
        %v2932 = vld [vmem:[%s693 + $0xb4] sm:$0xf]
        %v2933 = vld [vmem:[%s693 + $0xb8] sm:$0xf]
        %v2934 = vld [vmem:[%s693 + $0xbc] sm:$0xf]
        %v2935 = vld [vmem:[%s693 + $0xc0] sm:$0xf]
        %v2936 = vld [vmem:[%s693 + $0xc4] sm:$0xf]
        %v2937 = vld [vmem:[%s693 + $0xc8] sm:$0xf]
        %v2938 = vld [vmem:[%s693 + $0xcc] sm:$0xf]
        %v2939 = vld [vmem:[%s693 + $0xd0] sm:$0xf]
        %v2940 = vld [vmem:[%s693 + $0xd4] sm:$0xf]
        %v2941 = vld [vmem:[%s693 + $0xd8] sm:$0xf]
        %v2942 = vld [vmem:[%s693 + $0xdc] sm:$0xf]
        %v2943 = vld [vmem:[%s693 + $0xe0] sm:$0xf]
        %v2944 = vld [vmem:[%s693 + $0xe4] sm:$0xf]
        %v2945 = vld [vmem:[%s693 + $0xe8] sm:$0xf]
        %v2946 = vld [vmem:[%s693 + $0xec] sm:$0xf]
        %v2947 = vld [vmem:[%s693 + $0xf0] sm:$0xf]
        %v2948 = vld [vmem:[%s693 + $0xf4] sm:$0xf]
        %v2949 = vld [vmem:[%s693 + $0xf8] sm:$0xf]
        %v2950 = vld [vmem:[%s693 + $0xfc] sm:$0xf]
        %v2951 = vld [vmem:[%s791] sm:$0x1]
        %v2953 = vperm.slane %v2951, 0
        %v3019 = vunpack.c.l.b16 %v2887
        %v3020 = vunpack.c.l.b16 %v2888
        %v3021 = vunpack.c.l.b16 %v2889
        %v3022 = vunpack.c.l.b16 %v2890
        %v3023 = vunpack.c.l.b16 %v2891
        %v3024 = vunpack.c.l.b16 %v2892
        %v3025 = vunpack.c.l.b16 %v2893
        %v3026 = vunpack.c.l.b16 %v2894
        %v3027 = vunpack.c.l.b16 %v2895
        %v3028 = vunpack.c.l.b16 %v2896
        %v3029 = vunpack.c.l.b16 %v2897
        %v3030 = vunpack.c.l.b16 %v2898
        %v3031 = vunpack.c.l.b16 %v2899
        %v3032 = vunpack.c.l.b16 %v2900
        %v3033 = vunpack.c.l.b16 %v2901
        %v3034 = vunpack.c.l.b16 %v2902
        %v3035 = vunpack.c.l.b16 %v2903
        %v3036 = vunpack.c.l.b16 %v2904
        %v3037 = vunpack.c.l.b16 %v2905
        %v3038 = vunpack.c.l.b16 %v2906
        %v3039 = vunpack.c.l.b16 %v2907
        %v3040 = vunpack.c.l.b16 %v2908
        %v3041 = vunpack.c.l.b16 %v2909
        %v3042 = vunpack.c.l.b16 %v2910
        %v3043 = vunpack.c.l.b16 %v2911
        %v3044 = vunpack.c.l.b16 %v2912
        %v3045 = vunpack.c.l.b16 %v2913
        %v3046 = vunpack.c.l.b16 %v2914
        %v3047 = vunpack.c.l.b16 %v2915
        %v3048 = vunpack.c.l.b16 %v2916
        %v3049 = vunpack.c.l.b16 %v2917
        %v3050 = vunpack.c.l.b16 %v2918
        %v3051 = vunpack.c.l.b16 %v2919
        %v3052 = vunpack.c.l.b16 %v2920
        %v3053 = vunpack.c.l.b16 %v2921
        %v3054 = vunpack.c.l.b16 %v2922
        %v3055 = vunpack.c.l.b16 %v2923
        %v3056 = vunpack.c.l.b16 %v2924
        %v3057 = vunpack.c.l.b16 %v2925
        %v3058 = vunpack.c.l.b16 %v2926
        %v3059 = vunpack.c.l.b16 %v2927
        %v3060 = vunpack.c.l.b16 %v2928
        %v3061 = vunpack.c.l.b16 %v2929
        %v3062 = vunpack.c.l.b16 %v2930
        %v3063 = vunpack.c.l.b16 %v2931
        %v3064 = vunpack.c.l.b16 %v2932
        %v3065 = vunpack.c.l.b16 %v2933
        %v3066 = vunpack.c.l.b16 %v2934
        %v3067 = vunpack.c.l.b16 %v2935
        %v3068 = vunpack.c.l.b16 %v2936
        %v3069 = vunpack.c.l.b16 %v2937
        %v3070 = vunpack.c.l.b16 %v2938
        %v3071 = vunpack.c.l.b16 %v2939
        %v3072 = vunpack.c.l.b16 %v2940
        %v3073 = vunpack.c.l.b16 %v2941
        %v3074 = vunpack.c.l.b16 %v2942
        %v3075 = vunpack.c.l.b16 %v2943
        %v3076 = vunpack.c.l.b16 %v2944
        %v3077 = vunpack.c.l.b16 %v2945
        %v3078 = vunpack.c.l.b16 %v2946
        %v3079 = vunpack.c.l.b16 %v2947
        %v3080 = vunpack.c.l.b16 %v2948
        %v3081 = vunpack.c.l.b16 %v2949
        %v3082 = vunpack.c.l.b16 %v2950
        %v3083 = vpack.c.b16 %v3020, %v3019
        %v3084 = vpack.c.b16 %v3022, %v3021
        %v3085 = vpack.c.b16 %v3024, %v3023
        %v3086 = vpack.c.b16 %v3026, %v3025
        %v3087 = vpack.c.b16 %v3028, %v3027
        %v3088 = vpack.c.b16 %v3030, %v3029
        %v3089 = vpack.c.b16 %v3032, %v3031
        %v3090 = vpack.c.b16 %v3034, %v3033
        %v3091 = vpack.c.b16 %v3036, %v3035
        %v3092 = vpack.c.b16 %v3038, %v3037
        %v3093 = vpack.c.b16 %v3040, %v3039
        %v3094 = vpack.c.b16 %v3042, %v3041
        %v3095 = vpack.c.b16 %v3044, %v3043
        %v3096 = vpack.c.b16 %v3046, %v3045
        %v3097 = vpack.c.b16 %v3048, %v3047
        %v3098 = vpack.c.b16 %v3050, %v3049
        %v3099 = vpack.c.b16 %v3052, %v3051
        %v3100 = vpack.c.b16 %v3054, %v3053
        %v3101 = vpack.c.b16 %v3056, %v3055
        %v3102 = vpack.c.b16 %v3058, %v3057
        %v3103 = vpack.c.b16 %v3060, %v3059
        %v3104 = vpack.c.b16 %v3062, %v3061
        %v3105 = vpack.c.b16 %v3064, %v3063
        %v3106 = vpack.c.b16 %v3066, %v3065
        %v3107 = vpack.c.b16 %v3068, %v3067
        %v3108 = vpack.c.b16 %v3070, %v3069
        %v3109 = vpack.c.b16 %v3072, %v3071
        %v3110 = vpack.c.b16 %v3074, %v3073
        %v3111 = vpack.c.b16 %v3076, %v3075
        %v3112 = vpack.c.b16 %v3078, %v3077
        %v3113 = vpack.c.b16 %v3080, %v3079
        %v3114 = vpack.c.b16 %v3082, %v3081
        %3147 = vmatpush.bf16.msra.mxu0 %v3090
        %3148 = vmatpush.bf16.msra.mxu0 %v3089
        %3149 = vmatpush.bf16.msra.mxu0 %v3088
        %3150 = vmatpush.bf16.msra.mxu0 %v3087
        %3151 = vmatpush.bf16.msra.mxu0 %v3086
        %3152 = vmatpush.bf16.msra.mxu0 %v3085
        %3153 = vmatpush.bf16.msra.mxu0 %v3084
        %3154 = vmatpush.bf16.msra.mxu0 %v3083
        %3155 = vmatmul.bf16.gmra.mxu0 %v2855
        %v3156 = vpop.f32.mrf.mxu0
        %v3157 = vadd.f32 %v2953, %v3156
        %v3158 = vpop.f32.mrf.mxu0
        %v3159 = vadd.f32 %v2953, %v3158
        %3160 = vmatmul.bf16.gmra.mxu0 %v2859
        %v3161 = vpop.f32.mrf.mxu0
        %v3162 = vadd.f32 %v2953, %v3161
        %v3163 = vpop.f32.mrf.mxu0
        %v3164 = vadd.f32 %v2953, %v3163
        %3165 = vmatmul.bf16.gmra.mxu0 %v2863
        %v3166 = vpop.f32.mrf.mxu0
        %v3167 = vadd.f32 %v2953, %v3166
        %v3168 = vpop.f32.mrf.mxu0
        %v3169 = vadd.f32 %v2953, %v3168
        %3170 = vmatmul.bf16.gmra.mxu0 %v2867
        %v3171 = vpop.f32.mrf.mxu0
        %v3172 = vadd.f32 %v2953, %v3171
        %v3173 = vpop.f32.mrf.mxu0
        %v3174 = vadd.f32 %v2953, %v3173
        %3175 = vmatmul.bf16.gmra.mxu0 %v2871
        %v3176 = vpop.f32.mrf.mxu0
        %v3177 = vadd.f32 %v2953, %v3176
        %v3178 = vpop.f32.mrf.mxu0
        %v3179 = vadd.f32 %v2953, %v3178
        %3180 = vmatmul.bf16.gmra.mxu0 %v2875
        %v3181 = vpop.f32.mrf.mxu0
        %v3182 = vadd.f32 %v2953, %v3181
        %v3183 = vpop.f32.mrf.mxu0
        %v3184 = vadd.f32 %v2953, %v3183
        %3185 = vmatmul.bf16.gmra.mxu0 %v2879
        %v3186 = vpop.f32.mrf.mxu0
        %v3187 = vadd.f32 %v2953, %v3186
        %v3188 = vpop.f32.mrf.mxu0
        %v3189 = vadd.f32 %v2953, %v3188
        %3190 = vmatmul.bf16.gmra.mxu0 %v2883
        %v3191 = vpop.f32.mrf.mxu0
        %v3192 = vadd.f32 %v2953, %v3191
        %v3193 = vpop.f32.mrf.mxu0
        %v3194 = vadd.f32 %v2953, %v3193
        %3195 = vdwg.mxu0
        %3196 = vmatpush.bf16.msra.mxu0 %v3098
        %3197 = vmatpush.bf16.msra.mxu0 %v3097
        %3198 = vmatpush.bf16.msra.mxu0 %v3096
        %3199 = vmatpush.bf16.msra.mxu0 %v3095
        %3200 = vmatpush.bf16.msra.mxu0 %v3094
        %3201 = vmatpush.bf16.msra.mxu0 %v3093
        %3202 = vmatpush.bf16.msra.mxu0 %v3092
        %3203 = vmatpush.bf16.msra.mxu0 %v3091
        %3204 = vmatmul.bf16.gmra.mxu0 %v2856
        %v3205 = vpop.f32.mrf.mxu0
        %v3206 = vadd.f32 %v3157, %v3205
        %v3207 = vpop.f32.mrf.mxu0
        %v3208 = vadd.f32 %v3159, %v3207
        %3209 = vmatmul.bf16.gmra.mxu0 %v2860
        %v3210 = vpop.f32.mrf.mxu0
        %v3211 = vadd.f32 %v3162, %v3210
        %v3212 = vpop.f32.mrf.mxu0
        %v3213 = vadd.f32 %v3164, %v3212
        %3214 = vmatmul.bf16.gmra.mxu0 %v2864
        %v3215 = vpop.f32.mrf.mxu0
        %v3216 = vadd.f32 %v3167, %v3215
        %v3217 = vpop.f32.mrf.mxu0
        %v3218 = vadd.f32 %v3169, %v3217
        %3219 = vmatmul.bf16.gmra.mxu0 %v2868
        %v3220 = vpop.f32.mrf.mxu0
        %v3221 = vadd.f32 %v3172, %v3220
        %v3222 = vpop.f32.mrf.mxu0
        %v3223 = vadd.f32 %v3174, %v3222
        %3224 = vmatmul.bf16.gmra.mxu0 %v2872
        %v3225 = vpop.f32.mrf.mxu0
        %v3226 = vadd.f32 %v3177, %v3225
        %v3227 = vpop.f32.mrf.mxu0
        %v3228 = vadd.f32 %v3179, %v3227
        %3229 = vmatmul.bf16.gmra.mxu0 %v2876
        %v3230 = vpop.f32.mrf.mxu0
        %v3231 = vadd.f32 %v3182, %v3230
        %v3232 = vpop.f32.mrf.mxu0
        %v3233 = vadd.f32 %v3184, %v3232
        %3234 = vmatmul.bf16.gmra.mxu0 %v2880
        %v3235 = vpop.f32.mrf.mxu0
        %v3236 = vadd.f32 %v3187, %v3235
        %v3237 = vpop.f32.mrf.mxu0
        %v3238 = vadd.f32 %v3189, %v3237
        %3239 = vmatmul.bf16.gmra.mxu0 %v2884
        %v3240 = vpop.f32.mrf.mxu0
        %v3241 = vadd.f32 %v3192, %v3240
        %v3242 = vpop.f32.mrf.mxu0
        %v3243 = vadd.f32 %v3194, %v3242
        %3244 = vdwg.mxu0
        %3245 = vmatpush.bf16.msra.mxu0 %v3106
        %3246 = vmatpush.bf16.msra.mxu0 %v3105
        %3247 = vmatpush.bf16.msra.mxu0 %v3104
        %3248 = vmatpush.bf16.msra.mxu0 %v3103
        %3249 = vmatpush.bf16.msra.mxu0 %v3102
        %3250 = vmatpush.bf16.msra.mxu0 %v3101
        %3251 = vmatpush.bf16.msra.mxu0 %v3100
        %3252 = vmatpush.bf16.msra.mxu0 %v3099
        %3253 = vmatmul.bf16.gmra.mxu0 %v2857
        %v3254 = vpop.f32.mrf.mxu0
        %v3255 = vadd.f32 %v3206, %v3254
        %v3256 = vpop.f32.mrf.mxu0
        %v3257 = vadd.f32 %v3208, %v3256
        %3258 = vmatmul.bf16.gmra.mxu0 %v2861
        %v3259 = vpop.f32.mrf.mxu0
        %v3260 = vadd.f32 %v3211, %v3259
        %v3261 = vpop.f32.mrf.mxu0
        %v3262 = vadd.f32 %v3213, %v3261
        %3263 = vmatmul.bf16.gmra.mxu0 %v2865
        %v3264 = vpop.f32.mrf.mxu0
        %v3265 = vadd.f32 %v3216, %v3264
        %v3266 = vpop.f32.mrf.mxu0
        %v3267 = vadd.f32 %v3218, %v3266
        %3268 = vmatmul.bf16.gmra.mxu0 %v2869
        %v3269 = vpop.f32.mrf.mxu0
        %v3270 = vadd.f32 %v3221, %v3269
        %v3271 = vpop.f32.mrf.mxu0
        %v3272 = vadd.f32 %v3223, %v3271
        %3273 = vmatmul.bf16.gmra.mxu0 %v2873
        %v3274 = vpop.f32.mrf.mxu0
        %v3275 = vadd.f32 %v3226, %v3274
        %v3276 = vpop.f32.mrf.mxu0
        %v3277 = vadd.f32 %v3228, %v3276
        %3278 = vmatmul.bf16.gmra.mxu0 %v2877
        %v3279 = vpop.f32.mrf.mxu0
        %v3280 = vadd.f32 %v3231, %v3279
        %v3281 = vpop.f32.mrf.mxu0
        %v3282 = vadd.f32 %v3233, %v3281
        %3283 = vmatmul.bf16.gmra.mxu0 %v2881
        %v3284 = vpop.f32.mrf.mxu0
        %v3285 = vadd.f32 %v3236, %v3284
        %v3286 = vpop.f32.mrf.mxu0
        %v3287 = vadd.f32 %v3238, %v3286
        %3288 = vmatmul.bf16.gmra.mxu0 %v2885
        %v3289 = vpop.f32.mrf.mxu0
        %v3290 = vadd.f32 %v3241, %v3289
        %v3291 = vpop.f32.mrf.mxu0
        %v3292 = vadd.f32 %v3243, %v3291
        %3293 = vdwg.mxu0
        %3294 = vmatpush.bf16.msra.mxu0 %v3114
        %3295 = vmatpush.bf16.msra.mxu0 %v3113
        %3296 = vmatpush.bf16.msra.mxu0 %v3112
        %3297 = vmatpush.bf16.msra.mxu0 %v3111
        %3298 = vmatpush.bf16.msra.mxu0 %v3110
        %3299 = vmatpush.bf16.msra.mxu0 %v3109
        %3300 = vmatpush.bf16.msra.mxu0 %v3108
        %3301 = vmatpush.bf16.msra.mxu0 %v3107
        %3302 = vmatmul.bf16.gmra.mxu0 %v2858
        %v3303 = vpop.f32.mrf.mxu0
        %v3304 = vadd.f32 %v3255, %v3303
        %v3305 = vpop.f32.mrf.mxu0
        %v3306 = vadd.f32 %v3257, %v3305
        %3307 = vmatmul.bf16.gmra.mxu0 %v2862
        %v3308 = vpop.f32.mrf.mxu0
        %v3309 = vadd.f32 %v3260, %v3308
        %v3310 = vpop.f32.mrf.mxu0
        %v3311 = vadd.f32 %v3262, %v3310
        %3312 = vmatmul.bf16.gmra.mxu0 %v2866
        %v3313 = vpop.f32.mrf.mxu0
        %v3314 = vadd.f32 %v3265, %v3313
        %v3315 = vpop.f32.mrf.mxu0
        %v3316 = vadd.f32 %v3267, %v3315
        %3317 = vmatmul.bf16.gmra.mxu0 %v2870
        %v3318 = vpop.f32.mrf.mxu0
        %v3319 = vadd.f32 %v3270, %v3318
        %v3320 = vpop.f32.mrf.mxu0
        %v3321 = vadd.f32 %v3272, %v3320
        %3322 = vmatmul.bf16.gmra.mxu0 %v2874
        %v3323 = vpop.f32.mrf.mxu0
        %v3324 = vadd.f32 %v3275, %v3323
        %v3325 = vpop.f32.mrf.mxu0
        %v3326 = vadd.f32 %v3277, %v3325
        %3327 = vmatmul.bf16.gmra.mxu0 %v2878
        %v3328 = vpop.f32.mrf.mxu0
        %v3329 = vadd.f32 %v3280, %v3328
        %v3330 = vpop.f32.mrf.mxu0
        %v3331 = vadd.f32 %v3282, %v3330
        %3332 = vmatmul.bf16.gmra.mxu0 %v2882
        %v3333 = vpop.f32.mrf.mxu0
        %v3334 = vadd.f32 %v3285, %v3333
        %v3335 = vpop.f32.mrf.mxu0
        %v3336 = vadd.f32 %v3287, %v3335
        %3337 = vmatmul.bf16.gmra.mxu0 %v2886
        %v3338 = vpop.f32.mrf.mxu0
        %v3339 = vadd.f32 %v3290, %v3338
        %v3340 = vpop.f32.mrf.mxu0
        %v3341 = vadd.f32 %v3292, %v3340
        %3342 = vdwg.mxu0
        %v3343 = vadd.f32 %v3304, %v799
        %v3344 = vadd.f32 %v3306, %v800
        %v3345 = vadd.f32 %v3309, %v801
        %v3346 = vadd.f32 %v3311, %v802
        %v3347 = vadd.f32 %v3314, %v803
        %v3348 = vadd.f32 %v3316, %v804
        %v3349 = vadd.f32 %v3319, %v805
        %v3350 = vadd.f32 %v3321, %v806
        %v3351 = vadd.f32 %v3324, %v807
        %v3352 = vadd.f32 %v3326, %v808
        %v3353 = vadd.f32 %v3329, %v809
        %v3354 = vadd.f32 %v3331, %v810
        %v3355 = vadd.f32 %v3334, %v811
        %v3356 = vadd.f32 %v3336, %v812
        %v3357 = vadd.f32 %v3339, %v813
        %v3358 = vadd.f32 %v3341, %v814
        %3359 = vadd.xlane.f32.xlu0 %v3343
        %v3360 = vpop.xlane.xlu0 %3359
        %3361 = vadd.xlane.f32.xlu0 %v3344
        %v3362 = vpop.xlane.xlu0 %3361
        %3363 = vadd.xlane.f32.xlu0 %v3345
        %v3364 = vpop.xlane.xlu0 %3363
        %3365 = vadd.xlane.f32.xlu0 %v3346
        %v3366 = vpop.xlane.xlu0 %3365
        %3367 = vadd.xlane.f32.xlu0 %v3347
        %v3368 = vpop.xlane.xlu0 %3367
        %3369 = vadd.xlane.f32.xlu0 %v3348
        %v3370 = vpop.xlane.xlu0 %3369
        %3371 = vadd.xlane.f32.xlu0 %v3349
        %v3372 = vpop.xlane.xlu0 %3371
        %3373 = vadd.xlane.f32.xlu0 %v3350
        %v3374 = vpop.xlane.xlu0 %3373
        %3375 = vadd.xlane.f32.xlu0 %v3351
        %v3376 = vpop.xlane.xlu0 %3375
        %3377 = vadd.xlane.f32.xlu0 %v3352
        %v3378 = vpop.xlane.xlu0 %3377
        %3379 = vadd.xlane.f32.xlu0 %v3353
        %v3380 = vpop.xlane.xlu0 %3379
        %3381 = vadd.xlane.f32.xlu0 %v3354
        %v3382 = vpop.xlane.xlu0 %3381
        %3383 = vadd.xlane.f32.xlu0 %v3355
        %v3384 = vpop.xlane.xlu0 %3383
        %3385 = vadd.xlane.f32.xlu0 %v3356
        %v3386 = vpop.xlane.xlu0 %3385
        %3387 = vadd.xlane.f32.xlu0 %v3357
        %v3388 = vpop.xlane.xlu0 %3387
        %3389 = vadd.xlane.f32.xlu0 %v3358
        %v3390 = vpop.xlane.xlu0 %3389
        %v3391 = vrcp.pop 128.0
        %v3392 = vmul.f32 128.0, %v3391
        %v3393 = vsub.f32 1.0, %v3392
        %v3394 = vmul.f32 %v3391, %v3393
        %v3395 = vadd.f32 %v3391, %v3394
        %vm3396 = vweird.f32 %v3391
        %v3397 = vsel %vm3396, %v3391, %v3395
        %v3398 = vmul.f32 %v3360, %v3397
        %v3399 = vmul.f32 %v3362, %v3397
        %v3400 = vmul.f32 %v3364, %v3397
        %v3401 = vmul.f32 %v3366, %v3397
        %v3402 = vmul.f32 %v3368, %v3397
        %v3403 = vmul.f32 %v3370, %v3397
        %v3404 = vmul.f32 %v3372, %v3397
        %v3405 = vmul.f32 %v3374, %v3397
        %v3406 = vmul.f32 %v3376, %v3397
        %v3407 = vmul.f32 %v3378, %v3397
        %v3408 = vmul.f32 %v3380, %v3397
        %v3409 = vmul.f32 %v3382, %v3397
        %v3410 = vmul.f32 %v3384, %v3397
        %v3411 = vmul.f32 %v3386, %v3397
        %v3412 = vmul.f32 %v3388, %v3397
        %v3413 = vmul.f32 %v3390, %v3397
        %v3414 = vsub.f32 %v3343, %v3398
        %v3415 = vsub.f32 %v3344, %v3399
        %v3416 = vsub.f32 %v3345, %v3400
        %v3417 = vsub.f32 %v3346, %v3401
        %v3418 = vsub.f32 %v3347, %v3402
        %v3419 = vsub.f32 %v3348, %v3403
        %v3420 = vsub.f32 %v3349, %v3404
        %v3421 = vsub.f32 %v3350, %v3405
        %v3422 = vsub.f32 %v3351, %v3406
        %v3423 = vsub.f32 %v3352, %v3407
        %v3424 = vsub.f32 %v3353, %v3408
        %v3425 = vsub.f32 %v3354, %v3409
        %v3426 = vsub.f32 %v3355, %v3410
        %v3427 = vsub.f32 %v3356, %v3411
        %v3428 = vsub.f32 %v3357, %v3412
        %v3429 = vsub.f32 %v3358, %v3413
        %v3430 = vmul.f32 %v3414, %v3414
        %v3431 = vmul.f32 %v3415, %v3415
        %v3432 = vmul.f32 %v3416, %v3416
        %v3433 = vmul.f32 %v3417, %v3417
        %v3434 = vmul.f32 %v3418, %v3418
        %v3435 = vmul.f32 %v3419, %v3419
        %v3436 = vmul.f32 %v3420, %v3420
        %v3437 = vmul.f32 %v3421, %v3421
        %v3438 = vmul.f32 %v3422, %v3422
        %v3439 = vmul.f32 %v3423, %v3423
        %v3440 = vmul.f32 %v3424, %v3424
        %v3441 = vmul.f32 %v3425, %v3425
        %v3442 = vmul.f32 %v3426, %v3426
        %v3443 = vmul.f32 %v3427, %v3427
        %v3444 = vmul.f32 %v3428, %v3428
        %v3445 = vmul.f32 %v3429, %v3429
        %3446 = vadd.xlane.f32.xlu0 %v3430
        %v3447 = vpop.xlane.xlu0 %3446
        %3448 = vadd.xlane.f32.xlu0 %v3431
        %v3449 = vpop.xlane.xlu0 %3448
        %3450 = vadd.xlane.f32.xlu0 %v3432
        %v3451 = vpop.xlane.xlu0 %3450
        %3452 = vadd.xlane.f32.xlu0 %v3433
        %v3453 = vpop.xlane.xlu0 %3452
        %3454 = vadd.xlane.f32.xlu0 %v3434
        %v3455 = vpop.xlane.xlu0 %3454
        %3456 = vadd.xlane.f32.xlu0 %v3435
        %v3457 = vpop.xlane.xlu0 %3456
        %3458 = vadd.xlane.f32.xlu0 %v3436
        %v3459 = vpop.xlane.xlu0 %3458
        %3460 = vadd.xlane.f32.xlu0 %v3437
        %v3461 = vpop.xlane.xlu0 %3460
        %3462 = vadd.xlane.f32.xlu0 %v3438
        %v3463 = vpop.xlane.xlu0 %3462
        %3464 = vadd.xlane.f32.xlu0 %v3439
        %v3465 = vpop.xlane.xlu0 %3464
        %3466 = vadd.xlane.f32.xlu0 %v3440
        %v3467 = vpop.xlane.xlu0 %3466
        %3468 = vadd.xlane.f32.xlu0 %v3441
        %v3469 = vpop.xlane.xlu0 %3468
        %3470 = vadd.xlane.f32.xlu0 %v3442
        %v3471 = vpop.xlane.xlu0 %3470
        %3472 = vadd.xlane.f32.xlu0 %v3443
        %v3473 = vpop.xlane.xlu0 %3472
        %3474 = vadd.xlane.f32.xlu0 %v3444
        %v3475 = vpop.xlane.xlu0 %3474
        %3476 = vadd.xlane.f32.xlu0 %v3445
        %v3477 = vpop.xlane.xlu0 %3476
        %v3478 = vmul.f32 %v3447, %v3397
        %v3479 = vmul.f32 %v3449, %v3397
        %v3480 = vmul.f32 %v3451, %v3397
        %v3481 = vmul.f32 %v3453, %v3397
        %v3482 = vmul.f32 %v3455, %v3397
        %v3483 = vmul.f32 %v3457, %v3397
        %v3484 = vmul.f32 %v3459, %v3397
        %v3485 = vmul.f32 %v3461, %v3397
        %v3486 = vmul.f32 %v3463, %v3397
        %v3487 = vmul.f32 %v3465, %v3397
        %v3488 = vmul.f32 %v3467, %v3397
        %v3489 = vmul.f32 %v3469, %v3397
        %v3490 = vmul.f32 %v3471, %v3397
        %v3491 = vmul.f32 %v3473, %v3397
        %v3492 = vmul.f32 %v3475, %v3397
        %v3493 = vmul.f32 %v3477, %v3397
        %v3494 = vadd.f32 %v3478, 1e-12
        %v3495 = vadd.f32 %v3479, 1e-12
        %v3496 = vadd.f32 %v3480, 1e-12
        %v3497 = vadd.f32 %v3481, 1e-12
        %v3498 = vadd.f32 %v3482, 1e-12
        %v3499 = vadd.f32 %v3483, 1e-12
        %v3500 = vadd.f32 %v3484, 1e-12
        %v3501 = vadd.f32 %v3485, 1e-12
        %v3502 = vadd.f32 %v3486, 1e-12
        %v3503 = vadd.f32 %v3487, 1e-12
        %v3504 = vadd.f32 %v3488, 1e-12
        %v3505 = vadd.f32 %v3489, 1e-12
        %v3506 = vadd.f32 %v3490, 1e-12
        %v3507 = vadd.f32 %v3491, 1e-12
        %v3508 = vadd.f32 %v3492, 1e-12
        %v3509 = vadd.f32 %v3493, 1e-12
        %v3510 = vrsqrt.pop %v3494
        %v3511 = vmul.f32 %v3510, %v3494
        %v3512 = vmul.f32 %v3511, %v3510
        %v3513 = vmul.f32 0.5, %v3512
        %v3514 = vsub.f32 1.5, %v3513
        %v3515 = vmul.f32 %v3510, %v3514
        %vm3516 = vweird.f32 %v3494
        %vm3517 = vweird.f32 %v3510
        %vm3518 = vmor %vm3516, %vm3517
        %v3519 = vsel %vm3518, %v3510, %v3515
        %v3520 = vrsqrt.pop %v3495
        %v3521 = vmul.f32 %v3520, %v3495
        %v3522 = vmul.f32 %v3521, %v3520
        %v3523 = vmul.f32 0.5, %v3522
        %v3524 = vsub.f32 1.5, %v3523
        %v3525 = vmul.f32 %v3520, %v3524
        %vm3526 = vweird.f32 %v3495
        %vm3527 = vweird.f32 %v3520
        %vm3528 = vmor %vm3526, %vm3527
        %v3529 = vsel %vm3528, %v3520, %v3525
        %v3530 = vrsqrt.pop %v3496
        %v3531 = vmul.f32 %v3530, %v3496
        %v3532 = vmul.f32 %v3531, %v3530
        %v3533 = vmul.f32 0.5, %v3532
        %v3534 = vsub.f32 1.5, %v3533
        %v3535 = vmul.f32 %v3530, %v3534
        %vm3536 = vweird.f32 %v3496
        %vm3537 = vweird.f32 %v3530
        %vm3538 = vmor %vm3536, %vm3537
        %v3539 = vsel %vm3538, %v3530, %v3535
        %v3540 = vrsqrt.pop %v3497
        %v3541 = vmul.f32 %v3540, %v3497
        %v3542 = vmul.f32 %v3541, %v3540
        %v3543 = vmul.f32 0.5, %v3542
        %v3544 = vsub.f32 1.5, %v3543
        %v3545 = vmul.f32 %v3540, %v3544
        %vm3546 = vweird.f32 %v3497
        %vm3547 = vweird.f32 %v3540
        %vm3548 = vmor %vm3546, %vm3547
        %v3549 = vsel %vm3548, %v3540, %v3545
        %v3550 = vrsqrt.pop %v3498
        %v3551 = vmul.f32 %v3550, %v3498
        %v3552 = vmul.f32 %v3551, %v3550
        %v3553 = vmul.f32 0.5, %v3552
        %v3554 = vsub.f32 1.5, %v3553
        %v3555 = vmul.f32 %v3550, %v3554
        %vm3556 = vweird.f32 %v3498
        %vm3557 = vweird.f32 %v3550
        %vm3558 = vmor %vm3556, %vm3557
        %v3559 = vsel %vm3558, %v3550, %v3555
        %v3560 = vrsqrt.pop %v3499
        %v3561 = vmul.f32 %v3560, %v3499
        %v3562 = vmul.f32 %v3561, %v3560
        %v3563 = vmul.f32 0.5, %v3562
        %v3564 = vsub.f32 1.5, %v3563
        %v3565 = vmul.f32 %v3560, %v3564
        %vm3566 = vweird.f32 %v3499
        %vm3567 = vweird.f32 %v3560
        %vm3568 = vmor %vm3566, %vm3567
        %v3569 = vsel %vm3568, %v3560, %v3565
        %v3570 = vrsqrt.pop %v3500
        %v3571 = vmul.f32 %v3570, %v3500
        %v3572 = vmul.f32 %v3571, %v3570
        %v3573 = vmul.f32 0.5, %v3572
        %v3574 = vsub.f32 1.5, %v3573
        %v3575 = vmul.f32 %v3570, %v3574
        %vm3576 = vweird.f32 %v3500
        %vm3577 = vweird.f32 %v3570
        %vm3578 = vmor %vm3576, %vm3577
        %v3579 = vsel %vm3578, %v3570, %v3575
        %v3580 = vrsqrt.pop %v3501
        %v3581 = vmul.f32 %v3580, %v3501
        %v3582 = vmul.f32 %v3581, %v3580
        %v3583 = vmul.f32 0.5, %v3582
        %v3584 = vsub.f32 1.5, %v3583
        %v3585 = vmul.f32 %v3580, %v3584
        %vm3586 = vweird.f32 %v3501
        %vm3587 = vweird.f32 %v3580
        %vm3588 = vmor %vm3586, %vm3587
        %v3589 = vsel %vm3588, %v3580, %v3585
        %v3590 = vrsqrt.pop %v3502
        %v3591 = vmul.f32 %v3590, %v3502
        %v3592 = vmul.f32 %v3591, %v3590
        %v3593 = vmul.f32 0.5, %v3592
        %v3594 = vsub.f32 1.5, %v3593
        %v3595 = vmul.f32 %v3590, %v3594
        %vm3596 = vweird.f32 %v3502
        %vm3597 = vweird.f32 %v3590
        %vm3598 = vmor %vm3596, %vm3597
        %v3599 = vsel %vm3598, %v3590, %v3595
        %v3600 = vrsqrt.pop %v3503
        %v3601 = vmul.f32 %v3600, %v3503
        %v3602 = vmul.f32 %v3601, %v3600
        %v3603 = vmul.f32 0.5, %v3602
        %v3604 = vsub.f32 1.5, %v3603
        %v3605 = vmul.f32 %v3600, %v3604
        %vm3606 = vweird.f32 %v3503
        %vm3607 = vweird.f32 %v3600
        %vm3608 = vmor %vm3606, %vm3607
        %v3609 = vsel %vm3608, %v3600, %v3605
        %v3610 = vrsqrt.pop %v3504
        %v3611 = vmul.f32 %v3610, %v3504
        %v3612 = vmul.f32 %v3611, %v3610
        %v3613 = vmul.f32 0.5, %v3612
        %v3614 = vsub.f32 1.5, %v3613
        %v3615 = vmul.f32 %v3610, %v3614
        %vm3616 = vweird.f32 %v3504
        %vm3617 = vweird.f32 %v3610
        %vm3618 = vmor %vm3616, %vm3617
        %v3619 = vsel %vm3618, %v3610, %v3615
        %v3620 = vrsqrt.pop %v3505
        %v3621 = vmul.f32 %v3620, %v3505
        %v3622 = vmul.f32 %v3621, %v3620
        %v3623 = vmul.f32 0.5, %v3622
        %v3624 = vsub.f32 1.5, %v3623
        %v3625 = vmul.f32 %v3620, %v3624
        %vm3626 = vweird.f32 %v3505
        %vm3627 = vweird.f32 %v3620
        %vm3628 = vmor %vm3626, %vm3627
        %v3629 = vsel %vm3628, %v3620, %v3625
        %v3630 = vrsqrt.pop %v3506
        %v3631 = vmul.f32 %v3630, %v3506
        %v3632 = vmul.f32 %v3631, %v3630
        %v3633 = vmul.f32 0.5, %v3632
        %v3634 = vsub.f32 1.5, %v3633
        %v3635 = vmul.f32 %v3630, %v3634
        %vm3636 = vweird.f32 %v3506
        %vm3637 = vweird.f32 %v3630
        %vm3638 = vmor %vm3636, %vm3637
        %v3639 = vsel %vm3638, %v3630, %v3635
        %v3640 = vrsqrt.pop %v3507
        %v3641 = vmul.f32 %v3640, %v3507
        %v3642 = vmul.f32 %v3641, %v3640
        %v3643 = vmul.f32 0.5, %v3642
        %v3644 = vsub.f32 1.5, %v3643
        %v3645 = vmul.f32 %v3640, %v3644
        %vm3646 = vweird.f32 %v3507
        %vm3647 = vweird.f32 %v3640
        %vm3648 = vmor %vm3646, %vm3647
        %v3649 = vsel %vm3648, %v3640, %v3645
        %v3650 = vrsqrt.pop %v3508
        %v3651 = vmul.f32 %v3650, %v3508
        %v3652 = vmul.f32 %v3651, %v3650
        %v3653 = vmul.f32 0.5, %v3652
        %v3654 = vsub.f32 1.5, %v3653
        %v3655 = vmul.f32 %v3650, %v3654
        %vm3656 = vweird.f32 %v3508
        %vm3657 = vweird.f32 %v3650
        %vm3658 = vmor %vm3656, %vm3657
        %v3659 = vsel %vm3658, %v3650, %v3655
        %v3660 = vrsqrt.pop %v3509
        %v3661 = vmul.f32 %v3660, %v3509
        %v3662 = vmul.f32 %v3661, %v3660
        %v3663 = vmul.f32 0.5, %v3662
        %v3664 = vsub.f32 1.5, %v3663
        %v3665 = vmul.f32 %v3660, %v3664
        %vm3666 = vweird.f32 %v3509
        %vm3667 = vweird.f32 %v3660
        %vm3668 = vmor %vm3666, %vm3667
        %v3669 = vsel %vm3668, %v3660, %v3665
        %v3670 = vmul.f32 %v3414, %v3519
        %v3671 = vmul.f32 %v3415, %v3529
        %v3672 = vmul.f32 %v3416, %v3539
        %v3673 = vmul.f32 %v3417, %v3549
        %v3674 = vmul.f32 %v3418, %v3559
        %v3675 = vmul.f32 %v3419, %v3569
        %v3676 = vmul.f32 %v3420, %v3579
        %v3677 = vmul.f32 %v3421, %v3589
        %v3678 = vmul.f32 %v3422, %v3599
        %v3679 = vmul.f32 %v3423, %v3609
        %v3680 = vmul.f32 %v3424, %v3619
        %v3681 = vmul.f32 %v3425, %v3629
        %v3682 = vmul.f32 %v3426, %v3639
        %v3683 = vmul.f32 %v3427, %v3649
        %v3684 = vmul.f32 %v3428, %v3659
        %v3685 = vmul.f32 %v3429, %v3669
        %v3686 = vld [vmem:[%s794] sm:$0x1]
        %v3688 = vperm.slane %v3686, 0
        %v3690 = vmul.f32 %v3670, %v3688
        %v3691 = vmul.f32 %v3671, %v3688
        %v3692 = vmul.f32 %v3672, %v3688
        %v3693 = vmul.f32 %v3673, %v3688
        %v3694 = vmul.f32 %v3674, %v3688
        %v3695 = vmul.f32 %v3675, %v3688
        %v3696 = vmul.f32 %v3676, %v3688
        %v3697 = vmul.f32 %v3677, %v3688
        %v3698 = vmul.f32 %v3678, %v3688
        %v3699 = vmul.f32 %v3679, %v3688
        %v3700 = vmul.f32 %v3680, %v3688
        %v3701 = vmul.f32 %v3681, %v3688
        %v3702 = vmul.f32 %v3682, %v3688
        %v3703 = vmul.f32 %v3683, %v3688
        %v3704 = vmul.f32 %v3684, %v3688
        %v3705 = vmul.f32 %v3685, %v3688
        %v3706 = vld [vmem:[%s797] sm:$0x1]
        %v3708 = vperm.slane %v3706, 0
        %v3710 = vadd.f32 %v3690, %v3708
        %v3711 = vadd.f32 %v3691, %v3708
        %v3712 = vadd.f32 %v3692, %v3708
        %v3713 = vadd.f32 %v3693, %v3708
        %v3714 = vadd.f32 %v3694, %v3708
        %v3715 = vadd.f32 %v3695, %v3708
        %v3716 = vadd.f32 %v3696, %v3708
        %v3717 = vadd.f32 %v3697, %v3708
        %v3718 = vadd.f32 %v3698, %v3708
        %v3719 = vadd.f32 %v3699, %v3708
        %v3720 = vadd.f32 %v3700, %v3708
        %v3721 = vadd.f32 %v3701, %v3708
        %v3722 = vadd.f32 %v3702, %v3708
        %v3723 = vadd.f32 %v3703, %v3708
        %v3724 = vadd.f32 %v3704, %v3708
        %v3725 = vadd.f32 %v3705, %v3708
        %v3726 = vpack.c.bf16 %v3710, %v3710
        %v3727 = vpack.c.bf16 %v3711, %v3711
        %v3728 = vpack.c.bf16 %v3712, %v3712
        %v3729 = vpack.c.bf16 %v3713, %v3713
        %v3730 = vpack.c.bf16 %v3714, %v3714
        %v3731 = vpack.c.bf16 %v3715, %v3715
        %v3732 = vpack.c.bf16 %v3716, %v3716
        %v3733 = vpack.c.bf16 %v3717, %v3717
        %v3734 = vpack.c.bf16 %v3718, %v3718
        %v3735 = vpack.c.bf16 %v3719, %v3719
        %v3736 = vpack.c.bf16 %v3720, %v3720
        %v3737 = vpack.c.bf16 %v3721, %v3721
        %v3738 = vpack.c.bf16 %v3722, %v3722
        %v3739 = vpack.c.bf16 %v3723, %v3723
        %v3740 = vpack.c.bf16 %v3724, %v3724
        %v3741 = vpack.c.bf16 %v3725, %v3725
        %v3742 = vrot.slane %v3734, 4
        %vm3743 = vcmask 1047556
        %v3744 = vsel %vm3743, %v3742, %v3726
        %v3746 = vunpack.c.l.s4 1983009808
        %v3747 = vunpack.c.0.s8 %v3746
        %v3748 = vperm.slane %v3744, %v3747
        %v3749 = vrot.slane %v3738, 4
        %v3750 = vsel %vm3743, %v3749, %v3730
        %v3752 = vunpack.c.l.s4 1983009808
        %v3753 = vunpack.c.0.s8 %v3752
        %v3754 = vperm.slane %v3750, %v3753
        %v3755 = vrot.slane %v3754, 4
        %v3756 = vsel %vm3743, %v3755, %v3748
        %v3757 = vrot.slane %v3748, 4
        %v3758 = vsel %vm3743, %v3754, %v3757
        %v3760 = vunpack.c.l.s4 1934713408
        %v3761 = vunpack.c.0.s8 %v3760
        %v3762 = vperm.slane %v3756, %v3761
        %v3764 = vunpack.c.l.s4 1934713408
        %v3765 = vunpack.c.0.s8 %v3764
        %v3766 = vperm.slane %v3758, %v3765
        %v3767 = vrot.slane %v3762, 4
        %v3768 = vsel %vm3743, 0, %v3767
        %v3769 = vrot.slane %v3766, 4
        %v3770 = vsel %vm3743, 0, %v3769
        %v3771 = vrot.slane %v3736, 4
        %v3772 = vsel %vm3743, %v3771, %v3728
        %v3774 = vunpack.c.l.s4 1983009808
        %v3775 = vunpack.c.0.s8 %v3774
        %v3776 = vperm.slane %v3772, %v3775
        %v3777 = vrot.slane %v3740, 4
        %v3778 = vsel %vm3743, %v3777, %v3732
        %v3780 = vunpack.c.l.s4 1983009808
        %v3781 = vunpack.c.0.s8 %v3780
        %v3782 = vperm.slane %v3778, %v3781
        %v3783 = vrot.slane %v3782, 4
        %v3784 = vsel %vm3743, %v3783, %v3776
        %v3785 = vrot.slane %v3776, 4
        %v3786 = vsel %vm3743, %v3782, %v3785
        %v3788 = vunpack.c.l.s4 1934713408
        %v3789 = vunpack.c.0.s8 %v3788
        %v3790 = vperm.slane %v3784, %v3789
        %v3792 = vunpack.c.l.s4 1934713408
        %v3793 = vunpack.c.0.s8 %v3792
        %v3794 = vperm.slane %v3786, %v3793
        %v3795 = vrot.slane %v3790, 4
        %v3796 = vsel %vm3743, 0, %v3795
        %v3797 = vrot.slane %v3794, 4
        %v3798 = vsel %vm3743, 0, %v3797
        %v3799 = vrot.slane %v3735, 4
        %v3800 = vsel %vm3743, %v3799, %v3727
        %v3802 = vunpack.c.l.s4 1983009808
        %v3803 = vunpack.c.0.s8 %v3802
        %v3804 = vperm.slane %v3800, %v3803
        %v3805 = vrot.slane %v3739, 4
        %v3806 = vsel %vm3743, %v3805, %v3731
        %v3808 = vunpack.c.l.s4 1983009808
        %v3809 = vunpack.c.0.s8 %v3808
        %v3810 = vperm.slane %v3806, %v3809
        %v3811 = vrot.slane %v3810, 4
        %v3812 = vsel %vm3743, %v3811, %v3804
        %v3813 = vrot.slane %v3804, 4
        %v3814 = vsel %vm3743, %v3810, %v3813
        %v3816 = vunpack.c.l.s4 1934713408
        %v3817 = vunpack.c.0.s8 %v3816
        %v3818 = vperm.slane %v3812, %v3817
        %v3820 = vunpack.c.l.s4 1934713408
        %v3821 = vunpack.c.0.s8 %v3820
        %v3822 = vperm.slane %v3814, %v3821
        %v3823 = vrot.slane %v3818, 4
        %v3824 = vsel %vm3743, 0, %v3823
        %v3825 = vrot.slane %v3822, 4
        %v3826 = vsel %vm3743, 0, %v3825
        %v3827 = vrot.slane %v3737, 4
        %v3828 = vsel %vm3743, %v3827, %v3729
        %v3830 = vunpack.c.l.s4 1983009808
        %v3831 = vunpack.c.0.s8 %v3830
        %v3832 = vperm.slane %v3828, %v3831
        %v3833 = vrot.slane %v3741, 4
        %v3834 = vsel %vm3743, %v3833, %v3733
        %v3836 = vunpack.c.l.s4 1983009808
        %v3837 = vunpack.c.0.s8 %v3836
        %v3838 = vperm.slane %v3834, %v3837
        %v3839 = vrot.slane %v3838, 4
        %v3840 = vsel %vm3743, %v3839, %v3832
        %v3841 = vrot.slane %v3832, 4
        %v3842 = vsel %vm3743, %v3838, %v3841
        %v3844 = vunpack.c.l.s4 1934713408
        %v3845 = vunpack.c.0.s8 %v3844
        %v3846 = vperm.slane %v3840, %v3845
        %v3848 = vunpack.c.l.s4 1934713408
        %v3849 = vunpack.c.0.s8 %v3848
        %v3850 = vperm.slane %v3842, %v3849
        %v3851 = vrot.slane %v3846, 4
        %v3852 = vsel %vm3743, 0, %v3851
        %v3853 = vrot.slane %v3850, 4
        %v3854 = vsel %vm3743, 0, %v3853
        %v3857 = vpack.i.b16 %v3790, %v3762
        %v3859 = vshrl.u32 %v3762, 16
        %v3860 = vshrl.u32 %v3790, 16
        %v3861 = vpack.i.b16 %v3860, %v3859
        %v3865 = vpack.i.b16 %v3796, %v3768
        %v3867 = vshrl.u32 %v3768, 16
        %v3868 = vshrl.u32 %v3796, 16
        %v3869 = vpack.i.b16 %v3868, %v3867
        %v3873 = vpack.i.b16 %v3794, %v3766
        %v3875 = vshrl.u32 %v3766, 16
        %v3876 = vshrl.u32 %v3794, 16
        %v3877 = vpack.i.b16 %v3876, %v3875
        %v3881 = vpack.i.b16 %v3798, %v3770
        %v3883 = vshrl.u32 %v3770, 16
        %v3884 = vshrl.u32 %v3798, 16
        %v3885 = vpack.i.b16 %v3884, %v3883
        %v3889 = vpack.i.b16 %v3846, %v3818
        %v3891 = vshrl.u32 %v3818, 16
        %v3892 = vshrl.u32 %v3846, 16
        %v3893 = vpack.i.b16 %v3892, %v3891
        %v3897 = vpack.i.b16 %v3852, %v3824
        %v3899 = vshrl.u32 %v3824, 16
        %v3900 = vshrl.u32 %v3852, 16
        %v3901 = vpack.i.b16 %v3900, %v3899
        %v3905 = vpack.i.b16 %v3850, %v3822
        %v3907 = vshrl.u32 %v3822, 16
        %v3908 = vshrl.u32 %v3850, 16
        %v3909 = vpack.i.b16 %v3908, %v3907
        %v3913 = vpack.i.b16 %v3854, %v3826
        %v3915 = vshrl.u32 %v3826, 16
        %v3916 = vshrl.u32 %v3854, 16
        %v3917 = vpack.i.b16 %v3916, %v3915
        %3919 = vst [vmem:[%s781] sm:$0xf] %v3857
        %3920 = vst [vmem:[%s781 + $0x4] sm:$0xf] %v3861
        %3921 = vst [vmem:[%s781 + $0x8] sm:$0xf] %v3865
        %3922 = vst [vmem:[%s781 + $0xc] sm:$0xf] %v3869
        %3923 = vst [vmem:[%s781 + $0x10] sm:$0xf] %v3873
        %3924 = vst [vmem:[%s781 + $0x14] sm:$0xf] %v3877
        %3925 = vst [vmem:[%s781 + $0x18] sm:$0xf] %v3881
        %3926 = vst [vmem:[%s781 + $0x1c] sm:$0xf] %v3885
        %3927 = vst [vmem:[%s781 + $0x20] sm:$0xf] %v3889
        %3928 = vst [vmem:[%s781 + $0x24] sm:$0xf] %v3893
        %3929 = vst [vmem:[%s781 + $0x28] sm:$0xf] %v3897
        %3930 = vst [vmem:[%s781 + $0x2c] sm:$0xf] %v3901
        %3931 = vst [vmem:[%s781 + $0x30] sm:$0xf] %v3905
        %3932 = vst [vmem:[%s781 + $0x34] sm:$0xf] %v3909
        %3933 = vst [vmem:[%s781 + $0x38] sm:$0xf] %v3913
        %3934 = vst [vmem:[%s781 + $0x3c] sm:$0xf] %v3917
        %s3935 = sand.u32 %s381, 1
        %s3936 = scalar_lea.sflag [#allocation4], %s3935
        %s3937 = sand.u32 %s381, 1
        %s3938 = smul.addr %s3937, 64
        %s3939 = scalar_lea.vmem [#allocation16], %s3938
        // Predicated region
        $region101: #{tpu_custom_call.1} parent=67 // pred_check
          %p3940 = pneg %p391
        $region102: #{tpu_custom_call.1} parent=67 // pred_check_branch
          %3942 = sbr.rel (%p3940) target = $region104
        $region103: #{tpu_custom_call.1} parent=67 // pred_region
          %3944 = vsyncadd %s3936, 0
          %s3945 = smul.addr %s45, 16
          %s3946 = sadd.s32 %s46, %s3945
          %s3947 = smul.addr %s3946, 4
          %s3948 = scalar_lea.hbm %s12, %s3947
          %s3949 = sshll.u32 %s3939, 4
          %s3950 = int_to_ptr.vmem [resolvable:$true] %s3949
          %s3951 = sshll.u32 %s3948, 4
          %s3952 = int_to_ptr.hbm [resolvable:$true] %s3951
          %3957 = dma.vmem_to_hbm [thread:$0]  %s3950, 1024, %s3952, %s3936, 64, 64, 4
        $region104: #{tpu_custom_call.1} parent=67 // pred_fallthru
          _
      $region68: #{tpu_custom_call.1} parent=5 // pred_fallthru
        _
      %p3958 = scmp.le.s32.totalorder 2, %s36
      // Predicated region
      $region105: #{tpu_custom_call.1} parent=5 // pred_check
        %p3959 = pneg %p3958
      $region106: #{tpu_custom_call.1} parent=5 // pred_check_branch
        %3961 = sbr.rel (%p3959) target = $region108
      $region107: #{tpu_custom_call.1} parent=5 // pred_region
        %s3962 = ssub.s32 %s36, 2
        // Predicated region
        $region109: #{tpu_custom_call.1} parent=107 // pred_check
          %p3963 = pneg %p397
        $region110: #{tpu_custom_call.1} parent=107 // pred_check_branch
          %3965 = sbr.rel (%p3963) target = $region112
        $region111: #{tpu_custom_call.1} parent=107 // pred_region
          %s3966 = sand.u32 %s382, 1
          %s3967 = scalar_lea.sflag [#allocation4], %s3966
          %s3968 = sand.u32 %s382, 1
          %s3969 = smul.addr %s3968, 64
          %s3970 = scalar_lea.vmem [#allocation16], %s3969
          %3972 = dma.done %s3967, 1024
        $region112: #{tpu_custom_call.1} parent=107 // pred_fallthru
          _
      $region108: #{tpu_custom_call.1} parent=5 // pred_fallthru
        _
    $region6: #{tpu_custom_call.1} parent=1 // loop_footer
      %s40 = sadd.s32 1, %s36
    $region7: #{tpu_custom_call.1} parent=1 // loop_footer_branch
      %35 = sbr.rel target = $region3
    $region8: #{tpu_custom_call.1} parent=1 // loop_exit
      _
    %3973 = vsyncpa [#allocation3], 1
    %s3974 = scalar_lea.sflag [#allocation3], 1
    %3975 = vsyncpa %s3974, 1
    %3976 = vsyncpa [#allocation6], 1
    %s3977 = scalar_lea.sflag [#allocation6], 1
    %3978 = vsyncpa %s3977, 1
    %3979 = vsyncpa [#allocation9], 1
    %s3980 = scalar_lea.sflag [#allocation9], 1
    %3981 = vsyncpa %s3980, 1
    %3982 = vsyncpa [#allocation12], 1
    %s3983 = scalar_lea.sflag [#allocation12], 1
    %3984 = vsyncpa %s3983, 1
    %3985 = vsyncpa [#allocation15], 1
    %s3986 = scalar_lea.sflag [#allocation15], 1
    %3987 = vsyncpa %s3986, 1
    %3988 = vsyncpa [#allocation4], 1
    %s3989 = scalar_lea.sflag [#allocation4], 1
    %3990 = vsyncpa %s3989, 1

</llo_original>
